<compile_context>
chip_gen: v5e
topology: v5e:2x2
jax: 0.10.0
libtpu: 0.0.40
codegen_flags: <defaults>
</compile_context>

<pallas_src>
import jax
import jax.numpy as jnp
import numpy as np
from jax.experimental import pallas as pl
from jax.experimental.pallas import tpu as pltpu

LEAKY_SLOPE = 0.2
BN_EPS = 0.8                    # nn.BatchNorm1d(out_feat, 0.8) -> eps=0.8
PARAM_DTYPE = jnp.bfloat16      # weight streaming dtype (f32 MXU accumulation)
LANE = 128


def _generator_kernel(z_ref,
                      w1_ref, b1_ref,
                      w2_ref, g2_ref, be2_ref,
                      w3_ref, g3_ref, be3_ref,
                      w4_ref, g4_ref, be4_ref,
                      w5_ref, b5_ref,
                      o_ref):
    """Fully fused Generator forward (single kernel body, all operands VMEM)."""
    inv_b = jnp.float32(1.0 / z_ref.shape[0])

    def linear(h_f32, w_ref, b_ref=None):
        # bf16 x bf16 -> f32 accumulation on the MXU.
        y = jnp.dot(h_f32.astype(w_ref.dtype), w_ref[...],
                    preferred_element_type=jnp.float32)
        if b_ref is not None:
            y = y + b_ref[...].astype(jnp.float32)
        return y

    def leaky(y):
        # max(y, 0.2*y) == LeakyReLU(0.2) for slope < 1.
        return jnp.maximum(y, LEAKY_SLOPE * y)

    def bn_leaky(y, g_ref, be_ref):
        # Train-mode BatchNorm1d with centered (numerically safe) variance.
        # The upstream Linear bias is omitted: it cancels exactly under the
        # batch-mean subtraction.
        mean = jnp.sum(y, axis=0, keepdims=True) * inv_b
        yc = y - mean
        var = jnp.sum(yc * yc, axis=0, keepdims=True) * inv_b   # biased var
        scale = g_ref[...] * jax.lax.rsqrt(var + BN_EPS)
        return leaky(yc * scale + be_ref[...])

    h = leaky(linear(z_ref[...].astype(jnp.float32), w1_ref, b1_ref))
    h = bn_leaky(linear(h, w2_ref), g2_ref, be2_ref)
    h = bn_leaky(linear(h, w3_ref), g3_ref, be3_ref)
    h = bn_leaky(linear(h, w4_ref), g4_ref, be4_ref)
    o_ref[...] = linear(h, w5_ref, b5_ref).astype(o_ref.dtype)


def generator_forward(z, params, r_shape):
    """Full Generator forward.  z: (B, latent_dim) float32."""
    batch = z.shape[0]
    out_dim = int(np.prod(r_shape))

    p1, p2, p3, p4, p5 = params
    padded_out = p5["w"].shape[1]          # pre-padded to a LANE multiple

    # Biases of BN layers are intentionally NOT passed: with train-mode BN the
    # Linear bias cancels exactly under the batch-mean subtraction.
    args = (
        z,
        p1["w"], p1["b"],
        p2["w"], p2["gamma"], p2["beta"],
        p3["w"], p3["gamma"], p3["beta"],
        p4["w"], p4["gamma"], p4["beta"],
        p5["w"], p5["b"],
    )

    vmem = pltpu.MemorySpace.VMEM
    out = pl.pallas_call(
        _generator_kernel,
        out_shape=jax.ShapeDtypeStruct((batch, padded_out), jnp.float32),
        in_specs=[pl.BlockSpec(memory_space=vmem)] * len(args),
        out_specs=pl.BlockSpec(memory_space=vmem),
        compiler_params=pltpu.CompilerParams(
            # Explicit, v7x-safe scoped VMEM budget (actual use ~4 MiB).
            vmem_limit_bytes=32 * 1024 * 1024),
    )(*args)

    return out[:, :out_dim].reshape(batch, *r_shape)


def generator_reference(z, params, r_shape):
    """Pure-JAX reference mirroring the PyTorch module (train-mode BN)."""
    p1, p2, p3, p4, p5 = params
    out_dim = int(np.prod(r_shape))

    def linear(h, p, use_bias=True):
        y = jnp.dot(h.astype(p["w"].dtype), p["w"],
                    preferred_element_type=jnp.float32)
        return y + p["b"] if use_bias else y

    def leaky(y):
        return jnp.maximum(y, LEAKY_SLOPE * y)

    def bn(y, p):
        mean = jnp.mean(y, axis=0, keepdims=True)
        var = jnp.mean((y - mean) ** 2, axis=0, keepdims=True)
        return (y - mean) * (p["gamma"] * jax.lax.rsqrt(var + BN_EPS)) + p["beta"]

    h = leaky(linear(z.astype(jnp.float32), p1))
    h = leaky(bn(linear(h, p2), p2))        # Linear bias kept: cancels under BN
    h = leaky(bn(linear(h, p3), p3))
    h = leaky(bn(linear(h, p4), p4))
    y = linear(h, p5)
    return y[:, :out_dim].reshape(z.shape[0], *r_shape)


def init_params(key, latent_dim, r_shape):
    """PyTorch-style uniform +-1/sqrt(fan_in) init; last layer pre-padded."""
    out_dim = int(np.prod(r_shape))
    dims = [latent_dim, 128, 256, 512, 1024, out_dim]
    padded_out = ((out_dim + LANE - 1) // LANE) * LANE
    params = []
    for i in range(len(dims) - 1):
        fan_in, fan_out = dims[i], dims[i + 1]
        key, k_w, k_b = jax.random.split(key, 3)
        bound = 1.0 / np.sqrt(fan_in)
        w = jax.random.uniform(k_w, (fan_in, fan_out), jnp.float32, -bound, bound)
        b = jax.random.uniform(k_b, (1, fan_out), jnp.float32, -bound, bound)
        if i == len(dims) - 2 and padded_out != fan_out:
            # Pre-pad the final layer to a 128-lane multiple ONCE (lane-dense
            # kernel stores, no per-call pad in the hot path).
            w = jnp.pad(w, ((0, 0), (0, padded_out - fan_out)))
            b = jnp.pad(b, ((0, 0), (0, padded_out - fan_out)))
        params.append(dict(
            w=w.astype(PARAM_DTYPE),                 # bf16 weights for the MXU
            b=b,                                     # f32 bias
            gamma=jnp.ones((1, w.shape[1]), jnp.float32),   # BN weight
            beta=jnp.zeros((1, w.shape[1]), jnp.float32),   # BN bias
        ))
    return params


if __name__ == "__main__":
    latent_dim = 32
    n_rows, n_cols = 8, 8
    # 256 rows: fills MXU systolic rows on v6e/v7x (and 2x the v5e MXU rows);
    # train-mode BN statistics are over this full batch.
    batch = 256

    key = jax.random.PRNGKey(0)
    key, k_z = jax.random.split(key)
    z = jax.random.normal(k_z, (batch, latent_dim), jnp.float32)

    params = init_params(key, latent_dim, (n_rows, n_cols))

    fwd = jax.jit(generator_forward, static_argnames=("r_shape",))
    img = jax.block_until_ready(fwd(z, params, (n_rows, n_cols)))

    assert img.shape == (batch, n_rows, n_cols), img.shape
    assert img.dtype == jnp.float32
    assert bool(jnp.all(jnp.isfinite(img)))

    ref = generator_reference(z, params, (n_rows, n_cols))
    np.testing.assert_allclose(np.asarray(img), np.asarray(ref),
                               rtol=2e-2, atol=2e-2)
    print("KERNEL_OK")
</pallas_src>

<mosaic_0001>
module attributes {stable_mosaic.version = 11 : i64} {
  func.func @_generator_kernel(%arg0: memref<256x32xf32, #tpu.memory_space<vmem>>, %arg1: memref<32x128xbf16, #tpu.memory_space<vmem>>, %arg2: memref<1x128xf32, #tpu.memory_space<vmem>>, %arg3: memref<128x256xbf16, #tpu.memory_space<vmem>>, %arg4: memref<1x256xf32, #tpu.memory_space<vmem>>, %arg5: memref<1x256xf32, #tpu.memory_space<vmem>>, %arg6: memref<256x512xbf16, #tpu.memory_space<vmem>>, %arg7: memref<1x512xf32, #tpu.memory_space<vmem>>, %arg8: memref<1x512xf32, #tpu.memory_space<vmem>>, %arg9: memref<512x1024xbf16, #tpu.memory_space<vmem>>, %arg10: memref<1x1024xf32, #tpu.memory_space<vmem>>, %arg11: memref<1x1024xf32, #tpu.memory_space<vmem>>, %arg12: memref<1024x128xbf16, #tpu.memory_space<vmem>>, %arg13: memref<1x128xf32, #tpu.memory_space<vmem>>, %arg14: memref<256x128xf32, #tpu.memory_space<vmem>>) attributes {dimension_semantics = [], scalar_prefetch = 0 : i64, scratch_operands = 0 : i64, tpu.core_type = #tpu.core_type<tc>} {
    %c0 = arith.constant 0 : index
    %c0_0 = arith.constant 0 : index
    %0 = vector.load %arg0[%c0, %c0_0] : memref<256x32xf32, #tpu.memory_space<vmem>>, vector<256x32xf32>
    %1 = arith.truncf %0 : vector<256x32xf32> to vector<256x32xbf16>
    %c0_1 = arith.constant 0 : index
    %c0_2 = arith.constant 0 : index
    %2 = vector.load %arg1[%c0_1, %c0_2] : memref<32x128xbf16, #tpu.memory_space<vmem>>, vector<32x128xbf16>
    %cst = arith.constant dense<0.000000e+00> : vector<256x128xf32>
    %3 = tpu.matmul %1, %2, %cst {dimension_numbers = #tpu.dot_dimension_numbers<[1], [0], [0], [1], [0, 0, 1, 1], [], []>} : vector<256x32xbf16>, vector<32x128xbf16>, vector<256x128xf32> -> vector<256x128xf32>
    %c0_3 = arith.constant 0 : index
    %c0_4 = arith.constant 0 : index
    %4 = vector.load %arg2[%c0_3, %c0_4] : memref<1x128xf32, #tpu.memory_space<vmem>>, vector<1x128xf32>
    %5 = vector.broadcast %4 : vector<1x128xf32> to vector<256x128xf32>
    %6 = arith.addf %3, %5 : vector<256x128xf32>
    %cst_5 = arith.constant 2.000000e-01 : f32
    %7 = vector.broadcast %cst_5 : f32 to vector<256x128xf32>
    %8 = arith.mulf %7, %6 : vector<256x128xf32>
    %9 = arith.maximumf %6, %8 : vector<256x128xf32>
    %10 = arith.truncf %9 : vector<256x128xf32> to vector<256x128xbf16>
    %c0_6 = arith.constant 0 : index
    %c0_7 = arith.constant 0 : index
    %11 = vector.load %arg3[%c0_6, %c0_7] : memref<128x256xbf16, #tpu.memory_space<vmem>>, vector<128x256xbf16>
    %cst_8 = arith.constant dense<0.000000e+00> : vector<256x256xf32>
    %12 = tpu.matmul %10, %11, %cst_8 {dimension_numbers = #tpu.dot_dimension_numbers<[1], [0], [0], [1], [0, 0, 1, 1], [], []>} : vector<256x128xbf16>, vector<128x256xbf16>, vector<256x256xf32> -> vector<256x256xf32>
    %cst_9 = arith.constant dense<0.000000e+00> : vector<256xf32>
    %13 = vector.multi_reduction <add>, %12, %cst_9 [0] : vector<256x256xf32> to vector<256xf32>
    %14 = vector.shape_cast %13 : vector<256xf32> to vector<1x256xf32>
    %cst_10 = arith.constant 3.906250e-03 : f32
    %15 = vector.broadcast %cst_10 : f32 to vector<1x256xf32>
    %16 = arith.mulf %14, %15 : vector<1x256xf32>
    %17 = vector.broadcast %16 : vector<1x256xf32> to vector<256x256xf32>
    %18 = arith.subf %12, %17 : vector<256x256xf32>
    %19 = arith.mulf %18, %18 : vector<256x256xf32>
    %cst_11 = arith.constant dense<0.000000e+00> : vector<256xf32>
    %20 = vector.multi_reduction <add>, %19, %cst_11 [0] : vector<256x256xf32> to vector<256xf32>
    %21 = vector.shape_cast %20 : vector<256xf32> to vector<1x256xf32>
    %cst_12 = arith.constant 3.906250e-03 : f32
    %22 = vector.broadcast %cst_12 : f32 to vector<1x256xf32>
    %23 = arith.mulf %21, %22 : vector<1x256xf32>
    %c0_13 = arith.constant 0 : index
    %c0_14 = arith.constant 0 : index
    %24 = vector.load %arg4[%c0_13, %c0_14] : memref<1x256xf32, #tpu.memory_space<vmem>>, vector<1x256xf32>
    %cst_15 = arith.constant 8.000000e-01 : f32
    %25 = vector.broadcast %cst_15 : f32 to vector<1x256xf32>
    %26 = arith.addf %23, %25 : vector<1x256xf32>
    %27 = math.rsqrt %26 : vector<1x256xf32>
    %28 = arith.mulf %24, %27 : vector<1x256xf32>
    %29 = vector.broadcast %28 : vector<1x256xf32> to vector<256x256xf32>
    %30 = arith.mulf %18, %29 : vector<256x256xf32>
    %c0_16 = arith.constant 0 : index
    %c0_17 = arith.constant 0 : index
    %31 = vector.load %arg5[%c0_16, %c0_17] : memref<1x256xf32, #tpu.memory_space<vmem>>, vector<1x256xf32>
    %32 = vector.broadcast %31 : vector<1x256xf32> to vector<256x256xf32>
    %33 = arith.addf %30, %32 : vector<256x256xf32>
    %cst_18 = arith.constant 2.000000e-01 : f32
    %34 = vector.broadcast %cst_18 : f32 to vector<256x256xf32>
    %35 = arith.mulf %34, %33 : vector<256x256xf32>
    %36 = arith.maximumf %33, %35 : vector<256x256xf32>
    %37 = arith.truncf %36 : vector<256x256xf32> to vector<256x256xbf16>
    %c0_19 = arith.constant 0 : index
    %c0_20 = arith.constant 0 : index
    %38 = vector.load %arg6[%c0_19, %c0_20] : memref<256x512xbf16, #tpu.memory_space<vmem>>, vector<256x512xbf16>
    %cst_21 = arith.constant dense<0.000000e+00> : vector<256x512xf32>
    %39 = tpu.matmul %37, %38, %cst_21 {dimension_numbers = #tpu.dot_dimension_numbers<[1], [0], [0], [1], [0, 0, 1, 1], [], []>} : vector<256x256xbf16>, vector<256x512xbf16>, vector<256x512xf32> -> vector<256x512xf32>
    %cst_22 = arith.constant dense<0.000000e+00> : vector<512xf32>
    %40 = vector.multi_reduction <add>, %39, %cst_22 [0] : vector<256x512xf32> to vector<512xf32>
    %41 = vector.shape_cast %40 : vector<512xf32> to vector<1x512xf32>
    %cst_23 = arith.constant 3.906250e-03 : f32
    %42 = vector.broadcast %cst_23 : f32 to vector<1x512xf32>
    %43 = arith.mulf %41, %42 : vector<1x512xf32>
    %44 = vector.broadcast %43 : vector<1x512xf32> to vector<256x512xf32>
    %45 = arith.subf %39, %44 : vector<256x512xf32>
    %46 = arith.mulf %45, %45 : vector<256x512xf32>
    %cst_24 = arith.constant dense<0.000000e+00> : vector<512xf32>
    %47 = vector.multi_reduction <add>, %46, %cst_24 [0] : vector<256x512xf32> to vector<512xf32>
    %48 = vector.shape_cast %47 : vector<512xf32> to vector<1x512xf32>
    %cst_25 = arith.constant 3.906250e-03 : f32
    %49 = vector.broadcast %cst_25 : f32 to vector<1x512xf32>
    %50 = arith.mulf %48, %49 : vector<1x512xf32>
    %c0_26 = arith.constant 0 : index
    %c0_27 = arith.constant 0 : index
    %51 = vector.load %arg7[%c0_26, %c0_27] : memref<1x512xf32, #tpu.memory_space<vmem>>, vector<1x512xf32>
    %cst_28 = arith.constant 8.000000e-01 : f32
    %52 = vector.broadcast %cst_28 : f32 to vector<1x512xf32>
    %53 = arith.addf %50, %52 : vector<1x512xf32>
    %54 = math.rsqrt %53 : vector<1x512xf32>
    %55 = arith.mulf %51, %54 : vector<1x512xf32>
    %56 = vector.broadcast %55 : vector<1x512xf32> to vector<256x512xf32>
    %57 = arith.mulf %45, %56 : vector<256x512xf32>
    %c0_29 = arith.constant 0 : index
    %c0_30 = arith.constant 0 : index
    %58 = vector.load %arg8[%c0_29, %c0_30] : memref<1x512xf32, #tpu.memory_space<vmem>>, vector<1x512xf32>
    %59 = vector.broadcast %58 : vector<1x512xf32> to vector<256x512xf32>
    %60 = arith.addf %57, %59 : vector<256x512xf32>
    %cst_31 = arith.constant 2.000000e-01 : f32
    %61 = vector.broadcast %cst_31 : f32 to vector<256x512xf32>
    %62 = arith.mulf %61, %60 : vector<256x512xf32>
    %63 = arith.maximumf %60, %62 : vector<256x512xf32>
    %64 = arith.truncf %63 : vector<256x512xf32> to vector<256x512xbf16>
    %c0_32 = arith.constant 0 : index
    %c0_33 = arith.constant 0 : index
    %65 = vector.load %arg9[%c0_32, %c0_33] : memref<512x1024xbf16, #tpu.memory_space<vmem>>, vector<512x1024xbf16>
    %cst_34 = arith.constant dense<0.000000e+00> : vector<256x1024xf32>
    %66 = tpu.matmul %64, %65, %cst_34 {dimension_numbers = #tpu.dot_dimension_numbers<[1], [0], [0], [1], [0, 0, 1, 1], [], []>} : vector<256x512xbf16>, vector<512x1024xbf16>, vector<256x1024xf32> -> vector<256x1024xf32>
    %cst_35 = arith.constant dense<0.000000e+00> : vector<1024xf32>
    %67 = vector.multi_reduction <add>, %66, %cst_35 [0] : vector<256x1024xf32> to vector<1024xf32>
    %68 = vector.shape_cast %67 : vector<1024xf32> to vector<1x1024xf32>
    %cst_36 = arith.constant 3.906250e-03 : f32
    %69 = vector.broadcast %cst_36 : f32 to vector<1x1024xf32>
    %70 = arith.mulf %68, %69 : vector<1x1024xf32>
    %71 = vector.broadcast %70 : vector<1x1024xf32> to vector<256x1024xf32>
    %72 = arith.subf %66, %71 : vector<256x1024xf32>
    %73 = arith.mulf %72, %72 : vector<256x1024xf32>
    %cst_37 = arith.constant dense<0.000000e+00> : vector<1024xf32>
    %74 = vector.multi_reduction <add>, %73, %cst_37 [0] : vector<256x1024xf32> to vector<1024xf32>
    %75 = vector.shape_cast %74 : vector<1024xf32> to vector<1x1024xf32>
    %cst_38 = arith.constant 3.906250e-03 : f32
    %76 = vector.broadcast %cst_38 : f32 to vector<1x1024xf32>
    %77 = arith.mulf %75, %76 : vector<1x1024xf32>
    %c0_39 = arith.constant 0 : index
    %c0_40 = arith.constant 0 : index
    %78 = vector.load %arg10[%c0_39, %c0_40] : memref<1x1024xf32, #tpu.memory_space<vmem>>, vector<1x1024xf32>
    %cst_41 = arith.constant 8.000000e-01 : f32
    %79 = vector.broadcast %cst_41 : f32 to vector<1x1024xf32>
    %80 = arith.addf %77, %79 : vector<1x1024xf32>
    %81 = math.rsqrt %80 : vector<1x1024xf32>
    %82 = arith.mulf %78, %81 : vector<1x1024xf32>
    %83 = vector.broadcast %82 : vector<1x1024xf32> to vector<256x1024xf32>
    %84 = arith.mulf %72, %83 : vector<256x1024xf32>
    %c0_42 = arith.constant 0 : index
    %c0_43 = arith.constant 0 : index
    %85 = vector.load %arg11[%c0_42, %c0_43] : memref<1x1024xf32, #tpu.memory_space<vmem>>, vector<1x1024xf32>
    %86 = vector.broadcast %85 : vector<1x1024xf32> to vector<256x1024xf32>
    %87 = arith.addf %84, %86 : vector<256x1024xf32>
    %cst_44 = arith.constant 2.000000e-01 : f32
    %88 = vector.broadcast %cst_44 : f32 to vector<256x1024xf32>
    %89 = arith.mulf %88, %87 : vector<256x1024xf32>
    %90 = arith.maximumf %87, %89 : vector<256x1024xf32>
    %91 = arith.truncf %90 : vector<256x1024xf32> to vector<256x1024xbf16>
    %c0_45 = arith.constant 0 : index
    %c0_46 = arith.constant 0 : index
    %92 = vector.load %arg12[%c0_45, %c0_46] : memref<1024x128xbf16, #tpu.memory_space<vmem>>, vector<1024x128xbf16>
    %cst_47 = arith.constant dense<0.000000e+00> : vector<256x128xf32>
    %93 = tpu.matmul %91, %92, %cst_47 {dimension_numbers = #tpu.dot_dimension_numbers<[1], [0], [0], [1], [0, 0, 1, 1], [], []>} : vector<256x1024xbf16>, vector<1024x128xbf16>, vector<256x128xf32> -> vector<256x128xf32>
    %c0_48 = arith.constant 0 : index
    %c0_49 = arith.constant 0 : index
    %94 = vector.load %arg13[%c0_48, %c0_49] : memref<1x128xf32, #tpu.memory_space<vmem>>, vector<1x128xf32>
    %95 = vector.broadcast %94 : vector<1x128xf32> to vector<256x128xf32>
    %96 = arith.addf %93, %95 : vector<256x128xf32>
    %c0_50 = arith.constant 0 : index
    %c0_51 = arith.constant 0 : index
    %97 = vector.load %arg14[%c0_50, %c0_51] : memref<256x128xf32, #tpu.memory_space<vmem>>, vector<256x128xf32>
    tpu.vector_store %arg14[%c0_50, %c0_51], %96 {strides = array<i32>} : memref<256x128xf32, #tpu.memory_space<vmem>>, vector<256x128xf32>,
    return
  }
}

</mosaic_0001>

<llo_original>
// kernel: generator_forward.1
$region0: #{generator_forward.1}
  #allocation0 [shape = 'u32[]', space=smem, size = 0x4, offset = 0x4, fixed_abs, tag = 'smem constant byte address 0x4 - core index']
  #allocation1 [shape = 'u32[72,128]{1,0:T(1,128)}', space=vmem, size = 0x9000, scoped, tag = 'internal scratch']
  %s0 = inlined_call_operand.vmem [shape: f32[256,32], index: 0, kind: input, shape index: {}]
  %s1 = inlined_call_operand.vmem [shape: bf16[32,128], index: 1, kind: input, shape index: {}]
  %s2 = inlined_call_operand.vmem [shape: f32[1,128], index: 2, kind: input, shape index: {}]
  %s3 = inlined_call_operand.vmem [shape: bf16[128,256], index: 3, kind: input, shape index: {}]
  %s4 = inlined_call_operand.vmem [shape: f32[1,256], index: 4, kind: input, shape index: {}]
  %s5 = inlined_call_operand.vmem [shape: f32[1,256], index: 5, kind: input, shape index: {}]
  %s6 = inlined_call_operand.hbm [shape: bf16[256,512], index: 6, kind: input, shape index: {}]
  %s7 = inlined_call_operand.vmem [shape: f32[1,512], index: 7, kind: input, shape index: {}]
  %s8 = inlined_call_operand.vmem [shape: f32[1,512], index: 8, kind: input, shape index: {}]
  %s9 = inlined_call_operand.hbm [shape: bf16[512,1024], index: 9, kind: input, shape index: {}]
  %s10 = inlined_call_operand.vmem [shape: f32[1,1024], index: 10, kind: input, shape index: {}]
  %s11 = inlined_call_operand.vmem [shape: f32[1,1024], index: 11, kind: input, shape index: {}]
  %s12 = inlined_call_operand.hbm [shape: bf16[1024,128], index: 12, kind: input, shape index: {}]
  %s13 = inlined_call_operand.vmem [shape: f32[1,128], index: 13, kind: input, shape index: {}]
  %s14 = inlined_call_operand.vmem [shape: f32[256,128], index: 14, kind: output, shape index: {}]
  %s15 = sld [smem:[#allocation0]]
  $region78: #{generator_forward.1} parent=0
    _
  %s17 = ssub.s32 1, %s15
  %s18 = scalar_select 0, %s17, %s15
  $region1: #{generator_forward.1} parent=0
    #allocation2 [shape = 'u8[262144]{0}', space=vmem, size = 0x40000, scoped, tag = 'input window, operand 6, single buffered']
    #allocation3 [shape = 's32[1]{0}', space=sflag, size = 0x4, scoped, tag = 'scoped memory for generator_forward.1']
    #allocation4 [shape = 'u8[1048576]{0}', space=vmem, size = 0x100000, scoped, tag = 'input window, operand 9, single buffered']
    #allocation5 [shape = 's32[1]{0}', space=sflag, size = 0x4, scoped, tag = 'scoped memory for generator_forward.1']
    #allocation6 [shape = 'u8[262144]{0}', space=vmem, size = 0x40000, scoped, tag = 'input window, operand 12, single buffered']
    %19 = vsyncpa [#allocation3], 0
    %20 = vsyncpa [#allocation5], 0
    // Predicated region
    $region2: #{generator_forward.1} parent=1 // pred_check
      _
    $region3: #{generator_forward.1} parent=1 // pred_check_branch
      %22 = sbr.rel (0) target = $region5
    $region4: #{generator_forward.1} parent=1 // pred_region
      _
    $region5: #{generator_forward.1} parent=1 // pred_fallthru
      _
    // Predicated region
    $region6: #{generator_forward.1} parent=1 // pred_check
      _
    $region7: #{generator_forward.1} parent=1 // pred_check_branch
      %24 = sbr.rel (0) target = $region9
    $region8: #{generator_forward.1} parent=1 // pred_region
      _
    $region9: #{generator_forward.1} parent=1 // pred_fallthru
      _
    // Predicated region
    $region10: #{generator_forward.1} parent=1 // pred_check
      _
    $region11: #{generator_forward.1} parent=1 // pred_check_branch
      %26 = sbr.rel (0) target = $region13
    $region12: #{generator_forward.1} parent=1 // pred_region
      _
    $region13: #{generator_forward.1} parent=1 // pred_fallthru
      _
    // Predicated region
    $region14: #{generator_forward.1} parent=1 // pred_check
      _
    $region15: #{generator_forward.1} parent=1 // pred_check_branch
      %28 = sbr.rel (0) target = $region17
    $region16: #{generator_forward.1} parent=1 // pred_region
      _
    $region17: #{generator_forward.1} parent=1 // pred_fallthru
      _
    // Predicated region
    $region18: #{generator_forward.1} parent=1 // pred_check
      _
    $region19: #{generator_forward.1} parent=1 // pred_check_branch
      %30 = sbr.rel (0) target = $region21
    $region20: #{generator_forward.1} parent=1 // pred_region
      _
    $region21: #{generator_forward.1} parent=1 // pred_fallthru
      _
    // Predicated region
    $region22: #{generator_forward.1} parent=1 // pred_check
      _
    $region23: #{generator_forward.1} parent=1 // pred_check_branch
      %32 = sbr.rel (0) target = $region25
    $region24: #{generator_forward.1} parent=1 // pred_region
      _
    $region25: #{generator_forward.1} parent=1 // pred_fallthru
      _
    // Predicated region
    $region26: #{generator_forward.1} parent=1 // pred_check
      _
    $region27: #{generator_forward.1} parent=1 // pred_check_branch
      %34 = sbr.rel (0) target = $region29
    $region28: #{generator_forward.1} parent=1 // pred_region
      %36 = vsyncadd [#allocation3], 0
      %s37 = sshll.u32 %s6, 4
      %s38 = int_to_ptr.hbm [resolvable:$true] %s37
      %s39 = sshll.u32 [#allocation2], 4
      %s40 = int_to_ptr.vmem [resolvable:$true] %s39
      %45 = dma.hbm_to_vmem [thread:$0]  %s38, 8192, %s40, [#allocation3], 256, 256, 16
    $region29: #{generator_forward.1} parent=1 // pred_fallthru
      _
    // Predicated region
    $region30: #{generator_forward.1} parent=1 // pred_check
      _
    $region31: #{generator_forward.1} parent=1 // pred_check_branch
      %47 = sbr.rel (0) target = $region33
    $region32: #{generator_forward.1} parent=1 // pred_region
      _
    $region33: #{generator_forward.1} parent=1 // pred_fallthru
      _
    // Predicated region
    $region34: #{generator_forward.1} parent=1 // pred_check
      _
    $region35: #{generator_forward.1} parent=1 // pred_check_branch
      %49 = sbr.rel (0) target = $region37
    $region36: #{generator_forward.1} parent=1 // pred_region
      _
    $region37: #{generator_forward.1} parent=1 // pred_fallthru
      _
    // Predicated region
    $region38: #{generator_forward.1} parent=1 // pred_check
      _
    $region39: #{generator_forward.1} parent=1 // pred_check_branch
      %51 = sbr.rel (0) target = $region41
    $region40: #{generator_forward.1} parent=1 // pred_region
      %53 = vsyncadd [#allocation5], 0
      %s54 = sshll.u32 %s9, 4
      %s55 = int_to_ptr.hbm [resolvable:$true] %s54
      %s56 = sshll.u32 [#allocation4], 4
      %s57 = int_to_ptr.vmem [resolvable:$true] %s56
      %62 = dma.hbm_to_vmem [thread:$0]  %s55, 32768, %s57, [#allocation5], 512, 512, 32
    $region41: #{generator_forward.1} parent=1 // pred_fallthru
      _
    // Predicated region
    $region42: #{generator_forward.1} parent=1 // pred_check
      _
    $region43: #{generator_forward.1} parent=1 // pred_check_branch
      %64 = sbr.rel (0) target = $region45
    $region44: #{generator_forward.1} parent=1 // pred_region
      _
    $region45: #{generator_forward.1} parent=1 // pred_fallthru
      _
    // Predicated region
    $region46: #{generator_forward.1} parent=1 // pred_check
      _
    $region47: #{generator_forward.1} parent=1 // pred_check_branch
      %66 = sbr.rel (0) target = $region49
    $region48: #{generator_forward.1} parent=1 // pred_region
      _
    $region49: #{generator_forward.1} parent=1 // pred_fallthru
      _
    // Predicated region
    $region50: #{generator_forward.1} parent=1 // pred_check
      _
    $region51: #{generator_forward.1} parent=1 // pred_check_branch
      %68 = sbr.rel (0) target = $region53
    $region52: #{generator_forward.1} parent=1 // pred_region
      %70 = vsyncadd [#allocation5], 0
      %s71 = sshll.u32 %s12, 4
      %s72 = int_to_ptr.hbm [resolvable:$true] %s71
      %s73 = sshll.u32 [#allocation6], 4
      %s74 = int_to_ptr.vmem [resolvable:$true] %s73
      %79 = dma.hbm_to_vmem [thread:$0]  %s72, 8192, %s74, [#allocation5], 64, 64, 4
    $region53: #{generator_forward.1} parent=1 // pred_fallthru
      _
    // Predicated region
    $region54: #{generator_forward.1} parent=1 // pred_check
      _
    $region55: #{generator_forward.1} parent=1 // pred_check_branch
      %81 = sbr.rel (0) target = $region57
    $region56: #{generator_forward.1} parent=1 // pred_region
      _
    $region57: #{generator_forward.1} parent=1 // pred_fallthru
      _
    // Predicated region
    $region58: #{generator_forward.1} parent=1 // pred_check
      _
    $region59: #{generator_forward.1} parent=1 // pred_check_branch
      %83 = sbr.rel (0) target = $region61
    $region60: #{generator_forward.1} parent=1 // pred_region
      %85 = dma.done [#allocation3], 8192
    $region61: #{generator_forward.1} parent=1 // pred_fallthru
      _
    // Predicated region
    $region62: #{generator_forward.1} parent=1 // pred_check
      _
    $region63: #{generator_forward.1} parent=1 // pred_check_branch
      %87 = sbr.rel (0) target = $region65
    $region64: #{generator_forward.1} parent=1 // pred_region
      %89 = dma.done [#allocation5], 32768
    $region65: #{generator_forward.1} parent=1 // pred_fallthru
      _
    // Predicated region
    $region66: #{generator_forward.1} parent=1 // pred_check
      _
    $region67: #{generator_forward.1} parent=1 // pred_check_branch
      %91 = sbr.rel (0) target = $region69
    $region68: #{generator_forward.1} parent=1 // pred_region
      %93 = dma.done [#allocation5], 8192
    $region69: #{generator_forward.1} parent=1 // pred_fallthru
      _
    %v95 = vld [vmem:[%s0] sm:$0xff]
    %v96 = vld [vmem:[%s0 + $0x8] sm:$0xff]
    %v97 = vld [vmem:[%s0 + $0x10] sm:$0xff]
    %v98 = vld [vmem:[%s0 + $0x18] sm:$0xff]
    %v99 = vld [vmem:[%s0 + $0x20] sm:$0xff]
    %v100 = vld [vmem:[%s0 + $0x28] sm:$0xff]
    %v101 = vld [vmem:[%s0 + $0x30] sm:$0xff]
    %v102 = vld [vmem:[%s0 + $0x38] sm:$0xff]
    %v103 = vld [vmem:[%s0 + $0x40] sm:$0xff]
    %v104 = vld [vmem:[%s0 + $0x48] sm:$0xff]
    %v105 = vld [vmem:[%s0 + $0x50] sm:$0xff]
    %v106 = vld [vmem:[%s0 + $0x58] sm:$0xff]
    %v107 = vld [vmem:[%s0 + $0x60] sm:$0xff]
    %v108 = vld [vmem:[%s0 + $0x68] sm:$0xff]
    %v109 = vld [vmem:[%s0 + $0x70] sm:$0xff]
    %v110 = vld [vmem:[%s0 + $0x78] sm:$0xff]
    %v111 = vld [vmem:[%s0 + $0x80] sm:$0xff]
    %v112 = vld [vmem:[%s0 + $0x88] sm:$0xff]
    %v113 = vld [vmem:[%s0 + $0x90] sm:$0xff]
    %v114 = vld [vmem:[%s0 + $0x98] sm:$0xff]
    %v115 = vld [vmem:[%s0 + $0xa0] sm:$0xff]
    %v116 = vld [vmem:[%s0 + $0xa8] sm:$0xff]
    %v117 = vld [vmem:[%s0 + $0xb0] sm:$0xff]
    %v118 = vld [vmem:[%s0 + $0xb8] sm:$0xff]
    %v119 = vld [vmem:[%s0 + $0xc0] sm:$0xff]
    %v120 = vld [vmem:[%s0 + $0xc8] sm:$0xff]
    %v121 = vld [vmem:[%s0 + $0xd0] sm:$0xff]
    %v122 = vld [vmem:[%s0 + $0xd8] sm:$0xff]
    %v123 = vld [vmem:[%s0 + $0xe0] sm:$0xff]
    %v124 = vld [vmem:[%s0 + $0xe8] sm:$0xff]
    %v125 = vld [vmem:[%s0 + $0xf0] sm:$0xff]
    %v126 = vld [vmem:[%s0 + $0xf8] sm:$0xff]
    %v127 = vpack.c.bf16 %v96, %v95
    %v128 = vpack.c.bf16 %v98, %v97
    %v129 = vpack.c.bf16 %v100, %v99
    %v130 = vpack.c.bf16 %v102, %v101
    %v131 = vpack.c.bf16 %v104, %v103
    %v132 = vpack.c.bf16 %v106, %v105
    %v133 = vpack.c.bf16 %v108, %v107
    %v134 = vpack.c.bf16 %v110, %v109
    %v135 = vpack.c.bf16 %v112, %v111
    %v136 = vpack.c.bf16 %v114, %v113
    %v137 = vpack.c.bf16 %v116, %v115
    %v138 = vpack.c.bf16 %v118, %v117
    %v139 = vpack.c.bf16 %v120, %v119
    %v140 = vpack.c.bf16 %v122, %v121
    %v141 = vpack.c.bf16 %v124, %v123
    %v142 = vpack.c.bf16 %v126, %v125
    %v143 = vld [vmem:[%s1] sm:$0xf]
    %v144 = vld [vmem:[%s1 + $0x4] sm:$0xf]
    %v145 = vld [vmem:[%s1 + $0x8] sm:$0xf]
    %v146 = vld [vmem:[%s1 + $0xc] sm:$0xf]
    %v147 = vld [vmem:[%s2] sm:$0x1]
    %v149 = vperm.slane %v147, 0
    %v155 = vunpack.c.l.b16 %v143
    %v156 = vunpack.c.l.b16 %v144
    %v157 = vunpack.c.l.b16 %v145
    %v158 = vunpack.c.l.b16 %v146
    %v159 = vpack.c.b16 %v156, %v155
    %v160 = vpack.c.b16 %v158, %v157
    %vm163 = vcmask 261120
    %v165 = vsel %vm163, %v127, 0
    %v168 = vsel %vm163, %v128, 0
    %v171 = vsel %vm163, %v129, 0
    %v174 = vsel %vm163, %v130, 0
    %v177 = vsel %vm163, %v131, 0
    %v180 = vsel %vm163, %v132, 0
    %v183 = vsel %vm163, %v133, 0
    %v186 = vsel %vm163, %v134, 0
    %v189 = vsel %vm163, %v135, 0
    %v192 = vsel %vm163, %v136, 0
    %v195 = vsel %vm163, %v137, 0
    %v198 = vsel %vm163, %v138, 0
    %v201 = vsel %vm163, %v139, 0
    %v204 = vsel %vm163, %v140, 0
    %v207 = vsel %vm163, %v141, 0
    %v210 = vsel %vm163, %v142, 0
    %212 = vmatpush.bf16.msra.mxu0 0
    %213 = vmatpush.bf16.msra.mxu0 0
    %214 = vmatpush.bf16.msra.mxu0 0
    %215 = vmatpush.bf16.msra.mxu0 0
    %216 = vmatpush.bf16.msra.mxu0 0
    %217 = vmatpush.bf16.msra.mxu0 0
    %218 = vmatpush.bf16.msra.mxu0 %v160
    %219 = vmatpush.bf16.msra.mxu0 %v159
    %220 = vmatmul.bf16.gmra.mxu0 %v165
    %v221 = vpop.f32.mrf.mxu0
    %v222 = vadd.f32 %v149, %v221
    %v223 = vpop.f32.mrf.mxu0
    %v224 = vadd.f32 %v149, %v223
    %225 = vmatmul.bf16.gmra.mxu0 %v168
    %v226 = vpop.f32.mrf.mxu0
    %v227 = vadd.f32 %v149, %v226
    %v228 = vpop.f32.mrf.mxu0
    %v229 = vadd.f32 %v149, %v228
    %230 = vmatmul.bf16.gmra.mxu0 %v171
    %v231 = vpop.f32.mrf.mxu0
    %v232 = vadd.f32 %v149, %v231
    %v233 = vpop.f32.mrf.mxu0
    %v234 = vadd.f32 %v149, %v233
    %235 = vmatmul.bf16.gmra.mxu0 %v174
    %v236 = vpop.f32.mrf.mxu0
    %v237 = vadd.f32 %v149, %v236
    %v238 = vpop.f32.mrf.mxu0
    %v239 = vadd.f32 %v149, %v238
    %240 = vmatmul.bf16.gmra.mxu0 %v177
    %v241 = vpop.f32.mrf.mxu0
    %v242 = vadd.f32 %v149, %v241
    %v243 = vpop.f32.mrf.mxu0
    %v244 = vadd.f32 %v149, %v243
    %245 = vmatmul.bf16.gmra.mxu0 %v180
    %v246 = vpop.f32.mrf.mxu0
    %v247 = vadd.f32 %v149, %v246
    %v248 = vpop.f32.mrf.mxu0
    %v249 = vadd.f32 %v149, %v248
    %250 = vmatmul.bf16.gmra.mxu0 %v183
    %v251 = vpop.f32.mrf.mxu0
    %v252 = vadd.f32 %v149, %v251
    %v253 = vpop.f32.mrf.mxu0
    %v254 = vadd.f32 %v149, %v253
    %255 = vmatmul.bf16.gmra.mxu0 %v186
    %v256 = vpop.f32.mrf.mxu0
    %v257 = vadd.f32 %v149, %v256
    %v258 = vpop.f32.mrf.mxu0
    %v259 = vadd.f32 %v149, %v258
    %260 = vmatmul.bf16.gmra.mxu0 %v189
    %v261 = vpop.f32.mrf.mxu0
    %v262 = vadd.f32 %v149, %v261
    %v263 = vpop.f32.mrf.mxu0
    %v264 = vadd.f32 %v149, %v263
    %265 = vmatmul.bf16.gmra.mxu0 %v192
    %v266 = vpop.f32.mrf.mxu0
    %v267 = vadd.f32 %v149, %v266
    %v268 = vpop.f32.mrf.mxu0
    %v269 = vadd.f32 %v149, %v268
    %270 = vmatmul.bf16.gmra.mxu0 %v195
    %v271 = vpop.f32.mrf.mxu0
    %v272 = vadd.f32 %v149, %v271
    %v273 = vpop.f32.mrf.mxu0
    %v274 = vadd.f32 %v149, %v273
    %275 = vmatmul.bf16.gmra.mxu0 %v198
    %v276 = vpop.f32.mrf.mxu0
    %v277 = vadd.f32 %v149, %v276
    %v278 = vpop.f32.mrf.mxu0
    %v279 = vadd.f32 %v149, %v278
    %280 = vmatmul.bf16.gmra.mxu0 %v201
    %v281 = vpop.f32.mrf.mxu0
    %v282 = vadd.f32 %v149, %v281
    %v283 = vpop.f32.mrf.mxu0
    %v284 = vadd.f32 %v149, %v283
    %285 = vmatmul.bf16.gmra.mxu0 %v204
    %v286 = vpop.f32.mrf.mxu0
    %v287 = vadd.f32 %v149, %v286
    %v288 = vpop.f32.mrf.mxu0
    %v289 = vadd.f32 %v149, %v288
    %290 = vmatmul.bf16.gmra.mxu0 %v207
    %v291 = vpop.f32.mrf.mxu0
    %v292 = vadd.f32 %v149, %v291
    %v293 = vpop.f32.mrf.mxu0
    %v294 = vadd.f32 %v149, %v293
    %295 = vmatmul.bf16.gmra.mxu0 %v210
    %v296 = vpop.f32.mrf.mxu0
    %v297 = vadd.f32 %v149, %v296
    %v298 = vpop.f32.mrf.mxu0
    %v299 = vadd.f32 %v149, %v298
    %300 = vdwg.mxu0
    %v301 = vmul.f32 %v222, 0.2
    %v302 = vmul.f32 %v224, 0.2
    %v303 = vmul.f32 %v227, 0.2
    %v304 = vmul.f32 %v229, 0.2
    %v305 = vmul.f32 %v232, 0.2
    %v306 = vmul.f32 %v234, 0.2
    %v307 = vmul.f32 %v237, 0.2
    %v308 = vmul.f32 %v239, 0.2
    %v309 = vmul.f32 %v242, 0.2
    %v310 = vmul.f32 %v244, 0.2
    %v311 = vmul.f32 %v247, 0.2
    %v312 = vmul.f32 %v249, 0.2
    %v313 = vmul.f32 %v252, 0.2
    %v314 = vmul.f32 %v254, 0.2
    %v315 = vmul.f32 %v257, 0.2
    %v316 = vmul.f32 %v259, 0.2
    %v317 = vmul.f32 %v262, 0.2
    %v318 = vmul.f32 %v264, 0.2
    %v319 = vmul.f32 %v267, 0.2
    %v320 = vmul.f32 %v269, 0.2
    %v321 = vmul.f32 %v272, 0.2
    %v322 = vmul.f32 %v274, 0.2
    %v323 = vmul.f32 %v277, 0.2
    %v324 = vmul.f32 %v279, 0.2
    %v325 = vmul.f32 %v282, 0.2
    %v326 = vmul.f32 %v284, 0.2
    %v327 = vmul.f32 %v287, 0.2
    %v328 = vmul.f32 %v289, 0.2
    %v329 = vmul.f32 %v292, 0.2
    %v330 = vmul.f32 %v294, 0.2
    %v331 = vmul.f32 %v297, 0.2
    %v332 = vmul.f32 %v299, 0.2
    %v333 = vmax.f32 %v222, %v301
    %v334 = vmax.f32 %v224, %v302
    %v335 = vmax.f32 %v227, %v303
    %v336 = vmax.f32 %v229, %v304
    %v337 = vmax.f32 %v232, %v305
    %v338 = vmax.f32 %v234, %v306
    %v339 = vmax.f32 %v237, %v307
    %v340 = vmax.f32 %v239, %v308
    %v341 = vmax.f32 %v242, %v309
    %v342 = vmax.f32 %v244, %v310
    %v343 = vmax.f32 %v247, %v311
    %v344 = vmax.f32 %v249, %v312
    %v345 = vmax.f32 %v252, %v313
    %v346 = vmax.f32 %v254, %v314
    %v347 = vmax.f32 %v257, %v315
    %v348 = vmax.f32 %v259, %v316
    %v349 = vmax.f32 %v262, %v317
    %v350 = vmax.f32 %v264, %v318
    %v351 = vmax.f32 %v267, %v319
    %v352 = vmax.f32 %v269, %v320
    %v353 = vmax.f32 %v272, %v321
    %v354 = vmax.f32 %v274, %v322
    %v355 = vmax.f32 %v277, %v323
    %v356 = vmax.f32 %v279, %v324
    %v357 = vmax.f32 %v282, %v325
    %v358 = vmax.f32 %v284, %v326
    %v359 = vmax.f32 %v287, %v327
    %v360 = vmax.f32 %v289, %v328
    %v361 = vmax.f32 %v292, %v329
    %v362 = vmax.f32 %v294, %v330
    %v363 = vmax.f32 %v297, %v331
    %v364 = vmax.f32 %v299, %v332
    %v365 = vpack.c.bf16 %v334, %v333
    %v366 = vpack.c.bf16 %v336, %v335
    %v367 = vpack.c.bf16 %v338, %v337
    %v368 = vpack.c.bf16 %v340, %v339
    %v369 = vpack.c.bf16 %v342, %v341
    %v370 = vpack.c.bf16 %v344, %v343
    %v371 = vpack.c.bf16 %v346, %v345
    %v372 = vpack.c.bf16 %v348, %v347
    %v373 = vpack.c.bf16 %v350, %v349
    %v374 = vpack.c.bf16 %v352, %v351
    %v375 = vpack.c.bf16 %v354, %v353
    %v376 = vpack.c.bf16 %v356, %v355
    %v377 = vpack.c.bf16 %v358, %v357
    %v378 = vpack.c.bf16 %v360, %v359
    %v379 = vpack.c.bf16 %v362, %v361
    %v380 = vpack.c.bf16 %v364, %v363
    %v381 = vld [vmem:[%s3] sm:$0xff]
    %v382 = vld [vmem:[%s3 + $0x8] sm:$0xff]
    %v383 = vld [vmem:[%s3 + $0x10] sm:$0xff]
    %v384 = vld [vmem:[%s3 + $0x18] sm:$0xff]
    %v385 = vld [vmem:[%s3 + $0x20] sm:$0xff]
    %v386 = vld [vmem:[%s3 + $0x28] sm:$0xff]
    %v387 = vld [vmem:[%s3 + $0x30] sm:$0xff]
    %v388 = vld [vmem:[%s3 + $0x38] sm:$0xff]
    %v389 = vld [vmem:[%s3 + $0x40] sm:$0xff]
    %v390 = vld [vmem:[%s3 + $0x48] sm:$0xff]
    %v391 = vld [vmem:[%s3 + $0x50] sm:$0xff]
    %v392 = vld [vmem:[%s3 + $0x58] sm:$0xff]
    %v393 = vld [vmem:[%s3 + $0x60] sm:$0xff]
    %v394 = vld [vmem:[%s3 + $0x68] sm:$0xff]
    %v395 = vld [vmem:[%s3 + $0x70] sm:$0xff]
    %v396 = vld [vmem:[%s3 + $0x78] sm:$0xff]
    %v413 = vunpack.c.l.b16 %v381
    %v414 = vunpack.c.h.b16 %v381
    %v415 = vunpack.c.l.b16 %v382
    %v416 = vunpack.c.h.b16 %v382
    %v417 = vunpack.c.l.b16 %v383
    %v418 = vunpack.c.h.b16 %v383
    %v419 = vunpack.c.l.b16 %v384
    %v420 = vunpack.c.h.b16 %v384
    %v421 = vunpack.c.l.b16 %v385
    %v422 = vunpack.c.h.b16 %v385
    %v423 = vunpack.c.l.b16 %v386
    %v424 = vunpack.c.h.b16 %v386
    %v425 = vunpack.c.l.b16 %v387
    %v426 = vunpack.c.h.b16 %v387
    %v427 = vunpack.c.l.b16 %v388
    %v428 = vunpack.c.h.b16 %v388
    %v429 = vunpack.c.l.b16 %v389
    %v430 = vunpack.c.h.b16 %v389
    %v431 = vunpack.c.l.b16 %v390
    %v432 = vunpack.c.h.b16 %v390
    %v433 = vunpack.c.l.b16 %v391
    %v434 = vunpack.c.h.b16 %v391
    %v435 = vunpack.c.l.b16 %v392
    %v436 = vunpack.c.h.b16 %v392
    %v437 = vunpack.c.l.b16 %v393
    %v438 = vunpack.c.h.b16 %v393
    %v439 = vunpack.c.l.b16 %v394
    %v440 = vunpack.c.h.b16 %v394
    %v441 = vunpack.c.l.b16 %v395
    %v442 = vunpack.c.h.b16 %v395
    %v443 = vunpack.c.l.b16 %v396
    %v444 = vunpack.c.h.b16 %v396
    %v445 = vpack.c.b16 %v415, %v413
    %v446 = vpack.c.b16 %v416, %v414
    %v447 = vpack.c.b16 %v419, %v417
    %v448 = vpack.c.b16 %v420, %v418
    %v449 = vpack.c.b16 %v423, %v421
    %v450 = vpack.c.b16 %v424, %v422
    %v451 = vpack.c.b16 %v427, %v425
    %v452 = vpack.c.b16 %v428, %v426
    %v453 = vpack.c.b16 %v431, %v429
    %v454 = vpack.c.b16 %v432, %v430
    %v455 = vpack.c.b16 %v435, %v433
    %v456 = vpack.c.b16 %v436, %v434
    %v457 = vpack.c.b16 %v439, %v437
    %v458 = vpack.c.b16 %v440, %v438
    %v459 = vpack.c.b16 %v443, %v441
    %v460 = vpack.c.b16 %v444, %v442
    %477 = vmatpush.bf16.msra.mxu0 %v459
    %478 = vmatpush.bf16.msra.mxu0 %v457
    %479 = vmatpush.bf16.msra.mxu0 %v455
    %480 = vmatpush.bf16.msra.mxu0 %v453
    %481 = vmatpush.bf16.msra.mxu0 %v451
    %482 = vmatpush.bf16.msra.mxu0 %v449
    %483 = vmatpush.bf16.msra.mxu0 %v447
    %484 = vmatpush.bf16.msra.mxu0 %v445
    %485 = vmatmul.bf16.gmra.mxu0 %v365
    %v486 = vpop.f32.mrf.mxu0
    %v487 = vadd.f32 0.0, %v486
    %v488 = vpop.f32.mrf.mxu0
    %v489 = vadd.f32 0.0, %v488
    %490 = vmatmul.bf16.gmra.mxu0 %v366
    %v491 = vpop.f32.mrf.mxu0
    %v492 = vadd.f32 0.0, %v491
    %v493 = vpop.f32.mrf.mxu0
    %v494 = vadd.f32 0.0, %v493
    %495 = vmatmul.bf16.gmra.mxu0 %v367
    %v496 = vpop.f32.mrf.mxu0
    %v497 = vadd.f32 0.0, %v496
    %v498 = vpop.f32.mrf.mxu0
    %v499 = vadd.f32 0.0, %v498
    %500 = vmatmul.bf16.gmra.mxu0 %v368
    %v501 = vpop.f32.mrf.mxu0
    %v502 = vadd.f32 0.0, %v501
    %v503 = vpop.f32.mrf.mxu0
    %v504 = vadd.f32 0.0, %v503
    %505 = vmatmul.bf16.gmra.mxu0 %v369
    %v506 = vpop.f32.mrf.mxu0
    %v507 = vadd.f32 0.0, %v506
    %v508 = vpop.f32.mrf.mxu0
    %v509 = vadd.f32 0.0, %v508
    %510 = vmatmul.bf16.gmra.mxu0 %v370
    %v511 = vpop.f32.mrf.mxu0
    %v512 = vadd.f32 0.0, %v511
    %v513 = vpop.f32.mrf.mxu0
    %v514 = vadd.f32 0.0, %v513
    %515 = vmatmul.bf16.gmra.mxu0 %v371
    %v516 = vpop.f32.mrf.mxu0
    %v517 = vadd.f32 0.0, %v516
    %v518 = vpop.f32.mrf.mxu0
    %v519 = vadd.f32 0.0, %v518
    %520 = vmatmul.bf16.gmra.mxu0 %v372
    %v521 = vpop.f32.mrf.mxu0
    %v522 = vadd.f32 0.0, %v521
    %v523 = vpop.f32.mrf.mxu0
    %v524 = vadd.f32 0.0, %v523
    %525 = vmatmul.bf16.gmra.mxu0 %v373
    %v526 = vpop.f32.mrf.mxu0
    %v527 = vadd.f32 0.0, %v526
    %v528 = vpop.f32.mrf.mxu0
    %v529 = vadd.f32 0.0, %v528
    %530 = vmatmul.bf16.gmra.mxu0 %v374
    %v531 = vpop.f32.mrf.mxu0
    %v532 = vadd.f32 0.0, %v531
    %v533 = vpop.f32.mrf.mxu0
    %v534 = vadd.f32 0.0, %v533
    %535 = vmatmul.bf16.gmra.mxu0 %v375
    %v536 = vpop.f32.mrf.mxu0
    %v537 = vadd.f32 0.0, %v536
    %v538 = vpop.f32.mrf.mxu0
    %v539 = vadd.f32 0.0, %v538
    %540 = vmatmul.bf16.gmra.mxu0 %v376
    %v541 = vpop.f32.mrf.mxu0
    %v542 = vadd.f32 0.0, %v541
    %v543 = vpop.f32.mrf.mxu0
    %v544 = vadd.f32 0.0, %v543
    %545 = vmatmul.bf16.gmra.mxu0 %v377
    %v546 = vpop.f32.mrf.mxu0
    %v547 = vadd.f32 0.0, %v546
    %v548 = vpop.f32.mrf.mxu0
    %v549 = vadd.f32 0.0, %v548
    %550 = vmatmul.bf16.gmra.mxu0 %v378
    %v551 = vpop.f32.mrf.mxu0
    %v552 = vadd.f32 0.0, %v551
    %v553 = vpop.f32.mrf.mxu0
    %v554 = vadd.f32 0.0, %v553
    %555 = vmatmul.bf16.gmra.mxu0 %v379
    %v556 = vpop.f32.mrf.mxu0
    %v557 = vadd.f32 0.0, %v556
    %v558 = vpop.f32.mrf.mxu0
    %v559 = vadd.f32 0.0, %v558
    %560 = vmatmul.bf16.gmra.mxu0 %v380
    %v561 = vpop.f32.mrf.mxu0
    %v562 = vadd.f32 0.0, %v561
    %v563 = vpop.f32.mrf.mxu0
    %v564 = vadd.f32 0.0, %v563
    %565 = vdwg.mxu0
    %566 = vmatpush.bf16.msra.mxu0 %v460
    %567 = vmatpush.bf16.msra.mxu0 %v458
    %568 = vmatpush.bf16.msra.mxu0 %v456
    %569 = vmatpush.bf16.msra.mxu0 %v454
    %570 = vmatpush.bf16.msra.mxu0 %v452
    %571 = vmatpush.bf16.msra.mxu0 %v450
    %572 = vmatpush.bf16.msra.mxu0 %v448
    %573 = vmatpush.bf16.msra.mxu0 %v446
    %574 = vmatmul.bf16.gmra.mxu0 %v365
    %v575 = vpop.f32.mrf.mxu0
    %v576 = vadd.f32 0.0, %v575
    %v577 = vpop.f32.mrf.mxu0
    %v578 = vadd.f32 0.0, %v577
    %579 = vmatmul.bf16.gmra.mxu0 %v366
    %v580 = vpop.f32.mrf.mxu0
    %v581 = vadd.f32 0.0, %v580
    %v582 = vpop.f32.mrf.mxu0
    %v583 = vadd.f32 0.0, %v582
    %584 = vmatmul.bf16.gmra.mxu0 %v367
    %v585 = vpop.f32.mrf.mxu0
    %v586 = vadd.f32 0.0, %v585
    %v587 = vpop.f32.mrf.mxu0
    %v588 = vadd.f32 0.0, %v587
    %589 = vmatmul.bf16.gmra.mxu0 %v368
    %v590 = vpop.f32.mrf.mxu0
    %v591 = vadd.f32 0.0, %v590
    %v592 = vpop.f32.mrf.mxu0
    %v593 = vadd.f32 0.0, %v592
    %594 = vmatmul.bf16.gmra.mxu0 %v369
    %v595 = vpop.f32.mrf.mxu0
    %v596 = vadd.f32 0.0, %v595
    %v597 = vpop.f32.mrf.mxu0
    %v598 = vadd.f32 0.0, %v597
    %599 = vmatmul.bf16.gmra.mxu0 %v370
    %v600 = vpop.f32.mrf.mxu0
    %v601 = vadd.f32 0.0, %v600
    %v602 = vpop.f32.mrf.mxu0
    %v603 = vadd.f32 0.0, %v602
    %604 = vmatmul.bf16.gmra.mxu0 %v371
    %v605 = vpop.f32.mrf.mxu0
    %v606 = vadd.f32 0.0, %v605
    %v607 = vpop.f32.mrf.mxu0
    %v608 = vadd.f32 0.0, %v607
    %609 = vmatmul.bf16.gmra.mxu0 %v372
    %v610 = vpop.f32.mrf.mxu0
    %v611 = vadd.f32 0.0, %v610
    %v612 = vpop.f32.mrf.mxu0
    %v613 = vadd.f32 0.0, %v612
    %614 = vmatmul.bf16.gmra.mxu0 %v373
    %v615 = vpop.f32.mrf.mxu0
    %v616 = vadd.f32 0.0, %v615
    %v617 = vpop.f32.mrf.mxu0
    %v618 = vadd.f32 0.0, %v617
    %619 = vmatmul.bf16.gmra.mxu0 %v374
    %v620 = vpop.f32.mrf.mxu0
    %v621 = vadd.f32 0.0, %v620
    %v622 = vpop.f32.mrf.mxu0
    %v623 = vadd.f32 0.0, %v622
    %624 = vmatmul.bf16.gmra.mxu0 %v375
    %v625 = vpop.f32.mrf.mxu0
    %v626 = vadd.f32 0.0, %v625
    %v627 = vpop.f32.mrf.mxu0
    %v628 = vadd.f32 0.0, %v627
    %629 = vmatmul.bf16.gmra.mxu0 %v376
    %v630 = vpop.f32.mrf.mxu0
    %v631 = vadd.f32 0.0, %v630
    %v632 = vpop.f32.mrf.mxu0
    %v633 = vadd.f32 0.0, %v632
    %634 = vmatmul.bf16.gmra.mxu0 %v377
    %v635 = vpop.f32.mrf.mxu0
    %v636 = vadd.f32 0.0, %v635
    %v637 = vpop.f32.mrf.mxu0
    %v638 = vadd.f32 0.0, %v637
    %639 = vmatmul.bf16.gmra.mxu0 %v378
    %v640 = vpop.f32.mrf.mxu0
    %v641 = vadd.f32 0.0, %v640
    %v642 = vpop.f32.mrf.mxu0
    %v643 = vadd.f32 0.0, %v642
    %644 = vmatmul.bf16.gmra.mxu0 %v379
    %v645 = vpop.f32.mrf.mxu0
    %v646 = vadd.f32 0.0, %v645
    %v647 = vpop.f32.mrf.mxu0
    %v648 = vadd.f32 0.0, %v647
    %649 = vmatmul.bf16.gmra.mxu0 %v380
    %v650 = vpop.f32.mrf.mxu0
    %v651 = vadd.f32 0.0, %v650
    %v652 = vpop.f32.mrf.mxu0
    %v653 = vadd.f32 0.0, %v652
    %654 = vdwg.mxu0
    %v655 = vadd.f32 %v487, %v489
    %v656 = vadd.f32 %v655, %v492
    %v657 = vadd.f32 %v656, %v494
    %v658 = vadd.f32 %v657, %v497
    %v659 = vadd.f32 %v658, %v499
    %v660 = vadd.f32 %v659, %v502
    %v661 = vadd.f32 %v660, %v504
    %v662 = vadd.f32 %v661, %v507
    %v663 = vadd.f32 %v662, %v509
    %v664 = vadd.f32 %v663, %v512
    %v665 = vadd.f32 %v664, %v514
    %v666 = vadd.f32 %v665, %v517
    %v667 = vadd.f32 %v666, %v519
    %v668 = vadd.f32 %v667, %v522
    %v669 = vadd.f32 %v668, %v524
    %v670 = vadd.f32 %v669, %v527
    %v671 = vadd.f32 %v670, %v529
    %v672 = vadd.f32 %v671, %v532
    %v673 = vadd.f32 %v672, %v534
    %v674 = vadd.f32 %v673, %v537
    %v675 = vadd.f32 %v674, %v539
    %v676 = vadd.f32 %v675, %v542
    %v677 = vadd.f32 %v676, %v544
    %v678 = vadd.f32 %v677, %v547
    %v679 = vadd.f32 %v678, %v549
    %v680 = vadd.f32 %v679, %v552
    %v681 = vadd.f32 %v680, %v554
    %v682 = vadd.f32 %v681, %v557
    %v683 = vadd.f32 %v682, %v559
    %v684 = vadd.f32 %v683, %v562
    %v685 = vadd.f32 %v684, %v564
    %v686 = vrot.slane %v685, 4
    %v687 = vadd.f32 %v685, %v686
    %v688 = vrot.slane %v687, 2
    %v689 = vadd.f32 %v687, %v688
    %v690 = vrot.slane %v689, 1
    %v691 = vadd.f32 %v689, %v690
    %v692 = vadd.f32 %v576, %v578
    %v693 = vadd.f32 %v692, %v581
    %v694 = vadd.f32 %v693, %v583
    %v695 = vadd.f32 %v694, %v586
    %v696 = vadd.f32 %v695, %v588
    %v697 = vadd.f32 %v696, %v591
    %v698 = vadd.f32 %v697, %v593
    %v699 = vadd.f32 %v698, %v596
    %v700 = vadd.f32 %v699, %v598
    %v701 = vadd.f32 %v700, %v601
    %v702 = vadd.f32 %v701, %v603
    %v703 = vadd.f32 %v702, %v606
    %v704 = vadd.f32 %v703, %v608
    %v705 = vadd.f32 %v704, %v611
    %v706 = vadd.f32 %v705, %v613
    %v707 = vadd.f32 %v706, %v616
    %v708 = vadd.f32 %v707, %v618
    %v709 = vadd.f32 %v708, %v621
    %v710 = vadd.f32 %v709, %v623
    %v711 = vadd.f32 %v710, %v626
    %v712 = vadd.f32 %v711, %v628
    %v713 = vadd.f32 %v712, %v631
    %v714 = vadd.f32 %v713, %v633
    %v715 = vadd.f32 %v714, %v636
    %v716 = vadd.f32 %v715, %v638
    %v717 = vadd.f32 %v716, %v641
    %v718 = vadd.f32 %v717, %v643
    %v719 = vadd.f32 %v718, %v646
    %v720 = vadd.f32 %v719, %v648
    %v721 = vadd.f32 %v720, %v651
    %v722 = vadd.f32 %v721, %v653
    %v723 = vrot.slane %v722, 4
    %v724 = vadd.f32 %v722, %v723
    %v725 = vrot.slane %v724, 2
    %v726 = vadd.f32 %v724, %v725
    %v727 = vrot.slane %v726, 1
    %v728 = vadd.f32 %v726, %v727
    %v729 = vmul.f32 %v691, 0.00390625
    %v730 = vmul.f32 %v728, 0.00390625
    %v731 = vsub.f32 %v487, %v729
    %v732 = vsub.f32 %v576, %v730
    %v733 = vsub.f32 %v489, %v729
    %v734 = vsub.f32 %v578, %v730
    %v735 = vsub.f32 %v492, %v729
    %v736 = vsub.f32 %v581, %v730
    %v737 = vsub.f32 %v494, %v729
    %v738 = vsub.f32 %v583, %v730
    %v739 = vsub.f32 %v497, %v729
    %v740 = vsub.f32 %v586, %v730
    %v741 = vsub.f32 %v499, %v729
    %v742 = vsub.f32 %v588, %v730
    %v743 = vsub.f32 %v502, %v729
    %v744 = vsub.f32 %v591, %v730
    %v745 = vsub.f32 %v504, %v729
    %v746 = vsub.f32 %v593, %v730
    %v747 = vsub.f32 %v507, %v729
    %v748 = vsub.f32 %v596, %v730
    %v749 = vsub.f32 %v509, %v729
    %v750 = vsub.f32 %v598, %v730
    %v751 = vsub.f32 %v512, %v729
    %v752 = vsub.f32 %v601, %v730
    %v753 = vsub.f32 %v514, %v729
    %v754 = vsub.f32 %v603, %v730
    %v755 = vsub.f32 %v517, %v729
    %v756 = vsub.f32 %v606, %v730
    %v757 = vsub.f32 %v519, %v729
    %v758 = vsub.f32 %v608, %v730
    %v759 = vsub.f32 %v522, %v729
    %v760 = vsub.f32 %v611, %v730
    %v761 = vsub.f32 %v524, %v729
    %v762 = vsub.f32 %v613, %v730
    %v763 = vsub.f32 %v527, %v729
    %v764 = vsub.f32 %v616, %v730
    %v765 = vsub.f32 %v529, %v729
    %v766 = vsub.f32 %v618, %v730
    %v767 = vsub.f32 %v532, %v729
    %v768 = vsub.f32 %v621, %v730
    %v769 = vsub.f32 %v534, %v729
    %v770 = vsub.f32 %v623, %v730
    %v771 = vsub.f32 %v537, %v729
    %v772 = vsub.f32 %v626, %v730
    %v773 = vsub.f32 %v539, %v729
    %v774 = vsub.f32 %v628, %v730
    %v775 = vsub.f32 %v542, %v729
    %v776 = vsub.f32 %v631, %v730
    %v777 = vsub.f32 %v544, %v729
    %v778 = vsub.f32 %v633, %v730
    %v779 = vsub.f32 %v547, %v729
    %v780 = vsub.f32 %v636, %v730
    %v781 = vsub.f32 %v549, %v729
    %v782 = vsub.f32 %v638, %v730
    %v783 = vsub.f32 %v552, %v729
    %v784 = vsub.f32 %v641, %v730
    %v785 = vsub.f32 %v554, %v729
    %v786 = vsub.f32 %v643, %v730
    %v787 = vsub.f32 %v557, %v729
    %v788 = vsub.f32 %v646, %v730
    %v789 = vsub.f32 %v559, %v729
    %v790 = vsub.f32 %v648, %v730
    %v791 = vsub.f32 %v562, %v729
    %v792 = vsub.f32 %v651, %v730
    %v793 = vsub.f32 %v564, %v729
    %v794 = vsub.f32 %v653, %v730
    %v795 = vmul.f32 %v731, %v731
    %v796 = vmul.f32 %v732, %v732
    %v797 = vmul.f32 %v733, %v733
    %v798 = vmul.f32 %v734, %v734
    %v799 = vmul.f32 %v735, %v735
    %v800 = vmul.f32 %v736, %v736
    %v801 = vmul.f32 %v737, %v737
    %v802 = vmul.f32 %v738, %v738
    %v803 = vmul.f32 %v739, %v739
    %v804 = vmul.f32 %v740, %v740
    %v805 = vmul.f32 %v741, %v741
    %v806 = vmul.f32 %v742, %v742
    %v807 = vmul.f32 %v743, %v743
    %v808 = vmul.f32 %v744, %v744
    %v809 = vmul.f32 %v745, %v745
    %v810 = vmul.f32 %v746, %v746
    %v811 = vmul.f32 %v747, %v747
    %v812 = vmul.f32 %v748, %v748
    %v813 = vmul.f32 %v749, %v749
    %v814 = vmul.f32 %v750, %v750
    %v815 = vmul.f32 %v751, %v751
    %v816 = vmul.f32 %v752, %v752
    %v817 = vmul.f32 %v753, %v753
    %v818 = vmul.f32 %v754, %v754
    %v819 = vmul.f32 %v755, %v755
    %v820 = vmul.f32 %v756, %v756
    %v821 = vmul.f32 %v757, %v757
    %v822 = vmul.f32 %v758, %v758
    %v823 = vmul.f32 %v759, %v759
    %v824 = vmul.f32 %v760, %v760
    %v825 = vmul.f32 %v761, %v761
    %v826 = vmul.f32 %v762, %v762
    %v827 = vmul.f32 %v763, %v763
    %v828 = vmul.f32 %v764, %v764
    %v829 = vmul.f32 %v765, %v765
    %v830 = vmul.f32 %v766, %v766
    %v831 = vmul.f32 %v767, %v767
    %v832 = vmul.f32 %v768, %v768
    %v833 = vmul.f32 %v769, %v769
    %v834 = vmul.f32 %v770, %v770
    %v835 = vmul.f32 %v771, %v771
    %v836 = vmul.f32 %v772, %v772
    %v837 = vmul.f32 %v773, %v773
    %v838 = vmul.f32 %v774, %v774
    %v839 = vmul.f32 %v775, %v775
    %v840 = vmul.f32 %v776, %v776
    %v841 = vmul.f32 %v777, %v777
    %v842 = vmul.f32 %v778, %v778
    %v843 = vmul.f32 %v779, %v779
    %v844 = vmul.f32 %v780, %v780
    %v845 = vmul.f32 %v781, %v781
    %v846 = vmul.f32 %v782, %v782
    %v847 = vmul.f32 %v783, %v783
    %v848 = vmul.f32 %v784, %v784
    %v849 = vmul.f32 %v785, %v785
    %v850 = vmul.f32 %v786, %v786
    %v851 = vmul.f32 %v787, %v787
    %v852 = vmul.f32 %v788, %v788
    %v853 = vmul.f32 %v789, %v789
    %v854 = vmul.f32 %v790, %v790
    %v855 = vmul.f32 %v791, %v791
    %v856 = vmul.f32 %v792, %v792
    %v857 = vmul.f32 %v793, %v793
    %v858 = vmul.f32 %v794, %v794
    %v859 = vadd.f32 %v795, %v797
    %v860 = vadd.f32 %v859, %v799
    %v861 = vadd.f32 %v860, %v801
    %v862 = vadd.f32 %v861, %v803
    %v863 = vadd.f32 %v862, %v805
    %v864 = vadd.f32 %v863, %v807
    %v865 = vadd.f32 %v864, %v809
    %v866 = vadd.f32 %v865, %v811
    %v867 = vadd.f32 %v866, %v813
    %v868 = vadd.f32 %v867, %v815
    %v869 = vadd.f32 %v868, %v817
    %v870 = vadd.f32 %v869, %v819
    %v871 = vadd.f32 %v870, %v821
    %v872 = vadd.f32 %v871, %v823
    %v873 = vadd.f32 %v872, %v825
    %v874 = vadd.f32 %v873, %v827
    %v875 = vadd.f32 %v874, %v829
    %v876 = vadd.f32 %v875, %v831
    %v877 = vadd.f32 %v876, %v833
    %v878 = vadd.f32 %v877, %v835
    %v879 = vadd.f32 %v878, %v837
    %v880 = vadd.f32 %v879, %v839
    %v881 = vadd.f32 %v880, %v841
    %v882 = vadd.f32 %v881, %v843
    %v883 = vadd.f32 %v882, %v845
    %v884 = vadd.f32 %v883, %v847
    %v885 = vadd.f32 %v884, %v849
    %v886 = vadd.f32 %v885, %v851
    %v887 = vadd.f32 %v886, %v853
    %v888 = vadd.f32 %v887, %v855
    %v889 = vadd.f32 %v888, %v857
    %v890 = vrot.slane %v889, 4
    %v891 = vadd.f32 %v889, %v890
    %v892 = vrot.slane %v891, 2
    %v893 = vadd.f32 %v891, %v892
    %v894 = vrot.slane %v893, 1
    %v895 = vadd.f32 %v893, %v894
    %v896 = vadd.f32 %v796, %v798
    %v897 = vadd.f32 %v896, %v800
    %v898 = vadd.f32 %v897, %v802
    %v899 = vadd.f32 %v898, %v804
    %v900 = vadd.f32 %v899, %v806
    %v901 = vadd.f32 %v900, %v808
    %v902 = vadd.f32 %v901, %v810
    %v903 = vadd.f32 %v902, %v812
    %v904 = vadd.f32 %v903, %v814
    %v905 = vadd.f32 %v904, %v816
    %v906 = vadd.f32 %v905, %v818
    %v907 = vadd.f32 %v906, %v820
    %v908 = vadd.f32 %v907, %v822
    %v909 = vadd.f32 %v908, %v824
    %v910 = vadd.f32 %v909, %v826
    %v911 = vadd.f32 %v910, %v828
    %v912 = vadd.f32 %v911, %v830
    %v913 = vadd.f32 %v912, %v832
    %v914 = vadd.f32 %v913, %v834
    %v915 = vadd.f32 %v914, %v836
    %v916 = vadd.f32 %v915, %v838
    %v917 = vadd.f32 %v916, %v840
    %v918 = vadd.f32 %v917, %v842
    %v919 = vadd.f32 %v918, %v844
    %v920 = vadd.f32 %v919, %v846
    %v921 = vadd.f32 %v920, %v848
    %v922 = vadd.f32 %v921, %v850
    %v923 = vadd.f32 %v922, %v852
    %v924 = vadd.f32 %v923, %v854
    %v925 = vadd.f32 %v924, %v856
    %v926 = vadd.f32 %v925, %v858
    %v927 = vrot.slane %v926, 4
    %v928 = vadd.f32 %v926, %v927
    %v929 = vrot.slane %v928, 2
    %v930 = vadd.f32 %v928, %v929
    %v931 = vrot.slane %v930, 1
    %v932 = vadd.f32 %v930, %v931
    %v933 = vmul.f32 %v895, 0.00390625
    %v934 = vmul.f32 %v932, 0.00390625
    %v935 = vld [vmem:[%s4] sm:$0x3]
    %v936 = vadd.f32 %v933, 0.8
    %v937 = vadd.f32 %v934, 0.8
    %v938 = vrsqrt.pop %v936
    %v939 = vmul.f32 %v938, %v936
    %v940 = vmul.f32 %v939, %v938
    %v941 = vmul.f32 0.5, %v940
    %v942 = vsub.f32 1.5, %v941
    %v943 = vmul.f32 %v938, %v942
    %vm944 = vweird.f32 %v936
    %vm945 = vweird.f32 %v938
    %vm946 = vmor %vm944, %vm945
    %v947 = vsel %vm946, %v938, %v943
    %v948 = vrsqrt.pop %v937
    %v949 = vmul.f32 %v948, %v937
    %v950 = vmul.f32 %v949, %v948
    %v951 = vmul.f32 0.5, %v950
    %v952 = vsub.f32 1.5, %v951
    %v953 = vmul.f32 %v948, %v952
    %vm954 = vweird.f32 %v937
    %vm955 = vweird.f32 %v948
    %vm956 = vmor %vm954, %vm955
    %v957 = vsel %vm956, %v948, %v953
    %v960 = vrot.slane %v957, 7
    %vm961 = vcmask 1040384
    %v962 = vsel %vm961, %v947, %v960
    %v964 = vmul.f32 %v935, %v962
    %v966 = vperm.slane %v964, 0
    %v967 = vperm.slane %v964, 1
    %v970 = vmul.f32 %v731, %v966
    %v971 = vmul.f32 %v732, %v967
    %v972 = vmul.f32 %v733, %v966
    %v973 = vmul.f32 %v734, %v967
    %v974 = vmul.f32 %v735, %v966
    %v975 = vmul.f32 %v736, %v967
    %v976 = vmul.f32 %v737, %v966
    %v977 = vmul.f32 %v738, %v967
    %v978 = vmul.f32 %v739, %v966
    %v979 = vmul.f32 %v740, %v967
    %v980 = vmul.f32 %v741, %v966
    %v981 = vmul.f32 %v742, %v967
    %v982 = vmul.f32 %v743, %v966
    %v983 = vmul.f32 %v744, %v967
    %v984 = vmul.f32 %v745, %v966
    %v985 = vmul.f32 %v746, %v967
    %v986 = vmul.f32 %v747, %v966
    %v987 = vmul.f32 %v748, %v967
    %v988 = vmul.f32 %v749, %v966
    %v989 = vmul.f32 %v750, %v967
    %v990 = vmul.f32 %v751, %v966
    %v991 = vmul.f32 %v752, %v967
    %v992 = vmul.f32 %v753, %v966
    %v993 = vmul.f32 %v754, %v967
    %v994 = vmul.f32 %v755, %v966
    %v995 = vmul.f32 %v756, %v967
    %v996 = vmul.f32 %v757, %v966
    %v997 = vmul.f32 %v758, %v967
    %v998 = vmul.f32 %v759, %v966
    %v999 = vmul.f32 %v760, %v967
    %v1000 = vmul.f32 %v761, %v966
    %v1001 = vmul.f32 %v762, %v967
    %v1002 = vmul.f32 %v763, %v966
    %v1003 = vmul.f32 %v764, %v967
    %v1004 = vmul.f32 %v765, %v966
    %v1005 = vmul.f32 %v766, %v967
    %v1006 = vmul.f32 %v767, %v966
    %v1007 = vmul.f32 %v768, %v967
    %v1008 = vmul.f32 %v769, %v966
    %v1009 = vmul.f32 %v770, %v967
    %v1010 = vmul.f32 %v771, %v966
    %v1011 = vmul.f32 %v772, %v967
    %v1012 = vmul.f32 %v773, %v966
    %v1013 = vmul.f32 %v774, %v967
    %v1014 = vmul.f32 %v775, %v966
    %v1015 = vmul.f32 %v776, %v967
    %v1016 = vmul.f32 %v777, %v966
    %v1017 = vmul.f32 %v778, %v967
    %v1018 = vmul.f32 %v779, %v966
    %v1019 = vmul.f32 %v780, %v967
    %v1020 = vmul.f32 %v781, %v966
    %v1021 = vmul.f32 %v782, %v967
    %v1022 = vmul.f32 %v783, %v966
    %v1023 = vmul.f32 %v784, %v967
    %v1024 = vmul.f32 %v785, %v966
    %v1025 = vmul.f32 %v786, %v967
    %v1026 = vmul.f32 %v787, %v966
    %v1027 = vmul.f32 %v788, %v967
    %v1028 = vmul.f32 %v789, %v966
    %v1029 = vmul.f32 %v790, %v967
    %v1030 = vmul.f32 %v791, %v966
    %v1031 = vmul.f32 %v792, %v967
    %v1032 = vmul.f32 %v793, %v966
    %v1033 = vmul.f32 %v794, %v967
    %v1034 = vld [vmem:[%s5] sm:$0x3]
    %v1036 = vperm.slane %v1034, 0
    %v1037 = vperm.slane %v1034, 1
    %v1040 = vadd.f32 %v970, %v1036
    %v1041 = vadd.f32 %v971, %v1037
    %v1042 = vadd.f32 %v972, %v1036
    %v1043 = vadd.f32 %v973, %v1037
    %v1044 = vadd.f32 %v974, %v1036
    %v1045 = vadd.f32 %v975, %v1037
    %v1046 = vadd.f32 %v976, %v1036
    %v1047 = vadd.f32 %v977, %v1037
    %v1048 = vadd.f32 %v978, %v1036
    %v1049 = vadd.f32 %v979, %v1037
    %v1050 = vadd.f32 %v980, %v1036
    %v1051 = vadd.f32 %v981, %v1037
    %v1052 = vadd.f32 %v982, %v1036
    %v1053 = vadd.f32 %v983, %v1037
    %v1054 = vadd.f32 %v984, %v1036
    %v1055 = vadd.f32 %v985, %v1037
    %v1056 = vadd.f32 %v986, %v1036
    %v1057 = vadd.f32 %v987, %v1037
    %v1058 = vadd.f32 %v988, %v1036
    %v1059 = vadd.f32 %v989, %v1037
    %v1060 = vadd.f32 %v990, %v1036
    %v1061 = vadd.f32 %v991, %v1037
    %v1062 = vadd.f32 %v992, %v1036
    %v1063 = vadd.f32 %v993, %v1037
    %v1064 = vadd.f32 %v994, %v1036
    %v1065 = vadd.f32 %v995, %v1037
    %v1066 = vadd.f32 %v996, %v1036
    %v1067 = vadd.f32 %v997, %v1037
    %v1068 = vadd.f32 %v998, %v1036
    %v1069 = vadd.f32 %v999, %v1037
    %v1070 = vadd.f32 %v1000, %v1036
    %v1071 = vadd.f32 %v1001, %v1037
    %v1072 = vadd.f32 %v1002, %v1036
    %v1073 = vadd.f32 %v1003, %v1037
    %v1074 = vadd.f32 %v1004, %v1036
    %v1075 = vadd.f32 %v1005, %v1037
    %v1076 = vadd.f32 %v1006, %v1036
    %v1077 = vadd.f32 %v1007, %v1037
    %v1078 = vadd.f32 %v1008, %v1036
    %v1079 = vadd.f32 %v1009, %v1037
    %v1080 = vadd.f32 %v1010, %v1036
    %v1081 = vadd.f32 %v1011, %v1037
    %v1082 = vadd.f32 %v1012, %v1036
    %v1083 = vadd.f32 %v1013, %v1037
    %v1084 = vadd.f32 %v1014, %v1036
    %v1085 = vadd.f32 %v1015, %v1037
    %v1086 = vadd.f32 %v1016, %v1036
    %v1087 = vadd.f32 %v1017, %v1037
    %v1088 = vadd.f32 %v1018, %v1036
    %v1089 = vadd.f32 %v1019, %v1037
    %v1090 = vadd.f32 %v1020, %v1036
    %v1091 = vadd.f32 %v1021, %v1037
    %v1092 = vadd.f32 %v1022, %v1036
    %v1093 = vadd.f32 %v1023, %v1037
    %v1094 = vadd.f32 %v1024, %v1036
    %v1095 = vadd.f32 %v1025, %v1037
    %v1096 = vadd.f32 %v1026, %v1036
    %v1097 = vadd.f32 %v1027, %v1037
    %v1098 = vadd.f32 %v1028, %v1036
    %v1099 = vadd.f32 %v1029, %v1037
    %v1100 = vadd.f32 %v1030, %v1036
    %v1101 = vadd.f32 %v1031, %v1037
    %v1102 = vadd.f32 %v1032, %v1036
    %v1103 = vadd.f32 %v1033, %v1037
    %v1104 = vmul.f32 %v1040, 0.2
    %v1105 = vmul.f32 %v1041, 0.2
    %v1106 = vmul.f32 %v1042, 0.2
    %v1107 = vmul.f32 %v1043, 0.2
    %v1108 = vmul.f32 %v1044, 0.2
    %v1109 = vmul.f32 %v1045, 0.2
    %v1110 = vmul.f32 %v1046, 0.2
    %v1111 = vmul.f32 %v1047, 0.2
    %v1112 = vmul.f32 %v1048, 0.2
    %v1113 = vmul.f32 %v1049, 0.2
    %v1114 = vmul.f32 %v1050, 0.2
    %v1115 = vmul.f32 %v1051, 0.2
    %v1116 = vmul.f32 %v1052, 0.2
    %v1117 = vmul.f32 %v1053, 0.2
    %v1118 = vmul.f32 %v1054, 0.2
    %v1119 = vmul.f32 %v1055, 0.2
    %v1120 = vmul.f32 %v1056, 0.2
    %v1121 = vmul.f32 %v1057, 0.2
    %v1122 = vmul.f32 %v1058, 0.2
    %v1123 = vmul.f32 %v1059, 0.2
    %v1124 = vmul.f32 %v1060, 0.2
    %v1125 = vmul.f32 %v1061, 0.2
    %v1126 = vmul.f32 %v1062, 0.2
    %v1127 = vmul.f32 %v1063, 0.2
    %v1128 = vmul.f32 %v1064, 0.2
    %v1129 = vmul.f32 %v1065, 0.2
    %v1130 = vmul.f32 %v1066, 0.2
    %v1131 = vmul.f32 %v1067, 0.2
    %v1132 = vmul.f32 %v1068, 0.2
    %v1133 = vmul.f32 %v1069, 0.2
    %v1134 = vmul.f32 %v1070, 0.2
    %v1135 = vmul.f32 %v1071, 0.2
    %v1136 = vmul.f32 %v1072, 0.2
    %v1137 = vmul.f32 %v1073, 0.2
    %v1138 = vmul.f32 %v1074, 0.2
    %v1139 = vmul.f32 %v1075, 0.2
    %v1140 = vmul.f32 %v1076, 0.2
    %v1141 = vmul.f32 %v1077, 0.2
    %v1142 = vmul.f32 %v1078, 0.2
    %v1143 = vmul.f32 %v1079, 0.2
    %v1144 = vmul.f32 %v1080, 0.2
    %v1145 = vmul.f32 %v1081, 0.2
    %v1146 = vmul.f32 %v1082, 0.2
    %v1147 = vmul.f32 %v1083, 0.2
    %v1148 = vmul.f32 %v1084, 0.2
    %v1149 = vmul.f32 %v1085, 0.2
    %v1150 = vmul.f32 %v1086, 0.2
    %v1151 = vmul.f32 %v1087, 0.2
    %v1152 = vmul.f32 %v1088, 0.2
    %v1153 = vmul.f32 %v1089, 0.2
    %v1154 = vmul.f32 %v1090, 0.2
    %v1155 = vmul.f32 %v1091, 0.2
    %v1156 = vmul.f32 %v1092, 0.2
    %v1157 = vmul.f32 %v1093, 0.2
    %v1158 = vmul.f32 %v1094, 0.2
    %v1159 = vmul.f32 %v1095, 0.2
    %v1160 = vmul.f32 %v1096, 0.2
    %v1161 = vmul.f32 %v1097, 0.2
    %v1162 = vmul.f32 %v1098, 0.2
    %v1163 = vmul.f32 %v1099, 0.2
    %v1164 = vmul.f32 %v1100, 0.2
    %v1165 = vmul.f32 %v1101, 0.2
    %v1166 = vmul.f32 %v1102, 0.2
    %v1167 = vmul.f32 %v1103, 0.2
    %v1168 = vmax.f32 %v1040, %v1104
    %v1169 = vmax.f32 %v1041, %v1105
    %v1170 = vmax.f32 %v1042, %v1106
    %v1171 = vmax.f32 %v1043, %v1107
    %v1172 = vmax.f32 %v1044, %v1108
    %v1173 = vmax.f32 %v1045, %v1109
    %v1174 = vmax.f32 %v1046, %v1110
    %v1175 = vmax.f32 %v1047, %v1111
    %v1176 = vmax.f32 %v1048, %v1112
    %v1177 = vmax.f32 %v1049, %v1113
    %v1178 = vmax.f32 %v1050, %v1114
    %v1179 = vmax.f32 %v1051, %v1115
    %v1180 = vmax.f32 %v1052, %v1116
    %v1181 = vmax.f32 %v1053, %v1117
    %v1182 = vmax.f32 %v1054, %v1118
    %v1183 = vmax.f32 %v1055, %v1119
    %v1184 = vmax.f32 %v1056, %v1120
    %v1185 = vmax.f32 %v1057, %v1121
    %v1186 = vmax.f32 %v1058, %v1122
    %v1187 = vmax.f32 %v1059, %v1123
    %v1188 = vmax.f32 %v1060, %v1124
    %v1189 = vmax.f32 %v1061, %v1125
    %v1190 = vmax.f32 %v1062, %v1126
    %v1191 = vmax.f32 %v1063, %v1127
    %v1192 = vmax.f32 %v1064, %v1128
    %v1193 = vmax.f32 %v1065, %v1129
    %v1194 = vmax.f32 %v1066, %v1130
    %v1195 = vmax.f32 %v1067, %v1131
    %v1196 = vmax.f32 %v1068, %v1132
    %v1197 = vmax.f32 %v1069, %v1133
    %v1198 = vmax.f32 %v1070, %v1134
    %v1199 = vmax.f32 %v1071, %v1135
    %v1200 = vmax.f32 %v1072, %v1136
    %v1201 = vmax.f32 %v1073, %v1137
    %v1202 = vmax.f32 %v1074, %v1138
    %v1203 = vmax.f32 %v1075, %v1139
    %v1204 = vmax.f32 %v1076, %v1140
    %v1205 = vmax.f32 %v1077, %v1141
    %v1206 = vmax.f32 %v1078, %v1142
    %v1207 = vmax.f32 %v1079, %v1143
    %v1208 = vmax.f32 %v1080, %v1144
    %v1209 = vmax.f32 %v1081, %v1145
    %v1210 = vmax.f32 %v1082, %v1146
    %v1211 = vmax.f32 %v1083, %v1147
    %v1212 = vmax.f32 %v1084, %v1148
    %v1213 = vmax.f32 %v1085, %v1149
    %v1214 = vmax.f32 %v1086, %v1150
    %v1215 = vmax.f32 %v1087, %v1151
    %v1216 = vmax.f32 %v1088, %v1152
    %v1217 = vmax.f32 %v1089, %v1153
    %v1218 = vmax.f32 %v1090, %v1154
    %v1219 = vmax.f32 %v1091, %v1155
    %v1220 = vmax.f32 %v1092, %v1156
    %v1221 = vmax.f32 %v1093, %v1157
    %v1222 = vmax.f32 %v1094, %v1158
    %v1223 = vmax.f32 %v1095, %v1159
    %v1224 = vmax.f32 %v1096, %v1160
    %v1225 = vmax.f32 %v1097, %v1161
    %v1226 = vmax.f32 %v1098, %v1162
    %v1227 = vmax.f32 %v1099, %v1163
    %v1228 = vmax.f32 %v1100, %v1164
    %v1229 = vmax.f32 %v1101, %v1165
    %v1230 = vmax.f32 %v1102, %v1166
    %v1231 = vmax.f32 %v1103, %v1167
    %v1232 = vpack.c.bf16 %v1170, %v1168
    %v1233 = vpack.c.bf16 %v1171, %v1169
    %v1234 = vpack.c.bf16 %v1174, %v1172
    %v1235 = vpack.c.bf16 %v1175, %v1173
    %v1236 = vpack.c.bf16 %v1178, %v1176
    %v1237 = vpack.c.bf16 %v1179, %v1177
    %v1238 = vpack.c.bf16 %v1182, %v1180
    %v1239 = vpack.c.bf16 %v1183, %v1181
    %v1240 = vpack.c.bf16 %v1186, %v1184
    %v1241 = vpack.c.bf16 %v1187, %v1185
    %v1242 = vpack.c.bf16 %v1190, %v1188
    %v1243 = vpack.c.bf16 %v1191, %v1189
    %v1244 = vpack.c.bf16 %v1194, %v1192
    %v1245 = vpack.c.bf16 %v1195, %v1193
    %v1246 = vpack.c.bf16 %v1198, %v1196
    %v1247 = vpack.c.bf16 %v1199, %v1197
    %v1248 = vpack.c.bf16 %v1202, %v1200
    %v1249 = vpack.c.bf16 %v1203, %v1201
    %v1250 = vpack.c.bf16 %v1206, %v1204
    %v1251 = vpack.c.bf16 %v1207, %v1205
    %v1252 = vpack.c.bf16 %v1210, %v1208
    %v1253 = vpack.c.bf16 %v1211, %v1209
    %v1254 = vpack.c.bf16 %v1214, %v1212
    %v1255 = vpack.c.bf16 %v1215, %v1213
    %v1256 = vpack.c.bf16 %v1218, %v1216
    %v1257 = vpack.c.bf16 %v1219, %v1217
    %v1258 = vpack.c.bf16 %v1222, %v1220
    %v1259 = vpack.c.bf16 %v1223, %v1221
    %v1260 = vpack.c.bf16 %v1226, %v1224
    %v1261 = vpack.c.bf16 %v1227, %v1225
    %v1262 = vpack.c.bf16 %v1230, %v1228
    %v1263 = vpack.c.bf16 %v1231, %v1229
    %v1264 = vld [vmem:[#allocation2] sm:$0xff]
    %v1265 = vld [vmem:[#allocation2 + $0x8] sm:$0xff]
    %v1266 = vld [vmem:[#allocation2 + $0x10] sm:$0xff]
    %v1267 = vld [vmem:[#allocation2 + $0x18] sm:$0xff]
    %v1268 = vld [vmem:[#allocation2 + $0x20] sm:$0xff]
    %v1269 = vld [vmem:[#allocation2 + $0x28] sm:$0xff]
    %v1270 = vld [vmem:[#allocation2 + $0x30] sm:$0xff]
    %v1271 = vld [vmem:[#allocation2 + $0x38] sm:$0xff]
    %v1272 = vld [vmem:[#allocation2 + $0x40] sm:$0xff]
    %v1273 = vld [vmem:[#allocation2 + $0x48] sm:$0xff]
    %v1274 = vld [vmem:[#allocation2 + $0x50] sm:$0xff]
    %v1275 = vld [vmem:[#allocation2 + $0x58] sm:$0xff]
    %v1276 = vld [vmem:[#allocation2 + $0x60] sm:$0xff]
    %v1277 = vld [vmem:[#allocation2 + $0x68] sm:$0xff]
    %v1278 = vld [vmem:[#allocation2 + $0x70] sm:$0xff]
    %v1279 = vld [vmem:[#allocation2 + $0x78] sm:$0xff]
    %v1280 = vld [vmem:[#allocation2 + $0x80] sm:$0xff]
    %v1281 = vld [vmem:[#allocation2 + $0x88] sm:$0xff]
    %v1282 = vld [vmem:[#allocation2 + $0x90] sm:$0xff]
    %v1283 = vld [vmem:[#allocation2 + $0x98] sm:$0xff]
    %v1284 = vld [vmem:[#allocation2 + $0xa0] sm:$0xff]
    %v1285 = vld [vmem:[#allocation2 + $0xa8] sm:$0xff]
    %v1286 = vld [vmem:[#allocation2 + $0xb0] sm:$0xff]
    %v1287 = vld [vmem:[#allocation2 + $0xb8] sm:$0xff]
    %v1288 = vld [vmem:[#allocation2 + $0xc0] sm:$0xff]
    %v1289 = vld [vmem:[#allocation2 + $0xc8] sm:$0xff]
    %v1290 = vld [vmem:[#allocation2 + $0xd0] sm:$0xff]
    %v1291 = vld [vmem:[#allocation2 + $0xd8] sm:$0xff]
    %v1292 = vld [vmem:[#allocation2 + $0xe0] sm:$0xff]
    %v1293 = vld [vmem:[#allocation2 + $0xe8] sm:$0xff]
    %v1294 = vld [vmem:[#allocation2 + $0xf0] sm:$0xff]
    %v1295 = vld [vmem:[#allocation2 + $0xf8] sm:$0xff]
    %v1296 = vld [vmem:[#allocation2 + $0x100] sm:$0xff]
    %v1297 = vld [vmem:[#allocation2 + $0x108] sm:$0xff]
    %v1298 = vld [vmem:[#allocation2 + $0x110] sm:$0xff]
    %v1299 = vld [vmem:[#allocation2 + $0x118] sm:$0xff]
    %v1300 = vld [vmem:[#allocation2 + $0x120] sm:$0xff]
    %v1301 = vld [vmem:[#allocation2 + $0x128] sm:$0xff]
    %v1302 = vld [vmem:[#allocation2 + $0x130] sm:$0xff]
    %v1303 = vld [vmem:[#allocation2 + $0x138] sm:$0xff]
    %v1304 = vld [vmem:[#allocation2 + $0x140] sm:$0xff]
    %v1305 = vld [vmem:[#allocation2 + $0x148] sm:$0xff]
    %v1306 = vld [vmem:[#allocation2 + $0x150] sm:$0xff]
    %v1307 = vld [vmem:[#allocation2 + $0x158] sm:$0xff]
    %v1308 = vld [vmem:[#allocation2 + $0x160] sm:$0xff]
    %v1309 = vld [vmem:[#allocation2 + $0x168] sm:$0xff]
    %v1310 = vld [vmem:[#allocation2 + $0x170] sm:$0xff]
    %v1311 = vld [vmem:[#allocation2 + $0x178] sm:$0xff]
    %v1312 = vld [vmem:[#allocation2 + $0x180] sm:$0xff]
    %v1313 = vld [vmem:[#allocation2 + $0x188] sm:$0xff]
    %v1314 = vld [vmem:[#allocation2 + $0x190] sm:$0xff]
    %v1315 = vld [vmem:[#allocation2 + $0x198] sm:$0xff]
    %v1316 = vld [vmem:[#allocation2 + $0x1a0] sm:$0xff]
    %v1317 = vld [vmem:[#allocation2 + $0x1a8] sm:$0xff]
    %v1318 = vld [vmem:[#allocation2 + $0x1b0] sm:$0xff]
    %v1319 = vld [vmem:[#allocation2 + $0x1b8] sm:$0xff]
    %v1320 = vld [vmem:[#allocation2 + $0x1c0] sm:$0xff]
    %v1321 = vld [vmem:[#allocation2 + $0x1c8] sm:$0xff]
    %v1322 = vld [vmem:[#allocation2 + $0x1d0] sm:$0xff]
    %v1323 = vld [vmem:[#allocation2 + $0x1d8] sm:$0xff]
    %v1324 = vld [vmem:[#allocation2 + $0x1e0] sm:$0xff]
    %v1325 = vld [vmem:[#allocation2 + $0x1e8] sm:$0xff]
    %v1326 = vld [vmem:[#allocation2 + $0x1f0] sm:$0xff]
    %v1327 = vld [vmem:[#allocation2 + $0x1f8] sm:$0xff]
    %v1392 = vunpack.c.l.b16 %v1264
    %v1393 = vunpack.c.h.b16 %v1264
    %v1394 = vunpack.c.l.b16 %v1265
    %v1395 = vunpack.c.h.b16 %v1265
    %v1396 = vunpack.c.l.b16 %v1266
    %v1397 = vunpack.c.h.b16 %v1266
    %v1398 = vunpack.c.l.b16 %v1267
    %v1399 = vunpack.c.h.b16 %v1267
    %v1400 = vunpack.c.l.b16 %v1268
    %v1401 = vunpack.c.h.b16 %v1268
    %v1402 = vunpack.c.l.b16 %v1269
    %v1403 = vunpack.c.h.b16 %v1269
    %v1404 = vunpack.c.l.b16 %v1270
    %v1405 = vunpack.c.h.b16 %v1270
    %v1406 = vunpack.c.l.b16 %v1271
    %v1407 = vunpack.c.h.b16 %v1271
    %v1408 = vunpack.c.l.b16 %v1272
    %v1409 = vunpack.c.h.b16 %v1272
    %v1410 = vunpack.c.l.b16 %v1273
    %v1411 = vunpack.c.h.b16 %v1273
    %v1412 = vunpack.c.l.b16 %v1274
    %v1413 = vunpack.c.h.b16 %v1274
    %v1414 = vunpack.c.l.b16 %v1275
    %v1415 = vunpack.c.h.b16 %v1275
    %v1416 = vunpack.c.l.b16 %v1276
    %v1417 = vunpack.c.h.b16 %v1276
    %v1418 = vunpack.c.l.b16 %v1277
    %v1419 = vunpack.c.h.b16 %v1277
    %v1420 = vunpack.c.l.b16 %v1278
    %v1421 = vunpack.c.h.b16 %v1278
    %v1422 = vunpack.c.l.b16 %v1279
    %v1423 = vunpack.c.h.b16 %v1279
    %v1424 = vunpack.c.l.b16 %v1280
    %v1425 = vunpack.c.h.b16 %v1280
    %v1426 = vunpack.c.l.b16 %v1281
    %v1427 = vunpack.c.h.b16 %v1281
    %v1428 = vunpack.c.l.b16 %v1282
    %v1429 = vunpack.c.h.b16 %v1282
    %v1430 = vunpack.c.l.b16 %v1283
    %v1431 = vunpack.c.h.b16 %v1283
    %v1432 = vunpack.c.l.b16 %v1284
    %v1433 = vunpack.c.h.b16 %v1284
    %v1434 = vunpack.c.l.b16 %v1285
    %v1435 = vunpack.c.h.b16 %v1285
    %v1436 = vunpack.c.l.b16 %v1286
    %v1437 = vunpack.c.h.b16 %v1286
    %v1438 = vunpack.c.l.b16 %v1287
    %v1439 = vunpack.c.h.b16 %v1287
    %v1440 = vunpack.c.l.b16 %v1288
    %v1441 = vunpack.c.h.b16 %v1288
    %v1442 = vunpack.c.l.b16 %v1289
    %v1443 = vunpack.c.h.b16 %v1289
    %v1444 = vunpack.c.l.b16 %v1290
    %v1445 = vunpack.c.h.b16 %v1290
    %v1446 = vunpack.c.l.b16 %v1291
    %v1447 = vunpack.c.h.b16 %v1291
    %v1448 = vunpack.c.l.b16 %v1292
    %v1449 = vunpack.c.h.b16 %v1292
    %v1450 = vunpack.c.l.b16 %v1293
    %v1451 = vunpack.c.h.b16 %v1293
    %v1452 = vunpack.c.l.b16 %v1294
    %v1453 = vunpack.c.h.b16 %v1294
    %v1454 = vunpack.c.l.b16 %v1295
    %v1455 = vunpack.c.h.b16 %v1295
    %v1456 = vunpack.c.l.b16 %v1296
    %v1457 = vunpack.c.h.b16 %v1296
    %v1458 = vunpack.c.l.b16 %v1297
    %v1459 = vunpack.c.h.b16 %v1297
    %v1460 = vunpack.c.l.b16 %v1298
    %v1461 = vunpack.c.h.b16 %v1298
    %v1462 = vunpack.c.l.b16 %v1299
    %v1463 = vunpack.c.h.b16 %v1299
    %v1464 = vunpack.c.l.b16 %v1300
    %v1465 = vunpack.c.h.b16 %v1300
    %v1466 = vunpack.c.l.b16 %v1301
    %v1467 = vunpack.c.h.b16 %v1301
    %v1468 = vunpack.c.l.b16 %v1302
    %v1469 = vunpack.c.h.b16 %v1302
    %v1470 = vunpack.c.l.b16 %v1303
    %v1471 = vunpack.c.h.b16 %v1303
    %v1472 = vunpack.c.l.b16 %v1304
    %v1473 = vunpack.c.h.b16 %v1304
    %v1474 = vunpack.c.l.b16 %v1305
    %v1475 = vunpack.c.h.b16 %v1305
    %v1476 = vunpack.c.l.b16 %v1306
    %v1477 = vunpack.c.h.b16 %v1306
    %v1478 = vunpack.c.l.b16 %v1307
    %v1479 = vunpack.c.h.b16 %v1307
    %v1480 = vunpack.c.l.b16 %v1308
    %v1481 = vunpack.c.h.b16 %v1308
    %v1482 = vunpack.c.l.b16 %v1309
    %v1483 = vunpack.c.h.b16 %v1309
    %v1484 = vunpack.c.l.b16 %v1310
    %v1485 = vunpack.c.h.b16 %v1310
    %v1486 = vunpack.c.l.b16 %v1311
    %v1487 = vunpack.c.h.b16 %v1311
    %v1488 = vunpack.c.l.b16 %v1312
    %v1489 = vunpack.c.h.b16 %v1312
    %v1490 = vunpack.c.l.b16 %v1313
    %v1491 = vunpack.c.h.b16 %v1313
    %v1492 = vunpack.c.l.b16 %v1314
    %v1493 = vunpack.c.h.b16 %v1314
    %v1494 = vunpack.c.l.b16 %v1315
    %v1495 = vunpack.c.h.b16 %v1315
    %v1496 = vunpack.c.l.b16 %v1316
    %v1497 = vunpack.c.h.b16 %v1316
    %v1498 = vunpack.c.l.b16 %v1317
    %v1499 = vunpack.c.h.b16 %v1317
    %v1500 = vunpack.c.l.b16 %v1318
    %v1501 = vunpack.c.h.b16 %v1318
    %v1502 = vunpack.c.l.b16 %v1319
    %v1503 = vunpack.c.h.b16 %v1319
    %v1504 = vunpack.c.l.b16 %v1320
    %v1505 = vunpack.c.h.b16 %v1320
    %v1506 = vunpack.c.l.b16 %v1321
    %v1507 = vunpack.c.h.b16 %v1321
    %v1508 = vunpack.c.l.b16 %v1322
    %v1509 = vunpack.c.h.b16 %v1322
    %v1510 = vunpack.c.l.b16 %v1323
    %v1511 = vunpack.c.h.b16 %v1323
    %v1512 = vunpack.c.l.b16 %v1324
    %v1513 = vunpack.c.h.b16 %v1324
    %v1514 = vunpack.c.l.b16 %v1325
    %v1515 = vunpack.c.h.b16 %v1325
    %v1516 = vunpack.c.l.b16 %v1326
    %v1517 = vunpack.c.h.b16 %v1326
    %v1518 = vunpack.c.l.b16 %v1327
    %v1519 = vunpack.c.h.b16 %v1327
    %v1520 = vpack.c.b16 %v1396, %v1392
    %v1521 = vpack.c.b16 %v1397, %v1393
    %v1522 = vpack.c.b16 %v1398, %v1394
    %v1523 = vpack.c.b16 %v1399, %v1395
    %v1524 = vpack.c.b16 %v1404, %v1400
    %v1525 = vpack.c.b16 %v1405, %v1401
    %v1526 = vpack.c.b16 %v1406, %v1402
    %v1527 = vpack.c.b16 %v1407, %v1403
    %v1528 = vpack.c.b16 %v1412, %v1408
    %v1529 = vpack.c.b16 %v1413, %v1409
    %v1530 = vpack.c.b16 %v1414, %v1410
    %v1531 = vpack.c.b16 %v1415, %v1411
    %v1532 = vpack.c.b16 %v1420, %v1416
    %v1533 = vpack.c.b16 %v1421, %v1417
    %v1534 = vpack.c.b16 %v1422, %v1418
    %v1535 = vpack.c.b16 %v1423, %v1419
    %v1536 = vpack.c.b16 %v1428, %v1424
    %v1537 = vpack.c.b16 %v1429, %v1425
    %v1538 = vpack.c.b16 %v1430, %v1426
    %v1539 = vpack.c.b16 %v1431, %v1427
    %v1540 = vpack.c.b16 %v1436, %v1432
    %v1541 = vpack.c.b16 %v1437, %v1433
    %v1542 = vpack.c.b16 %v1438, %v1434
    %v1543 = vpack.c.b16 %v1439, %v1435
    %v1544 = vpack.c.b16 %v1444, %v1440
    %v1545 = vpack.c.b16 %v1445, %v1441
    %v1546 = vpack.c.b16 %v1446, %v1442
    %v1547 = vpack.c.b16 %v1447, %v1443
    %v1548 = vpack.c.b16 %v1452, %v1448
    %v1549 = vpack.c.b16 %v1453, %v1449
    %v1550 = vpack.c.b16 %v1454, %v1450
    %v1551 = vpack.c.b16 %v1455, %v1451
    %v1552 = vpack.c.b16 %v1460, %v1456
    %v1553 = vpack.c.b16 %v1461, %v1457
    %v1554 = vpack.c.b16 %v1462, %v1458
    %v1555 = vpack.c.b16 %v1463, %v1459
    %v1556 = vpack.c.b16 %v1468, %v1464
    %v1557 = vpack.c.b16 %v1469, %v1465
    %v1558 = vpack.c.b16 %v1470, %v1466
    %v1559 = vpack.c.b16 %v1471, %v1467
    %v1560 = vpack.c.b16 %v1476, %v1472
    %v1561 = vpack.c.b16 %v1477, %v1473
    %v1562 = vpack.c.b16 %v1478, %v1474
    %v1563 = vpack.c.b16 %v1479, %v1475
    %v1564 = vpack.c.b16 %v1484, %v1480
    %v1565 = vpack.c.b16 %v1485, %v1481
    %v1566 = vpack.c.b16 %v1486, %v1482
    %v1567 = vpack.c.b16 %v1487, %v1483
    %v1568 = vpack.c.b16 %v1492, %v1488
    %v1569 = vpack.c.b16 %v1493, %v1489
    %v1570 = vpack.c.b16 %v1494, %v1490
    %v1571 = vpack.c.b16 %v1495, %v1491
    %v1572 = vpack.c.b16 %v1500, %v1496
    %v1573 = vpack.c.b16 %v1501, %v1497
    %v1574 = vpack.c.b16 %v1502, %v1498
    %v1575 = vpack.c.b16 %v1503, %v1499
    %v1576 = vpack.c.b16 %v1508, %v1504
    %v1577 = vpack.c.b16 %v1509, %v1505
    %v1578 = vpack.c.b16 %v1510, %v1506
    %v1579 = vpack.c.b16 %v1511, %v1507
    %v1580 = vpack.c.b16 %v1516, %v1512
    %v1581 = vpack.c.b16 %v1517, %v1513
    %v1582 = vpack.c.b16 %v1518, %v1514
    %v1583 = vpack.c.b16 %v1519, %v1515
    %1648 = vmatpush.bf16.msra.mxu0 %v1548
    %1649 = vmatpush.bf16.msra.mxu0 %v1544
    %1650 = vmatpush.bf16.msra.mxu0 %v1540
    %1651 = vmatpush.bf16.msra.mxu0 %v1536
    %1652 = vmatpush.bf16.msra.mxu0 %v1532
    %1653 = vmatpush.bf16.msra.mxu0 %v1528
    %1654 = vmatpush.bf16.msra.mxu0 %v1524
    %1655 = vmatpush.bf16.msra.mxu0 %v1520
    %1656 = vmatmul.bf16.gmra.mxu0 %v1232
    %v1657 = vpop.f32.mrf.mxu0
    %v1658 = vadd.f32 0.0, %v1657
    %v1659 = vpop.f32.mrf.mxu0
    %v1660 = vadd.f32 0.0, %v1659
    %1661 = vmatmul.bf16.gmra.mxu0 %v1234
    %v1662 = vpop.f32.mrf.mxu0
    %v1663 = vadd.f32 0.0, %v1662
    %v1664 = vpop.f32.mrf.mxu0
    %v1665 = vadd.f32 0.0, %v1664
    %1666 = vmatmul.bf16.gmra.mxu0 %v1236
    %v1667 = vpop.f32.mrf.mxu0
    %v1668 = vadd.f32 0.0, %v1667
    %v1669 = vpop.f32.mrf.mxu0
    %v1670 = vadd.f32 0.0, %v1669
    %1671 = vmatmul.bf16.gmra.mxu0 %v1238
    %v1672 = vpop.f32.mrf.mxu0
    %v1673 = vadd.f32 0.0, %v1672
    %v1674 = vpop.f32.mrf.mxu0
    %v1675 = vadd.f32 0.0, %v1674
    %1676 = vmatmul.bf16.gmra.mxu0 %v1240
    %v1677 = vpop.f32.mrf.mxu0
    %v1678 = vadd.f32 0.0, %v1677
    %v1679 = vpop.f32.mrf.mxu0
    %v1680 = vadd.f32 0.0, %v1679
    %1681 = vmatmul.bf16.gmra.mxu0 %v1242
    %v1682 = vpop.f32.mrf.mxu0
    %v1683 = vadd.f32 0.0, %v1682
    %v1684 = vpop.f32.mrf.mxu0
    %v1685 = vadd.f32 0.0, %v1684
    %1686 = vmatmul.bf16.gmra.mxu0 %v1244
    %v1687 = vpop.f32.mrf.mxu0
    %v1688 = vadd.f32 0.0, %v1687
    %v1689 = vpop.f32.mrf.mxu0
    %v1690 = vadd.f32 0.0, %v1689
    %1691 = vmatmul.bf16.gmra.mxu0 %v1246
    %v1692 = vpop.f32.mrf.mxu0
    %v1693 = vadd.f32 0.0, %v1692
    %v1694 = vpop.f32.mrf.mxu0
    %v1695 = vadd.f32 0.0, %v1694
    %1696 = vmatmul.bf16.gmra.mxu0 %v1248
    %v1697 = vpop.f32.mrf.mxu0
    %v1698 = vadd.f32 0.0, %v1697
    %v1699 = vpop.f32.mrf.mxu0
    %v1700 = vadd.f32 0.0, %v1699
    %1701 = vmatmul.bf16.gmra.mxu0 %v1250
    %v1702 = vpop.f32.mrf.mxu0
    %v1703 = vadd.f32 0.0, %v1702
    %v1704 = vpop.f32.mrf.mxu0
    %v1705 = vadd.f32 0.0, %v1704
    %1706 = vmatmul.bf16.gmra.mxu0 %v1252
    %v1707 = vpop.f32.mrf.mxu0
    %v1708 = vadd.f32 0.0, %v1707
    %v1709 = vpop.f32.mrf.mxu0
    %v1710 = vadd.f32 0.0, %v1709
    %1711 = vmatmul.bf16.gmra.mxu0 %v1254
    %v1712 = vpop.f32.mrf.mxu0
    %v1713 = vadd.f32 0.0, %v1712
    %v1714 = vpop.f32.mrf.mxu0
    %v1715 = vadd.f32 0.0, %v1714
    %1716 = vmatmul.bf16.gmra.mxu0 %v1256
    %v1717 = vpop.f32.mrf.mxu0
    %v1718 = vadd.f32 0.0, %v1717
    %v1719 = vpop.f32.mrf.mxu0
    %v1720 = vadd.f32 0.0, %v1719
    %1721 = vmatmul.bf16.gmra.mxu0 %v1258
    %v1722 = vpop.f32.mrf.mxu0
    %v1723 = vadd.f32 0.0, %v1722
    %v1724 = vpop.f32.mrf.mxu0
    %v1725 = vadd.f32 0.0, %v1724
    %1726 = vmatmul.bf16.gmra.mxu0 %v1260
    %v1727 = vpop.f32.mrf.mxu0
    %v1728 = vadd.f32 0.0, %v1727
    %v1729 = vpop.f32.mrf.mxu0
    %v1730 = vadd.f32 0.0, %v1729
    %1731 = vmatmul.bf16.gmra.mxu0 %v1262
    %v1732 = vpop.f32.mrf.mxu0
    %v1733 = vadd.f32 0.0, %v1732
    %v1734 = vpop.f32.mrf.mxu0
    %v1735 = vadd.f32 0.0, %v1734
    %1736 = vdwg.mxu0
    %1737 = vmatpush.bf16.msra.mxu0 %v1580
    %1738 = vmatpush.bf16.msra.mxu0 %v1576
    %1739 = vmatpush.bf16.msra.mxu0 %v1572
    %1740 = vmatpush.bf16.msra.mxu0 %v1568
    %1741 = vmatpush.bf16.msra.mxu0 %v1564
    %1742 = vmatpush.bf16.msra.mxu0 %v1560
    %1743 = vmatpush.bf16.msra.mxu0 %v1556
    %1744 = vmatpush.bf16.msra.mxu0 %v1552
    %1745 = vmatmul.bf16.gmra.mxu0 %v1233
    %v1746 = vpop.f32.mrf.mxu0
    %v1747 = vadd.f32 %v1658, %v1746
    %v1748 = vpop.f32.mrf.mxu0
    %v1749 = vadd.f32 %v1660, %v1748
    %1750 = vmatmul.bf16.gmra.mxu0 %v1235
    %v1751 = vpop.f32.mrf.mxu0
    %v1752 = vadd.f32 %v1663, %v1751
    %v1753 = vpop.f32.mrf.mxu0
    %v1754 = vadd.f32 %v1665, %v1753
    %1755 = vmatmul.bf16.gmra.mxu0 %v1237
    %v1756 = vpop.f32.mrf.mxu0
    %v1757 = vadd.f32 %v1668, %v1756
    %v1758 = vpop.f32.mrf.mxu0
    %v1759 = vadd.f32 %v1670, %v1758
    %1760 = vmatmul.bf16.gmra.mxu0 %v1239
    %v1761 = vpop.f32.mrf.mxu0
    %v1762 = vadd.f32 %v1673, %v1761
    %v1763 = vpop.f32.mrf.mxu0
    %v1764 = vadd.f32 %v1675, %v1763
    %1765 = vmatmul.bf16.gmra.mxu0 %v1241
    %v1766 = vpop.f32.mrf.mxu0
    %v1767 = vadd.f32 %v1678, %v1766
    %v1768 = vpop.f32.mrf.mxu0
    %v1769 = vadd.f32 %v1680, %v1768
    %1770 = vmatmul.bf16.gmra.mxu0 %v1243
    %v1771 = vpop.f32.mrf.mxu0
    %v1772 = vadd.f32 %v1683, %v1771
    %v1773 = vpop.f32.mrf.mxu0
    %v1774 = vadd.f32 %v1685, %v1773
    %1775 = vmatmul.bf16.gmra.mxu0 %v1245
    %v1776 = vpop.f32.mrf.mxu0
    %v1777 = vadd.f32 %v1688, %v1776
    %v1778 = vpop.f32.mrf.mxu0
    %v1779 = vadd.f32 %v1690, %v1778
    %1780 = vmatmul.bf16.gmra.mxu0 %v1247
    %v1781 = vpop.f32.mrf.mxu0
    %v1782 = vadd.f32 %v1693, %v1781
    %v1783 = vpop.f32.mrf.mxu0
    %v1784 = vadd.f32 %v1695, %v1783
    %1785 = vmatmul.bf16.gmra.mxu0 %v1249
    %v1786 = vpop.f32.mrf.mxu0
    %v1787 = vadd.f32 %v1698, %v1786
    %v1788 = vpop.f32.mrf.mxu0
    %v1789 = vadd.f32 %v1700, %v1788
    %1790 = vmatmul.bf16.gmra.mxu0 %v1251
    %v1791 = vpop.f32.mrf.mxu0
    %v1792 = vadd.f32 %v1703, %v1791
    %v1793 = vpop.f32.mrf.mxu0
    %v1794 = vadd.f32 %v1705, %v1793
    %1795 = vmatmul.bf16.gmra.mxu0 %v1253
    %v1796 = vpop.f32.mrf.mxu0
    %v1797 = vadd.f32 %v1708, %v1796
    %v1798 = vpop.f32.mrf.mxu0
    %v1799 = vadd.f32 %v1710, %v1798
    %1800 = vmatmul.bf16.gmra.mxu0 %v1255
    %v1801 = vpop.f32.mrf.mxu0
    %v1802 = vadd.f32 %v1713, %v1801
    %v1803 = vpop.f32.mrf.mxu0
    %v1804 = vadd.f32 %v1715, %v1803
    %1805 = vmatmul.bf16.gmra.mxu0 %v1257
    %v1806 = vpop.f32.mrf.mxu0
    %v1807 = vadd.f32 %v1718, %v1806
    %v1808 = vpop.f32.mrf.mxu0
    %v1809 = vadd.f32 %v1720, %v1808
    %1810 = vmatmul.bf16.gmra.mxu0 %v1259
    %v1811 = vpop.f32.mrf.mxu0
    %v1812 = vadd.f32 %v1723, %v1811
    %v1813 = vpop.f32.mrf.mxu0
    %v1814 = vadd.f32 %v1725, %v1813
    %1815 = vmatmul.bf16.gmra.mxu0 %v1261
    %v1816 = vpop.f32.mrf.mxu0
    %v1817 = vadd.f32 %v1728, %v1816
    %v1818 = vpop.f32.mrf.mxu0
    %v1819 = vadd.f32 %v1730, %v1818
    %1820 = vmatmul.bf16.gmra.mxu0 %v1263
    %v1821 = vpop.f32.mrf.mxu0
    %v1822 = vadd.f32 %v1733, %v1821
    %v1823 = vpop.f32.mrf.mxu0
    %v1824 = vadd.f32 %v1735, %v1823
    %1825 = vdwg.mxu0
    %1826 = vmatpush.bf16.msra.mxu0 %v1549
    %1827 = vmatpush.bf16.msra.mxu0 %v1545
    %1828 = vmatpush.bf16.msra.mxu0 %v1541
    %1829 = vmatpush.bf16.msra.mxu0 %v1537
    %1830 = vmatpush.bf16.msra.mxu0 %v1533
    %1831 = vmatpush.bf16.msra.mxu0 %v1529
    %1832 = vmatpush.bf16.msra.mxu0 %v1525
    %1833 = vmatpush.bf16.msra.mxu0 %v1521
    %1834 = vmatmul.bf16.gmra.mxu0 %v1232
    %v1835 = vpop.f32.mrf.mxu0
    %v1836 = vadd.f32 0.0, %v1835
    %v1837 = vpop.f32.mrf.mxu0
    %v1838 = vadd.f32 0.0, %v1837
    %1839 = vmatmul.bf16.gmra.mxu0 %v1234
    %v1840 = vpop.f32.mrf.mxu0
    %v1841 = vadd.f32 0.0, %v1840
    %v1842 = vpop.f32.mrf.mxu0
    %v1843 = vadd.f32 0.0, %v1842
    %1844 = vmatmul.bf16.gmra.mxu0 %v1236
    %v1845 = vpop.f32.mrf.mxu0
    %v1846 = vadd.f32 0.0, %v1845
    %v1847 = vpop.f32.mrf.mxu0
    %v1848 = vadd.f32 0.0, %v1847
    %1849 = vmatmul.bf16.gmra.mxu0 %v1238
    %v1850 = vpop.f32.mrf.mxu0
    %v1851 = vadd.f32 0.0, %v1850
    %v1852 = vpop.f32.mrf.mxu0
    %v1853 = vadd.f32 0.0, %v1852
    %1854 = vmatmul.bf16.gmra.mxu0 %v1240
    %v1855 = vpop.f32.mrf.mxu0
    %v1856 = vadd.f32 0.0, %v1855
    %v1857 = vpop.f32.mrf.mxu0
    %v1858 = vadd.f32 0.0, %v1857
    %1859 = vmatmul.bf16.gmra.mxu0 %v1242
    %v1860 = vpop.f32.mrf.mxu0
    %v1861 = vadd.f32 0.0, %v1860
    %v1862 = vpop.f32.mrf.mxu0
    %v1863 = vadd.f32 0.0, %v1862
    %1864 = vmatmul.bf16.gmra.mxu0 %v1244
    %v1865 = vpop.f32.mrf.mxu0
    %v1866 = vadd.f32 0.0, %v1865
    %v1867 = vpop.f32.mrf.mxu0
    %v1868 = vadd.f32 0.0, %v1867
    %1869 = vmatmul.bf16.gmra.mxu0 %v1246
    %v1870 = vpop.f32.mrf.mxu0
    %v1871 = vadd.f32 0.0, %v1870
    %v1872 = vpop.f32.mrf.mxu0
    %v1873 = vadd.f32 0.0, %v1872
    %1874 = vmatmul.bf16.gmra.mxu0 %v1248
    %v1875 = vpop.f32.mrf.mxu0
    %v1876 = vadd.f32 0.0, %v1875
    %v1877 = vpop.f32.mrf.mxu0
    %v1878 = vadd.f32 0.0, %v1877
    %1879 = vmatmul.bf16.gmra.mxu0 %v1250
    %v1880 = vpop.f32.mrf.mxu0
    %v1881 = vadd.f32 0.0, %v1880
    %v1882 = vpop.f32.mrf.mxu0
    %v1883 = vadd.f32 0.0, %v1882
    %1884 = vmatmul.bf16.gmra.mxu0 %v1252
    %v1885 = vpop.f32.mrf.mxu0
    %v1886 = vadd.f32 0.0, %v1885
    %v1887 = vpop.f32.mrf.mxu0
    %v1888 = vadd.f32 0.0, %v1887
    %1889 = vmatmul.bf16.gmra.mxu0 %v1254
    %v1890 = vpop.f32.mrf.mxu0
    %v1891 = vadd.f32 0.0, %v1890
    %v1892 = vpop.f32.mrf.mxu0
    %v1893 = vadd.f32 0.0, %v1892
    %1894 = vmatmul.bf16.gmra.mxu0 %v1256
    %v1895 = vpop.f32.mrf.mxu0
    %v1896 = vadd.f32 0.0, %v1895
    %v1897 = vpop.f32.mrf.mxu0
    %v1898 = vadd.f32 0.0, %v1897
    %1899 = vmatmul.bf16.gmra.mxu0 %v1258
    %v1900 = vpop.f32.mrf.mxu0
    %v1901 = vadd.f32 0.0, %v1900
    %v1902 = vpop.f32.mrf.mxu0
    %v1903 = vadd.f32 0.0, %v1902
    %1904 = vmatmul.bf16.gmra.mxu0 %v1260
    %v1905 = vpop.f32.mrf.mxu0
    %v1906 = vadd.f32 0.0, %v1905
    %v1907 = vpop.f32.mrf.mxu0
    %v1908 = vadd.f32 0.0, %v1907
    %1909 = vmatmul.bf16.gmra.mxu0 %v1262
    %v1910 = vpop.f32.mrf.mxu0
    %v1911 = vadd.f32 0.0, %v1910
    %v1912 = vpop.f32.mrf.mxu0
    %v1913 = vadd.f32 0.0, %v1912
    %1914 = vdwg.mxu0
    %1915 = vmatpush.bf16.msra.mxu0 %v1581
    %1916 = vmatpush.bf16.msra.mxu0 %v1577
    %1917 = vmatpush.bf16.msra.mxu0 %v1573
    %1918 = vmatpush.bf16.msra.mxu0 %v1569
    %1919 = vmatpush.bf16.msra.mxu0 %v1565
    %1920 = vmatpush.bf16.msra.mxu0 %v1561
    %1921 = vmatpush.bf16.msra.mxu0 %v1557
    %1922 = vmatpush.bf16.msra.mxu0 %v1553
    %1923 = vmatmul.bf16.gmra.mxu0 %v1233
    %v1924 = vpop.f32.mrf.mxu0
    %v1925 = vadd.f32 %v1836, %v1924
    %v1926 = vpop.f32.mrf.mxu0
    %v1927 = vadd.f32 %v1838, %v1926
    %1928 = vmatmul.bf16.gmra.mxu0 %v1235
    %v1929 = vpop.f32.mrf.mxu0
    %v1930 = vadd.f32 %v1841, %v1929
    %v1931 = vpop.f32.mrf.mxu0
    %v1932 = vadd.f32 %v1843, %v1931
    %1933 = vmatmul.bf16.gmra.mxu0 %v1237
    %v1934 = vpop.f32.mrf.mxu0
    %v1935 = vadd.f32 %v1846, %v1934
    %v1936 = vpop.f32.mrf.mxu0
    %v1937 = vadd.f32 %v1848, %v1936
    %1938 = vmatmul.bf16.gmra.mxu0 %v1239
    %v1939 = vpop.f32.mrf.mxu0
    %v1940 = vadd.f32 %v1851, %v1939
    %v1941 = vpop.f32.mrf.mxu0
    %v1942 = vadd.f32 %v1853, %v1941
    %1943 = vmatmul.bf16.gmra.mxu0 %v1241
    %v1944 = vpop.f32.mrf.mxu0
    %v1945 = vadd.f32 %v1856, %v1944
    %v1946 = vpop.f32.mrf.mxu0
    %v1947 = vadd.f32 %v1858, %v1946
    %1948 = vmatmul.bf16.gmra.mxu0 %v1243
    %v1949 = vpop.f32.mrf.mxu0
    %v1950 = vadd.f32 %v1861, %v1949
    %v1951 = vpop.f32.mrf.mxu0
    %v1952 = vadd.f32 %v1863, %v1951
    %1953 = vmatmul.bf16.gmra.mxu0 %v1245
    %v1954 = vpop.f32.mrf.mxu0
    %v1955 = vadd.f32 %v1866, %v1954
    %v1956 = vpop.f32.mrf.mxu0
    %v1957 = vadd.f32 %v1868, %v1956
    %1958 = vmatmul.bf16.gmra.mxu0 %v1247
    %v1959 = vpop.f32.mrf.mxu0
    %v1960 = vadd.f32 %v1871, %v1959
    %v1961 = vpop.f32.mrf.mxu0
    %v1962 = vadd.f32 %v1873, %v1961
    %1963 = vmatmul.bf16.gmra.mxu0 %v1249
    %v1964 = vpop.f32.mrf.mxu0
    %v1965 = vadd.f32 %v1876, %v1964
    %v1966 = vpop.f32.mrf.mxu0
    %v1967 = vadd.f32 %v1878, %v1966
    %1968 = vmatmul.bf16.gmra.mxu0 %v1251
    %v1969 = vpop.f32.mrf.mxu0
    %v1970 = vadd.f32 %v1881, %v1969
    %v1971 = vpop.f32.mrf.mxu0
    %v1972 = vadd.f32 %v1883, %v1971
    %1973 = vmatmul.bf16.gmra.mxu0 %v1253
    %v1974 = vpop.f32.mrf.mxu0
    %v1975 = vadd.f32 %v1886, %v1974
    %v1976 = vpop.f32.mrf.mxu0
    %v1977 = vadd.f32 %v1888, %v1976
    %1978 = vmatmul.bf16.gmra.mxu0 %v1255
    %v1979 = vpop.f32.mrf.mxu0
    %v1980 = vadd.f32 %v1891, %v1979
    %v1981 = vpop.f32.mrf.mxu0
    %v1982 = vadd.f32 %v1893, %v1981
    %1983 = vmatmul.bf16.gmra.mxu0 %v1257
    %v1984 = vpop.f32.mrf.mxu0
    %v1985 = vadd.f32 %v1896, %v1984
    %v1986 = vpop.f32.mrf.mxu0
    %v1987 = vadd.f32 %v1898, %v1986
    %1988 = vmatmul.bf16.gmra.mxu0 %v1259
    %v1989 = vpop.f32.mrf.mxu0
    %v1990 = vadd.f32 %v1901, %v1989
    %v1991 = vpop.f32.mrf.mxu0
    %v1992 = vadd.f32 %v1903, %v1991
    %1993 = vmatmul.bf16.gmra.mxu0 %v1261
    %v1994 = vpop.f32.mrf.mxu0
    %v1995 = vadd.f32 %v1906, %v1994
    %v1996 = vpop.f32.mrf.mxu0
    %v1997 = vadd.f32 %v1908, %v1996
    %1998 = vmatmul.bf16.gmra.mxu0 %v1263
    %v1999 = vpop.f32.mrf.mxu0
    %v2000 = vadd.f32 %v1911, %v1999
    %v2001 = vpop.f32.mrf.mxu0
    %v2002 = vadd.f32 %v1913, %v2001
    %2003 = vdwg.mxu0
    %2004 = vmatpush.bf16.msra.mxu0 %v1550
    %2005 = vmatpush.bf16.msra.mxu0 %v1546
    %2006 = vmatpush.bf16.msra.mxu0 %v1542
    %2007 = vmatpush.bf16.msra.mxu0 %v1538
    %2008 = vmatpush.bf16.msra.mxu0 %v1534
    %2009 = vmatpush.bf16.msra.mxu0 %v1530
    %2010 = vmatpush.bf16.msra.mxu0 %v1526
    %2011 = vmatpush.bf16.msra.mxu0 %v1522
    %2012 = vmatmul.bf16.gmra.mxu0 %v1232
    %v2013 = vpop.f32.mrf.mxu0
    %v2014 = vadd.f32 0.0, %v2013
    %v2015 = vpop.f32.mrf.mxu0
    %v2016 = vadd.f32 0.0, %v2015
    %2017 = vmatmul.bf16.gmra.mxu0 %v1234
    %v2018 = vpop.f32.mrf.mxu0
    %v2019 = vadd.f32 0.0, %v2018
    %v2020 = vpop.f32.mrf.mxu0
    %v2021 = vadd.f32 0.0, %v2020
    %2022 = vmatmul.bf16.gmra.mxu0 %v1236
    %v2023 = vpop.f32.mrf.mxu0
    %v2024 = vadd.f32 0.0, %v2023
    %v2025 = vpop.f32.mrf.mxu0
    %v2026 = vadd.f32 0.0, %v2025
    %2027 = vmatmul.bf16.gmra.mxu0 %v1238
    %v2028 = vpop.f32.mrf.mxu0
    %v2029 = vadd.f32 0.0, %v2028
    %v2030 = vpop.f32.mrf.mxu0
    %v2031 = vadd.f32 0.0, %v2030
    %2032 = vmatmul.bf16.gmra.mxu0 %v1240
    %v2033 = vpop.f32.mrf.mxu0
    %v2034 = vadd.f32 0.0, %v2033
    %v2035 = vpop.f32.mrf.mxu0
    %v2036 = vadd.f32 0.0, %v2035
    %2037 = vmatmul.bf16.gmra.mxu0 %v1242
    %v2038 = vpop.f32.mrf.mxu0
    %v2039 = vadd.f32 0.0, %v2038
    %v2040 = vpop.f32.mrf.mxu0
    %v2041 = vadd.f32 0.0, %v2040
    %2042 = vmatmul.bf16.gmra.mxu0 %v1244
    %v2043 = vpop.f32.mrf.mxu0
    %v2044 = vadd.f32 0.0, %v2043
    %v2045 = vpop.f32.mrf.mxu0
    %v2046 = vadd.f32 0.0, %v2045
    %2047 = vmatmul.bf16.gmra.mxu0 %v1246
    %v2048 = vpop.f32.mrf.mxu0
    %v2049 = vadd.f32 0.0, %v2048
    %v2050 = vpop.f32.mrf.mxu0
    %v2051 = vadd.f32 0.0, %v2050
    %2052 = vmatmul.bf16.gmra.mxu0 %v1248
    %v2053 = vpop.f32.mrf.mxu0
    %v2054 = vadd.f32 0.0, %v2053
    %v2055 = vpop.f32.mrf.mxu0
    %v2056 = vadd.f32 0.0, %v2055
    %2057 = vmatmul.bf16.gmra.mxu0 %v1250
    %v2058 = vpop.f32.mrf.mxu0
    %v2059 = vadd.f32 0.0, %v2058
    %v2060 = vpop.f32.mrf.mxu0
    %v2061 = vadd.f32 0.0, %v2060
    %2062 = vmatmul.bf16.gmra.mxu0 %v1252
    %v2063 = vpop.f32.mrf.mxu0
    %v2064 = vadd.f32 0.0, %v2063
    %v2065 = vpop.f32.mrf.mxu0
    %v2066 = vadd.f32 0.0, %v2065
    %2067 = vmatmul.bf16.gmra.mxu0 %v1254
    %v2068 = vpop.f32.mrf.mxu0
    %v2069 = vadd.f32 0.0, %v2068
    %v2070 = vpop.f32.mrf.mxu0
    %v2071 = vadd.f32 0.0, %v2070
    %2072 = vmatmul.bf16.gmra.mxu0 %v1256
    %v2073 = vpop.f32.mrf.mxu0
    %v2074 = vadd.f32 0.0, %v2073
    %v2075 = vpop.f32.mrf.mxu0
    %v2076 = vadd.f32 0.0, %v2075
    %2077 = vmatmul.bf16.gmra.mxu0 %v1258
    %v2078 = vpop.f32.mrf.mxu0
    %v2079 = vadd.f32 0.0, %v2078
    %v2080 = vpop.f32.mrf.mxu0
    %v2081 = vadd.f32 0.0, %v2080
    %2082 = vmatmul.bf16.gmra.mxu0 %v1260
    %v2083 = vpop.f32.mrf.mxu0
    %v2084 = vadd.f32 0.0, %v2083
    %v2085 = vpop.f32.mrf.mxu0
    %v2086 = vadd.f32 0.0, %v2085
    %2087 = vmatmul.bf16.gmra.mxu0 %v1262
    %v2088 = vpop.f32.mrf.mxu0
    %v2089 = vadd.f32 0.0, %v2088
    %v2090 = vpop.f32.mrf.mxu0
    %v2091 = vadd.f32 0.0, %v2090
    %2092 = vdwg.mxu0
    %2093 = vmatpush.bf16.msra.mxu0 %v1582
    %2094 = vmatpush.bf16.msra.mxu0 %v1578
    %2095 = vmatpush.bf16.msra.mxu0 %v1574
    %2096 = vmatpush.bf16.msra.mxu0 %v1570
    %2097 = vmatpush.bf16.msra.mxu0 %v1566
    %2098 = vmatpush.bf16.msra.mxu0 %v1562
    %2099 = vmatpush.bf16.msra.mxu0 %v1558
    %2100 = vmatpush.bf16.msra.mxu0 %v1554
    %2101 = vmatmul.bf16.gmra.mxu0 %v1233
    %v2102 = vpop.f32.mrf.mxu0
    %v2103 = vadd.f32 %v2014, %v2102
    %v2104 = vpop.f32.mrf.mxu0
    %v2105 = vadd.f32 %v2016, %v2104
    %2106 = vmatmul.bf16.gmra.mxu0 %v1235
    %v2107 = vpop.f32.mrf.mxu0
    %v2108 = vadd.f32 %v2019, %v2107
    %v2109 = vpop.f32.mrf.mxu0
    %v2110 = vadd.f32 %v2021, %v2109
    %2111 = vmatmul.bf16.gmra.mxu0 %v1237
    %v2112 = vpop.f32.mrf.mxu0
    %v2113 = vadd.f32 %v2024, %v2112
    %v2114 = vpop.f32.mrf.mxu0
    %v2115 = vadd.f32 %v2026, %v2114
    %2116 = vmatmul.bf16.gmra.mxu0 %v1239
    %v2117 = vpop.f32.mrf.mxu0
    %v2118 = vadd.f32 %v2029, %v2117
    %v2119 = vpop.f32.mrf.mxu0
    %v2120 = vadd.f32 %v2031, %v2119
    %2121 = vmatmul.bf16.gmra.mxu0 %v1241
    %v2122 = vpop.f32.mrf.mxu0
    %v2123 = vadd.f32 %v2034, %v2122
    %v2124 = vpop.f32.mrf.mxu0
    %v2125 = vadd.f32 %v2036, %v2124
    %2126 = vmatmul.bf16.gmra.mxu0 %v1243
    %v2127 = vpop.f32.mrf.mxu0
    %v2128 = vadd.f32 %v2039, %v2127
    %v2129 = vpop.f32.mrf.mxu0
    %v2130 = vadd.f32 %v2041, %v2129
    %2131 = vmatmul.bf16.gmra.mxu0 %v1245
    %v2132 = vpop.f32.mrf.mxu0
    %v2133 = vadd.f32 %v2044, %v2132
    %v2134 = vpop.f32.mrf.mxu0
    %v2135 = vadd.f32 %v2046, %v2134
    %2136 = vmatmul.bf16.gmra.mxu0 %v1247
    %v2137 = vpop.f32.mrf.mxu0
    %v2138 = vadd.f32 %v2049, %v2137
    %v2139 = vpop.f32.mrf.mxu0
    %v2140 = vadd.f32 %v2051, %v2139
    %2141 = vmatmul.bf16.gmra.mxu0 %v1249
    %v2142 = vpop.f32.mrf.mxu0
    %v2143 = vadd.f32 %v2054, %v2142
    %v2144 = vpop.f32.mrf.mxu0
    %v2145 = vadd.f32 %v2056, %v2144
    %2146 = vmatmul.bf16.gmra.mxu0 %v1251
    %v2147 = vpop.f32.mrf.mxu0
    %v2148 = vadd.f32 %v2059, %v2147
    %v2149 = vpop.f32.mrf.mxu0
    %v2150 = vadd.f32 %v2061, %v2149
    %2151 = vmatmul.bf16.gmra.mxu0 %v1253
    %v2152 = vpop.f32.mrf.mxu0
    %v2153 = vadd.f32 %v2064, %v2152
    %v2154 = vpop.f32.mrf.mxu0
    %v2155 = vadd.f32 %v2066, %v2154
    %2156 = vmatmul.bf16.gmra.mxu0 %v1255
    %v2157 = vpop.f32.mrf.mxu0
    %v2158 = vadd.f32 %v2069, %v2157
    %v2159 = vpop.f32.mrf.mxu0
    %v2160 = vadd.f32 %v2071, %v2159
    %2161 = vmatmul.bf16.gmra.mxu0 %v1257
    %v2162 = vpop.f32.mrf.mxu0
    %v2163 = vadd.f32 %v2074, %v2162
    %v2164 = vpop.f32.mrf.mxu0
    %v2165 = vadd.f32 %v2076, %v2164
    %2166 = vmatmul.bf16.gmra.mxu0 %v1259
    %v2167 = vpop.f32.mrf.mxu0
    %v2168 = vadd.f32 %v2079, %v2167
    %v2169 = vpop.f32.mrf.mxu0
    %v2170 = vadd.f32 %v2081, %v2169
    %2171 = vmatmul.bf16.gmra.mxu0 %v1261
    %v2172 = vpop.f32.mrf.mxu0
    %v2173 = vadd.f32 %v2084, %v2172
    %v2174 = vpop.f32.mrf.mxu0
    %v2175 = vadd.f32 %v2086, %v2174
    %2176 = vmatmul.bf16.gmra.mxu0 %v1263
    %v2177 = vpop.f32.mrf.mxu0
    %v2178 = vadd.f32 %v2089, %v2177
    %v2179 = vpop.f32.mrf.mxu0
    %v2180 = vadd.f32 %v2091, %v2179
    %2181 = vdwg.mxu0
    %2182 = vmatpush.bf16.msra.mxu0 %v1551
    %2183 = vmatpush.bf16.msra.mxu0 %v1547
    %2184 = vmatpush.bf16.msra.mxu0 %v1543
    %2185 = vmatpush.bf16.msra.mxu0 %v1539
    %2186 = vmatpush.bf16.msra.mxu0 %v1535
    %2187 = vmatpush.bf16.msra.mxu0 %v1531
    %2188 = vmatpush.bf16.msra.mxu0 %v1527
    %2189 = vmatpush.bf16.msra.mxu0 %v1523
    %2190 = vmatmul.bf16.gmra.mxu0 %v1232
    %v2191 = vpop.f32.mrf.mxu0
    %v2192 = vadd.f32 0.0, %v2191
    %v2193 = vpop.f32.mrf.mxu0
    %v2194 = vadd.f32 0.0, %v2193
    %2195 = vmatmul.bf16.gmra.mxu0 %v1234
    %v2196 = vpop.f32.mrf.mxu0
    %v2197 = vadd.f32 0.0, %v2196
    %v2198 = vpop.f32.mrf.mxu0
    %v2199 = vadd.f32 0.0, %v2198
    %2200 = vmatmul.bf16.gmra.mxu0 %v1236
    %v2201 = vpop.f32.mrf.mxu0
    %v2202 = vadd.f32 0.0, %v2201
    %v2203 = vpop.f32.mrf.mxu0
    %v2204 = vadd.f32 0.0, %v2203
    %2205 = vmatmul.bf16.gmra.mxu0 %v1238
    %v2206 = vpop.f32.mrf.mxu0
    %v2207 = vadd.f32 0.0, %v2206
    %v2208 = vpop.f32.mrf.mxu0
    %v2209 = vadd.f32 0.0, %v2208
    %2210 = vmatmul.bf16.gmra.mxu0 %v1240
    %v2211 = vpop.f32.mrf.mxu0
    %v2212 = vadd.f32 0.0, %v2211
    %v2213 = vpop.f32.mrf.mxu0
    %v2214 = vadd.f32 0.0, %v2213
    %2215 = vmatmul.bf16.gmra.mxu0 %v1242
    %v2216 = vpop.f32.mrf.mxu0
    %v2217 = vadd.f32 0.0, %v2216
    %v2218 = vpop.f32.mrf.mxu0
    %v2219 = vadd.f32 0.0, %v2218
    %2220 = vmatmul.bf16.gmra.mxu0 %v1244
    %v2221 = vpop.f32.mrf.mxu0
    %v2222 = vadd.f32 0.0, %v2221
    %v2223 = vpop.f32.mrf.mxu0
    %v2224 = vadd.f32 0.0, %v2223
    %2225 = vmatmul.bf16.gmra.mxu0 %v1246
    %v2226 = vpop.f32.mrf.mxu0
    %v2227 = vadd.f32 0.0, %v2226
    %v2228 = vpop.f32.mrf.mxu0
    %v2229 = vadd.f32 0.0, %v2228
    %2230 = vmatmul.bf16.gmra.mxu0 %v1248
    %v2231 = vpop.f32.mrf.mxu0
    %v2232 = vadd.f32 0.0, %v2231
    %v2233 = vpop.f32.mrf.mxu0
    %v2234 = vadd.f32 0.0, %v2233
    %2235 = vmatmul.bf16.gmra.mxu0 %v1250
    %v2236 = vpop.f32.mrf.mxu0
    %v2237 = vadd.f32 0.0, %v2236
    %v2238 = vpop.f32.mrf.mxu0
    %v2239 = vadd.f32 0.0, %v2238
    %2240 = vmatmul.bf16.gmra.mxu0 %v1252
    %v2241 = vpop.f32.mrf.mxu0
    %v2242 = vadd.f32 0.0, %v2241
    %v2243 = vpop.f32.mrf.mxu0
    %v2244 = vadd.f32 0.0, %v2243
    %2245 = vmatmul.bf16.gmra.mxu0 %v1254
    %v2246 = vpop.f32.mrf.mxu0
    %v2247 = vadd.f32 0.0, %v2246
    %v2248 = vpop.f32.mrf.mxu0
    %v2249 = vadd.f32 0.0, %v2248
    %2250 = vmatmul.bf16.gmra.mxu0 %v1256
    %v2251 = vpop.f32.mrf.mxu0
    %v2252 = vadd.f32 0.0, %v2251
    %v2253 = vpop.f32.mrf.mxu0
    %v2254 = vadd.f32 0.0, %v2253
    %2255 = vmatmul.bf16.gmra.mxu0 %v1258
    %v2256 = vpop.f32.mrf.mxu0
    %v2257 = vadd.f32 0.0, %v2256
    %v2258 = vpop.f32.mrf.mxu0
    %v2259 = vadd.f32 0.0, %v2258
    %2260 = vmatmul.bf16.gmra.mxu0 %v1260
    %v2261 = vpop.f32.mrf.mxu0
    %v2262 = vadd.f32 0.0, %v2261
    %v2263 = vpop.f32.mrf.mxu0
    %v2264 = vadd.f32 0.0, %v2263
    %2265 = vmatmul.bf16.gmra.mxu0 %v1262
    %v2266 = vpop.f32.mrf.mxu0
    %v2267 = vadd.f32 0.0, %v2266
    %v2268 = vpop.f32.mrf.mxu0
    %v2269 = vadd.f32 0.0, %v2268
    %2270 = vdwg.mxu0
    %2271 = vmatpush.bf16.msra.mxu0 %v1583
    %2272 = vmatpush.bf16.msra.mxu0 %v1579
    %2273 = vmatpush.bf16.msra.mxu0 %v1575
    %2274 = vmatpush.bf16.msra.mxu0 %v1571
    %2275 = vmatpush.bf16.msra.mxu0 %v1567
    %2276 = vmatpush.bf16.msra.mxu0 %v1563
    %2277 = vmatpush.bf16.msra.mxu0 %v1559
    %2278 = vmatpush.bf16.msra.mxu0 %v1555
    %2279 = vmatmul.bf16.gmra.mxu0 %v1233
    %v2280 = vpop.f32.mrf.mxu0
    %v2281 = vadd.f32 %v2192, %v2280
    %v2282 = vpop.f32.mrf.mxu0
    %v2283 = vadd.f32 %v2194, %v2282
    %2284 = vmatmul.bf16.gmra.mxu0 %v1235
    %v2285 = vpop.f32.mrf.mxu0
    %v2286 = vadd.f32 %v2197, %v2285
    %v2287 = vpop.f32.mrf.mxu0
    %v2288 = vadd.f32 %v2199, %v2287
    %2289 = vmatmul.bf16.gmra.mxu0 %v1237
    %v2290 = vpop.f32.mrf.mxu0
    %v2291 = vadd.f32 %v2202, %v2290
    %v2292 = vpop.f32.mrf.mxu0
    %v2293 = vadd.f32 %v2204, %v2292
    %2294 = vmatmul.bf16.gmra.mxu0 %v1239
    %v2295 = vpop.f32.mrf.mxu0
    %v2296 = vadd.f32 %v2207, %v2295
    %v2297 = vpop.f32.mrf.mxu0
    %v2298 = vadd.f32 %v2209, %v2297
    %2299 = vmatmul.bf16.gmra.mxu0 %v1241
    %v2300 = vpop.f32.mrf.mxu0
    %v2301 = vadd.f32 %v2212, %v2300
    %v2302 = vpop.f32.mrf.mxu0
    %v2303 = vadd.f32 %v2214, %v2302
    %2304 = vmatmul.bf16.gmra.mxu0 %v1243
    %v2305 = vpop.f32.mrf.mxu0
    %v2306 = vadd.f32 %v2217, %v2305
    %v2307 = vpop.f32.mrf.mxu0
    %v2308 = vadd.f32 %v2219, %v2307
    %2309 = vmatmul.bf16.gmra.mxu0 %v1245
    %v2310 = vpop.f32.mrf.mxu0
    %v2311 = vadd.f32 %v2222, %v2310
    %v2312 = vpop.f32.mrf.mxu0
    %v2313 = vadd.f32 %v2224, %v2312
    %2314 = vmatmul.bf16.gmra.mxu0 %v1247
    %v2315 = vpop.f32.mrf.mxu0
    %v2316 = vadd.f32 %v2227, %v2315
    %v2317 = vpop.f32.mrf.mxu0
    %v2318 = vadd.f32 %v2229, %v2317
    %2319 = vmatmul.bf16.gmra.mxu0 %v1249
    %v2320 = vpop.f32.mrf.mxu0
    %v2321 = vadd.f32 %v2232, %v2320
    %v2322 = vpop.f32.mrf.mxu0
    %v2323 = vadd.f32 %v2234, %v2322
    %2324 = vmatmul.bf16.gmra.mxu0 %v1251
    %v2325 = vpop.f32.mrf.mxu0
    %v2326 = vadd.f32 %v2237, %v2325
    %v2327 = vpop.f32.mrf.mxu0
    %v2328 = vadd.f32 %v2239, %v2327
    %2329 = vmatmul.bf16.gmra.mxu0 %v1253
    %v2330 = vpop.f32.mrf.mxu0
    %v2331 = vadd.f32 %v2242, %v2330
    %v2332 = vpop.f32.mrf.mxu0
    %v2333 = vadd.f32 %v2244, %v2332
    %2334 = vmatmul.bf16.gmra.mxu0 %v1255
    %v2335 = vpop.f32.mrf.mxu0
    %v2336 = vadd.f32 %v2247, %v2335
    %v2337 = vpop.f32.mrf.mxu0
    %v2338 = vadd.f32 %v2249, %v2337
    %2339 = vmatmul.bf16.gmra.mxu0 %v1257
    %v2340 = vpop.f32.mrf.mxu0
    %v2341 = vadd.f32 %v2252, %v2340
    %v2342 = vpop.f32.mrf.mxu0
    %v2343 = vadd.f32 %v2254, %v2342
    %2344 = vmatmul.bf16.gmra.mxu0 %v1259
    %v2345 = vpop.f32.mrf.mxu0
    %v2346 = vadd.f32 %v2257, %v2345
    %v2347 = vpop.f32.mrf.mxu0
    %v2348 = vadd.f32 %v2259, %v2347
    %2349 = vmatmul.bf16.gmra.mxu0 %v1261
    %v2350 = vpop.f32.mrf.mxu0
    %v2351 = vadd.f32 %v2262, %v2350
    %v2352 = vpop.f32.mrf.mxu0
    %v2353 = vadd.f32 %v2264, %v2352
    %2354 = vmatmul.bf16.gmra.mxu0 %v1263
    %v2355 = vpop.f32.mrf.mxu0
    %v2356 = vadd.f32 %v2267, %v2355
    %v2357 = vpop.f32.mrf.mxu0
    %v2358 = vadd.f32 %v2269, %v2357
    %2359 = vdwg.mxu0
    %v2360 = vadd.f32 %v1747, %v1749
    %v2361 = vadd.f32 %v2360, %v1752
    %v2362 = vadd.f32 %v2361, %v1754
    %v2363 = vadd.f32 %v2362, %v1757
    %v2364 = vadd.f32 %v2363, %v1759
    %v2365 = vadd.f32 %v2364, %v1762
    %v2366 = vadd.f32 %v2365, %v1764
    %v2367 = vadd.f32 %v2366, %v1767
    %v2368 = vadd.f32 %v2367, %v1769
    %v2369 = vadd.f32 %v2368, %v1772
    %v2370 = vadd.f32 %v2369, %v1774
    %v2371 = vadd.f32 %v2370, %v1777
    %v2372 = vadd.f32 %v2371, %v1779
    %v2373 = vadd.f32 %v2372, %v1782
    %v2374 = vadd.f32 %v2373, %v1784
    %v2375 = vadd.f32 %v2374, %v1787
    %v2376 = vadd.f32 %v2375, %v1789
    %v2377 = vadd.f32 %v2376, %v1792
    %v2378 = vadd.f32 %v2377, %v1794
    %v2379 = vadd.f32 %v2378, %v1797
    %v2380 = vadd.f32 %v2379, %v1799
    %v2381 = vadd.f32 %v2380, %v1802
    %v2382 = vadd.f32 %v2381, %v1804
    %v2383 = vadd.f32 %v2382, %v1807
    %v2384 = vadd.f32 %v2383, %v1809
    %v2385 = vadd.f32 %v2384, %v1812
    %v2386 = vadd.f32 %v2385, %v1814
    %v2387 = vadd.f32 %v2386, %v1817
    %v2388 = vadd.f32 %v2387, %v1819
    %v2389 = vadd.f32 %v2388, %v1822
    %v2390 = vadd.f32 %v2389, %v1824
    %v2391 = vrot.slane %v2390, 4
    %v2392 = vadd.f32 %v2390, %v2391
    %v2393 = vrot.slane %v2392, 2
    %v2394 = vadd.f32 %v2392, %v2393
    %v2395 = vrot.slane %v2394, 1
    %v2396 = vadd.f32 %v2394, %v2395
    %v2397 = vadd.f32 %v1925, %v1927
    %v2398 = vadd.f32 %v2397, %v1930
    %v2399 = vadd.f32 %v2398, %v1932
    %v2400 = vadd.f32 %v2399, %v1935
    %v2401 = vadd.f32 %v2400, %v1937
    %v2402 = vadd.f32 %v2401, %v1940
    %v2403 = vadd.f32 %v2402, %v1942
    %v2404 = vadd.f32 %v2403, %v1945
    %v2405 = vadd.f32 %v2404, %v1947
    %v2406 = vadd.f32 %v2405, %v1950
    %v2407 = vadd.f32 %v2406, %v1952
    %v2408 = vadd.f32 %v2407, %v1955
    %v2409 = vadd.f32 %v2408, %v1957
    %v2410 = vadd.f32 %v2409, %v1960
    %v2411 = vadd.f32 %v2410, %v1962
    %v2412 = vadd.f32 %v2411, %v1965
    %v2413 = vadd.f32 %v2412, %v1967
    %v2414 = vadd.f32 %v2413, %v1970
    %v2415 = vadd.f32 %v2414, %v1972
    %v2416 = vadd.f32 %v2415, %v1975
    %v2417 = vadd.f32 %v2416, %v1977
    %v2418 = vadd.f32 %v2417, %v1980
    %v2419 = vadd.f32 %v2418, %v1982
    %v2420 = vadd.f32 %v2419, %v1985
    %v2421 = vadd.f32 %v2420, %v1987
    %v2422 = vadd.f32 %v2421, %v1990
    %v2423 = vadd.f32 %v2422, %v1992
    %v2424 = vadd.f32 %v2423, %v1995
    %v2425 = vadd.f32 %v2424, %v1997
    %v2426 = vadd.f32 %v2425, %v2000
    %v2427 = vadd.f32 %v2426, %v2002
    %v2428 = vrot.slane %v2427, 4
    %v2429 = vadd.f32 %v2427, %v2428
    %v2430 = vrot.slane %v2429, 2
    %v2431 = vadd.f32 %v2429, %v2430
    %v2432 = vrot.slane %v2431, 1
    %v2433 = vadd.f32 %v2431, %v2432
    %v2434 = vadd.f32 %v2103, %v2105
    %v2435 = vadd.f32 %v2434, %v2108
    %v2436 = vadd.f32 %v2435, %v2110
    %v2437 = vadd.f32 %v2436, %v2113
    %v2438 = vadd.f32 %v2437, %v2115
    %v2439 = vadd.f32 %v2438, %v2118
    %v2440 = vadd.f32 %v2439, %v2120
    %v2441 = vadd.f32 %v2440, %v2123
    %v2442 = vadd.f32 %v2441, %v2125
    %v2443 = vadd.f32 %v2442, %v2128
    %v2444 = vadd.f32 %v2443, %v2130
    %v2445 = vadd.f32 %v2444, %v2133
    %v2446 = vadd.f32 %v2445, %v2135
    %v2447 = vadd.f32 %v2446, %v2138
    %v2448 = vadd.f32 %v2447, %v2140
    %v2449 = vadd.f32 %v2448, %v2143
    %v2450 = vadd.f32 %v2449, %v2145
    %v2451 = vadd.f32 %v2450, %v2148
    %v2452 = vadd.f32 %v2451, %v2150
    %v2453 = vadd.f32 %v2452, %v2153
    %v2454 = vadd.f32 %v2453, %v2155
    %v2455 = vadd.f32 %v2454, %v2158
    %v2456 = vadd.f32 %v2455, %v2160
    %v2457 = vadd.f32 %v2456, %v2163
    %v2458 = vadd.f32 %v2457, %v2165
    %v2459 = vadd.f32 %v2458, %v2168
    %v2460 = vadd.f32 %v2459, %v2170
    %v2461 = vadd.f32 %v2460, %v2173
    %v2462 = vadd.f32 %v2461, %v2175
    %v2463 = vadd.f32 %v2462, %v2178
    %v2464 = vadd.f32 %v2463, %v2180
    %v2465 = vrot.slane %v2464, 4
    %v2466 = vadd.f32 %v2464, %v2465
    %v2467 = vrot.slane %v2466, 2
    %v2468 = vadd.f32 %v2466, %v2467
    %v2469 = vrot.slane %v2468, 1
    %v2470 = vadd.f32 %v2468, %v2469
    %v2471 = vadd.f32 %v2281, %v2283
    %v2472 = vadd.f32 %v2471, %v2286
    %v2473 = vadd.f32 %v2472, %v2288
    %v2474 = vadd.f32 %v2473, %v2291
    %v2475 = vadd.f32 %v2474, %v2293
    %v2476 = vadd.f32 %v2475, %v2296
    %v2477 = vadd.f32 %v2476, %v2298
    %v2478 = vadd.f32 %v2477, %v2301
    %v2479 = vadd.f32 %v2478, %v2303
    %v2480 = vadd.f32 %v2479, %v2306
    %v2481 = vadd.f32 %v2480, %v2308
    %v2482 = vadd.f32 %v2481, %v2311
    %v2483 = vadd.f32 %v2482, %v2313
    %v2484 = vadd.f32 %v2483, %v2316
    %v2485 = vadd.f32 %v2484, %v2318
    %v2486 = vadd.f32 %v2485, %v2321
    %v2487 = vadd.f32 %v2486, %v2323
    %v2488 = vadd.f32 %v2487, %v2326
    %v2489 = vadd.f32 %v2488, %v2328
    %v2490 = vadd.f32 %v2489, %v2331
    %v2491 = vadd.f32 %v2490, %v2333
    %v2492 = vadd.f32 %v2491, %v2336
    %v2493 = vadd.f32 %v2492, %v2338
    %v2494 = vadd.f32 %v2493, %v2341
    %v2495 = vadd.f32 %v2494, %v2343
    %v2496 = vadd.f32 %v2495, %v2346
    %v2497 = vadd.f32 %v2496, %v2348
    %v2498 = vadd.f32 %v2497, %v2351
    %v2499 = vadd.f32 %v2498, %v2353
    %v2500 = vadd.f32 %v2499, %v2356
    %v2501 = vadd.f32 %v2500, %v2358
    %v2502 = vrot.slane %v2501, 4
    %v2503 = vadd.f32 %v2501, %v2502
    %v2504 = vrot.slane %v2503, 2
    %v2505 = vadd.f32 %v2503, %v2504
    %v2506 = vrot.slane %v2505, 1
    %v2507 = vadd.f32 %v2505, %v2506
    %v2508 = vmul.f32 %v2396, 0.00390625
    %v2509 = vmul.f32 %v2433, 0.00390625
    %v2510 = vmul.f32 %v2470, 0.00390625
    %v2511 = vmul.f32 %v2507, 0.00390625
    %v2512 = vsub.f32 %v1747, %v2508
    %v2513 = vsub.f32 %v1925, %v2509
    %v2514 = vsub.f32 %v2103, %v2510
    %v2515 = vsub.f32 %v2281, %v2511
    %v2516 = vsub.f32 %v1749, %v2508
    %v2517 = vsub.f32 %v1927, %v2509
    %v2518 = vsub.f32 %v2105, %v2510
    %v2519 = vsub.f32 %v2283, %v2511
    %v2520 = vsub.f32 %v1752, %v2508
    %v2521 = vsub.f32 %v1930, %v2509
    %v2522 = vsub.f32 %v2108, %v2510
    %v2523 = vsub.f32 %v2286, %v2511
    %v2524 = vsub.f32 %v1754, %v2508
    %v2525 = vsub.f32 %v1932, %v2509
    %v2526 = vsub.f32 %v2110, %v2510
    %v2527 = vsub.f32 %v2288, %v2511
    %v2528 = vsub.f32 %v1757, %v2508
    %v2529 = vsub.f32 %v1935, %v2509
    %v2530 = vsub.f32 %v2113, %v2510
    %v2531 = vsub.f32 %v2291, %v2511
    %v2532 = vsub.f32 %v1759, %v2508
    %v2533 = vsub.f32 %v1937, %v2509
    %v2534 = vsub.f32 %v2115, %v2510
    %v2535 = vsub.f32 %v2293, %v2511
    %v2536 = vsub.f32 %v1762, %v2508
    %v2537 = vsub.f32 %v1940, %v2509
    %v2538 = vsub.f32 %v2118, %v2510
    %v2539 = vsub.f32 %v2296, %v2511
    %v2540 = vsub.f32 %v1764, %v2508
    %v2541 = vsub.f32 %v1942, %v2509
    %v2542 = vsub.f32 %v2120, %v2510
    %v2543 = vsub.f32 %v2298, %v2511
    %v2544 = vsub.f32 %v1767, %v2508
    %v2545 = vsub.f32 %v1945, %v2509
    %v2546 = vsub.f32 %v2123, %v2510
    %v2547 = vsub.f32 %v2301, %v2511
    %v2548 = vsub.f32 %v1769, %v2508
    %v2549 = vsub.f32 %v1947, %v2509
    %v2550 = vsub.f32 %v2125, %v2510
    %v2551 = vsub.f32 %v2303, %v2511
    %v2552 = vsub.f32 %v1772, %v2508
    %v2553 = vsub.f32 %v1950, %v2509
    %v2554 = vsub.f32 %v2128, %v2510
    %v2555 = vsub.f32 %v2306, %v2511
    %v2556 = vsub.f32 %v1774, %v2508
    %v2557 = vsub.f32 %v1952, %v2509
    %v2558 = vsub.f32 %v2130, %v2510
    %v2559 = vsub.f32 %v2308, %v2511
    %v2560 = vsub.f32 %v1777, %v2508
    %v2561 = vsub.f32 %v1955, %v2509
    %v2562 = vsub.f32 %v2133, %v2510
    %v2563 = vsub.f32 %v2311, %v2511
    %v2564 = vsub.f32 %v1779, %v2508
    %v2565 = vsub.f32 %v1957, %v2509
    %v2566 = vsub.f32 %v2135, %v2510
    %v2567 = vsub.f32 %v2313, %v2511
    %v2568 = vsub.f32 %v1782, %v2508
    %v2569 = vsub.f32 %v1960, %v2509
    %v2570 = vsub.f32 %v2138, %v2510
    %v2571 = vsub.f32 %v2316, %v2511
    %v2572 = vsub.f32 %v1784, %v2508
    %v2573 = vsub.f32 %v1962, %v2509
    %v2574 = vsub.f32 %v2140, %v2510
    %v2575 = vsub.f32 %v2318, %v2511
    %v2576 = vsub.f32 %v1787, %v2508
    %v2577 = vsub.f32 %v1965, %v2509
    %v2578 = vsub.f32 %v2143, %v2510
    %v2579 = vsub.f32 %v2321, %v2511
    %v2580 = vsub.f32 %v1789, %v2508
    %v2581 = vsub.f32 %v1967, %v2509
    %v2582 = vsub.f32 %v2145, %v2510
    %v2583 = vsub.f32 %v2323, %v2511
    %v2584 = vsub.f32 %v1792, %v2508
    %v2585 = vsub.f32 %v1970, %v2509
    %v2586 = vsub.f32 %v2148, %v2510
    %v2587 = vsub.f32 %v2326, %v2511
    %v2588 = vsub.f32 %v1794, %v2508
    %v2589 = vsub.f32 %v1972, %v2509
    %v2590 = vsub.f32 %v2150, %v2510
    %v2591 = vsub.f32 %v2328, %v2511
    %v2592 = vsub.f32 %v1797, %v2508
    %v2593 = vsub.f32 %v1975, %v2509
    %v2594 = vsub.f32 %v2153, %v2510
    %v2595 = vsub.f32 %v2331, %v2511
    %v2596 = vsub.f32 %v1799, %v2508
    %v2597 = vsub.f32 %v1977, %v2509
    %v2598 = vsub.f32 %v2155, %v2510
    %v2599 = vsub.f32 %v2333, %v2511
    %v2600 = vsub.f32 %v1802, %v2508
    %v2601 = vsub.f32 %v1980, %v2509
    %v2602 = vsub.f32 %v2158, %v2510
    %v2603 = vsub.f32 %v2336, %v2511
    %v2604 = vsub.f32 %v1804, %v2508
    %v2605 = vsub.f32 %v1982, %v2509
    %v2606 = vsub.f32 %v2160, %v2510
    %v2607 = vsub.f32 %v2338, %v2511
    %v2608 = vsub.f32 %v1807, %v2508
    %v2609 = vsub.f32 %v1985, %v2509
    %v2610 = vsub.f32 %v2163, %v2510
    %v2611 = vsub.f32 %v2341, %v2511
    %v2612 = vsub.f32 %v1809, %v2508
    %v2613 = vsub.f32 %v1987, %v2509
    %v2614 = vsub.f32 %v2165, %v2510
    %v2615 = vsub.f32 %v2343, %v2511
    %v2616 = vsub.f32 %v1812, %v2508
    %v2617 = vsub.f32 %v1990, %v2509
    %v2618 = vsub.f32 %v2168, %v2510
    %v2619 = vsub.f32 %v2346, %v2511
    %v2620 = vsub.f32 %v1814, %v2508
    %v2621 = vsub.f32 %v1992, %v2509
    %v2622 = vsub.f32 %v2170, %v2510
    %v2623 = vsub.f32 %v2348, %v2511
    %v2624 = vsub.f32 %v1817, %v2508
    %v2625 = vsub.f32 %v1995, %v2509
    %v2626 = vsub.f32 %v2173, %v2510
    %v2627 = vsub.f32 %v2351, %v2511
    %v2628 = vsub.f32 %v1819, %v2508
    %v2629 = vsub.f32 %v1997, %v2509
    %v2630 = vsub.f32 %v2175, %v2510
    %v2631 = vsub.f32 %v2353, %v2511
    %v2632 = vsub.f32 %v1822, %v2508
    %v2633 = vsub.f32 %v2000, %v2509
    %v2634 = vsub.f32 %v2178, %v2510
    %v2635 = vsub.f32 %v2356, %v2511
    %v2636 = vsub.f32 %v1824, %v2508
    %v2637 = vsub.f32 %v2002, %v2509
    %v2638 = vsub.f32 %v2180, %v2510
    %v2639 = vsub.f32 %v2358, %v2511
    %v2640 = vmul.f32 %v2512, %v2512
    %v2641 = vmul.f32 %v2513, %v2513
    %v2642 = vmul.f32 %v2514, %v2514
    %v2643 = vmul.f32 %v2515, %v2515
    %v2644 = vmul.f32 %v2516, %v2516
    %v2645 = vmul.f32 %v2517, %v2517
    %v2646 = vmul.f32 %v2518, %v2518
    %v2647 = vmul.f32 %v2519, %v2519
    %v2648 = vmul.f32 %v2520, %v2520
    %v2649 = vmul.f32 %v2521, %v2521
    %v2650 = vmul.f32 %v2522, %v2522
    %v2651 = vmul.f32 %v2523, %v2523
    %v2652 = vmul.f32 %v2524, %v2524
    %v2653 = vmul.f32 %v2525, %v2525
    %v2654 = vmul.f32 %v2526, %v2526
    %v2655 = vmul.f32 %v2527, %v2527
    %v2656 = vmul.f32 %v2528, %v2528
    %v2657 = vmul.f32 %v2529, %v2529
    %v2658 = vmul.f32 %v2530, %v2530
    %v2659 = vmul.f32 %v2531, %v2531
    %v2660 = vmul.f32 %v2532, %v2532
    %v2661 = vmul.f32 %v2533, %v2533
    %v2662 = vmul.f32 %v2534, %v2534
    %v2663 = vmul.f32 %v2535, %v2535
    %v2664 = vmul.f32 %v2536, %v2536
    %v2665 = vmul.f32 %v2537, %v2537
    %v2666 = vmul.f32 %v2538, %v2538
    %v2667 = vmul.f32 %v2539, %v2539
    %v2668 = vmul.f32 %v2540, %v2540
    %v2669 = vmul.f32 %v2541, %v2541
    %v2670 = vmul.f32 %v2542, %v2542
    %v2671 = vmul.f32 %v2543, %v2543
    %v2672 = vmul.f32 %v2544, %v2544
    %v2673 = vmul.f32 %v2545, %v2545
    %v2674 = vmul.f32 %v2546, %v2546
    %v2675 = vmul.f32 %v2547, %v2547
    %v2676 = vmul.f32 %v2548, %v2548
    %v2677 = vmul.f32 %v2549, %v2549
    %v2678 = vmul.f32 %v2550, %v2550
    %v2679 = vmul.f32 %v2551, %v2551
    %v2680 = vmul.f32 %v2552, %v2552
    %v2681 = vmul.f32 %v2553, %v2553
    %v2682 = vmul.f32 %v2554, %v2554
    %v2683 = vmul.f32 %v2555, %v2555
    %v2684 = vmul.f32 %v2556, %v2556
    %v2685 = vmul.f32 %v2557, %v2557
    %v2686 = vmul.f32 %v2558, %v2558
    %v2687 = vmul.f32 %v2559, %v2559
    %v2688 = vmul.f32 %v2560, %v2560
    %v2689 = vmul.f32 %v2561, %v2561
    %v2690 = vmul.f32 %v2562, %v2562
    %v2691 = vmul.f32 %v2563, %v2563
    %v2692 = vmul.f32 %v2564, %v2564
    %v2693 = vmul.f32 %v2565, %v2565
    %v2694 = vmul.f32 %v2566, %v2566
    %v2695 = vmul.f32 %v2567, %v2567
    %v2696 = vmul.f32 %v2568, %v2568
    %v2697 = vmul.f32 %v2569, %v2569
    %v2698 = vmul.f32 %v2570, %v2570
    %v2699 = vmul.f32 %v2571, %v2571
    %v2700 = vmul.f32 %v2572, %v2572
    %v2701 = vmul.f32 %v2573, %v2573
    %v2702 = vmul.f32 %v2574, %v2574
    %v2703 = vmul.f32 %v2575, %v2575
    %v2704 = vmul.f32 %v2576, %v2576
    %v2705 = vmul.f32 %v2577, %v2577
    %v2706 = vmul.f32 %v2578, %v2578
    %v2707 = vmul.f32 %v2579, %v2579
    %v2708 = vmul.f32 %v2580, %v2580
    %v2709 = vmul.f32 %v2581, %v2581
    %v2710 = vmul.f32 %v2582, %v2582
    %v2711 = vmul.f32 %v2583, %v2583
    %v2712 = vmul.f32 %v2584, %v2584
    %v2713 = vmul.f32 %v2585, %v2585
    %v2714 = vmul.f32 %v2586, %v2586
    %v2715 = vmul.f32 %v2587, %v2587
    %v2716 = vmul.f32 %v2588, %v2588
    %v2717 = vmul.f32 %v2589, %v2589
    %v2718 = vmul.f32 %v2590, %v2590
    %v2719 = vmul.f32 %v2591, %v2591
    %v2720 = vmul.f32 %v2592, %v2592
    %v2721 = vmul.f32 %v2593, %v2593
    %v2722 = vmul.f32 %v2594, %v2594
    %v2723 = vmul.f32 %v2595, %v2595
    %v2724 = vmul.f32 %v2596, %v2596
    %v2725 = vmul.f32 %v2597, %v2597
    %v2726 = vmul.f32 %v2598, %v2598
    %v2727 = vmul.f32 %v2599, %v2599
    %v2728 = vmul.f32 %v2600, %v2600
    %v2729 = vmul.f32 %v2601, %v2601
    %v2730 = vmul.f32 %v2602, %v2602
    %v2731 = vmul.f32 %v2603, %v2603
    %v2732 = vmul.f32 %v2604, %v2604
    %v2733 = vmul.f32 %v2605, %v2605
    %v2734 = vmul.f32 %v2606, %v2606
    %v2735 = vmul.f32 %v2607, %v2607
    %v2736 = vmul.f32 %v2608, %v2608
    %v2737 = vmul.f32 %v2609, %v2609
    %v2738 = vmul.f32 %v2610, %v2610
    %v2739 = vmul.f32 %v2611, %v2611
    %v2740 = vmul.f32 %v2612, %v2612
    %v2741 = vmul.f32 %v2613, %v2613
    %v2742 = vmul.f32 %v2614, %v2614
    %v2743 = vmul.f32 %v2615, %v2615
    %v2744 = vmul.f32 %v2616, %v2616
    %v2745 = vmul.f32 %v2617, %v2617
    %v2746 = vmul.f32 %v2618, %v2618
    %v2747 = vmul.f32 %v2619, %v2619
    %v2748 = vmul.f32 %v2620, %v2620
    %v2749 = vmul.f32 %v2621, %v2621
    %v2750 = vmul.f32 %v2622, %v2622
    %v2751 = vmul.f32 %v2623, %v2623
    %v2752 = vmul.f32 %v2624, %v2624
    %v2753 = vmul.f32 %v2625, %v2625
    %v2754 = vmul.f32 %v2626, %v2626
    %v2755 = vmul.f32 %v2627, %v2627
    %v2756 = vmul.f32 %v2628, %v2628
    %v2757 = vmul.f32 %v2629, %v2629
    %v2758 = vmul.f32 %v2630, %v2630
    %v2759 = vmul.f32 %v2631, %v2631
    %v2760 = vmul.f32 %v2632, %v2632
    %v2761 = vmul.f32 %v2633, %v2633
    %v2762 = vmul.f32 %v2634, %v2634
    %v2763 = vmul.f32 %v2635, %v2635
    %v2764 = vmul.f32 %v2636, %v2636
    %v2765 = vmul.f32 %v2637, %v2637
    %v2766 = vmul.f32 %v2638, %v2638
    %v2767 = vmul.f32 %v2639, %v2639
    %v2768 = vadd.f32 %v2640, %v2644
    %v2769 = vadd.f32 %v2768, %v2648
    %v2770 = vadd.f32 %v2769, %v2652
    %v2771 = vadd.f32 %v2770, %v2656
    %v2772 = vadd.f32 %v2771, %v2660
    %v2773 = vadd.f32 %v2772, %v2664
    %v2774 = vadd.f32 %v2773, %v2668
    %v2775 = vadd.f32 %v2774, %v2672
    %v2776 = vadd.f32 %v2775, %v2676
    %v2777 = vadd.f32 %v2776, %v2680
    %v2778 = vadd.f32 %v2777, %v2684
    %v2779 = vadd.f32 %v2778, %v2688
    %v2780 = vadd.f32 %v2779, %v2692
    %v2781 = vadd.f32 %v2780, %v2696
    %v2782 = vadd.f32 %v2781, %v2700
    %v2783 = vadd.f32 %v2782, %v2704
    %v2784 = vadd.f32 %v2783, %v2708
    %v2785 = vadd.f32 %v2784, %v2712
    %v2786 = vadd.f32 %v2785, %v2716
    %v2787 = vadd.f32 %v2786, %v2720
    %v2788 = vadd.f32 %v2787, %v2724
    %v2789 = vadd.f32 %v2788, %v2728
    %v2790 = vadd.f32 %v2789, %v2732
    %v2791 = vadd.f32 %v2790, %v2736
    %v2792 = vadd.f32 %v2791, %v2740
    %v2793 = vadd.f32 %v2792, %v2744
    %v2794 = vadd.f32 %v2793, %v2748
    %v2795 = vadd.f32 %v2794, %v2752
    %v2796 = vadd.f32 %v2795, %v2756
    %v2797 = vadd.f32 %v2796, %v2760
    %v2798 = vadd.f32 %v2797, %v2764
    %v2799 = vrot.slane %v2798, 4
    %v2800 = vadd.f32 %v2798, %v2799
    %v2801 = vrot.slane %v2800, 2
    %v2802 = vadd.f32 %v2800, %v2801
    %v2803 = vrot.slane %v2802, 1
    %v2804 = vadd.f32 %v2802, %v2803
    %v2805 = vadd.f32 %v2641, %v2645
    %v2806 = vadd.f32 %v2805, %v2649
    %v2807 = vadd.f32 %v2806, %v2653
    %v2808 = vadd.f32 %v2807, %v2657
    %v2809 = vadd.f32 %v2808, %v2661
    %v2810 = vadd.f32 %v2809, %v2665
    %v2811 = vadd.f32 %v2810, %v2669
    %v2812 = vadd.f32 %v2811, %v2673
    %v2813 = vadd.f32 %v2812, %v2677
    %v2814 = vadd.f32 %v2813, %v2681
    %v2815 = vadd.f32 %v2814, %v2685
    %v2816 = vadd.f32 %v2815, %v2689
    %v2817 = vadd.f32 %v2816, %v2693
    %v2818 = vadd.f32 %v2817, %v2697
    %v2819 = vadd.f32 %v2818, %v2701
    %v2820 = vadd.f32 %v2819, %v2705
    %v2821 = vadd.f32 %v2820, %v2709
    %v2822 = vadd.f32 %v2821, %v2713
    %v2823 = vadd.f32 %v2822, %v2717
    %v2824 = vadd.f32 %v2823, %v2721
    %v2825 = vadd.f32 %v2824, %v2725
    %v2826 = vadd.f32 %v2825, %v2729
    %v2827 = vadd.f32 %v2826, %v2733
    %v2828 = vadd.f32 %v2827, %v2737
    %v2829 = vadd.f32 %v2828, %v2741
    %v2830 = vadd.f32 %v2829, %v2745
    %v2831 = vadd.f32 %v2830, %v2749
    %v2832 = vadd.f32 %v2831, %v2753
    %v2833 = vadd.f32 %v2832, %v2757
    %v2834 = vadd.f32 %v2833, %v2761
    %v2835 = vadd.f32 %v2834, %v2765
    %v2836 = vrot.slane %v2835, 4
    %v2837 = vadd.f32 %v2835, %v2836
    %v2838 = vrot.slane %v2837, 2
    %v2839 = vadd.f32 %v2837, %v2838
    %v2840 = vrot.slane %v2839, 1
    %v2841 = vadd.f32 %v2839, %v2840
    %v2842 = vadd.f32 %v2642, %v2646
    %v2843 = vadd.f32 %v2842, %v2650
    %v2844 = vadd.f32 %v2843, %v2654
    %v2845 = vadd.f32 %v2844, %v2658
    %v2846 = vadd.f32 %v2845, %v2662
    %v2847 = vadd.f32 %v2846, %v2666
    %v2848 = vadd.f32 %v2847, %v2670
    %v2849 = vadd.f32 %v2848, %v2674
    %v2850 = vadd.f32 %v2849, %v2678
    %v2851 = vadd.f32 %v2850, %v2682
    %v2852 = vadd.f32 %v2851, %v2686
    %v2853 = vadd.f32 %v2852, %v2690
    %v2854 = vadd.f32 %v2853, %v2694
    %v2855 = vadd.f32 %v2854, %v2698
    %v2856 = vadd.f32 %v2855, %v2702
    %v2857 = vadd.f32 %v2856, %v2706
    %v2858 = vadd.f32 %v2857, %v2710
    %v2859 = vadd.f32 %v2858, %v2714
    %v2860 = vadd.f32 %v2859, %v2718
    %v2861 = vadd.f32 %v2860, %v2722
    %v2862 = vadd.f32 %v2861, %v2726
    %v2863 = vadd.f32 %v2862, %v2730
    %v2864 = vadd.f32 %v2863, %v2734
    %v2865 = vadd.f32 %v2864, %v2738
    %v2866 = vadd.f32 %v2865, %v2742
    %v2867 = vadd.f32 %v2866, %v2746
    %v2868 = vadd.f32 %v2867, %v2750
    %v2869 = vadd.f32 %v2868, %v2754
    %v2870 = vadd.f32 %v2869, %v2758
    %v2871 = vadd.f32 %v2870, %v2762
    %v2872 = vadd.f32 %v2871, %v2766
    %v2873 = vrot.slane %v2872, 4
    %v2874 = vadd.f32 %v2872, %v2873
    %v2875 = vrot.slane %v2874, 2
    %v2876 = vadd.f32 %v2874, %v2875
    %v2877 = vrot.slane %v2876, 1
    %v2878 = vadd.f32 %v2876, %v2877
    %v2879 = vadd.f32 %v2643, %v2647
    %v2880 = vadd.f32 %v2879, %v2651
    %v2881 = vadd.f32 %v2880, %v2655
    %v2882 = vadd.f32 %v2881, %v2659
    %v2883 = vadd.f32 %v2882, %v2663
    %v2884 = vadd.f32 %v2883, %v2667
    %v2885 = vadd.f32 %v2884, %v2671
    %v2886 = vadd.f32 %v2885, %v2675
    %v2887 = vadd.f32 %v2886, %v2679
    %v2888 = vadd.f32 %v2887, %v2683
    %v2889 = vadd.f32 %v2888, %v2687
    %v2890 = vadd.f32 %v2889, %v2691
    %v2891 = vadd.f32 %v2890, %v2695
    %v2892 = vadd.f32 %v2891, %v2699
    %v2893 = vadd.f32 %v2892, %v2703
    %v2894 = vadd.f32 %v2893, %v2707
    %v2895 = vadd.f32 %v2894, %v2711
    %v2896 = vadd.f32 %v2895, %v2715
    %v2897 = vadd.f32 %v2896, %v2719
    %v2898 = vadd.f32 %v2897, %v2723
    %v2899 = vadd.f32 %v2898, %v2727
    %v2900 = vadd.f32 %v2899, %v2731
    %v2901 = vadd.f32 %v2900, %v2735
    %v2902 = vadd.f32 %v2901, %v2739
    %v2903 = vadd.f32 %v2902, %v2743
    %v2904 = vadd.f32 %v2903, %v2747
    %v2905 = vadd.f32 %v2904, %v2751
    %v2906 = vadd.f32 %v2905, %v2755
    %v2907 = vadd.f32 %v2906, %v2759
    %v2908 = vadd.f32 %v2907, %v2763
    %v2909 = vadd.f32 %v2908, %v2767
    %v2910 = vrot.slane %v2909, 4
    %v2911 = vadd.f32 %v2909, %v2910
    %v2912 = vrot.slane %v2911, 2
    %v2913 = vadd.f32 %v2911, %v2912
    %v2914 = vrot.slane %v2913, 1
    %v2915 = vadd.f32 %v2913, %v2914
    %v2916 = vmul.f32 %v2804, 0.00390625
    %v2917 = vmul.f32 %v2841, 0.00390625
    %v2918 = vmul.f32 %v2878, 0.00390625
    %v2919 = vmul.f32 %v2915, 0.00390625
    %v2920 = vld [vmem:[%s7] sm:$0xf]
    %v2921 = vadd.f32 %v2916, 0.8
    %v2922 = vadd.f32 %v2917, 0.8
    %v2923 = vadd.f32 %v2918, 0.8
    %v2924 = vadd.f32 %v2919, 0.8
    %v2925 = vrsqrt.pop %v2921
    %v2926 = vmul.f32 %v2925, %v2921
    %v2927 = vmul.f32 %v2926, %v2925
    %v2928 = vmul.f32 0.5, %v2927
    %v2929 = vsub.f32 1.5, %v2928
    %v2930 = vmul.f32 %v2925, %v2929
    %vm2931 = vweird.f32 %v2921
    %vm2932 = vweird.f32 %v2925
    %vm2933 = vmor %vm2931, %vm2932
    %v2934 = vsel %vm2933, %v2925, %v2930
    %v2935 = vrsqrt.pop %v2922
    %v2936 = vmul.f32 %v2935, %v2922
    %v2937 = vmul.f32 %v2936, %v2935
    %v2938 = vmul.f32 0.5, %v2937
    %v2939 = vsub.f32 1.5, %v2938
    %v2940 = vmul.f32 %v2935, %v2939
    %vm2941 = vweird.f32 %v2922
    %vm2942 = vweird.f32 %v2935
    %vm2943 = vmor %vm2941, %vm2942
    %v2944 = vsel %vm2943, %v2935, %v2940
    %v2945 = vrsqrt.pop %v2923
    %v2946 = vmul.f32 %v2945, %v2923
    %v2947 = vmul.f32 %v2946, %v2945
    %v2948 = vmul.f32 0.5, %v2947
    %v2949 = vsub.f32 1.5, %v2948
    %v2950 = vmul.f32 %v2945, %v2949
    %vm2951 = vweird.f32 %v2923
    %vm2952 = vweird.f32 %v2945
    %vm2953 = vmor %vm2951, %vm2952
    %v2954 = vsel %vm2953, %v2945, %v2950
    %v2955 = vrsqrt.pop %v2924
    %v2956 = vmul.f32 %v2955, %v2924
    %v2957 = vmul.f32 %v2956, %v2955
    %v2958 = vmul.f32 0.5, %v2957
    %v2959 = vsub.f32 1.5, %v2958
    %v2960 = vmul.f32 %v2955, %v2959
    %vm2961 = vweird.f32 %v2924
    %vm2962 = vweird.f32 %v2955
    %vm2963 = vmor %vm2961, %vm2962
    %v2964 = vsel %vm2963, %v2955, %v2960
    %v2969 = vrot.slane %v2944, 7
    %v2970 = vrot.slane %v2954, 6
    %v2971 = vrot.slane %v2964, 5
    %v2972 = vsel %vm961, %v2934, %v2969
    %vm2973 = vcmask 1042434
    %v2974 = vsel %vm2973, %v2970, %v2971
    %vm2975 = vcmask 1041408
    %v2976 = vsel %vm2975, %v2972, %v2974
    %v2978 = vmul.f32 %v2920, %v2976
    %v2980 = vperm.slane %v2978, 0
    %v2981 = vperm.slane %v2978, 1
    %v2982 = vperm.slane %v2978, 2
    %v2983 = vperm.slane %v2978, 3
    %v2988 = vmul.f32 %v2512, %v2980
    %v2989 = vmul.f32 %v2513, %v2981
    %v2990 = vmul.f32 %v2514, %v2982
    %v2991 = vmul.f32 %v2515, %v2983
    %v2992 = vmul.f32 %v2516, %v2980
    %v2993 = vmul.f32 %v2517, %v2981
    %v2994 = vmul.f32 %v2518, %v2982
    %v2995 = vmul.f32 %v2519, %v2983
    %v2996 = vmul.f32 %v2520, %v2980
    %v2997 = vmul.f32 %v2521, %v2981
    %v2998 = vmul.f32 %v2522, %v2982
    %v2999 = vmul.f32 %v2523, %v2983
    %v3000 = vmul.f32 %v2524, %v2980
    %v3001 = vmul.f32 %v2525, %v2981
    %v3002 = vmul.f32 %v2526, %v2982
    %v3003 = vmul.f32 %v2527, %v2983
    %v3004 = vmul.f32 %v2528, %v2980
    %v3005 = vmul.f32 %v2529, %v2981
    %v3006 = vmul.f32 %v2530, %v2982
    %v3007 = vmul.f32 %v2531, %v2983
    %v3008 = vmul.f32 %v2532, %v2980
    %v3009 = vmul.f32 %v2533, %v2981
    %v3010 = vmul.f32 %v2534, %v2982
    %v3011 = vmul.f32 %v2535, %v2983
    %v3012 = vmul.f32 %v2536, %v2980
    %v3013 = vmul.f32 %v2537, %v2981
    %v3014 = vmul.f32 %v2538, %v2982
    %v3015 = vmul.f32 %v2539, %v2983
    %v3016 = vmul.f32 %v2540, %v2980
    %v3017 = vmul.f32 %v2541, %v2981
    %v3018 = vmul.f32 %v2542, %v2982
    %v3019 = vmul.f32 %v2543, %v2983
    %v3020 = vmul.f32 %v2544, %v2980
    %v3021 = vmul.f32 %v2545, %v2981
    %v3022 = vmul.f32 %v2546, %v2982
    %v3023 = vmul.f32 %v2547, %v2983
    %v3024 = vmul.f32 %v2548, %v2980
    %v3025 = vmul.f32 %v2549, %v2981
    %v3026 = vmul.f32 %v2550, %v2982
    %v3027 = vmul.f32 %v2551, %v2983
    %v3028 = vmul.f32 %v2552, %v2980
    %v3029 = vmul.f32 %v2553, %v2981
    %v3030 = vmul.f32 %v2554, %v2982
    %v3031 = vmul.f32 %v2555, %v2983
    %v3032 = vmul.f32 %v2556, %v2980
    %v3033 = vmul.f32 %v2557, %v2981
    %v3034 = vmul.f32 %v2558, %v2982
    %v3035 = vmul.f32 %v2559, %v2983
    %v3036 = vmul.f32 %v2560, %v2980
    %v3037 = vmul.f32 %v2561, %v2981
    %v3038 = vmul.f32 %v2562, %v2982
    %v3039 = vmul.f32 %v2563, %v2983
    %v3040 = vmul.f32 %v2564, %v2980
    %v3041 = vmul.f32 %v2565, %v2981
    %v3042 = vmul.f32 %v2566, %v2982
    %v3043 = vmul.f32 %v2567, %v2983
    %v3044 = vmul.f32 %v2568, %v2980
    %v3045 = vmul.f32 %v2569, %v2981
    %v3046 = vmul.f32 %v2570, %v2982
    %v3047 = vmul.f32 %v2571, %v2983
    %v3048 = vmul.f32 %v2572, %v2980
    %v3049 = vmul.f32 %v2573, %v2981
    %v3050 = vmul.f32 %v2574, %v2982
    %v3051 = vmul.f32 %v2575, %v2983
    %v3052 = vmul.f32 %v2576, %v2980
    %v3053 = vmul.f32 %v2577, %v2981
    %v3054 = vmul.f32 %v2578, %v2982
    %v3055 = vmul.f32 %v2579, %v2983
    %v3056 = vmul.f32 %v2580, %v2980
    %v3057 = vmul.f32 %v2581, %v2981
    %v3058 = vmul.f32 %v2582, %v2982
    %v3059 = vmul.f32 %v2583, %v2983
    %v3060 = vmul.f32 %v2584, %v2980
    %v3061 = vmul.f32 %v2585, %v2981
    %v3062 = vmul.f32 %v2586, %v2982
    %v3063 = vmul.f32 %v2587, %v2983
    %v3064 = vmul.f32 %v2588, %v2980
    %v3065 = vmul.f32 %v2589, %v2981
    %v3066 = vmul.f32 %v2590, %v2982
    %v3067 = vmul.f32 %v2591, %v2983
    %v3068 = vmul.f32 %v2592, %v2980
    %v3069 = vmul.f32 %v2593, %v2981
    %v3070 = vmul.f32 %v2594, %v2982
    %v3071 = vmul.f32 %v2595, %v2983
    %v3072 = vmul.f32 %v2596, %v2980
    %v3073 = vmul.f32 %v2597, %v2981
    %v3074 = vmul.f32 %v2598, %v2982
    %v3075 = vmul.f32 %v2599, %v2983
    %v3076 = vmul.f32 %v2600, %v2980
    %v3077 = vmul.f32 %v2601, %v2981
    %v3078 = vmul.f32 %v2602, %v2982
    %v3079 = vmul.f32 %v2603, %v2983
    %v3080 = vmul.f32 %v2604, %v2980
    %v3081 = vmul.f32 %v2605, %v2981
    %v3082 = vmul.f32 %v2606, %v2982
    %v3083 = vmul.f32 %v2607, %v2983
    %v3084 = vmul.f32 %v2608, %v2980
    %v3085 = vmul.f32 %v2609, %v2981
    %v3086 = vmul.f32 %v2610, %v2982
    %v3087 = vmul.f32 %v2611, %v2983
    %v3088 = vmul.f32 %v2612, %v2980
    %v3089 = vmul.f32 %v2613, %v2981
    %v3090 = vmul.f32 %v2614, %v2982
    %v3091 = vmul.f32 %v2615, %v2983
    %v3092 = vmul.f32 %v2616, %v2980
    %v3093 = vmul.f32 %v2617, %v2981
    %v3094 = vmul.f32 %v2618, %v2982
    %v3095 = vmul.f32 %v2619, %v2983
    %v3096 = vmul.f32 %v2620, %v2980
    %v3097 = vmul.f32 %v2621, %v2981
    %v3098 = vmul.f32 %v2622, %v2982
    %v3099 = vmul.f32 %v2623, %v2983
    %v3100 = vmul.f32 %v2624, %v2980
    %v3101 = vmul.f32 %v2625, %v2981
    %v3102 = vmul.f32 %v2626, %v2982
    %v3103 = vmul.f32 %v2627, %v2983
    %v3104 = vmul.f32 %v2628, %v2980
    %v3105 = vmul.f32 %v2629, %v2981
    %v3106 = vmul.f32 %v2630, %v2982
    %v3107 = vmul.f32 %v2631, %v2983
    %v3108 = vmul.f32 %v2632, %v2980
    %v3109 = vmul.f32 %v2633, %v2981
    %v3110 = vmul.f32 %v2634, %v2982
    %v3111 = vmul.f32 %v2635, %v2983
    %v3112 = vmul.f32 %v2636, %v2980
    %v3113 = vmul.f32 %v2637, %v2981
    %v3114 = vmul.f32 %v2638, %v2982
    %v3115 = vmul.f32 %v2639, %v2983
    %v3116 = vld [vmem:[%s8] sm:$0xf]
    %v3118 = vperm.slane %v3116, 0
    %v3119 = vperm.slane %v3116, 1
    %v3120 = vperm.slane %v3116, 2
    %v3121 = vperm.slane %v3116, 3
    %v3126 = vadd.f32 %v2988, %v3118
    %v3127 = vadd.f32 %v2989, %v3119
    %v3128 = vadd.f32 %v2990, %v3120
    %v3129 = vadd.f32 %v2991, %v3121
    %v3130 = vadd.f32 %v2992, %v3118
    %v3131 = vadd.f32 %v2993, %v3119
    %v3132 = vadd.f32 %v2994, %v3120
    %v3133 = vadd.f32 %v2995, %v3121
    %v3134 = vadd.f32 %v2996, %v3118
    %v3135 = vadd.f32 %v2997, %v3119
    %v3136 = vadd.f32 %v2998, %v3120
    %v3137 = vadd.f32 %v2999, %v3121
    %v3138 = vadd.f32 %v3000, %v3118
    %v3139 = vadd.f32 %v3001, %v3119
    %v3140 = vadd.f32 %v3002, %v3120
    %v3141 = vadd.f32 %v3003, %v3121
    %v3142 = vadd.f32 %v3004, %v3118
    %v3143 = vadd.f32 %v3005, %v3119
    %v3144 = vadd.f32 %v3006, %v3120
    %v3145 = vadd.f32 %v3007, %v3121
    %v3146 = vadd.f32 %v3008, %v3118
    %v3147 = vadd.f32 %v3009, %v3119
    %v3148 = vadd.f32 %v3010, %v3120
    %v3149 = vadd.f32 %v3011, %v3121
    %v3150 = vadd.f32 %v3012, %v3118
    %v3151 = vadd.f32 %v3013, %v3119
    %v3152 = vadd.f32 %v3014, %v3120
    %v3153 = vadd.f32 %v3015, %v3121
    %v3154 = vadd.f32 %v3016, %v3118
    %v3155 = vadd.f32 %v3017, %v3119
    %v3156 = vadd.f32 %v3018, %v3120
    %v3157 = vadd.f32 %v3019, %v3121
    %v3158 = vadd.f32 %v3020, %v3118
    %v3159 = vadd.f32 %v3021, %v3119
    %v3160 = vadd.f32 %v3022, %v3120
    %v3161 = vadd.f32 %v3023, %v3121
    %v3162 = vadd.f32 %v3024, %v3118
    %v3163 = vadd.f32 %v3025, %v3119
    %v3164 = vadd.f32 %v3026, %v3120
    %v3165 = vadd.f32 %v3027, %v3121
    %v3166 = vadd.f32 %v3028, %v3118
    %v3167 = vadd.f32 %v3029, %v3119
    %v3168 = vadd.f32 %v3030, %v3120
    %v3169 = vadd.f32 %v3031, %v3121
    %v3170 = vadd.f32 %v3032, %v3118
    %v3171 = vadd.f32 %v3033, %v3119
    %v3172 = vadd.f32 %v3034, %v3120
    %v3173 = vadd.f32 %v3035, %v3121
    %v3174 = vadd.f32 %v3036, %v3118
    %v3175 = vadd.f32 %v3037, %v3119
    %v3176 = vadd.f32 %v3038, %v3120
    %v3177 = vadd.f32 %v3039, %v3121
    %v3178 = vadd.f32 %v3040, %v3118
    %v3179 = vadd.f32 %v3041, %v3119
    %v3180 = vadd.f32 %v3042, %v3120
    %v3181 = vadd.f32 %v3043, %v3121
    %v3182 = vadd.f32 %v3044, %v3118
    %v3183 = vadd.f32 %v3045, %v3119
    %v3184 = vadd.f32 %v3046, %v3120
    %v3185 = vadd.f32 %v3047, %v3121
    %v3186 = vadd.f32 %v3048, %v3118
    %v3187 = vadd.f32 %v3049, %v3119
    %v3188 = vadd.f32 %v3050, %v3120
    %v3189 = vadd.f32 %v3051, %v3121
    %v3190 = vadd.f32 %v3052, %v3118
    %v3191 = vadd.f32 %v3053, %v3119
    %v3192 = vadd.f32 %v3054, %v3120
    %v3193 = vadd.f32 %v3055, %v3121
    %v3194 = vadd.f32 %v3056, %v3118
    %v3195 = vadd.f32 %v3057, %v3119
    %v3196 = vadd.f32 %v3058, %v3120
    %v3197 = vadd.f32 %v3059, %v3121
    %v3198 = vadd.f32 %v3060, %v3118
    %v3199 = vadd.f32 %v3061, %v3119
    %v3200 = vadd.f32 %v3062, %v3120
    %v3201 = vadd.f32 %v3063, %v3121
    %v3202 = vadd.f32 %v3064, %v3118
    %v3203 = vadd.f32 %v3065, %v3119
    %v3204 = vadd.f32 %v3066, %v3120
    %v3205 = vadd.f32 %v3067, %v3121
    %v3206 = vadd.f32 %v3068, %v3118
    %v3207 = vadd.f32 %v3069, %v3119
    %v3208 = vadd.f32 %v3070, %v3120
    %v3209 = vadd.f32 %v3071, %v3121
    %v3210 = vadd.f32 %v3072, %v3118
    %v3211 = vadd.f32 %v3073, %v3119
    %v3212 = vadd.f32 %v3074, %v3120
    %v3213 = vadd.f32 %v3075, %v3121
    %v3214 = vadd.f32 %v3076, %v3118
    %v3215 = vadd.f32 %v3077, %v3119
    %v3216 = vadd.f32 %v3078, %v3120
    %v3217 = vadd.f32 %v3079, %v3121
    %v3218 = vadd.f32 %v3080, %v3118
    %v3219 = vadd.f32 %v3081, %v3119
    %v3220 = vadd.f32 %v3082, %v3120
    %v3221 = vadd.f32 %v3083, %v3121
    %v3222 = vadd.f32 %v3084, %v3118
    %v3223 = vadd.f32 %v3085, %v3119
    %v3224 = vadd.f32 %v3086, %v3120
    %v3225 = vadd.f32 %v3087, %v3121
    %v3226 = vadd.f32 %v3088, %v3118
    %v3227 = vadd.f32 %v3089, %v3119
    %v3228 = vadd.f32 %v3090, %v3120
    %v3229 = vadd.f32 %v3091, %v3121
    %v3230 = vadd.f32 %v3092, %v3118
    %v3231 = vadd.f32 %v3093, %v3119
    %v3232 = vadd.f32 %v3094, %v3120
    %v3233 = vadd.f32 %v3095, %v3121
    %v3234 = vadd.f32 %v3096, %v3118
    %v3235 = vadd.f32 %v3097, %v3119
    %v3236 = vadd.f32 %v3098, %v3120
    %v3237 = vadd.f32 %v3099, %v3121
    %v3238 = vadd.f32 %v3100, %v3118
    %v3239 = vadd.f32 %v3101, %v3119
    %v3240 = vadd.f32 %v3102, %v3120
    %v3241 = vadd.f32 %v3103, %v3121
    %v3242 = vadd.f32 %v3104, %v3118
    %v3243 = vadd.f32 %v3105, %v3119
    %v3244 = vadd.f32 %v3106, %v3120
    %v3245 = vadd.f32 %v3107, %v3121
    %v3246 = vadd.f32 %v3108, %v3118
    %v3247 = vadd.f32 %v3109, %v3119
    %v3248 = vadd.f32 %v3110, %v3120
    %v3249 = vadd.f32 %v3111, %v3121
    %v3250 = vadd.f32 %v3112, %v3118
    %v3251 = vadd.f32 %v3113, %v3119
    %v3252 = vadd.f32 %v3114, %v3120
    %v3253 = vadd.f32 %v3115, %v3121
    %v3254 = vmul.f32 %v3126, 0.2
    %v3255 = vmul.f32 %v3127, 0.2
    %v3256 = vmul.f32 %v3128, 0.2
    %v3257 = vmul.f32 %v3129, 0.2
    %v3258 = vmul.f32 %v3130, 0.2
    %v3259 = vmul.f32 %v3131, 0.2
    %v3260 = vmul.f32 %v3132, 0.2
    %v3261 = vmul.f32 %v3133, 0.2
    %v3262 = vmul.f32 %v3134, 0.2
    %v3263 = vmul.f32 %v3135, 0.2
    %v3264 = vmul.f32 %v3136, 0.2
    %v3265 = vmul.f32 %v3137, 0.2
    %v3266 = vmul.f32 %v3138, 0.2
    %v3267 = vmul.f32 %v3139, 0.2
    %v3268 = vmul.f32 %v3140, 0.2
    %v3269 = vmul.f32 %v3141, 0.2
    %v3270 = vmul.f32 %v3142, 0.2
    %v3271 = vmul.f32 %v3143, 0.2
    %v3272 = vmul.f32 %v3144, 0.2
    %v3273 = vmul.f32 %v3145, 0.2
    %v3274 = vmul.f32 %v3146, 0.2
    %v3275 = vmul.f32 %v3147, 0.2
    %v3276 = vmul.f32 %v3148, 0.2
    %v3277 = vmul.f32 %v3149, 0.2
    %v3278 = vmul.f32 %v3150, 0.2
    %v3279 = vmul.f32 %v3151, 0.2
    %v3280 = vmul.f32 %v3152, 0.2
    %v3281 = vmul.f32 %v3153, 0.2
    %v3282 = vmul.f32 %v3154, 0.2
    %v3283 = vmul.f32 %v3155, 0.2
    %v3284 = vmul.f32 %v3156, 0.2
    %v3285 = vmul.f32 %v3157, 0.2
    %v3286 = vmul.f32 %v3158, 0.2
    %v3287 = vmul.f32 %v3159, 0.2
    %v3288 = vmul.f32 %v3160, 0.2
    %v3289 = vmul.f32 %v3161, 0.2
    %v3290 = vmul.f32 %v3162, 0.2
    %v3291 = vmul.f32 %v3163, 0.2
    %v3292 = vmul.f32 %v3164, 0.2
    %v3293 = vmul.f32 %v3165, 0.2
    %v3294 = vmul.f32 %v3166, 0.2
    %v3295 = vmul.f32 %v3167, 0.2
    %v3296 = vmul.f32 %v3168, 0.2
    %v3297 = vmul.f32 %v3169, 0.2
    %v3298 = vmul.f32 %v3170, 0.2
    %v3299 = vmul.f32 %v3171, 0.2
    %v3300 = vmul.f32 %v3172, 0.2
    %v3301 = vmul.f32 %v3173, 0.2
    %v3302 = vmul.f32 %v3174, 0.2
    %v3303 = vmul.f32 %v3175, 0.2
    %v3304 = vmul.f32 %v3176, 0.2
    %v3305 = vmul.f32 %v3177, 0.2
    %v3306 = vmul.f32 %v3178, 0.2
    %v3307 = vmul.f32 %v3179, 0.2
    %v3308 = vmul.f32 %v3180, 0.2
    %v3309 = vmul.f32 %v3181, 0.2
    %v3310 = vmul.f32 %v3182, 0.2
    %v3311 = vmul.f32 %v3183, 0.2
    %v3312 = vmul.f32 %v3184, 0.2
    %v3313 = vmul.f32 %v3185, 0.2
    %v3314 = vmul.f32 %v3186, 0.2
    %v3315 = vmul.f32 %v3187, 0.2
    %v3316 = vmul.f32 %v3188, 0.2
    %v3317 = vmul.f32 %v3189, 0.2
    %v3318 = vmul.f32 %v3190, 0.2
    %v3319 = vmul.f32 %v3191, 0.2
    %v3320 = vmul.f32 %v3192, 0.2
    %v3321 = vmul.f32 %v3193, 0.2
    %v3322 = vmul.f32 %v3194, 0.2
    %v3323 = vmul.f32 %v3195, 0.2
    %v3324 = vmul.f32 %v3196, 0.2
    %v3325 = vmul.f32 %v3197, 0.2
    %v3326 = vmul.f32 %v3198, 0.2
    %v3327 = vmul.f32 %v3199, 0.2
    %v3328 = vmul.f32 %v3200, 0.2
    %v3329 = vmul.f32 %v3201, 0.2
    %v3330 = vmul.f32 %v3202, 0.2
    %v3331 = vmul.f32 %v3203, 0.2
    %v3332 = vmul.f32 %v3204, 0.2
    %v3333 = vmul.f32 %v3205, 0.2
    %v3334 = vmul.f32 %v3206, 0.2
    %v3335 = vmul.f32 %v3207, 0.2
    %v3336 = vmul.f32 %v3208, 0.2
    %v3337 = vmul.f32 %v3209, 0.2
    %v3338 = vmul.f32 %v3210, 0.2
    %v3339 = vmul.f32 %v3211, 0.2
    %v3340 = vmul.f32 %v3212, 0.2
    %v3341 = vmul.f32 %v3213, 0.2
    %v3342 = vmul.f32 %v3214, 0.2
    %v3343 = vmul.f32 %v3215, 0.2
    %v3344 = vmul.f32 %v3216, 0.2
    %v3345 = vmul.f32 %v3217, 0.2
    %v3346 = vmul.f32 %v3218, 0.2
    %v3347 = vmul.f32 %v3219, 0.2
    %v3348 = vmul.f32 %v3220, 0.2
    %v3349 = vmul.f32 %v3221, 0.2
    %v3350 = vmul.f32 %v3222, 0.2
    %v3351 = vmul.f32 %v3223, 0.2
    %v3352 = vmul.f32 %v3224, 0.2
    %v3353 = vmul.f32 %v3225, 0.2
    %v3354 = vmul.f32 %v3226, 0.2
    %v3355 = vmul.f32 %v3227, 0.2
    %v3356 = vmul.f32 %v3228, 0.2
    %v3357 = vmul.f32 %v3229, 0.2
    %v3358 = vmul.f32 %v3230, 0.2
    %v3359 = vmul.f32 %v3231, 0.2
    %v3360 = vmul.f32 %v3232, 0.2
    %v3361 = vmul.f32 %v3233, 0.2
    %v3362 = vmul.f32 %v3234, 0.2
    %v3363 = vmul.f32 %v3235, 0.2
    %v3364 = vmul.f32 %v3236, 0.2
    %v3365 = vmul.f32 %v3237, 0.2
    %v3366 = vmul.f32 %v3238, 0.2
    %v3367 = vmul.f32 %v3239, 0.2
    %v3368 = vmul.f32 %v3240, 0.2
    %v3369 = vmul.f32 %v3241, 0.2
    %v3370 = vmul.f32 %v3242, 0.2
    %v3371 = vmul.f32 %v3243, 0.2
    %v3372 = vmul.f32 %v3244, 0.2
    %v3373 = vmul.f32 %v3245, 0.2
    %v3374 = vmul.f32 %v3246, 0.2
    %v3375 = vmul.f32 %v3247, 0.2
    %v3376 = vmul.f32 %v3248, 0.2
    %v3377 = vmul.f32 %v3249, 0.2
    %v3378 = vmul.f32 %v3250, 0.2
    %v3379 = vmul.f32 %v3251, 0.2
    %v3380 = vmul.f32 %v3252, 0.2
    %v3381 = vmul.f32 %v3253, 0.2
    %v3382 = vmax.f32 %v3126, %v3254
    %v3383 = vmax.f32 %v3127, %v3255
    %v3384 = vmax.f32 %v3128, %v3256
    %v3385 = vmax.f32 %v3129, %v3257
    %v3386 = vmax.f32 %v3130, %v3258
    %v3387 = vmax.f32 %v3131, %v3259
    %v3388 = vmax.f32 %v3132, %v3260
    %v3389 = vmax.f32 %v3133, %v3261
    %v3390 = vmax.f32 %v3134, %v3262
    %v3391 = vmax.f32 %v3135, %v3263
    %v3392 = vmax.f32 %v3136, %v3264
    %v3393 = vmax.f32 %v3137, %v3265
    %v3394 = vmax.f32 %v3138, %v3266
    %v3395 = vmax.f32 %v3139, %v3267
    %v3396 = vmax.f32 %v3140, %v3268
    %v3397 = vmax.f32 %v3141, %v3269
    %v3398 = vmax.f32 %v3142, %v3270
    %v3399 = vmax.f32 %v3143, %v3271
    %v3400 = vmax.f32 %v3144, %v3272
    %v3401 = vmax.f32 %v3145, %v3273
    %v3402 = vmax.f32 %v3146, %v3274
    %v3403 = vmax.f32 %v3147, %v3275
    %v3404 = vmax.f32 %v3148, %v3276
    %v3405 = vmax.f32 %v3149, %v3277
    %v3406 = vmax.f32 %v3150, %v3278
    %v3407 = vmax.f32 %v3151, %v3279
    %v3408 = vmax.f32 %v3152, %v3280
    %v3409 = vmax.f32 %v3153, %v3281
    %v3410 = vmax.f32 %v3154, %v3282
    %v3411 = vmax.f32 %v3155, %v3283
    %v3412 = vmax.f32 %v3156, %v3284
    %v3413 = vmax.f32 %v3157, %v3285
    %v3414 = vmax.f32 %v3158, %v3286
    %v3415 = vmax.f32 %v3159, %v3287
    %v3416 = vmax.f32 %v3160, %v3288
    %v3417 = vmax.f32 %v3161, %v3289
    %v3418 = vmax.f32 %v3162, %v3290
    %v3419 = vmax.f32 %v3163, %v3291
    %v3420 = vmax.f32 %v3164, %v3292
    %v3421 = vmax.f32 %v3165, %v3293
    %v3422 = vmax.f32 %v3166, %v3294
    %v3423 = vmax.f32 %v3167, %v3295
    %v3424 = vmax.f32 %v3168, %v3296
    %v3425 = vmax.f32 %v3169, %v3297
    %v3426 = vmax.f32 %v3170, %v3298
    %v3427 = vmax.f32 %v3171, %v3299
    %v3428 = vmax.f32 %v3172, %v3300
    %v3429 = vmax.f32 %v3173, %v3301
    %v3430 = vmax.f32 %v3174, %v3302
    %v3431 = vmax.f32 %v3175, %v3303
    %v3432 = vmax.f32 %v3176, %v3304
    %v3433 = vmax.f32 %v3177, %v3305
    %v3434 = vmax.f32 %v3178, %v3306
    %v3435 = vmax.f32 %v3179, %v3307
    %v3436 = vmax.f32 %v3180, %v3308
    %v3437 = vmax.f32 %v3181, %v3309
    %v3438 = vmax.f32 %v3182, %v3310
    %v3439 = vmax.f32 %v3183, %v3311
    %v3440 = vmax.f32 %v3184, %v3312
    %v3441 = vmax.f32 %v3185, %v3313
    %v3442 = vmax.f32 %v3186, %v3314
    %v3443 = vmax.f32 %v3187, %v3315
    %v3444 = vmax.f32 %v3188, %v3316
    %v3445 = vmax.f32 %v3189, %v3317
    %v3446 = vmax.f32 %v3190, %v3318
    %v3447 = vmax.f32 %v3191, %v3319
    %v3448 = vmax.f32 %v3192, %v3320
    %v3449 = vmax.f32 %v3193, %v3321
    %v3450 = vmax.f32 %v3194, %v3322
    %v3451 = vmax.f32 %v3195, %v3323
    %v3452 = vmax.f32 %v3196, %v3324
    %v3453 = vmax.f32 %v3197, %v3325
    %v3454 = vmax.f32 %v3198, %v3326
    %v3455 = vmax.f32 %v3199, %v3327
    %v3456 = vmax.f32 %v3200, %v3328
    %v3457 = vmax.f32 %v3201, %v3329
    %v3458 = vmax.f32 %v3202, %v3330
    %v3459 = vmax.f32 %v3203, %v3331
    %v3460 = vmax.f32 %v3204, %v3332
    %v3461 = vmax.f32 %v3205, %v3333
    %v3462 = vmax.f32 %v3206, %v3334
    %v3463 = vmax.f32 %v3207, %v3335
    %v3464 = vmax.f32 %v3208, %v3336
    %v3465 = vmax.f32 %v3209, %v3337
    %v3466 = vmax.f32 %v3210, %v3338
    %v3467 = vmax.f32 %v3211, %v3339
    %v3468 = vmax.f32 %v3212, %v3340
    %v3469 = vmax.f32 %v3213, %v3341
    %v3470 = vmax.f32 %v3214, %v3342
    %v3471 = vmax.f32 %v3215, %v3343
    %v3472 = vmax.f32 %v3216, %v3344
    %v3473 = vmax.f32 %v3217, %v3345
    %v3474 = vmax.f32 %v3218, %v3346
    %v3475 = vmax.f32 %v3219, %v3347
    %v3476 = vmax.f32 %v3220, %v3348
    %v3477 = vmax.f32 %v3221, %v3349
    %v3478 = vmax.f32 %v3222, %v3350
    %v3479 = vmax.f32 %v3223, %v3351
    %v3480 = vmax.f32 %v3224, %v3352
    %v3481 = vmax.f32 %v3225, %v3353
    %v3482 = vmax.f32 %v3226, %v3354
    %v3483 = vmax.f32 %v3227, %v3355
    %v3484 = vmax.f32 %v3228, %v3356
    %v3485 = vmax.f32 %v3229, %v3357
    %v3486 = vmax.f32 %v3230, %v3358
    %v3487 = vmax.f32 %v3231, %v3359
    %v3488 = vmax.f32 %v3232, %v3360
    %v3489 = vmax.f32 %v3233, %v3361
    %v3490 = vmax.f32 %v3234, %v3362
    %v3491 = vmax.f32 %v3235, %v3363
    %v3492 = vmax.f32 %v3236, %v3364
    %v3493 = vmax.f32 %v3237, %v3365
    %v3494 = vmax.f32 %v3238, %v3366
    %v3495 = vmax.f32 %v3239, %v3367
    %v3496 = vmax.f32 %v3240, %v3368
    %v3497 = vmax.f32 %v3241, %v3369
    %v3498 = vmax.f32 %v3242, %v3370
    %v3499 = vmax.f32 %v3243, %v3371
    %v3500 = vmax.f32 %v3244, %v3372
    %v3501 = vmax.f32 %v3245, %v3373
    %v3502 = vmax.f32 %v3246, %v3374
    %v3503 = vmax.f32 %v3247, %v3375
    %v3504 = vmax.f32 %v3248, %v3376
    %v3505 = vmax.f32 %v3249, %v3377
    %v3506 = vmax.f32 %v3250, %v3378
    %v3507 = vmax.f32 %v3251, %v3379
    %v3508 = vmax.f32 %v3252, %v3380
    %v3509 = vmax.f32 %v3253, %v3381
    %v3510 = vpack.c.bf16 %v3386, %v3382
    %v3511 = vpack.c.bf16 %v3387, %v3383
    %v3512 = vpack.c.bf16 %v3388, %v3384
    %v3513 = vpack.c.bf16 %v3389, %v3385
    %v3514 = vpack.c.bf16 %v3394, %v3390
    %v3515 = vpack.c.bf16 %v3395, %v3391
    %v3516 = vpack.c.bf16 %v3396, %v3392
    %v3517 = vpack.c.bf16 %v3397, %v3393
    %v3518 = vpack.c.bf16 %v3402, %v3398
    %v3519 = vpack.c.bf16 %v3403, %v3399
    %v3520 = vpack.c.bf16 %v3404, %v3400
    %v3521 = vpack.c.bf16 %v3405, %v3401
    %v3522 = vpack.c.bf16 %v3410, %v3406
    %v3523 = vpack.c.bf16 %v3411, %v3407
    %v3524 = vpack.c.bf16 %v3412, %v3408
    %v3525 = vpack.c.bf16 %v3413, %v3409
    %v3526 = vpack.c.bf16 %v3418, %v3414
    %v3527 = vpack.c.bf16 %v3419, %v3415
    %v3528 = vpack.c.bf16 %v3420, %v3416
    %v3529 = vpack.c.bf16 %v3421, %v3417
    %v3530 = vpack.c.bf16 %v3426, %v3422
    %v3531 = vpack.c.bf16 %v3427, %v3423
    %v3532 = vpack.c.bf16 %v3428, %v3424
    %v3533 = vpack.c.bf16 %v3429, %v3425
    %v3534 = vpack.c.bf16 %v3434, %v3430
    %v3535 = vpack.c.bf16 %v3435, %v3431
    %v3536 = vpack.c.bf16 %v3436, %v3432
    %v3537 = vpack.c.bf16 %v3437, %v3433
    %v3538 = vpack.c.bf16 %v3442, %v3438
    %v3539 = vpack.c.bf16 %v3443, %v3439
    %v3540 = vpack.c.bf16 %v3444, %v3440
    %v3541 = vpack.c.bf16 %v3445, %v3441
    %v3542 = vpack.c.bf16 %v3450, %v3446
    %v3543 = vpack.c.bf16 %v3451, %v3447
    %v3544 = vpack.c.bf16 %v3452, %v3448
    %v3545 = vpack.c.bf16 %v3453, %v3449
    %v3546 = vpack.c.bf16 %v3458, %v3454
    %v3547 = vpack.c.bf16 %v3459, %v3455
    %v3548 = vpack.c.bf16 %v3460, %v3456
    %v3549 = vpack.c.bf16 %v3461, %v3457
    %v3550 = vpack.c.bf16 %v3466, %v3462
    %v3551 = vpack.c.bf16 %v3467, %v3463
    %v3552 = vpack.c.bf16 %v3468, %v3464
    %v3553 = vpack.c.bf16 %v3469, %v3465
    %v3554 = vpack.c.bf16 %v3474, %v3470
    %v3555 = vpack.c.bf16 %v3475, %v3471
    %v3556 = vpack.c.bf16 %v3476, %v3472
    %v3557 = vpack.c.bf16 %v3477, %v3473
    %v3558 = vpack.c.bf16 %v3482, %v3478
    %v3559 = vpack.c.bf16 %v3483, %v3479
    %v3560 = vpack.c.bf16 %v3484, %v3480
    %v3561 = vpack.c.bf16 %v3485, %v3481
    %v3562 = vpack.c.bf16 %v3490, %v3486
    %v3563 = vpack.c.bf16 %v3491, %v3487
    %v3564 = vpack.c.bf16 %v3492, %v3488
    %v3565 = vpack.c.bf16 %v3493, %v3489
    %v3566 = vpack.c.bf16 %v3498, %v3494
    %v3567 = vpack.c.bf16 %v3499, %v3495
    %v3568 = vpack.c.bf16 %v3500, %v3496
    %v3569 = vpack.c.bf16 %v3501, %v3497
    %v3570 = vpack.c.bf16 %v3506, %v3502
    %v3571 = vpack.c.bf16 %v3507, %v3503
    %v3572 = vpack.c.bf16 %v3508, %v3504
    %v3573 = vpack.c.bf16 %v3509, %v3505
    %v3574 = vld [vmem:[#allocation4] sm:$0xff]
    %v3575 = vld [vmem:[#allocation4 + $0x8] sm:$0xff]
    %v3576 = vld [vmem:[#allocation4 + $0x10] sm:$0xff]
    %v3577 = vld [vmem:[#allocation4 + $0x18] sm:$0xff]
    %v3578 = vld [vmem:[#allocation4 + $0x20] sm:$0xff]
    %v3579 = vld [vmem:[#allocation4 + $0x28] sm:$0xff]
    %v3580 = vld [vmem:[#allocation4 + $0x30] sm:$0xff]
    %v3581 = vld [vmem:[#allocation4 + $0x38] sm:$0xff]
    %v3582 = vld [vmem:[#allocation4 + $0x40] sm:$0xff]
    %v3583 = vld [vmem:[#allocation4 + $0x48] sm:$0xff]
    %v3584 = vld [vmem:[#allocation4 + $0x50] sm:$0xff]
    %v3585 = vld [vmem:[#allocation4 + $0x58] sm:$0xff]
    %v3586 = vld [vmem:[#allocation4 + $0x60] sm:$0xff]
    %v3587 = vld [vmem:[#allocation4 + $0x68] sm:$0xff]
    %v3588 = vld [vmem:[#allocation4 + $0x70] sm:$0xff]
    %v3589 = vld [vmem:[#allocation4 + $0x78] sm:$0xff]
    %v3590 = vld [vmem:[#allocation4 + $0x80] sm:$0xff]
    %v3591 = vld [vmem:[#allocation4 + $0x88] sm:$0xff]
    %v3592 = vld [vmem:[#allocation4 + $0x90] sm:$0xff]
    %v3593 = vld [vmem:[#allocation4 + $0x98] sm:$0xff]
    %v3594 = vld [vmem:[#allocation4 + $0xa0] sm:$0xff]
    %v3595 = vld [vmem:[#allocation4 + $0xa8] sm:$0xff]
    %v3596 = vld [vmem:[#allocation4 + $0xb0] sm:$0xff]
    %v3597 = vld [vmem:[#allocation4 + $0xb8] sm:$0xff]
    %v3598 = vld [vmem:[#allocation4 + $0xc0] sm:$0xff]
    %v3599 = vld [vmem:[#allocation4 + $0xc8] sm:$0xff]
    %v3600 = vld [vmem:[#allocation4 + $0xd0] sm:$0xff]
    %v3601 = vld [vmem:[#allocation4 + $0xd8] sm:$0xff]
    %v3602 = vld [vmem:[#allocation4 + $0xe0] sm:$0xff]
    %v3603 = vld [vmem:[#allocation4 + $0xe8] sm:$0xff]
    %v3604 = vld [vmem:[#allocation4 + $0xf0] sm:$0xff]
    %v3605 = vld [vmem:[#allocation4 + $0xf8] sm:$0xff]
    %v3606 = vld [vmem:[#allocation4 + $0x100] sm:$0xff]
    %v3607 = vld [vmem:[#allocation4 + $0x108] sm:$0xff]
    %v3608 = vld [vmem:[#allocation4 + $0x110] sm:$0xff]
    %v3609 = vld [vmem:[#allocation4 + $0x118] sm:$0xff]
    %v3610 = vld [vmem:[#allocation4 + $0x120] sm:$0xff]
    %v3611 = vld [vmem:[#allocation4 + $0x128] sm:$0xff]
    %v3612 = vld [vmem:[#allocation4 + $0x130] sm:$0xff]
    %v3613 = vld [vmem:[#allocation4 + $0x138] sm:$0xff]
    %v3614 = vld [vmem:[#allocation4 + $0x140] sm:$0xff]
    %v3615 = vld [vmem:[#allocation4 + $0x148] sm:$0xff]
    %v3616 = vld [vmem:[#allocation4 + $0x150] sm:$0xff]
    %v3617 = vld [vmem:[#allocation4 + $0x158] sm:$0xff]
    %v3618 = vld [vmem:[#allocation4 + $0x160] sm:$0xff]
    %v3619 = vld [vmem:[#allocation4 + $0x168] sm:$0xff]
    %v3620 = vld [vmem:[#allocation4 + $0x170] sm:$0xff]
    %v3621 = vld [vmem:[#allocation4 + $0x178] sm:$0xff]
    %v3622 = vld [vmem:[#allocation4 + $0x180] sm:$0xff]
    %v3623 = vld [vmem:[#allocation4 + $0x188] sm:$0xff]
    %v3624 = vld [vmem:[#allocation4 + $0x190] sm:$0xff]
    %v3625 = vld [vmem:[#allocation4 + $0x198] sm:$0xff]
    %v3626 = vld [vmem:[#allocation4 + $0x1a0] sm:$0xff]
    %v3627 = vld [vmem:[#allocation4 + $0x1a8] sm:$0xff]
    %v3628 = vld [vmem:[#allocation4 + $0x1b0] sm:$0xff]
    %v3629 = vld [vmem:[#allocation4 + $0x1b8] sm:$0xff]
    %v3630 = vld [vmem:[#allocation4 + $0x1c0] sm:$0xff]
    %v3631 = vld [vmem:[#allocation4 + $0x1c8] sm:$0xff]
    %v3632 = vld [vmem:[#allocation4 + $0x1d0] sm:$0xff]
    %v3633 = vld [vmem:[#allocation4 + $0x1d8] sm:$0xff]
    %v3634 = vld [vmem:[#allocation4 + $0x1e0] sm:$0xff]
    %v3635 = vld [vmem:[#allocation4 + $0x1e8] sm:$0xff]
    %v3636 = vld [vmem:[#allocation4 + $0x1f0] sm:$0xff]
    %v3637 = vld [vmem:[#allocation4 + $0x1f8] sm:$0xff]
    %v3638 = vld [vmem:[#allocation4 + $0x200] sm:$0xff]
    %v3639 = vld [vmem:[#allocation4 + $0x208] sm:$0xff]
    %v3640 = vld [vmem:[#allocation4 + $0x210] sm:$0xff]
    %v3641 = vld [vmem:[#allocation4 + $0x218] sm:$0xff]
    %v3642 = vld [vmem:[#allocation4 + $0x220] sm:$0xff]
    %v3643 = vld [vmem:[#allocation4 + $0x228] sm:$0xff]
    %v3644 = vld [vmem:[#allocation4 + $0x230] sm:$0xff]
    %v3645 = vld [vmem:[#allocation4 + $0x238] sm:$0xff]
    %v3646 = vld [vmem:[#allocation4 + $0x240] sm:$0xff]
    %v3647 = vld [vmem:[#allocation4 + $0x248] sm:$0xff]
    %v3648 = vld [vmem:[#allocation4 + $0x250] sm:$0xff]
    %v3649 = vld [vmem:[#allocation4 + $0x258] sm:$0xff]
    %v3650 = vld [vmem:[#allocation4 + $0x260] sm:$0xff]
    %v3651 = vld [vmem:[#allocation4 + $0x268] sm:$0xff]
    %v3652 = vld [vmem:[#allocation4 + $0x270] sm:$0xff]
    %v3653 = vld [vmem:[#allocation4 + $0x278] sm:$0xff]
    %v3654 = vld [vmem:[#allocation4 + $0x280] sm:$0xff]
    %v3655 = vld [vmem:[#allocation4 + $0x288] sm:$0xff]
    %v3656 = vld [vmem:[#allocation4 + $0x290] sm:$0xff]
    %v3657 = vld [vmem:[#allocation4 + $0x298] sm:$0xff]
    %v3658 = vld [vmem:[#allocation4 + $0x2a0] sm:$0xff]
    %v3659 = vld [vmem:[#allocation4 + $0x2a8] sm:$0xff]
    %v3660 = vld [vmem:[#allocation4 + $0x2b0] sm:$0xff]
    %v3661 = vld [vmem:[#allocation4 + $0x2b8] sm:$0xff]
    %v3662 = vld [vmem:[#allocation4 + $0x2c0] sm:$0xff]
    %v3663 = vld [vmem:[#allocation4 + $0x2c8] sm:$0xff]
    %v3664 = vld [vmem:[#allocation4 + $0x2d0] sm:$0xff]
    %v3665 = vld [vmem:[#allocation4 + $0x2d8] sm:$0xff]
    %v3666 = vld [vmem:[#allocation4 + $0x2e0] sm:$0xff]
    %v3667 = vld [vmem:[#allocation4 + $0x2e8] sm:$0xff]
    %v3668 = vld [vmem:[#allocation4 + $0x2f0] sm:$0xff]
    %v3669 = vld [vmem:[#allocation4 + $0x2f8] sm:$0xff]
    %v3670 = vld [vmem:[#allocation4 + $0x300] sm:$0xff]
    %v3671 = vld [vmem:[#allocation4 + $0x308] sm:$0xff]
    %v3672 = vld [vmem:[#allocation4 + $0x310] sm:$0xff]
    %v3673 = vld [vmem:[#allocation4 + $0x318] sm:$0xff]
    %v3674 = vld [vmem:[#allocation4 + $0x320] sm:$0xff]
    %v3675 = vld [vmem:[#allocation4 + $0x328] sm:$0xff]
    %v3676 = vld [vmem:[#allocation4 + $0x330] sm:$0xff]
    %v3677 = vld [vmem:[#allocation4 + $0x338] sm:$0xff]
    %v3678 = vld [vmem:[#allocation4 + $0x340] sm:$0xff]
    %v3679 = vld [vmem:[#allocation4 + $0x348] sm:$0xff]
    %v3680 = vld [vmem:[#allocation4 + $0x350] sm:$0xff]
    %v3681 = vld [vmem:[#allocation4 + $0x358] sm:$0xff]
    %v3682 = vld [vmem:[#allocation4 + $0x360] sm:$0xff]
    %v3683 = vld [vmem:[#allocation4 + $0x368] sm:$0xff]
    %v3684 = vld [vmem:[#allocation4 + $0x370] sm:$0xff]
    %v3685 = vld [vmem:[#allocation4 + $0x378] sm:$0xff]
    %v3686 = vld [vmem:[#allocation4 + $0x380] sm:$0xff]
    %v3687 = vld [vmem:[#allocation4 + $0x388] sm:$0xff]
    %v3688 = vld [vmem:[#allocation4 + $0x390] sm:$0xff]
    %v3689 = vld [vmem:[#allocation4 + $0x398] sm:$0xff]
    %v3690 = vld [vmem:[#allocation4 + $0x3a0] sm:$0xff]
    %v3691 = vld [vmem:[#allocation4 + $0x3a8] sm:$0xff]
    %v3692 = vld [vmem:[#allocation4 + $0x3b0] sm:$0xff]
    %v3693 = vld [vmem:[#allocation4 + $0x3b8] sm:$0xff]
    %v3694 = vld [vmem:[#allocation4 + $0x3c0] sm:$0xff]
    %v3695 = vld [vmem:[#allocation4 + $0x3c8] sm:$0xff]
    %v3696 = vld [vmem:[#allocation4 + $0x3d0] sm:$0xff]
    %v3697 = vld [vmem:[#allocation4 + $0x3d8] sm:$0xff]
    %v3698 = vld [vmem:[#allocation4 + $0x3e0] sm:$0xff]
    %v3699 = vld [vmem:[#allocation4 + $0x3e8] sm:$0xff]
    %v3700 = vld [vmem:[#allocation4 + $0x3f0] sm:$0xff]
    %v3701 = vld [vmem:[#allocation4 + $0x3f8] sm:$0xff]
    %v3702 = vld [vmem:[#allocation4 + $0x400] sm:$0xff]
    %v3703 = vld [vmem:[#allocation4 + $0x408] sm:$0xff]
    %v3704 = vld [vmem:[#allocation4 + $0x410] sm:$0xff]
    %v3705 = vld [vmem:[#allocation4 + $0x418] sm:$0xff]
    %v3706 = vld [vmem:[#allocation4 + $0x420] sm:$0xff]
    %v3707 = vld [vmem:[#allocation4 + $0x428] sm:$0xff]
    %v3708 = vld [vmem:[#allocation4 + $0x430] sm:$0xff]
    %v3709 = vld [vmem:[#allocation4 + $0x438] sm:$0xff]
    %v3710 = vld [vmem:[#allocation4 + $0x440] sm:$0xff]
    %v3711 = vld [vmem:[#allocation4 + $0x448] sm:$0xff]
    %v3712 = vld [vmem:[#allocation4 + $0x450] sm:$0xff]
    %v3713 = vld [vmem:[#allocation4 + $0x458] sm:$0xff]
    %v3714 = vld [vmem:[#allocation4 + $0x460] sm:$0xff]
    %v3715 = vld [vmem:[#allocation4 + $0x468] sm:$0xff]
    %v3716 = vld [vmem:[#allocation4 + $0x470] sm:$0xff]
    %v3717 = vld [vmem:[#allocation4 + $0x478] sm:$0xff]
    %v3718 = vld [vmem:[#allocation4 + $0x480] sm:$0xff]
    %v3719 = vld [vmem:[#allocation4 + $0x488] sm:$0xff]
    %v3720 = vld [vmem:[#allocation4 + $0x490] sm:$0xff]
    %v3721 = vld [vmem:[#allocation4 + $0x498] sm:$0xff]
    %v3722 = vld [vmem:[#allocation4 + $0x4a0] sm:$0xff]
    %v3723 = vld [vmem:[#allocation4 + $0x4a8] sm:$0xff]
    %v3724 = vld [vmem:[#allocation4 + $0x4b0] sm:$0xff]
    %v3725 = vld [vmem:[#allocation4 + $0x4b8] sm:$0xff]
    %v3726 = vld [vmem:[#allocation4 + $0x4c0] sm:$0xff]
    %v3727 = vld [vmem:[#allocation4 + $0x4c8] sm:$0xff]
    %v3728 = vld [vmem:[#allocation4 + $0x4d0] sm:$0xff]
    %v3729 = vld [vmem:[#allocation4 + $0x4d8] sm:$0xff]
    %v3730 = vld [vmem:[#allocation4 + $0x4e0] sm:$0xff]
    %v3731 = vld [vmem:[#allocation4 + $0x4e8] sm:$0xff]
    %v3732 = vld [vmem:[#allocation4 + $0x4f0] sm:$0xff]
    %v3733 = vld [vmem:[#allocation4 + $0x4f8] sm:$0xff]
    %v3734 = vld [vmem:[#allocation4 + $0x500] sm:$0xff]
    %v3735 = vld [vmem:[#allocation4 + $0x508] sm:$0xff]
    %v3736 = vld [vmem:[#allocation4 + $0x510] sm:$0xff]
    %v3737 = vld [vmem:[#allocation4 + $0x518] sm:$0xff]
    %v3738 = vld [vmem:[#allocation4 + $0x520] sm:$0xff]
    %v3739 = vld [vmem:[#allocation4 + $0x528] sm:$0xff]
    %v3740 = vld [vmem:[#allocation4 + $0x530] sm:$0xff]
    %v3741 = vld [vmem:[#allocation4 + $0x538] sm:$0xff]
    %v3742 = vld [vmem:[#allocation4 + $0x540] sm:$0xff]
    %v3743 = vld [vmem:[#allocation4 + $0x548] sm:$0xff]
    %v3744 = vld [vmem:[#allocation4 + $0x550] sm:$0xff]
    %v3745 = vld [vmem:[#allocation4 + $0x558] sm:$0xff]
    %v3746 = vld [vmem:[#allocation4 + $0x560] sm:$0xff]
    %v3747 = vld [vmem:[#allocation4 + $0x568] sm:$0xff]
    %v3748 = vld [vmem:[#allocation4 + $0x570] sm:$0xff]
    %v3749 = vld [vmem:[#allocation4 + $0x578] sm:$0xff]
    %v3750 = vld [vmem:[#allocation4 + $0x580] sm:$0xff]
    %v3751 = vld [vmem:[#allocation4 + $0x588] sm:$0xff]
    %v3752 = vld [vmem:[#allocation4 + $0x590] sm:$0xff]
    %v3753 = vld [vmem:[#allocation4 + $0x598] sm:$0xff]
    %v3754 = vld [vmem:[#allocation4 + $0x5a0] sm:$0xff]
    %v3755 = vld [vmem:[#allocation4 + $0x5a8] sm:$0xff]
    %v3756 = vld [vmem:[#allocation4 + $0x5b0] sm:$0xff]
    %v3757 = vld [vmem:[#allocation4 + $0x5b8] sm:$0xff]
    %v3758 = vld [vmem:[#allocation4 + $0x5c0] sm:$0xff]
    %v3759 = vld [vmem:[#allocation4 + $0x5c8] sm:$0xff]
    %v3760 = vld [vmem:[#allocation4 + $0x5d0] sm:$0xff]
    %v3761 = vld [vmem:[#allocation4 + $0x5d8] sm:$0xff]
    %v3762 = vld [vmem:[#allocation4 + $0x5e0] sm:$0xff]
    %v3763 = vld [vmem:[#allocation4 + $0x5e8] sm:$0xff]
    %v3764 = vld [vmem:[#allocation4 + $0x5f0] sm:$0xff]
    %v3765 = vld [vmem:[#allocation4 + $0x5f8] sm:$0xff]
    %v3766 = vld [vmem:[#allocation4 + $0x600] sm:$0xff]
    %v3767 = vld [vmem:[#allocation4 + $0x608] sm:$0xff]
    %v3768 = vld [vmem:[#allocation4 + $0x610] sm:$0xff]
    %v3769 = vld [vmem:[#allocation4 + $0x618] sm:$0xff]
    %v3770 = vld [vmem:[#allocation4 + $0x620] sm:$0xff]
    %v3771 = vld [vmem:[#allocation4 + $0x628] sm:$0xff]
    %v3772 = vld [vmem:[#allocation4 + $0x630] sm:$0xff]
    %v3773 = vld [vmem:[#allocation4 + $0x638] sm:$0xff]
    %v3774 = vld [vmem:[#allocation4 + $0x640] sm:$0xff]
    %v3775 = vld [vmem:[#allocation4 + $0x648] sm:$0xff]
    %v3776 = vld [vmem:[#allocation4 + $0x650] sm:$0xff]
    %v3777 = vld [vmem:[#allocation4 + $0x658] sm:$0xff]
    %v3778 = vld [vmem:[#allocation4 + $0x660] sm:$0xff]
    %v3779 = vld [vmem:[#allocation4 + $0x668] sm:$0xff]
    %v3780 = vld [vmem:[#allocation4 + $0x670] sm:$0xff]
    %v3781 = vld [vmem:[#allocation4 + $0x678] sm:$0xff]
    %v3782 = vld [vmem:[#allocation4 + $0x680] sm:$0xff]
    %v3783 = vld [vmem:[#allocation4 + $0x688] sm:$0xff]
    %v3784 = vld [vmem:[#allocation4 + $0x690] sm:$0xff]
    %v3785 = vld [vmem:[#allocation4 + $0x698] sm:$0xff]
    %v3786 = vld [vmem:[#allocation4 + $0x6a0] sm:$0xff]
    %v3787 = vld [vmem:[#allocation4 + $0x6a8] sm:$0xff]
    %v3788 = vld [vmem:[#allocation4 + $0x6b0] sm:$0xff]
    %v3789 = vld [vmem:[#allocation4 + $0x6b8] sm:$0xff]
    %v3790 = vld [vmem:[#allocation4 + $0x6c0] sm:$0xff]
    %v3791 = vld [vmem:[#allocation4 + $0x6c8] sm:$0xff]
    %v3792 = vld [vmem:[#allocation4 + $0x6d0] sm:$0xff]
    %v3793 = vld [vmem:[#allocation4 + $0x6d8] sm:$0xff]
    %v3794 = vld [vmem:[#allocation4 + $0x6e0] sm:$0xff]
    %v3795 = vld [vmem:[#allocation4 + $0x6e8] sm:$0xff]
    %v3796 = vld [vmem:[#allocation4 + $0x6f0] sm:$0xff]
    %v3797 = vld [vmem:[#allocation4 + $0x6f8] sm:$0xff]
    %v3798 = vld [vmem:[#allocation4 + $0x700] sm:$0xff]
    %v3799 = vld [vmem:[#allocation4 + $0x708] sm:$0xff]
    %v3800 = vld [vmem:[#allocation4 + $0x710] sm:$0xff]
    %v3801 = vld [vmem:[#allocation4 + $0x718] sm:$0xff]
    %v3802 = vld [vmem:[#allocation4 + $0x720] sm:$0xff]
    %v3803 = vld [vmem:[#allocation4 + $0x728] sm:$0xff]
    %v3804 = vld [vmem:[#allocation4 + $0x730] sm:$0xff]
    %v3805 = vld [vmem:[#allocation4 + $0x738] sm:$0xff]
    %v3806 = vld [vmem:[#allocation4 + $0x740] sm:$0xff]
    %v3807 = vld [vmem:[#allocation4 + $0x748] sm:$0xff]
    %v3808 = vld [vmem:[#allocation4 + $0x750] sm:$0xff]
    %v3809 = vld [vmem:[#allocation4 + $0x758] sm:$0xff]
    %v3810 = vld [vmem:[#allocation4 + $0x760] sm:$0xff]
    %v3811 = vld [vmem:[#allocation4 + $0x768] sm:$0xff]
    %v3812 = vld [vmem:[#allocation4 + $0x770] sm:$0xff]
    %v3813 = vld [vmem:[#allocation4 + $0x778] sm:$0xff]
    %v3814 = vld [vmem:[#allocation4 + $0x780] sm:$0xff]
    %v3815 = vld [vmem:[#allocation4 + $0x788] sm:$0xff]
    %v3816 = vld [vmem:[#allocation4 + $0x790] sm:$0xff]
    %v3817 = vld [vmem:[#allocation4 + $0x798] sm:$0xff]
    %v3818 = vld [vmem:[#allocation4 + $0x7a0] sm:$0xff]
    %v3819 = vld [vmem:[#allocation4 + $0x7a8] sm:$0xff]
    %v3820 = vld [vmem:[#allocation4 + $0x7b0] sm:$0xff]
    %v3821 = vld [vmem:[#allocation4 + $0x7b8] sm:$0xff]
    %v3822 = vld [vmem:[#allocation4 + $0x7c0] sm:$0xff]
    %v3823 = vld [vmem:[#allocation4 + $0x7c8] sm:$0xff]
    %v3824 = vld [vmem:[#allocation4 + $0x7d0] sm:$0xff]
    %v3825 = vld [vmem:[#allocation4 + $0x7d8] sm:$0xff]
    %v3826 = vld [vmem:[#allocation4 + $0x7e0] sm:$0xff]
    %v3827 = vld [vmem:[#allocation4 + $0x7e8] sm:$0xff]
    %v3828 = vld [vmem:[#allocation4 + $0x7f0] sm:$0xff]
    %v3829 = vld [vmem:[#allocation4 + $0x7f8] sm:$0xff]
    %v4086 = vunpack.c.l.b16 %v3574
    %v4087 = vunpack.c.h.b16 %v3574
    %v4088 = vunpack.c.l.b16 %v3575
    %v4089 = vunpack.c.h.b16 %v3575
    %v4090 = vunpack.c.l.b16 %v3576
    %v4091 = vunpack.c.h.b16 %v3576
    %v4092 = vunpack.c.l.b16 %v3577
    %v4093 = vunpack.c.h.b16 %v3577
    %v4094 = vunpack.c.l.b16 %v3578
    %v4095 = vunpack.c.h.b16 %v3578
    %v4096 = vunpack.c.l.b16 %v3579
    %v4097 = vunpack.c.h.b16 %v3579
    %v4098 = vunpack.c.l.b16 %v3580
    %v4099 = vunpack.c.h.b16 %v3580
    %v4100 = vunpack.c.l.b16 %v3581
    %v4101 = vunpack.c.h.b16 %v3581
    %v4102 = vunpack.c.l.b16 %v3582
    %v4103 = vunpack.c.h.b16 %v3582
    %v4104 = vunpack.c.l.b16 %v3583
    %v4105 = vunpack.c.h.b16 %v3583
    %v4106 = vunpack.c.l.b16 %v3584
    %v4107 = vunpack.c.h.b16 %v3584
    %v4108 = vunpack.c.l.b16 %v3585
    %v4109 = vunpack.c.h.b16 %v3585
    %v4110 = vunpack.c.l.b16 %v3586
    %v4111 = vunpack.c.h.b16 %v3586
    %v4112 = vunpack.c.l.b16 %v3587
    %v4113 = vunpack.c.h.b16 %v3587
    %v4114 = vunpack.c.l.b16 %v3588
    %v4115 = vunpack.c.h.b16 %v3588
    %v4116 = vunpack.c.l.b16 %v3589
    %v4117 = vunpack.c.h.b16 %v3589
    %v4118 = vunpack.c.l.b16 %v3590
    %v4119 = vunpack.c.h.b16 %v3590
    %v4120 = vunpack.c.l.b16 %v3591
    %v4121 = vunpack.c.h.b16 %v3591
    %v4122 = vunpack.c.l.b16 %v3592
    %v4123 = vunpack.c.h.b16 %v3592
    %v4124 = vunpack.c.l.b16 %v3593
    %v4125 = vunpack.c.h.b16 %v3593
    %v4126 = vunpack.c.l.b16 %v3594
    %v4127 = vunpack.c.h.b16 %v3594
    %v4128 = vunpack.c.l.b16 %v3595
    %v4129 = vunpack.c.h.b16 %v3595
    %v4130 = vunpack.c.l.b16 %v3596
    %v4131 = vunpack.c.h.b16 %v3596
    %v4132 = vunpack.c.l.b16 %v3597
    %v4133 = vunpack.c.h.b16 %v3597
    %v4134 = vunpack.c.l.b16 %v3598
    %v4135 = vunpack.c.h.b16 %v3598
    %v4136 = vunpack.c.l.b16 %v3599
    %v4137 = vunpack.c.h.b16 %v3599
    %v4138 = vunpack.c.l.b16 %v3600
    %v4139 = vunpack.c.h.b16 %v3600
    %v4140 = vunpack.c.l.b16 %v3601
    %v4141 = vunpack.c.h.b16 %v3601
    %v4142 = vunpack.c.l.b16 %v3602
    %v4143 = vunpack.c.h.b16 %v3602
    %v4144 = vunpack.c.l.b16 %v3603
    %v4145 = vunpack.c.h.b16 %v3603
    %v4146 = vunpack.c.l.b16 %v3604
    %v4147 = vunpack.c.h.b16 %v3604
    %v4148 = vunpack.c.l.b16 %v3605
    %v4149 = vunpack.c.h.b16 %v3605
    %v4150 = vunpack.c.l.b16 %v3606
    %v4151 = vunpack.c.h.b16 %v3606
    %v4152 = vunpack.c.l.b16 %v3607
    %v4153 = vunpack.c.h.b16 %v3607
    %v4154 = vunpack.c.l.b16 %v3608
    %v4155 = vunpack.c.h.b16 %v3608
    %v4156 = vunpack.c.l.b16 %v3609
    %v4157 = vunpack.c.h.b16 %v3609
    %v4158 = vunpack.c.l.b16 %v3610
    %v4159 = vunpack.c.h.b16 %v3610
    %v4160 = vunpack.c.l.b16 %v3611
    %v4161 = vunpack.c.h.b16 %v3611
    %v4162 = vunpack.c.l.b16 %v3612
    %v4163 = vunpack.c.h.b16 %v3612
    %v4164 = vunpack.c.l.b16 %v3613
    %v4165 = vunpack.c.h.b16 %v3613
    %v4166 = vunpack.c.l.b16 %v3614
    %v4167 = vunpack.c.h.b16 %v3614
    %v4168 = vunpack.c.l.b16 %v3615
    %v4169 = vunpack.c.h.b16 %v3615
    %v4170 = vunpack.c.l.b16 %v3616
    %v4171 = vunpack.c.h.b16 %v3616
    %v4172 = vunpack.c.l.b16 %v3617
    %v4173 = vunpack.c.h.b16 %v3617
    %v4174 = vunpack.c.l.b16 %v3618
    %v4175 = vunpack.c.h.b16 %v3618
    %v4176 = vunpack.c.l.b16 %v3619
    %v4177 = vunpack.c.h.b16 %v3619
    %v4178 = vunpack.c.l.b16 %v3620
    %v4179 = vunpack.c.h.b16 %v3620
    %v4180 = vunpack.c.l.b16 %v3621
    %v4181 = vunpack.c.h.b16 %v3621
    %v4182 = vunpack.c.l.b16 %v3622
    %v4183 = vunpack.c.h.b16 %v3622
    %v4184 = vunpack.c.l.b16 %v3623
    %v4185 = vunpack.c.h.b16 %v3623
    %v4186 = vunpack.c.l.b16 %v3624
    %v4187 = vunpack.c.h.b16 %v3624
    %v4188 = vunpack.c.l.b16 %v3625
    %v4189 = vunpack.c.h.b16 %v3625
    %v4190 = vunpack.c.l.b16 %v3626
    %v4191 = vunpack.c.h.b16 %v3626
    %v4192 = vunpack.c.l.b16 %v3627
    %v4193 = vunpack.c.h.b16 %v3627
    %v4194 = vunpack.c.l.b16 %v3628
    %v4195 = vunpack.c.h.b16 %v3628
    %v4196 = vunpack.c.l.b16 %v3629
    %v4197 = vunpack.c.h.b16 %v3629
    %v4198 = vunpack.c.l.b16 %v3630
    %v4199 = vunpack.c.h.b16 %v3630
    %v4200 = vunpack.c.l.b16 %v3631
    %v4201 = vunpack.c.h.b16 %v3631
    %v4202 = vunpack.c.l.b16 %v3632
    %v4203 = vunpack.c.h.b16 %v3632
    %v4204 = vunpack.c.l.b16 %v3633
    %v4205 = vunpack.c.h.b16 %v3633
    %v4206 = vunpack.c.l.b16 %v3634
    %v4207 = vunpack.c.h.b16 %v3634
    %v4208 = vunpack.c.l.b16 %v3635
    %v4209 = vunpack.c.h.b16 %v3635
    %v4210 = vunpack.c.l.b16 %v3636
    %v4211 = vunpack.c.h.b16 %v3636
    %v4212 = vunpack.c.l.b16 %v3637
    %v4213 = vunpack.c.h.b16 %v3637
    %v4214 = vunpack.c.l.b16 %v3638
    %v4215 = vunpack.c.h.b16 %v3638
    %v4216 = vunpack.c.l.b16 %v3639
    %v4217 = vunpack.c.h.b16 %v3639
    %v4218 = vunpack.c.l.b16 %v3640
    %v4219 = vunpack.c.h.b16 %v3640
    %v4220 = vunpack.c.l.b16 %v3641
    %v4221 = vunpack.c.h.b16 %v3641
    %v4222 = vunpack.c.l.b16 %v3642
    %v4223 = vunpack.c.h.b16 %v3642
    %v4224 = vunpack.c.l.b16 %v3643
    %v4225 = vunpack.c.h.b16 %v3643
    %v4226 = vunpack.c.l.b16 %v3644
    %v4227 = vunpack.c.h.b16 %v3644
    %v4228 = vunpack.c.l.b16 %v3645
    %v4229 = vunpack.c.h.b16 %v3645
    %v4230 = vunpack.c.l.b16 %v3646
    %v4231 = vunpack.c.h.b16 %v3646
    %v4232 = vunpack.c.l.b16 %v3647
    %v4233 = vunpack.c.h.b16 %v3647
    %v4234 = vunpack.c.l.b16 %v3648
    %v4235 = vunpack.c.h.b16 %v3648
    %v4236 = vunpack.c.l.b16 %v3649
    %v4237 = vunpack.c.h.b16 %v3649
    %v4238 = vunpack.c.l.b16 %v3650
    %v4239 = vunpack.c.h.b16 %v3650
    %v4240 = vunpack.c.l.b16 %v3651
    %v4241 = vunpack.c.h.b16 %v3651
    %v4242 = vunpack.c.l.b16 %v3652
    %v4243 = vunpack.c.h.b16 %v3652
    %v4244 = vunpack.c.l.b16 %v3653
    %v4245 = vunpack.c.h.b16 %v3653
    %v4246 = vunpack.c.l.b16 %v3654
    %v4247 = vunpack.c.h.b16 %v3654
    %v4248 = vunpack.c.l.b16 %v3655
    %v4249 = vunpack.c.h.b16 %v3655
    %v4250 = vunpack.c.l.b16 %v3656
    %v4251 = vunpack.c.h.b16 %v3656
    %v4252 = vunpack.c.l.b16 %v3657
    %v4253 = vunpack.c.h.b16 %v3657
    %v4254 = vunpack.c.l.b16 %v3658
    %v4255 = vunpack.c.h.b16 %v3658
    %v4256 = vunpack.c.l.b16 %v3659
    %v4257 = vunpack.c.h.b16 %v3659
    %v4258 = vunpack.c.l.b16 %v3660
    %v4259 = vunpack.c.h.b16 %v3660
    %v4260 = vunpack.c.l.b16 %v3661
    %v4261 = vunpack.c.h.b16 %v3661
    %v4262 = vunpack.c.l.b16 %v3662
    %v4263 = vunpack.c.h.b16 %v3662
    %v4264 = vunpack.c.l.b16 %v3663
    %v4265 = vunpack.c.h.b16 %v3663
    %v4266 = vunpack.c.l.b16 %v3664
    %v4267 = vunpack.c.h.b16 %v3664
    %v4268 = vunpack.c.l.b16 %v3665
    %v4269 = vunpack.c.h.b16 %v3665
    %v4270 = vunpack.c.l.b16 %v3666
    %v4271 = vunpack.c.h.b16 %v3666
    %v4272 = vunpack.c.l.b16 %v3667
    %v4273 = vunpack.c.h.b16 %v3667
    %v4274 = vunpack.c.l.b16 %v3668
    %v4275 = vunpack.c.h.b16 %v3668
    %v4276 = vunpack.c.l.b16 %v3669
    %v4277 = vunpack.c.h.b16 %v3669
    %v4278 = vunpack.c.l.b16 %v3670
    %v4279 = vunpack.c.h.b16 %v3670
    %v4280 = vunpack.c.l.b16 %v3671
    %v4281 = vunpack.c.h.b16 %v3671
    %v4282 = vunpack.c.l.b16 %v3672
    %v4283 = vunpack.c.h.b16 %v3672
    %v4284 = vunpack.c.l.b16 %v3673
    %v4285 = vunpack.c.h.b16 %v3673
    %v4286 = vunpack.c.l.b16 %v3674
    %v4287 = vunpack.c.h.b16 %v3674
    %v4288 = vunpack.c.l.b16 %v3675
    %v4289 = vunpack.c.h.b16 %v3675
    %v4290 = vunpack.c.l.b16 %v3676
    %v4291 = vunpack.c.h.b16 %v3676
    %v4292 = vunpack.c.l.b16 %v3677
    %v4293 = vunpack.c.h.b16 %v3677
    %v4294 = vunpack.c.l.b16 %v3678
    %v4295 = vunpack.c.h.b16 %v3678
    %v4296 = vunpack.c.l.b16 %v3679
    %v4297 = vunpack.c.h.b16 %v3679
    %v4298 = vunpack.c.l.b16 %v3680
    %v4299 = vunpack.c.h.b16 %v3680
    %v4300 = vunpack.c.l.b16 %v3681
    %v4301 = vunpack.c.h.b16 %v3681
    %v4302 = vunpack.c.l.b16 %v3682
    %v4303 = vunpack.c.h.b16 %v3682
    %v4304 = vunpack.c.l.b16 %v3683
    %v4305 = vunpack.c.h.b16 %v3683
    %v4306 = vunpack.c.l.b16 %v3684
    %v4307 = vunpack.c.h.b16 %v3684
    %v4308 = vunpack.c.l.b16 %v3685
    %v4309 = vunpack.c.h.b16 %v3685
    %v4310 = vunpack.c.l.b16 %v3686
    %v4311 = vunpack.c.h.b16 %v3686
    %v4312 = vunpack.c.l.b16 %v3687
    %v4313 = vunpack.c.h.b16 %v3687
    %v4314 = vunpack.c.l.b16 %v3688
    %v4315 = vunpack.c.h.b16 %v3688
    %v4316 = vunpack.c.l.b16 %v3689
    %v4317 = vunpack.c.h.b16 %v3689
    %v4318 = vunpack.c.l.b16 %v3690
    %v4319 = vunpack.c.h.b16 %v3690
    %v4320 = vunpack.c.l.b16 %v3691
    %v4321 = vunpack.c.h.b16 %v3691
    %v4322 = vunpack.c.l.b16 %v3692
    %v4323 = vunpack.c.h.b16 %v3692
    %v4324 = vunpack.c.l.b16 %v3693
    %v4325 = vunpack.c.h.b16 %v3693
    %v4326 = vunpack.c.l.b16 %v3694
    %v4327 = vunpack.c.h.b16 %v3694
    %v4328 = vunpack.c.l.b16 %v3695
    %v4329 = vunpack.c.h.b16 %v3695
    %v4330 = vunpack.c.l.b16 %v3696
    %v4331 = vunpack.c.h.b16 %v3696
    %v4332 = vunpack.c.l.b16 %v3697
    %v4333 = vunpack.c.h.b16 %v3697
    %v4334 = vunpack.c.l.b16 %v3698
    %v4335 = vunpack.c.h.b16 %v3698
    %v4336 = vunpack.c.l.b16 %v3699
    %v4337 = vunpack.c.h.b16 %v3699
    %v4338 = vunpack.c.l.b16 %v3700
    %v4339 = vunpack.c.h.b16 %v3700
    %v4340 = vunpack.c.l.b16 %v3701
    %v4341 = vunpack.c.h.b16 %v3701
    %v4342 = vunpack.c.l.b16 %v3702
    %v4343 = vunpack.c.h.b16 %v3702
    %v4344 = vunpack.c.l.b16 %v3703
    %v4345 = vunpack.c.h.b16 %v3703
    %v4346 = vunpack.c.l.b16 %v3704
    %v4347 = vunpack.c.h.b16 %v3704
    %v4348 = vunpack.c.l.b16 %v3705
    %v4349 = vunpack.c.h.b16 %v3705
    %v4350 = vunpack.c.l.b16 %v3706
    %v4351 = vunpack.c.h.b16 %v3706
    %v4352 = vunpack.c.l.b16 %v3707
    %v4353 = vunpack.c.h.b16 %v3707
    %v4354 = vunpack.c.l.b16 %v3708
    %v4355 = vunpack.c.h.b16 %v3708
    %v4356 = vunpack.c.l.b16 %v3709
    %v4357 = vunpack.c.h.b16 %v3709
    %v4358 = vunpack.c.l.b16 %v3710
    %v4359 = vunpack.c.h.b16 %v3710
    %v4360 = vunpack.c.l.b16 %v3711
    %v4361 = vunpack.c.h.b16 %v3711
    %v4362 = vunpack.c.l.b16 %v3712
    %v4363 = vunpack.c.h.b16 %v3712
    %v4364 = vunpack.c.l.b16 %v3713
    %v4365 = vunpack.c.h.b16 %v3713
    %v4366 = vunpack.c.l.b16 %v3714
    %v4367 = vunpack.c.h.b16 %v3714
    %v4368 = vunpack.c.l.b16 %v3715
    %v4369 = vunpack.c.h.b16 %v3715
    %v4370 = vunpack.c.l.b16 %v3716
    %v4371 = vunpack.c.h.b16 %v3716
    %v4372 = vunpack.c.l.b16 %v3717
    %v4373 = vunpack.c.h.b16 %v3717
    %v4374 = vunpack.c.l.b16 %v3718
    %v4375 = vunpack.c.h.b16 %v3718
    %v4376 = vunpack.c.l.b16 %v3719
    %v4377 = vunpack.c.h.b16 %v3719
    %v4378 = vunpack.c.l.b16 %v3720
    %v4379 = vunpack.c.h.b16 %v3720
    %v4380 = vunpack.c.l.b16 %v3721
    %v4381 = vunpack.c.h.b16 %v3721
    %v4382 = vunpack.c.l.b16 %v3722
    %v4383 = vunpack.c.h.b16 %v3722
    %v4384 = vunpack.c.l.b16 %v3723
    %v4385 = vunpack.c.h.b16 %v3723
    %v4386 = vunpack.c.l.b16 %v3724
    %v4387 = vunpack.c.h.b16 %v3724
    %v4388 = vunpack.c.l.b16 %v3725
    %v4389 = vunpack.c.h.b16 %v3725
    %v4390 = vunpack.c.l.b16 %v3726
    %v4391 = vunpack.c.h.b16 %v3726
    %v4392 = vunpack.c.l.b16 %v3727
    %v4393 = vunpack.c.h.b16 %v3727
    %v4394 = vunpack.c.l.b16 %v3728
    %v4395 = vunpack.c.h.b16 %v3728
    %v4396 = vunpack.c.l.b16 %v3729
    %v4397 = vunpack.c.h.b16 %v3729
    %v4398 = vunpack.c.l.b16 %v3730
    %v4399 = vunpack.c.h.b16 %v3730
    %v4400 = vunpack.c.l.b16 %v3731
    %v4401 = vunpack.c.h.b16 %v3731
    %v4402 = vunpack.c.l.b16 %v3732
    %v4403 = vunpack.c.h.b16 %v3732
    %v4404 = vunpack.c.l.b16 %v3733
    %v4405 = vunpack.c.h.b16 %v3733
    %v4406 = vunpack.c.l.b16 %v3734
    %v4407 = vunpack.c.h.b16 %v3734
    %v4408 = vunpack.c.l.b16 %v3735
    %v4409 = vunpack.c.h.b16 %v3735
    %v4410 = vunpack.c.l.b16 %v3736
    %v4411 = vunpack.c.h.b16 %v3736
    %v4412 = vunpack.c.l.b16 %v3737
    %v4413 = vunpack.c.h.b16 %v3737
    %v4414 = vunpack.c.l.b16 %v3738
    %v4415 = vunpack.c.h.b16 %v3738
    %v4416 = vunpack.c.l.b16 %v3739
    %v4417 = vunpack.c.h.b16 %v3739
    %v4418 = vunpack.c.l.b16 %v3740
    %v4419 = vunpack.c.h.b16 %v3740
    %v4420 = vunpack.c.l.b16 %v3741
    %v4421 = vunpack.c.h.b16 %v3741
    %v4422 = vunpack.c.l.b16 %v3742
    %v4423 = vunpack.c.h.b16 %v3742
    %v4424 = vunpack.c.l.b16 %v3743
    %v4425 = vunpack.c.h.b16 %v3743
    %v4426 = vunpack.c.l.b16 %v3744
    %v4427 = vunpack.c.h.b16 %v3744
    %v4428 = vunpack.c.l.b16 %v3745
    %v4429 = vunpack.c.h.b16 %v3745
    %v4430 = vunpack.c.l.b16 %v3746
    %v4431 = vunpack.c.h.b16 %v3746
    %v4432 = vunpack.c.l.b16 %v3747
    %v4433 = vunpack.c.h.b16 %v3747
    %v4434 = vunpack.c.l.b16 %v3748
    %v4435 = vunpack.c.h.b16 %v3748
    %v4436 = vunpack.c.l.b16 %v3749
    %v4437 = vunpack.c.h.b16 %v3749
    %v4438 = vunpack.c.l.b16 %v3750
    %v4439 = vunpack.c.h.b16 %v3750
    %v4440 = vunpack.c.l.b16 %v3751
    %v4441 = vunpack.c.h.b16 %v3751
    %v4442 = vunpack.c.l.b16 %v3752
    %v4443 = vunpack.c.h.b16 %v3752
    %v4444 = vunpack.c.l.b16 %v3753
    %v4445 = vunpack.c.h.b16 %v3753
    %v4446 = vunpack.c.l.b16 %v3754
    %v4447 = vunpack.c.h.b16 %v3754
    %v4448 = vunpack.c.l.b16 %v3755
    %v4449 = vunpack.c.h.b16 %v3755
    %v4450 = vunpack.c.l.b16 %v3756
    %v4451 = vunpack.c.h.b16 %v3756
    %v4452 = vunpack.c.l.b16 %v3757
    %v4453 = vunpack.c.h.b16 %v3757
    %v4454 = vunpack.c.l.b16 %v3758
    %v4455 = vunpack.c.h.b16 %v3758
    %v4456 = vunpack.c.l.b16 %v3759
    %v4457 = vunpack.c.h.b16 %v3759
    %v4458 = vunpack.c.l.b16 %v3760
    %v4459 = vunpack.c.h.b16 %v3760
    %v4460 = vunpack.c.l.b16 %v3761
    %v4461 = vunpack.c.h.b16 %v3761
    %v4462 = vunpack.c.l.b16 %v3762
    %v4463 = vunpack.c.h.b16 %v3762
    %v4464 = vunpack.c.l.b16 %v3763
    %v4465 = vunpack.c.h.b16 %v3763
    %v4466 = vunpack.c.l.b16 %v3764
    %v4467 = vunpack.c.h.b16 %v3764
    %v4468 = vunpack.c.l.b16 %v3765
    %v4469 = vunpack.c.h.b16 %v3765
    %v4470 = vunpack.c.l.b16 %v3766
    %v4471 = vunpack.c.h.b16 %v3766
    %v4472 = vunpack.c.l.b16 %v3767
    %v4473 = vunpack.c.h.b16 %v3767
    %v4474 = vunpack.c.l.b16 %v3768
    %v4475 = vunpack.c.h.b16 %v3768
    %v4476 = vunpack.c.l.b16 %v3769
    %v4477 = vunpack.c.h.b16 %v3769
    %v4478 = vunpack.c.l.b16 %v3770
    %v4479 = vunpack.c.h.b16 %v3770
    %v4480 = vunpack.c.l.b16 %v3771
    %v4481 = vunpack.c.h.b16 %v3771
    %v4482 = vunpack.c.l.b16 %v3772
    %v4483 = vunpack.c.h.b16 %v3772
    %v4484 = vunpack.c.l.b16 %v3773
    %v4485 = vunpack.c.h.b16 %v3773
    %v4486 = vunpack.c.l.b16 %v3774
    %v4487 = vunpack.c.h.b16 %v3774
    %v4488 = vunpack.c.l.b16 %v3775
    %v4489 = vunpack.c.h.b16 %v3775
    %v4490 = vunpack.c.l.b16 %v3776
    %v4491 = vunpack.c.h.b16 %v3776
    %v4492 = vunpack.c.l.b16 %v3777
    %v4493 = vunpack.c.h.b16 %v3777
    %v4494 = vunpack.c.l.b16 %v3778
    %v4495 = vunpack.c.h.b16 %v3778
    %v4496 = vunpack.c.l.b16 %v3779
    %v4497 = vunpack.c.h.b16 %v3779
    %v4498 = vunpack.c.l.b16 %v3780
    %v4499 = vunpack.c.h.b16 %v3780
    %v4500 = vunpack.c.l.b16 %v3781
    %v4501 = vunpack.c.h.b16 %v3781
    %v4502 = vunpack.c.l.b16 %v3782
    %v4503 = vunpack.c.h.b16 %v3782
    %v4504 = vunpack.c.l.b16 %v3783
    %v4505 = vunpack.c.h.b16 %v3783
    %v4506 = vunpack.c.l.b16 %v3784
    %v4507 = vunpack.c.h.b16 %v3784
    %v4508 = vunpack.c.l.b16 %v3785
    %v4509 = vunpack.c.h.b16 %v3785
    %v4510 = vunpack.c.l.b16 %v3786
    %v4511 = vunpack.c.h.b16 %v3786
    %v4512 = vunpack.c.l.b16 %v3787
    %v4513 = vunpack.c.h.b16 %v3787
    %v4514 = vunpack.c.l.b16 %v3788
    %v4515 = vunpack.c.h.b16 %v3788
    %v4516 = vunpack.c.l.b16 %v3789
    %v4517 = vunpack.c.h.b16 %v3789
    %v4518 = vunpack.c.l.b16 %v3790
    %v4519 = vunpack.c.h.b16 %v3790
    %v4520 = vunpack.c.l.b16 %v3791
    %v4521 = vunpack.c.h.b16 %v3791
    %v4522 = vunpack.c.l.b16 %v3792
    %v4523 = vunpack.c.h.b16 %v3792
    %v4524 = vunpack.c.l.b16 %v3793
    %v4525 = vunpack.c.h.b16 %v3793
    %v4526 = vunpack.c.l.b16 %v3794
    %v4527 = vunpack.c.h.b16 %v3794
    %v4528 = vunpack.c.l.b16 %v3795
    %v4529 = vunpack.c.h.b16 %v3795
    %v4530 = vunpack.c.l.b16 %v3796
    %v4531 = vunpack.c.h.b16 %v3796
    %v4532 = vunpack.c.l.b16 %v3797
    %v4533 = vunpack.c.h.b16 %v3797
    %v4534 = vunpack.c.l.b16 %v3798
    %v4535 = vunpack.c.h.b16 %v3798
    %v4536 = vunpack.c.l.b16 %v3799
    %v4537 = vunpack.c.h.b16 %v3799
    %v4538 = vunpack.c.l.b16 %v3800
    %v4539 = vunpack.c.h.b16 %v3800
    %v4540 = vunpack.c.l.b16 %v3801
    %v4541 = vunpack.c.h.b16 %v3801
    %v4542 = vunpack.c.l.b16 %v3802
    %v4543 = vunpack.c.h.b16 %v3802
    %v4544 = vunpack.c.l.b16 %v3803
    %v4545 = vunpack.c.h.b16 %v3803
    %v4546 = vunpack.c.l.b16 %v3804
    %v4547 = vunpack.c.h.b16 %v3804
    %v4548 = vunpack.c.l.b16 %v3805
    %v4549 = vunpack.c.h.b16 %v3805
    %v4550 = vunpack.c.l.b16 %v3806
    %v4551 = vunpack.c.h.b16 %v3806
    %v4552 = vunpack.c.l.b16 %v3807
    %v4553 = vunpack.c.h.b16 %v3807
    %v4554 = vunpack.c.l.b16 %v3808
    %v4555 = vunpack.c.h.b16 %v3808
    %v4556 = vunpack.c.l.b16 %v3809
    %v4557 = vunpack.c.h.b16 %v3809
    %v4558 = vunpack.c.l.b16 %v3810
    %v4559 = vunpack.c.h.b16 %v3810
    %v4560 = vunpack.c.l.b16 %v3811
    %v4561 = vunpack.c.h.b16 %v3811
    %v4562 = vunpack.c.l.b16 %v3812
    %v4563 = vunpack.c.h.b16 %v3812
    %v4564 = vunpack.c.l.b16 %v3813
    %v4565 = vunpack.c.h.b16 %v3813
    %v4566 = vunpack.c.l.b16 %v3814
    %v4567 = vunpack.c.h.b16 %v3814
    %v4568 = vunpack.c.l.b16 %v3815
    %v4569 = vunpack.c.h.b16 %v3815
    %v4570 = vunpack.c.l.b16 %v3816
    %v4571 = vunpack.c.h.b16 %v3816
    %v4572 = vunpack.c.l.b16 %v3817
    %v4573 = vunpack.c.h.b16 %v3817
    %v4574 = vunpack.c.l.b16 %v3818
    %v4575 = vunpack.c.h.b16 %v3818
    %v4576 = vunpack.c.l.b16 %v3819
    %v4577 = vunpack.c.h.b16 %v3819
    %v4578 = vunpack.c.l.b16 %v3820
    %v4579 = vunpack.c.h.b16 %v3820
    %v4580 = vunpack.c.l.b16 %v3821
    %v4581 = vunpack.c.h.b16 %v3821
    %v4582 = vunpack.c.l.b16 %v3822
    %v4583 = vunpack.c.h.b16 %v3822
    %v4584 = vunpack.c.l.b16 %v3823
    %v4585 = vunpack.c.h.b16 %v3823
    %v4586 = vunpack.c.l.b16 %v3824
    %v4587 = vunpack.c.h.b16 %v3824
    %v4588 = vunpack.c.l.b16 %v3825
    %v4589 = vunpack.c.h.b16 %v3825
    %v4590 = vunpack.c.l.b16 %v3826
    %v4591 = vunpack.c.h.b16 %v3826
    %v4592 = vunpack.c.l.b16 %v3827
    %v4593 = vunpack.c.h.b16 %v3827
    %v4594 = vunpack.c.l.b16 %v3828
    %v4595 = vunpack.c.h.b16 %v3828
    %v4596 = vunpack.c.l.b16 %v3829
    %v4597 = vunpack.c.h.b16 %v3829
    %v4598 = vpack.c.b16 %v4094, %v4086
    %v4599 = vpack.c.b16 %v4095, %v4087
    %v4600 = vpack.c.b16 %v4096, %v4088
    %v4601 = vpack.c.b16 %v4097, %v4089
    %v4602 = vpack.c.b16 %v4098, %v4090
    %v4603 = vpack.c.b16 %v4099, %v4091
    %v4604 = vpack.c.b16 %v4100, %v4092
    %v4605 = vpack.c.b16 %v4101, %v4093
    %v4606 = vpack.c.b16 %v4110, %v4102
    %v4607 = vpack.c.b16 %v4111, %v4103
    %v4608 = vpack.c.b16 %v4112, %v4104
    %v4609 = vpack.c.b16 %v4113, %v4105
    %v4610 = vpack.c.b16 %v4114, %v4106
    %v4611 = vpack.c.b16 %v4115, %v4107
    %v4612 = vpack.c.b16 %v4116, %v4108
    %v4613 = vpack.c.b16 %v4117, %v4109
    %v4614 = vpack.c.b16 %v4126, %v4118
    %v4615 = vpack.c.b16 %v4127, %v4119
    %v4616 = vpack.c.b16 %v4128, %v4120
    %v4617 = vpack.c.b16 %v4129, %v4121
    %v4618 = vpack.c.b16 %v4130, %v4122
    %v4619 = vpack.c.b16 %v4131, %v4123
    %v4620 = vpack.c.b16 %v4132, %v4124
    %v4621 = vpack.c.b16 %v4133, %v4125
    %v4622 = vpack.c.b16 %v4142, %v4134
    %v4623 = vpack.c.b16 %v4143, %v4135
    %v4624 = vpack.c.b16 %v4144, %v4136
    %v4625 = vpack.c.b16 %v4145, %v4137
    %v4626 = vpack.c.b16 %v4146, %v4138
    %v4627 = vpack.c.b16 %v4147, %v4139
    %v4628 = vpack.c.b16 %v4148, %v4140
    %v4629 = vpack.c.b16 %v4149, %v4141
    %v4630 = vpack.c.b16 %v4158, %v4150
    %v4631 = vpack.c.b16 %v4159, %v4151
    %v4632 = vpack.c.b16 %v4160, %v4152
    %v4633 = vpack.c.b16 %v4161, %v4153
    %v4634 = vpack.c.b16 %v4162, %v4154
    %v4635 = vpack.c.b16 %v4163, %v4155
    %v4636 = vpack.c.b16 %v4164, %v4156
    %v4637 = vpack.c.b16 %v4165, %v4157
    %v4638 = vpack.c.b16 %v4174, %v4166
    %v4639 = vpack.c.b16 %v4175, %v4167
    %v4640 = vpack.c.b16 %v4176, %v4168
    %v4641 = vpack.c.b16 %v4177, %v4169
    %v4642 = vpack.c.b16 %v4178, %v4170
    %v4643 = vpack.c.b16 %v4179, %v4171
    %v4644 = vpack.c.b16 %v4180, %v4172
    %v4645 = vpack.c.b16 %v4181, %v4173
    %v4646 = vpack.c.b16 %v4190, %v4182
    %v4647 = vpack.c.b16 %v4191, %v4183
    %v4648 = vpack.c.b16 %v4192, %v4184
    %v4649 = vpack.c.b16 %v4193, %v4185
    %v4650 = vpack.c.b16 %v4194, %v4186
    %v4651 = vpack.c.b16 %v4195, %v4187
    %v4652 = vpack.c.b16 %v4196, %v4188
    %v4653 = vpack.c.b16 %v4197, %v4189
    %v4654 = vpack.c.b16 %v4206, %v4198
    %v4655 = vpack.c.b16 %v4207, %v4199
    %v4656 = vpack.c.b16 %v4208, %v4200
    %v4657 = vpack.c.b16 %v4209, %v4201
    %v4658 = vpack.c.b16 %v4210, %v4202
    %v4659 = vpack.c.b16 %v4211, %v4203
    %v4660 = vpack.c.b16 %v4212, %v4204
    %v4661 = vpack.c.b16 %v4213, %v4205
    %v4662 = vpack.c.b16 %v4222, %v4214
    %v4663 = vpack.c.b16 %v4223, %v4215
    %v4664 = vpack.c.b16 %v4224, %v4216
    %v4665 = vpack.c.b16 %v4225, %v4217
    %v4666 = vpack.c.b16 %v4226, %v4218
    %v4667 = vpack.c.b16 %v4227, %v4219
    %v4668 = vpack.c.b16 %v4228, %v4220
    %v4669 = vpack.c.b16 %v4229, %v4221
    %v4670 = vpack.c.b16 %v4238, %v4230
    %v4671 = vpack.c.b16 %v4239, %v4231
    %v4672 = vpack.c.b16 %v4240, %v4232
    %v4673 = vpack.c.b16 %v4241, %v4233
    %v4674 = vpack.c.b16 %v4242, %v4234
    %v4675 = vpack.c.b16 %v4243, %v4235
    %v4676 = vpack.c.b16 %v4244, %v4236
    %v4677 = vpack.c.b16 %v4245, %v4237
    %v4678 = vpack.c.b16 %v4254, %v4246
    %v4679 = vpack.c.b16 %v4255, %v4247
    %v4680 = vpack.c.b16 %v4256, %v4248
    %v4681 = vpack.c.b16 %v4257, %v4249
    %v4682 = vpack.c.b16 %v4258, %v4250
    %v4683 = vpack.c.b16 %v4259, %v4251
    %v4684 = vpack.c.b16 %v4260, %v4252
    %v4685 = vpack.c.b16 %v4261, %v4253
    %v4686 = vpack.c.b16 %v4270, %v4262
    %v4687 = vpack.c.b16 %v4271, %v4263
    %v4688 = vpack.c.b16 %v4272, %v4264
    %v4689 = vpack.c.b16 %v4273, %v4265
    %v4690 = vpack.c.b16 %v4274, %v4266
    %v4691 = vpack.c.b16 %v4275, %v4267
    %v4692 = vpack.c.b16 %v4276, %v4268
    %v4693 = vpack.c.b16 %v4277, %v4269
    %v4694 = vpack.c.b16 %v4286, %v4278
    %v4695 = vpack.c.b16 %v4287, %v4279
    %v4696 = vpack.c.b16 %v4288, %v4280
    %v4697 = vpack.c.b16 %v4289, %v4281
    %v4698 = vpack.c.b16 %v4290, %v4282
    %v4699 = vpack.c.b16 %v4291, %v4283
    %v4700 = vpack.c.b16 %v4292, %v4284
    %v4701 = vpack.c.b16 %v4293, %v4285
    %v4702 = vpack.c.b16 %v4302, %v4294
    %v4703 = vpack.c.b16 %v4303, %v4295
    %v4704 = vpack.c.b16 %v4304, %v4296
    %v4705 = vpack.c.b16 %v4305, %v4297
    %v4706 = vpack.c.b16 %v4306, %v4298
    %v4707 = vpack.c.b16 %v4307, %v4299
    %v4708 = vpack.c.b16 %v4308, %v4300
    %v4709 = vpack.c.b16 %v4309, %v4301
    %v4710 = vpack.c.b16 %v4318, %v4310
    %v4711 = vpack.c.b16 %v4319, %v4311
    %v4712 = vpack.c.b16 %v4320, %v4312
    %v4713 = vpack.c.b16 %v4321, %v4313
    %v4714 = vpack.c.b16 %v4322, %v4314
    %v4715 = vpack.c.b16 %v4323, %v4315
    %v4716 = vpack.c.b16 %v4324, %v4316
    %v4717 = vpack.c.b16 %v4325, %v4317
    %v4718 = vpack.c.b16 %v4334, %v4326
    %v4719 = vpack.c.b16 %v4335, %v4327
    %v4720 = vpack.c.b16 %v4336, %v4328
    %v4721 = vpack.c.b16 %v4337, %v4329
    %v4722 = vpack.c.b16 %v4338, %v4330
    %v4723 = vpack.c.b16 %v4339, %v4331
    %v4724 = vpack.c.b16 %v4340, %v4332
    %v4725 = vpack.c.b16 %v4341, %v4333
    %v4726 = vpack.c.b16 %v4350, %v4342
    %v4727 = vpack.c.b16 %v4351, %v4343
    %v4728 = vpack.c.b16 %v4352, %v4344
    %v4729 = vpack.c.b16 %v4353, %v4345
    %v4730 = vpack.c.b16 %v4354, %v4346
    %v4731 = vpack.c.b16 %v4355, %v4347
    %v4732 = vpack.c.b16 %v4356, %v4348
    %v4733 = vpack.c.b16 %v4357, %v4349
    %v4734 = vpack.c.b16 %v4366, %v4358
    %v4735 = vpack.c.b16 %v4367, %v4359
    %v4736 = vpack.c.b16 %v4368, %v4360
    %v4737 = vpack.c.b16 %v4369, %v4361
    %v4738 = vpack.c.b16 %v4370, %v4362
    %v4739 = vpack.c.b16 %v4371, %v4363
    %v4740 = vpack.c.b16 %v4372, %v4364
    %v4741 = vpack.c.b16 %v4373, %v4365
    %v4742 = vpack.c.b16 %v4382, %v4374
    %v4743 = vpack.c.b16 %v4383, %v4375
    %v4744 = vpack.c.b16 %v4384, %v4376
    %v4745 = vpack.c.b16 %v4385, %v4377
    %v4746 = vpack.c.b16 %v4386, %v4378
    %v4747 = vpack.c.b16 %v4387, %v4379
    %v4748 = vpack.c.b16 %v4388, %v4380
    %v4749 = vpack.c.b16 %v4389, %v4381
    %v4750 = vpack.c.b16 %v4398, %v4390
    %v4751 = vpack.c.b16 %v4399, %v4391
    %v4752 = vpack.c.b16 %v4400, %v4392
    %v4753 = vpack.c.b16 %v4401, %v4393
    %v4754 = vpack.c.b16 %v4402, %v4394
    %v4755 = vpack.c.b16 %v4403, %v4395
    %v4756 = vpack.c.b16 %v4404, %v4396
    %v4757 = vpack.c.b16 %v4405, %v4397
    %v4758 = vpack.c.b16 %v4414, %v4406
    %v4759 = vpack.c.b16 %v4415, %v4407
    %v4760 = vpack.c.b16 %v4416, %v4408
    %v4761 = vpack.c.b16 %v4417, %v4409
    %v4762 = vpack.c.b16 %v4418, %v4410
    %v4763 = vpack.c.b16 %v4419, %v4411
    %v4764 = vpack.c.b16 %v4420, %v4412
    %v4765 = vpack.c.b16 %v4421, %v4413
    %v4766 = vpack.c.b16 %v4430, %v4422
    %v4767 = vpack.c.b16 %v4431, %v4423
    %v4768 = vpack.c.b16 %v4432, %v4424
    %v4769 = vpack.c.b16 %v4433, %v4425
    %v4770 = vpack.c.b16 %v4434, %v4426
    %v4771 = vpack.c.b16 %v4435, %v4427
    %v4772 = vpack.c.b16 %v4436, %v4428
    %v4773 = vpack.c.b16 %v4437, %v4429
    %v4774 = vpack.c.b16 %v4446, %v4438
    %v4775 = vpack.c.b16 %v4447, %v4439
    %v4776 = vpack.c.b16 %v4448, %v4440
    %v4777 = vpack.c.b16 %v4449, %v4441
    %v4778 = vpack.c.b16 %v4450, %v4442
    %v4779 = vpack.c.b16 %v4451, %v4443
    %v4780 = vpack.c.b16 %v4452, %v4444
    %v4781 = vpack.c.b16 %v4453, %v4445
    %v4782 = vpack.c.b16 %v4462, %v4454
    %v4783 = vpack.c.b16 %v4463, %v4455
    %v4784 = vpack.c.b16 %v4464, %v4456
    %v4785 = vpack.c.b16 %v4465, %v4457
    %v4786 = vpack.c.b16 %v4466, %v4458
    %v4787 = vpack.c.b16 %v4467, %v4459
    %v4788 = vpack.c.b16 %v4468, %v4460
    %v4789 = vpack.c.b16 %v4469, %v4461
    %v4790 = vpack.c.b16 %v4478, %v4470
    %v4791 = vpack.c.b16 %v4479, %v4471
    %v4792 = vpack.c.b16 %v4480, %v4472
    %v4793 = vpack.c.b16 %v4481, %v4473
    %v4794 = vpack.c.b16 %v4482, %v4474
    %v4795 = vpack.c.b16 %v4483, %v4475
    %v4796 = vpack.c.b16 %v4484, %v4476
    %v4797 = vpack.c.b16 %v4485, %v4477
    %v4798 = vpack.c.b16 %v4494, %v4486
    %v4799 = vpack.c.b16 %v4495, %v4487
    %v4800 = vpack.c.b16 %v4496, %v4488
    %v4801 = vpack.c.b16 %v4497, %v4489
    %v4802 = vpack.c.b16 %v4498, %v4490
    %v4803 = vpack.c.b16 %v4499, %v4491
    %v4804 = vpack.c.b16 %v4500, %v4492
    %v4805 = vpack.c.b16 %v4501, %v4493
    %v4806 = vpack.c.b16 %v4510, %v4502
    %v4807 = vpack.c.b16 %v4511, %v4503
    %v4808 = vpack.c.b16 %v4512, %v4504
    %v4809 = vpack.c.b16 %v4513, %v4505
    %v4810 = vpack.c.b16 %v4514, %v4506
    %v4811 = vpack.c.b16 %v4515, %v4507
    %v4812 = vpack.c.b16 %v4516, %v4508
    %v4813 = vpack.c.b16 %v4517, %v4509
    %v4814 = vpack.c.b16 %v4526, %v4518
    %v4815 = vpack.c.b16 %v4527, %v4519
    %v4816 = vpack.c.b16 %v4528, %v4520
    %v4817 = vpack.c.b16 %v4529, %v4521
    %v4818 = vpack.c.b16 %v4530, %v4522
    %v4819 = vpack.c.b16 %v4531, %v4523
    %v4820 = vpack.c.b16 %v4532, %v4524
    %v4821 = vpack.c.b16 %v4533, %v4525
    %v4822 = vpack.c.b16 %v4542, %v4534
    %v4823 = vpack.c.b16 %v4543, %v4535
    %v4824 = vpack.c.b16 %v4544, %v4536
    %v4825 = vpack.c.b16 %v4545, %v4537
    %v4826 = vpack.c.b16 %v4546, %v4538
    %v4827 = vpack.c.b16 %v4547, %v4539
    %v4828 = vpack.c.b16 %v4548, %v4540
    %v4829 = vpack.c.b16 %v4549, %v4541
    %v4830 = vpack.c.b16 %v4558, %v4550
    %v4831 = vpack.c.b16 %v4559, %v4551
    %v4832 = vpack.c.b16 %v4560, %v4552
    %v4833 = vpack.c.b16 %v4561, %v4553
    %v4834 = vpack.c.b16 %v4562, %v4554
    %v4835 = vpack.c.b16 %v4563, %v4555
    %v4836 = vpack.c.b16 %v4564, %v4556
    %v4837 = vpack.c.b16 %v4565, %v4557
    %v4838 = vpack.c.b16 %v4574, %v4566
    %v4839 = vpack.c.b16 %v4575, %v4567
    %v4840 = vpack.c.b16 %v4576, %v4568
    %v4841 = vpack.c.b16 %v4577, %v4569
    %v4842 = vpack.c.b16 %v4578, %v4570
    %v4843 = vpack.c.b16 %v4579, %v4571
    %v4844 = vpack.c.b16 %v4580, %v4572
    %v4845 = vpack.c.b16 %v4581, %v4573
    %v4846 = vpack.c.b16 %v4590, %v4582
    %v4847 = vpack.c.b16 %v4591, %v4583
    %v4848 = vpack.c.b16 %v4592, %v4584
    %v4849 = vpack.c.b16 %v4593, %v4585
    %v4850 = vpack.c.b16 %v4594, %v4586
    %v4851 = vpack.c.b16 %v4595, %v4587
    %v4852 = vpack.c.b16 %v4596, %v4588
    %v4853 = vpack.c.b16 %v4597, %v4589
    %5110 = vmatpush.bf16.msra.mxu0 %v4654
    %5111 = vmatpush.bf16.msra.mxu0 %v4646
    %5112 = vmatpush.bf16.msra.mxu0 %v4638
    %5113 = vmatpush.bf16.msra.mxu0 %v4630
    %5114 = vmatpush.bf16.msra.mxu0 %v4622
    %5115 = vmatpush.bf16.msra.mxu0 %v4614
    %5116 = vmatpush.bf16.msra.mxu0 %v4606
    %5117 = vmatpush.bf16.msra.mxu0 %v4598
    %5118 = vmatmul.bf16.gmra.mxu0 %v3510
    %v5119 = vpop.f32.mrf.mxu0
    %v5120 = vadd.f32 0.0, %v5119
    %v5121 = vpop.f32.mrf.mxu0
    %v5122 = vadd.f32 0.0, %v5121
    %5123 = vmatmul.bf16.gmra.mxu0 %v3514
    %v5124 = vpop.f32.mrf.mxu0
    %v5125 = vadd.f32 0.0, %v5124
    %v5126 = vpop.f32.mrf.mxu0
    %v5127 = vadd.f32 0.0, %v5126
    %5128 = vmatmul.bf16.gmra.mxu0 %v3518
    %v5129 = vpop.f32.mrf.mxu0
    %v5130 = vadd.f32 0.0, %v5129
    %v5131 = vpop.f32.mrf.mxu0
    %v5132 = vadd.f32 0.0, %v5131
    %5133 = vmatmul.bf16.gmra.mxu0 %v3522
    %v5134 = vpop.f32.mrf.mxu0
    %v5135 = vadd.f32 0.0, %v5134
    %v5136 = vpop.f32.mrf.mxu0
    %v5137 = vadd.f32 0.0, %v5136
    %5138 = vmatmul.bf16.gmra.mxu0 %v3526
    %v5139 = vpop.f32.mrf.mxu0
    %v5140 = vadd.f32 0.0, %v5139
    %v5141 = vpop.f32.mrf.mxu0
    %v5142 = vadd.f32 0.0, %v5141
    %5143 = vmatmul.bf16.gmra.mxu0 %v3530
    %v5144 = vpop.f32.mrf.mxu0
    %v5145 = vadd.f32 0.0, %v5144
    %v5146 = vpop.f32.mrf.mxu0
    %v5147 = vadd.f32 0.0, %v5146
    %5148 = vmatmul.bf16.gmra.mxu0 %v3534
    %v5149 = vpop.f32.mrf.mxu0
    %v5150 = vadd.f32 0.0, %v5149
    %v5151 = vpop.f32.mrf.mxu0
    %v5152 = vadd.f32 0.0, %v5151
    %5153 = vmatmul.bf16.gmra.mxu0 %v3538
    %v5154 = vpop.f32.mrf.mxu0
    %v5155 = vadd.f32 0.0, %v5154
    %v5156 = vpop.f32.mrf.mxu0
    %v5157 = vadd.f32 0.0, %v5156
    %5158 = vmatmul.bf16.gmra.mxu0 %v3542
    %v5159 = vpop.f32.mrf.mxu0
    %v5160 = vadd.f32 0.0, %v5159
    %v5161 = vpop.f32.mrf.mxu0
    %v5162 = vadd.f32 0.0, %v5161
    %5163 = vmatmul.bf16.gmra.mxu0 %v3546
    %v5164 = vpop.f32.mrf.mxu0
    %v5165 = vadd.f32 0.0, %v5164
    %v5166 = vpop.f32.mrf.mxu0
    %v5167 = vadd.f32 0.0, %v5166
    %5168 = vmatmul.bf16.gmra.mxu0 %v3550
    %v5169 = vpop.f32.mrf.mxu0
    %v5170 = vadd.f32 0.0, %v5169
    %v5171 = vpop.f32.mrf.mxu0
    %v5172 = vadd.f32 0.0, %v5171
    %5173 = vmatmul.bf16.gmra.mxu0 %v3554
    %v5174 = vpop.f32.mrf.mxu0
    %v5175 = vadd.f32 0.0, %v5174
    %v5176 = vpop.f32.mrf.mxu0
    %v5177 = vadd.f32 0.0, %v5176
    %5178 = vmatmul.bf16.gmra.mxu0 %v3558
    %v5179 = vpop.f32.mrf.mxu0
    %v5180 = vadd.f32 0.0, %v5179
    %v5181 = vpop.f32.mrf.mxu0
    %v5182 = vadd.f32 0.0, %v5181
    %5183 = vmatmul.bf16.gmra.mxu0 %v3562
    %v5184 = vpop.f32.mrf.mxu0
    %v5185 = vadd.f32 0.0, %v5184
    %v5186 = vpop.f32.mrf.mxu0
    %v5187 = vadd.f32 0.0, %v5186
    %5188 = vmatmul.bf16.gmra.mxu0 %v3566
    %v5189 = vpop.f32.mrf.mxu0
    %v5190 = vadd.f32 0.0, %v5189
    %v5191 = vpop.f32.mrf.mxu0
    %v5192 = vadd.f32 0.0, %v5191
    %5193 = vmatmul.bf16.gmra.mxu0 %v3570
    %v5194 = vpop.f32.mrf.mxu0
    %v5195 = vadd.f32 0.0, %v5194
    %v5196 = vpop.f32.mrf.mxu0
    %v5197 = vadd.f32 0.0, %v5196
    %5198 = vdwg.mxu0
    %5199 = vmatpush.bf16.msra.mxu0 %v4718
    %5200 = vmatpush.bf16.msra.mxu0 %v4710
    %5201 = vmatpush.bf16.msra.mxu0 %v4702
    %5202 = vmatpush.bf16.msra.mxu0 %v4694
    %5203 = vmatpush.bf16.msra.mxu0 %v4686
    %5204 = vmatpush.bf16.msra.mxu0 %v4678
    %5205 = vmatpush.bf16.msra.mxu0 %v4670
    %5206 = vmatpush.bf16.msra.mxu0 %v4662
    %5207 = vmatmul.bf16.gmra.mxu0 %v3511
    %v5208 = vpop.f32.mrf.mxu0
    %v5209 = vadd.f32 %v5120, %v5208
    %v5210 = vpop.f32.mrf.mxu0
    %v5211 = vadd.f32 %v5122, %v5210
    %5212 = vmatmul.bf16.gmra.mxu0 %v3515
    %v5213 = vpop.f32.mrf.mxu0
    %v5214 = vadd.f32 %v5125, %v5213
    %v5215 = vpop.f32.mrf.mxu0
    %v5216 = vadd.f32 %v5127, %v5215
    %5217 = vmatmul.bf16.gmra.mxu0 %v3519
    %v5218 = vpop.f32.mrf.mxu0
    %v5219 = vadd.f32 %v5130, %v5218
    %v5220 = vpop.f32.mrf.mxu0
    %v5221 = vadd.f32 %v5132, %v5220
    %5222 = vmatmul.bf16.gmra.mxu0 %v3523
    %v5223 = vpop.f32.mrf.mxu0
    %v5224 = vadd.f32 %v5135, %v5223
    %v5225 = vpop.f32.mrf.mxu0
    %v5226 = vadd.f32 %v5137, %v5225
    %5227 = vmatmul.bf16.gmra.mxu0 %v3527
    %v5228 = vpop.f32.mrf.mxu0
    %v5229 = vadd.f32 %v5140, %v5228
    %v5230 = vpop.f32.mrf.mxu0
    %v5231 = vadd.f32 %v5142, %v5230
    %5232 = vmatmul.bf16.gmra.mxu0 %v3531
    %v5233 = vpop.f32.mrf.mxu0
    %v5234 = vadd.f32 %v5145, %v5233
    %v5235 = vpop.f32.mrf.mxu0
    %v5236 = vadd.f32 %v5147, %v5235
    %5237 = vmatmul.bf16.gmra.mxu0 %v3535
    %v5238 = vpop.f32.mrf.mxu0
    %v5239 = vadd.f32 %v5150, %v5238
    %v5240 = vpop.f32.mrf.mxu0
    %v5241 = vadd.f32 %v5152, %v5240
    %5242 = vmatmul.bf16.gmra.mxu0 %v3539
    %v5243 = vpop.f32.mrf.mxu0
    %v5244 = vadd.f32 %v5155, %v5243
    %v5245 = vpop.f32.mrf.mxu0
    %v5246 = vadd.f32 %v5157, %v5245
    %5247 = vmatmul.bf16.gmra.mxu0 %v3543
    %v5248 = vpop.f32.mrf.mxu0
    %v5249 = vadd.f32 %v5160, %v5248
    %v5250 = vpop.f32.mrf.mxu0
    %v5251 = vadd.f32 %v5162, %v5250
    %5252 = vmatmul.bf16.gmra.mxu0 %v3547
    %v5253 = vpop.f32.mrf.mxu0
    %v5254 = vadd.f32 %v5165, %v5253
    %v5255 = vpop.f32.mrf.mxu0
    %v5256 = vadd.f32 %v5167, %v5255
    %5257 = vmatmul.bf16.gmra.mxu0 %v3551
    %v5258 = vpop.f32.mrf.mxu0
    %v5259 = vadd.f32 %v5170, %v5258
    %v5260 = vpop.f32.mrf.mxu0
    %v5261 = vadd.f32 %v5172, %v5260
    %5262 = vmatmul.bf16.gmra.mxu0 %v3555
    %v5263 = vpop.f32.mrf.mxu0
    %v5264 = vadd.f32 %v5175, %v5263
    %v5265 = vpop.f32.mrf.mxu0
    %v5266 = vadd.f32 %v5177, %v5265
    %5267 = vmatmul.bf16.gmra.mxu0 %v3559
    %v5268 = vpop.f32.mrf.mxu0
    %v5269 = vadd.f32 %v5180, %v5268
    %v5270 = vpop.f32.mrf.mxu0
    %v5271 = vadd.f32 %v5182, %v5270
    %5272 = vmatmul.bf16.gmra.mxu0 %v3563
    %v5273 = vpop.f32.mrf.mxu0
    %v5274 = vadd.f32 %v5185, %v5273
    %v5275 = vpop.f32.mrf.mxu0
    %v5276 = vadd.f32 %v5187, %v5275
    %5277 = vmatmul.bf16.gmra.mxu0 %v3567
    %v5278 = vpop.f32.mrf.mxu0
    %v5279 = vadd.f32 %v5190, %v5278
    %v5280 = vpop.f32.mrf.mxu0
    %v5281 = vadd.f32 %v5192, %v5280
    %5282 = vmatmul.bf16.gmra.mxu0 %v3571
    %v5283 = vpop.f32.mrf.mxu0
    %v5284 = vadd.f32 %v5195, %v5283
    %v5285 = vpop.f32.mrf.mxu0
    %v5286 = vadd.f32 %v5197, %v5285
    %5287 = vdwg.mxu0
    %5288 = vmatpush.bf16.msra.mxu0 %v4782
    %5289 = vmatpush.bf16.msra.mxu0 %v4774
    %5290 = vmatpush.bf16.msra.mxu0 %v4766
    %5291 = vmatpush.bf16.msra.mxu0 %v4758
    %5292 = vmatpush.bf16.msra.mxu0 %v4750
    %5293 = vmatpush.bf16.msra.mxu0 %v4742
    %5294 = vmatpush.bf16.msra.mxu0 %v4734
    %5295 = vmatpush.bf16.msra.mxu0 %v4726
    %5296 = vmatmul.bf16.gmra.mxu0 %v3512
    %v5297 = vpop.f32.mrf.mxu0
    %v5298 = vadd.f32 %v5209, %v5297
    %v5299 = vpop.f32.mrf.mxu0
    %v5300 = vadd.f32 %v5211, %v5299
    %5301 = vmatmul.bf16.gmra.mxu0 %v3516
    %v5302 = vpop.f32.mrf.mxu0
    %v5303 = vadd.f32 %v5214, %v5302
    %v5304 = vpop.f32.mrf.mxu0
    %v5305 = vadd.f32 %v5216, %v5304
    %5306 = vmatmul.bf16.gmra.mxu0 %v3520
    %v5307 = vpop.f32.mrf.mxu0
    %v5308 = vadd.f32 %v5219, %v5307
    %v5309 = vpop.f32.mrf.mxu0
    %v5310 = vadd.f32 %v5221, %v5309
    %5311 = vmatmul.bf16.gmra.mxu0 %v3524
    %v5312 = vpop.f32.mrf.mxu0
    %v5313 = vadd.f32 %v5224, %v5312
    %v5314 = vpop.f32.mrf.mxu0
    %v5315 = vadd.f32 %v5226, %v5314
    %5316 = vmatmul.bf16.gmra.mxu0 %v3528
    %v5317 = vpop.f32.mrf.mxu0
    %v5318 = vadd.f32 %v5229, %v5317
    %v5319 = vpop.f32.mrf.mxu0
    %v5320 = vadd.f32 %v5231, %v5319
    %5321 = vmatmul.bf16.gmra.mxu0 %v3532
    %v5322 = vpop.f32.mrf.mxu0
    %v5323 = vadd.f32 %v5234, %v5322
    %v5324 = vpop.f32.mrf.mxu0
    %v5325 = vadd.f32 %v5236, %v5324
    %5326 = vmatmul.bf16.gmra.mxu0 %v3536
    %v5327 = vpop.f32.mrf.mxu0
    %v5328 = vadd.f32 %v5239, %v5327
    %v5329 = vpop.f32.mrf.mxu0
    %v5330 = vadd.f32 %v5241, %v5329
    %5331 = vmatmul.bf16.gmra.mxu0 %v3540
    %v5332 = vpop.f32.mrf.mxu0
    %v5333 = vadd.f32 %v5244, %v5332
    %v5334 = vpop.f32.mrf.mxu0
    %v5335 = vadd.f32 %v5246, %v5334
    %5336 = vmatmul.bf16.gmra.mxu0 %v3544
    %v5337 = vpop.f32.mrf.mxu0
    %v5338 = vadd.f32 %v5249, %v5337
    %v5339 = vpop.f32.mrf.mxu0
    %v5340 = vadd.f32 %v5251, %v5339
    %5341 = vmatmul.bf16.gmra.mxu0 %v3548
    %v5342 = vpop.f32.mrf.mxu0
    %v5343 = vadd.f32 %v5254, %v5342
    %v5344 = vpop.f32.mrf.mxu0
    %v5345 = vadd.f32 %v5256, %v5344
    %5346 = vmatmul.bf16.gmra.mxu0 %v3552
    %v5347 = vpop.f32.mrf.mxu0
    %v5348 = vadd.f32 %v5259, %v5347
    %v5349 = vpop.f32.mrf.mxu0
    %v5350 = vadd.f32 %v5261, %v5349
    %5351 = vmatmul.bf16.gmra.mxu0 %v3556
    %v5352 = vpop.f32.mrf.mxu0
    %v5353 = vadd.f32 %v5264, %v5352
    %v5354 = vpop.f32.mrf.mxu0
    %v5355 = vadd.f32 %v5266, %v5354
    %5356 = vmatmul.bf16.gmra.mxu0 %v3560
    %v5357 = vpop.f32.mrf.mxu0
    %v5358 = vadd.f32 %v5269, %v5357
    %v5359 = vpop.f32.mrf.mxu0
    %v5360 = vadd.f32 %v5271, %v5359
    %5361 = vmatmul.bf16.gmra.mxu0 %v3564
    %v5362 = vpop.f32.mrf.mxu0
    %v5363 = vadd.f32 %v5274, %v5362
    %v5364 = vpop.f32.mrf.mxu0
    %v5365 = vadd.f32 %v5276, %v5364
    %5366 = vmatmul.bf16.gmra.mxu0 %v3568
    %v5367 = vpop.f32.mrf.mxu0
    %v5368 = vadd.f32 %v5279, %v5367
    %v5369 = vpop.f32.mrf.mxu0
    %v5370 = vadd.f32 %v5281, %v5369
    %5371 = vmatmul.bf16.gmra.mxu0 %v3572
    %v5372 = vpop.f32.mrf.mxu0
    %v5373 = vadd.f32 %v5284, %v5372
    %v5374 = vpop.f32.mrf.mxu0
    %v5375 = vadd.f32 %v5286, %v5374
    %5376 = vdwg.mxu0
    %5377 = vmatpush.bf16.msra.mxu0 %v4846
    %5378 = vmatpush.bf16.msra.mxu0 %v4838
    %5379 = vmatpush.bf16.msra.mxu0 %v4830
    %5380 = vmatpush.bf16.msra.mxu0 %v4822
    %5381 = vmatpush.bf16.msra.mxu0 %v4814
    %5382 = vmatpush.bf16.msra.mxu0 %v4806
    %5383 = vmatpush.bf16.msra.mxu0 %v4798
    %5384 = vmatpush.bf16.msra.mxu0 %v4790
    %5385 = vmatmul.bf16.gmra.mxu0 %v3513
    %v5386 = vpop.f32.mrf.mxu0
    %v5387 = vadd.f32 %v5298, %v5386
    %v5388 = vpop.f32.mrf.mxu0
    %v5389 = vadd.f32 %v5300, %v5388
    %5390 = vmatmul.bf16.gmra.mxu0 %v3517
    %v5391 = vpop.f32.mrf.mxu0
    %v5392 = vadd.f32 %v5303, %v5391
    %v5393 = vpop.f32.mrf.mxu0
    %v5394 = vadd.f32 %v5305, %v5393
    %5395 = vmatmul.bf16.gmra.mxu0 %v3521
    %v5396 = vpop.f32.mrf.mxu0
    %v5397 = vadd.f32 %v5308, %v5396
    %v5398 = vpop.f32.mrf.mxu0
    %v5399 = vadd.f32 %v5310, %v5398
    %5400 = vmatmul.bf16.gmra.mxu0 %v3525
    %v5401 = vpop.f32.mrf.mxu0
    %v5402 = vadd.f32 %v5313, %v5401
    %v5403 = vpop.f32.mrf.mxu0
    %v5404 = vadd.f32 %v5315, %v5403
    %5405 = vmatmul.bf16.gmra.mxu0 %v3529
    %v5406 = vpop.f32.mrf.mxu0
    %v5407 = vadd.f32 %v5318, %v5406
    %v5408 = vpop.f32.mrf.mxu0
    %v5409 = vadd.f32 %v5320, %v5408
    %5410 = vmatmul.bf16.gmra.mxu0 %v3533
    %v5411 = vpop.f32.mrf.mxu0
    %v5412 = vadd.f32 %v5323, %v5411
    %v5413 = vpop.f32.mrf.mxu0
    %v5414 = vadd.f32 %v5325, %v5413
    %5415 = vmatmul.bf16.gmra.mxu0 %v3537
    %v5416 = vpop.f32.mrf.mxu0
    %v5417 = vadd.f32 %v5328, %v5416
    %v5418 = vpop.f32.mrf.mxu0
    %v5419 = vadd.f32 %v5330, %v5418
    %5420 = vmatmul.bf16.gmra.mxu0 %v3541
    %v5421 = vpop.f32.mrf.mxu0
    %v5422 = vadd.f32 %v5333, %v5421
    %v5423 = vpop.f32.mrf.mxu0
    %v5424 = vadd.f32 %v5335, %v5423
    %5425 = vmatmul.bf16.gmra.mxu0 %v3545
    %v5426 = vpop.f32.mrf.mxu0
    %v5427 = vadd.f32 %v5338, %v5426
    %v5428 = vpop.f32.mrf.mxu0
    %v5429 = vadd.f32 %v5340, %v5428
    %5430 = vmatmul.bf16.gmra.mxu0 %v3549
    %v5431 = vpop.f32.mrf.mxu0
    %v5432 = vadd.f32 %v5343, %v5431
    %v5433 = vpop.f32.mrf.mxu0
    %v5434 = vadd.f32 %v5345, %v5433
    %5435 = vmatmul.bf16.gmra.mxu0 %v3553
    %v5436 = vpop.f32.mrf.mxu0
    %v5437 = vadd.f32 %v5348, %v5436
    %v5438 = vpop.f32.mrf.mxu0
    %v5439 = vadd.f32 %v5350, %v5438
    %5440 = vmatmul.bf16.gmra.mxu0 %v3557
    %v5441 = vpop.f32.mrf.mxu0
    %v5442 = vadd.f32 %v5353, %v5441
    %v5443 = vpop.f32.mrf.mxu0
    %v5444 = vadd.f32 %v5355, %v5443
    %5445 = vmatmul.bf16.gmra.mxu0 %v3561
    %v5446 = vpop.f32.mrf.mxu0
    %v5447 = vadd.f32 %v5358, %v5446
    %v5448 = vpop.f32.mrf.mxu0
    %v5449 = vadd.f32 %v5360, %v5448
    %5450 = vmatmul.bf16.gmra.mxu0 %v3565
    %v5451 = vpop.f32.mrf.mxu0
    %v5452 = vadd.f32 %v5363, %v5451
    %v5453 = vpop.f32.mrf.mxu0
    %v5454 = vadd.f32 %v5365, %v5453
    %5455 = vmatmul.bf16.gmra.mxu0 %v3569
    %v5456 = vpop.f32.mrf.mxu0
    %v5457 = vadd.f32 %v5368, %v5456
    %v5458 = vpop.f32.mrf.mxu0
    %v5459 = vadd.f32 %v5370, %v5458
    %5460 = vmatmul.bf16.gmra.mxu0 %v3573
    %v5461 = vpop.f32.mrf.mxu0
    %v5462 = vadd.f32 %v5373, %v5461
    %v5463 = vpop.f32.mrf.mxu0
    %v5464 = vadd.f32 %v5375, %v5463
    %5465 = vdwg.mxu0
    %5466 = vmatpush.bf16.msra.mxu0 %v4655
    %5467 = vmatpush.bf16.msra.mxu0 %v4647
    %5468 = vmatpush.bf16.msra.mxu0 %v4639
    %5469 = vmatpush.bf16.msra.mxu0 %v4631
    %5470 = vmatpush.bf16.msra.mxu0 %v4623
    %5471 = vmatpush.bf16.msra.mxu0 %v4615
    %5472 = vmatpush.bf16.msra.mxu0 %v4607
    %5473 = vmatpush.bf16.msra.mxu0 %v4599
    %5474 = vmatmul.bf16.gmra.mxu0 %v3510
    %v5475 = vpop.f32.mrf.mxu0
    %v5476 = vadd.f32 0.0, %v5475
    %v5477 = vpop.f32.mrf.mxu0
    %v5478 = vadd.f32 0.0, %v5477
    %5479 = vmatmul.bf16.gmra.mxu0 %v3514
    %v5480 = vpop.f32.mrf.mxu0
    %v5481 = vadd.f32 0.0, %v5480
    %v5482 = vpop.f32.mrf.mxu0
    %v5483 = vadd.f32 0.0, %v5482
    %5484 = vmatmul.bf16.gmra.mxu0 %v3518
    %v5485 = vpop.f32.mrf.mxu0
    %v5486 = vadd.f32 0.0, %v5485
    %v5487 = vpop.f32.mrf.mxu0
    %v5488 = vadd.f32 0.0, %v5487
    %5489 = vmatmul.bf16.gmra.mxu0 %v3522
    %v5490 = vpop.f32.mrf.mxu0
    %v5491 = vadd.f32 0.0, %v5490
    %v5492 = vpop.f32.mrf.mxu0
    %v5493 = vadd.f32 0.0, %v5492
    %5494 = vmatmul.bf16.gmra.mxu0 %v3526
    %v5495 = vpop.f32.mrf.mxu0
    %v5496 = vadd.f32 0.0, %v5495
    %v5497 = vpop.f32.mrf.mxu0
    %v5498 = vadd.f32 0.0, %v5497
    %5499 = vmatmul.bf16.gmra.mxu0 %v3530
    %v5500 = vpop.f32.mrf.mxu0
    %v5501 = vadd.f32 0.0, %v5500
    %v5502 = vpop.f32.mrf.mxu0
    %v5503 = vadd.f32 0.0, %v5502
    %5504 = vmatmul.bf16.gmra.mxu0 %v3534
    %v5505 = vpop.f32.mrf.mxu0
    %v5506 = vadd.f32 0.0, %v5505
    %v5507 = vpop.f32.mrf.mxu0
    %v5508 = vadd.f32 0.0, %v5507
    %5509 = vmatmul.bf16.gmra.mxu0 %v3538
    %v5510 = vpop.f32.mrf.mxu0
    %v5511 = vadd.f32 0.0, %v5510
    %v5512 = vpop.f32.mrf.mxu0
    %v5513 = vadd.f32 0.0, %v5512
    %5514 = vmatmul.bf16.gmra.mxu0 %v3542
    %v5515 = vpop.f32.mrf.mxu0
    %v5516 = vadd.f32 0.0, %v5515
    %v5517 = vpop.f32.mrf.mxu0
    %v5518 = vadd.f32 0.0, %v5517
    %5519 = vmatmul.bf16.gmra.mxu0 %v3546
    %v5520 = vpop.f32.mrf.mxu0
    %v5521 = vadd.f32 0.0, %v5520
    %v5522 = vpop.f32.mrf.mxu0
    %v5523 = vadd.f32 0.0, %v5522
    %5524 = vmatmul.bf16.gmra.mxu0 %v3550
    %v5525 = vpop.f32.mrf.mxu0
    %v5526 = vadd.f32 0.0, %v5525
    %v5527 = vpop.f32.mrf.mxu0
    %v5528 = vadd.f32 0.0, %v5527
    %5529 = vmatmul.bf16.gmra.mxu0 %v3554
    %v5530 = vpop.f32.mrf.mxu0
    %v5531 = vadd.f32 0.0, %v5530
    %v5532 = vpop.f32.mrf.mxu0
    %v5533 = vadd.f32 0.0, %v5532
    %5534 = vmatmul.bf16.gmra.mxu0 %v3558
    %v5535 = vpop.f32.mrf.mxu0
    %v5536 = vadd.f32 0.0, %v5535
    %v5537 = vpop.f32.mrf.mxu0
    %v5538 = vadd.f32 0.0, %v5537
    %5539 = vmatmul.bf16.gmra.mxu0 %v3562
    %v5540 = vpop.f32.mrf.mxu0
    %v5541 = vadd.f32 0.0, %v5540
    %v5542 = vpop.f32.mrf.mxu0
    %v5543 = vadd.f32 0.0, %v5542
    %5544 = vmatmul.bf16.gmra.mxu0 %v3566
    %v5545 = vpop.f32.mrf.mxu0
    %v5546 = vadd.f32 0.0, %v5545
    %v5547 = vpop.f32.mrf.mxu0
    %v5548 = vadd.f32 0.0, %v5547
    %5549 = vmatmul.bf16.gmra.mxu0 %v3570
    %v5550 = vpop.f32.mrf.mxu0
    %v5551 = vadd.f32 0.0, %v5550
    %v5552 = vpop.f32.mrf.mxu0
    %v5553 = vadd.f32 0.0, %v5552
    %5554 = vdwg.mxu0
    %5555 = vmatpush.bf16.msra.mxu0 %v4719
    %5556 = vmatpush.bf16.msra.mxu0 %v4711
    %5557 = vmatpush.bf16.msra.mxu0 %v4703
    %5558 = vmatpush.bf16.msra.mxu0 %v4695
    %5559 = vmatpush.bf16.msra.mxu0 %v4687
    %5560 = vmatpush.bf16.msra.mxu0 %v4679
    %5561 = vmatpush.bf16.msra.mxu0 %v4671
    %5562 = vmatpush.bf16.msra.mxu0 %v4663
    %5563 = vmatmul.bf16.gmra.mxu0 %v3511
    %v5564 = vpop.f32.mrf.mxu0
    %v5565 = vadd.f32 %v5476, %v5564
    %v5566 = vpop.f32.mrf.mxu0
    %v5567 = vadd.f32 %v5478, %v5566
    %5568 = vmatmul.bf16.gmra.mxu0 %v3515
    %v5569 = vpop.f32.mrf.mxu0
    %v5570 = vadd.f32 %v5481, %v5569
    %v5571 = vpop.f32.mrf.mxu0
    %v5572 = vadd.f32 %v5483, %v5571
    %5573 = vmatmul.bf16.gmra.mxu0 %v3519
    %v5574 = vpop.f32.mrf.mxu0
    %v5575 = vadd.f32 %v5486, %v5574
    %v5576 = vpop.f32.mrf.mxu0
    %v5577 = vadd.f32 %v5488, %v5576
    %5578 = vmatmul.bf16.gmra.mxu0 %v3523
    %v5579 = vpop.f32.mrf.mxu0
    %v5580 = vadd.f32 %v5491, %v5579
    %v5581 = vpop.f32.mrf.mxu0
    %v5582 = vadd.f32 %v5493, %v5581
    %5583 = vmatmul.bf16.gmra.mxu0 %v3527
    %v5584 = vpop.f32.mrf.mxu0
    %v5585 = vadd.f32 %v5496, %v5584
    %v5586 = vpop.f32.mrf.mxu0
    %v5587 = vadd.f32 %v5498, %v5586
    %5588 = vmatmul.bf16.gmra.mxu0 %v3531
    %v5589 = vpop.f32.mrf.mxu0
    %v5590 = vadd.f32 %v5501, %v5589
    %v5591 = vpop.f32.mrf.mxu0
    %v5592 = vadd.f32 %v5503, %v5591
    %5593 = vmatmul.bf16.gmra.mxu0 %v3535
    %v5594 = vpop.f32.mrf.mxu0
    %v5595 = vadd.f32 %v5506, %v5594
    %v5596 = vpop.f32.mrf.mxu0
    %v5597 = vadd.f32 %v5508, %v5596
    %5598 = vmatmul.bf16.gmra.mxu0 %v3539
    %v5599 = vpop.f32.mrf.mxu0
    %v5600 = vadd.f32 %v5511, %v5599
    %v5601 = vpop.f32.mrf.mxu0
    %v5602 = vadd.f32 %v5513, %v5601
    %5603 = vmatmul.bf16.gmra.mxu0 %v3543
    %v5604 = vpop.f32.mrf.mxu0
    %v5605 = vadd.f32 %v5516, %v5604
    %v5606 = vpop.f32.mrf.mxu0
    %v5607 = vadd.f32 %v5518, %v5606
    %5608 = vmatmul.bf16.gmra.mxu0 %v3547
    %v5609 = vpop.f32.mrf.mxu0
    %v5610 = vadd.f32 %v5521, %v5609
    %v5611 = vpop.f32.mrf.mxu0
    %v5612 = vadd.f32 %v5523, %v5611
    %5613 = vmatmul.bf16.gmra.mxu0 %v3551
    %v5614 = vpop.f32.mrf.mxu0
    %v5615 = vadd.f32 %v5526, %v5614
    %v5616 = vpop.f32.mrf.mxu0
    %v5617 = vadd.f32 %v5528, %v5616
    %5618 = vmatmul.bf16.gmra.mxu0 %v3555
    %v5619 = vpop.f32.mrf.mxu0
    %v5620 = vadd.f32 %v5531, %v5619
    %v5621 = vpop.f32.mrf.mxu0
    %v5622 = vadd.f32 %v5533, %v5621
    %5623 = vmatmul.bf16.gmra.mxu0 %v3559
    %v5624 = vpop.f32.mrf.mxu0
    %v5625 = vadd.f32 %v5536, %v5624
    %v5626 = vpop.f32.mrf.mxu0
    %v5627 = vadd.f32 %v5538, %v5626
    %5628 = vmatmul.bf16.gmra.mxu0 %v3563
    %v5629 = vpop.f32.mrf.mxu0
    %v5630 = vadd.f32 %v5541, %v5629
    %v5631 = vpop.f32.mrf.mxu0
    %v5632 = vadd.f32 %v5543, %v5631
    %5633 = vmatmul.bf16.gmra.mxu0 %v3567
    %v5634 = vpop.f32.mrf.mxu0
    %v5635 = vadd.f32 %v5546, %v5634
    %v5636 = vpop.f32.mrf.mxu0
    %v5637 = vadd.f32 %v5548, %v5636
    %5638 = vmatmul.bf16.gmra.mxu0 %v3571
    %v5639 = vpop.f32.mrf.mxu0
    %v5640 = vadd.f32 %v5551, %v5639
    %v5641 = vpop.f32.mrf.mxu0
    %v5642 = vadd.f32 %v5553, %v5641
    %5643 = vdwg.mxu0
    %5644 = vmatpush.bf16.msra.mxu0 %v4783
    %5645 = vmatpush.bf16.msra.mxu0 %v4775
    %5646 = vmatpush.bf16.msra.mxu0 %v4767
    %5647 = vmatpush.bf16.msra.mxu0 %v4759
    %5648 = vmatpush.bf16.msra.mxu0 %v4751
    %5649 = vmatpush.bf16.msra.mxu0 %v4743
    %5650 = vmatpush.bf16.msra.mxu0 %v4735
    %5651 = vmatpush.bf16.msra.mxu0 %v4727
    %5652 = vmatmul.bf16.gmra.mxu0 %v3512
    %v5653 = vpop.f32.mrf.mxu0
    %v5654 = vadd.f32 %v5565, %v5653
    %v5655 = vpop.f32.mrf.mxu0
    %v5656 = vadd.f32 %v5567, %v5655
    %5657 = vmatmul.bf16.gmra.mxu0 %v3516
    %v5658 = vpop.f32.mrf.mxu0
    %v5659 = vadd.f32 %v5570, %v5658
    %v5660 = vpop.f32.mrf.mxu0
    %v5661 = vadd.f32 %v5572, %v5660
    %5662 = vmatmul.bf16.gmra.mxu0 %v3520
    %v5663 = vpop.f32.mrf.mxu0
    %v5664 = vadd.f32 %v5575, %v5663
    %v5665 = vpop.f32.mrf.mxu0
    %v5666 = vadd.f32 %v5577, %v5665
    %5667 = vmatmul.bf16.gmra.mxu0 %v3524
    %v5668 = vpop.f32.mrf.mxu0
    %v5669 = vadd.f32 %v5580, %v5668
    %v5670 = vpop.f32.mrf.mxu0
    %v5671 = vadd.f32 %v5582, %v5670
    %5672 = vmatmul.bf16.gmra.mxu0 %v3528
    %v5673 = vpop.f32.mrf.mxu0
    %v5674 = vadd.f32 %v5585, %v5673
    %v5675 = vpop.f32.mrf.mxu0
    %v5676 = vadd.f32 %v5587, %v5675
    %5677 = vmatmul.bf16.gmra.mxu0 %v3532
    %v5678 = vpop.f32.mrf.mxu0
    %v5679 = vadd.f32 %v5590, %v5678
    %v5680 = vpop.f32.mrf.mxu0
    %v5681 = vadd.f32 %v5592, %v5680
    %5682 = vmatmul.bf16.gmra.mxu0 %v3536
    %v5683 = vpop.f32.mrf.mxu0
    %v5684 = vadd.f32 %v5595, %v5683
    %v5685 = vpop.f32.mrf.mxu0
    %v5686 = vadd.f32 %v5597, %v5685
    %5687 = vmatmul.bf16.gmra.mxu0 %v3540
    %v5688 = vpop.f32.mrf.mxu0
    %v5689 = vadd.f32 %v5600, %v5688
    %v5690 = vpop.f32.mrf.mxu0
    %v5691 = vadd.f32 %v5602, %v5690
    %5692 = vmatmul.bf16.gmra.mxu0 %v3544
    %v5693 = vpop.f32.mrf.mxu0
    %v5694 = vadd.f32 %v5605, %v5693
    %v5695 = vpop.f32.mrf.mxu0
    %v5696 = vadd.f32 %v5607, %v5695
    %5697 = vmatmul.bf16.gmra.mxu0 %v3548
    %v5698 = vpop.f32.mrf.mxu0
    %v5699 = vadd.f32 %v5610, %v5698
    %v5700 = vpop.f32.mrf.mxu0
    %v5701 = vadd.f32 %v5612, %v5700
    %5702 = vmatmul.bf16.gmra.mxu0 %v3552
    %v5703 = vpop.f32.mrf.mxu0
    %v5704 = vadd.f32 %v5615, %v5703
    %v5705 = vpop.f32.mrf.mxu0
    %v5706 = vadd.f32 %v5617, %v5705
    %5707 = vmatmul.bf16.gmra.mxu0 %v3556
    %v5708 = vpop.f32.mrf.mxu0
    %v5709 = vadd.f32 %v5620, %v5708
    %v5710 = vpop.f32.mrf.mxu0
    %v5711 = vadd.f32 %v5622, %v5710
    %5712 = vmatmul.bf16.gmra.mxu0 %v3560
    %v5713 = vpop.f32.mrf.mxu0
    %v5714 = vadd.f32 %v5625, %v5713
    %v5715 = vpop.f32.mrf.mxu0
    %v5716 = vadd.f32 %v5627, %v5715
    %5717 = vmatmul.bf16.gmra.mxu0 %v3564
    %v5718 = vpop.f32.mrf.mxu0
    %v5719 = vadd.f32 %v5630, %v5718
    %v5720 = vpop.f32.mrf.mxu0
    %v5721 = vadd.f32 %v5632, %v5720
    %5722 = vmatmul.bf16.gmra.mxu0 %v3568
    %v5723 = vpop.f32.mrf.mxu0
    %v5724 = vadd.f32 %v5635, %v5723
    %v5725 = vpop.f32.mrf.mxu0
    %v5726 = vadd.f32 %v5637, %v5725
    %5727 = vmatmul.bf16.gmra.mxu0 %v3572
    %v5728 = vpop.f32.mrf.mxu0
    %v5729 = vadd.f32 %v5640, %v5728
    %v5730 = vpop.f32.mrf.mxu0
    %v5731 = vadd.f32 %v5642, %v5730
    %5732 = vdwg.mxu0
    %5733 = vmatpush.bf16.msra.mxu0 %v4847
    %5734 = vmatpush.bf16.msra.mxu0 %v4839
    %5735 = vmatpush.bf16.msra.mxu0 %v4831
    %5736 = vmatpush.bf16.msra.mxu0 %v4823
    %5737 = vmatpush.bf16.msra.mxu0 %v4815
    %5738 = vmatpush.bf16.msra.mxu0 %v4807
    %5739 = vmatpush.bf16.msra.mxu0 %v4799
    %5740 = vmatpush.bf16.msra.mxu0 %v4791
    %5741 = vmatmul.bf16.gmra.mxu0 %v3513
    %v5742 = vpop.f32.mrf.mxu0
    %v5743 = vadd.f32 %v5654, %v5742
    %v5744 = vpop.f32.mrf.mxu0
    %v5745 = vadd.f32 %v5656, %v5744
    %5746 = vmatmul.bf16.gmra.mxu0 %v3517
    %v5747 = vpop.f32.mrf.mxu0
    %v5748 = vadd.f32 %v5659, %v5747
    %v5749 = vpop.f32.mrf.mxu0
    %v5750 = vadd.f32 %v5661, %v5749
    %5751 = vmatmul.bf16.gmra.mxu0 %v3521
    %v5752 = vpop.f32.mrf.mxu0
    %v5753 = vadd.f32 %v5664, %v5752
    %v5754 = vpop.f32.mrf.mxu0
    %v5755 = vadd.f32 %v5666, %v5754
    %5756 = vmatmul.bf16.gmra.mxu0 %v3525
    %v5757 = vpop.f32.mrf.mxu0
    %v5758 = vadd.f32 %v5669, %v5757
    %v5759 = vpop.f32.mrf.mxu0
    %v5760 = vadd.f32 %v5671, %v5759
    %5761 = vmatmul.bf16.gmra.mxu0 %v3529
    %v5762 = vpop.f32.mrf.mxu0
    %v5763 = vadd.f32 %v5674, %v5762
    %v5764 = vpop.f32.mrf.mxu0
    %v5765 = vadd.f32 %v5676, %v5764
    %5766 = vmatmul.bf16.gmra.mxu0 %v3533
    %v5767 = vpop.f32.mrf.mxu0
    %v5768 = vadd.f32 %v5679, %v5767
    %v5769 = vpop.f32.mrf.mxu0
    %v5770 = vadd.f32 %v5681, %v5769
    %5771 = vmatmul.bf16.gmra.mxu0 %v3537
    %v5772 = vpop.f32.mrf.mxu0
    %v5773 = vadd.f32 %v5684, %v5772
    %v5774 = vpop.f32.mrf.mxu0
    %v5775 = vadd.f32 %v5686, %v5774
    %5776 = vmatmul.bf16.gmra.mxu0 %v3541
    %v5777 = vpop.f32.mrf.mxu0
    %v5778 = vadd.f32 %v5689, %v5777
    %v5779 = vpop.f32.mrf.mxu0
    %v5780 = vadd.f32 %v5691, %v5779
    %5781 = vmatmul.bf16.gmra.mxu0 %v3545
    %v5782 = vpop.f32.mrf.mxu0
    %v5783 = vadd.f32 %v5694, %v5782
    %v5784 = vpop.f32.mrf.mxu0
    %v5785 = vadd.f32 %v5696, %v5784
    %5786 = vmatmul.bf16.gmra.mxu0 %v3549
    %v5787 = vpop.f32.mrf.mxu0
    %v5788 = vadd.f32 %v5699, %v5787
    %v5789 = vpop.f32.mrf.mxu0
    %v5790 = vadd.f32 %v5701, %v5789
    %5791 = vmatmul.bf16.gmra.mxu0 %v3553
    %v5792 = vpop.f32.mrf.mxu0
    %v5793 = vadd.f32 %v5704, %v5792
    %v5794 = vpop.f32.mrf.mxu0
    %v5795 = vadd.f32 %v5706, %v5794
    %5796 = vmatmul.bf16.gmra.mxu0 %v3557
    %v5797 = vpop.f32.mrf.mxu0
    %v5798 = vadd.f32 %v5709, %v5797
    %v5799 = vpop.f32.mrf.mxu0
    %v5800 = vadd.f32 %v5711, %v5799
    %5801 = vmatmul.bf16.gmra.mxu0 %v3561
    %v5802 = vpop.f32.mrf.mxu0
    %v5803 = vadd.f32 %v5714, %v5802
    %v5804 = vpop.f32.mrf.mxu0
    %v5805 = vadd.f32 %v5716, %v5804
    %5806 = vmatmul.bf16.gmra.mxu0 %v3565
    %v5807 = vpop.f32.mrf.mxu0
    %v5808 = vadd.f32 %v5719, %v5807
    %v5809 = vpop.f32.mrf.mxu0
    %v5810 = vadd.f32 %v5721, %v5809
    %5811 = vmatmul.bf16.gmra.mxu0 %v3569
    %v5812 = vpop.f32.mrf.mxu0
    %v5813 = vadd.f32 %v5724, %v5812
    %v5814 = vpop.f32.mrf.mxu0
    %v5815 = vadd.f32 %v5726, %v5814
    %5816 = vmatmul.bf16.gmra.mxu0 %v3573
    %v5817 = vpop.f32.mrf.mxu0
    %v5818 = vadd.f32 %v5729, %v5817
    %v5819 = vpop.f32.mrf.mxu0
    %v5820 = vadd.f32 %v5731, %v5819
    %5821 = vdwg.mxu0
    %5822 = vmatpush.bf16.msra.mxu0 %v4656
    %5823 = vmatpush.bf16.msra.mxu0 %v4648
    %5824 = vmatpush.bf16.msra.mxu0 %v4640
    %5825 = vmatpush.bf16.msra.mxu0 %v4632
    %5826 = vmatpush.bf16.msra.mxu0 %v4624
    %5827 = vmatpush.bf16.msra.mxu0 %v4616
    %5828 = vmatpush.bf16.msra.mxu0 %v4608
    %5829 = vmatpush.bf16.msra.mxu0 %v4600
    %5830 = vmatmul.bf16.gmra.mxu0 %v3510
    %v5831 = vpop.f32.mrf.mxu0
    %v5832 = vadd.f32 0.0, %v5831
    %v5833 = vpop.f32.mrf.mxu0
    %v5834 = vadd.f32 0.0, %v5833
    %5835 = vmatmul.bf16.gmra.mxu0 %v3514
    %v5836 = vpop.f32.mrf.mxu0
    %v5837 = vadd.f32 0.0, %v5836
    %v5838 = vpop.f32.mrf.mxu0
    %v5839 = vadd.f32 0.0, %v5838
    %5840 = vmatmul.bf16.gmra.mxu0 %v3518
    %v5841 = vpop.f32.mrf.mxu0
    %v5842 = vadd.f32 0.0, %v5841
    %v5843 = vpop.f32.mrf.mxu0
    %v5844 = vadd.f32 0.0, %v5843
    %5845 = vmatmul.bf16.gmra.mxu0 %v3522
    %v5846 = vpop.f32.mrf.mxu0
    %v5847 = vadd.f32 0.0, %v5846
    %v5848 = vpop.f32.mrf.mxu0
    %v5849 = vadd.f32 0.0, %v5848
    %5850 = vmatmul.bf16.gmra.mxu0 %v3526
    %v5851 = vpop.f32.mrf.mxu0
    %v5852 = vadd.f32 0.0, %v5851
    %v5853 = vpop.f32.mrf.mxu0
    %v5854 = vadd.f32 0.0, %v5853
    %5855 = vmatmul.bf16.gmra.mxu0 %v3530
    %v5856 = vpop.f32.mrf.mxu0
    %v5857 = vadd.f32 0.0, %v5856
    %v5858 = vpop.f32.mrf.mxu0
    %v5859 = vadd.f32 0.0, %v5858
    %5860 = vmatmul.bf16.gmra.mxu0 %v3534
    %v5861 = vpop.f32.mrf.mxu0
    %v5862 = vadd.f32 0.0, %v5861
    %v5863 = vpop.f32.mrf.mxu0
    %v5864 = vadd.f32 0.0, %v5863
    %5865 = vmatmul.bf16.gmra.mxu0 %v3538
    %v5866 = vpop.f32.mrf.mxu0
    %v5867 = vadd.f32 0.0, %v5866
    %v5868 = vpop.f32.mrf.mxu0
    %v5869 = vadd.f32 0.0, %v5868
    %5870 = vmatmul.bf16.gmra.mxu0 %v3542
    %v5871 = vpop.f32.mrf.mxu0
    %v5872 = vadd.f32 0.0, %v5871
    %v5873 = vpop.f32.mrf.mxu0
    %v5874 = vadd.f32 0.0, %v5873
    %5875 = vmatmul.bf16.gmra.mxu0 %v3546
    %v5876 = vpop.f32.mrf.mxu0
    %v5877 = vadd.f32 0.0, %v5876
    %v5878 = vpop.f32.mrf.mxu0
    %v5879 = vadd.f32 0.0, %v5878
    %5880 = vmatmul.bf16.gmra.mxu0 %v3550
    %v5881 = vpop.f32.mrf.mxu0
    %v5882 = vadd.f32 0.0, %v5881
    %v5883 = vpop.f32.mrf.mxu0
    %v5884 = vadd.f32 0.0, %v5883
    %5885 = vmatmul.bf16.gmra.mxu0 %v3554
    %v5886 = vpop.f32.mrf.mxu0
    %v5887 = vadd.f32 0.0, %v5886
    %v5888 = vpop.f32.mrf.mxu0
    %v5889 = vadd.f32 0.0, %v5888
    %5890 = vmatmul.bf16.gmra.mxu0 %v3558
    %v5891 = vpop.f32.mrf.mxu0
    %v5892 = vadd.f32 0.0, %v5891
    %v5893 = vpop.f32.mrf.mxu0
    %v5894 = vadd.f32 0.0, %v5893
    %5895 = vmatmul.bf16.gmra.mxu0 %v3562
    %v5896 = vpop.f32.mrf.mxu0
    %v5897 = vadd.f32 0.0, %v5896
    %v5898 = vpop.f32.mrf.mxu0
    %v5899 = vadd.f32 0.0, %v5898
    %5900 = vmatmul.bf16.gmra.mxu0 %v3566
    %v5901 = vpop.f32.mrf.mxu0
    %v5902 = vadd.f32 0.0, %v5901
    %v5903 = vpop.f32.mrf.mxu0
    %v5904 = vadd.f32 0.0, %v5903
    %5905 = vmatmul.bf16.gmra.mxu0 %v3570
    %v5906 = vpop.f32.mrf.mxu0
    %v5907 = vadd.f32 0.0, %v5906
    %v5908 = vpop.f32.mrf.mxu0
    %v5909 = vadd.f32 0.0, %v5908
    %5910 = vdwg.mxu0
    %5911 = vmatpush.bf16.msra.mxu0 %v4720
    %5912 = vmatpush.bf16.msra.mxu0 %v4712
    %5913 = vmatpush.bf16.msra.mxu0 %v4704
    %5914 = vmatpush.bf16.msra.mxu0 %v4696
    %5915 = vmatpush.bf16.msra.mxu0 %v4688
    %5916 = vmatpush.bf16.msra.mxu0 %v4680
    %5917 = vmatpush.bf16.msra.mxu0 %v4672
    %5918 = vmatpush.bf16.msra.mxu0 %v4664
    %5919 = vmatmul.bf16.gmra.mxu0 %v3511
    %v5920 = vpop.f32.mrf.mxu0
    %v5921 = vadd.f32 %v5832, %v5920
    %v5922 = vpop.f32.mrf.mxu0
    %v5923 = vadd.f32 %v5834, %v5922
    %5924 = vmatmul.bf16.gmra.mxu0 %v3515
    %v5925 = vpop.f32.mrf.mxu0
    %v5926 = vadd.f32 %v5837, %v5925
    %v5927 = vpop.f32.mrf.mxu0
    %v5928 = vadd.f32 %v5839, %v5927
    %5929 = vmatmul.bf16.gmra.mxu0 %v3519
    %v5930 = vpop.f32.mrf.mxu0
    %v5931 = vadd.f32 %v5842, %v5930
    %v5932 = vpop.f32.mrf.mxu0
    %v5933 = vadd.f32 %v5844, %v5932
    %5934 = vmatmul.bf16.gmra.mxu0 %v3523
    %v5935 = vpop.f32.mrf.mxu0
    %v5936 = vadd.f32 %v5847, %v5935
    %v5937 = vpop.f32.mrf.mxu0
    %v5938 = vadd.f32 %v5849, %v5937
    %5939 = vmatmul.bf16.gmra.mxu0 %v3527
    %v5940 = vpop.f32.mrf.mxu0
    %v5941 = vadd.f32 %v5852, %v5940
    %v5942 = vpop.f32.mrf.mxu0
    %v5943 = vadd.f32 %v5854, %v5942
    %5944 = vmatmul.bf16.gmra.mxu0 %v3531
    %v5945 = vpop.f32.mrf.mxu0
    %v5946 = vadd.f32 %v5857, %v5945
    %v5947 = vpop.f32.mrf.mxu0
    %v5948 = vadd.f32 %v5859, %v5947
    %5949 = vmatmul.bf16.gmra.mxu0 %v3535
    %v5950 = vpop.f32.mrf.mxu0
    %v5951 = vadd.f32 %v5862, %v5950
    %v5952 = vpop.f32.mrf.mxu0
    %v5953 = vadd.f32 %v5864, %v5952
    %5954 = vmatmul.bf16.gmra.mxu0 %v3539
    %v5955 = vpop.f32.mrf.mxu0
    %v5956 = vadd.f32 %v5867, %v5955
    %v5957 = vpop.f32.mrf.mxu0
    %v5958 = vadd.f32 %v5869, %v5957
    %5959 = vmatmul.bf16.gmra.mxu0 %v3543
    %v5960 = vpop.f32.mrf.mxu0
    %v5961 = vadd.f32 %v5872, %v5960
    %v5962 = vpop.f32.mrf.mxu0
    %v5963 = vadd.f32 %v5874, %v5962
    %5964 = vmatmul.bf16.gmra.mxu0 %v3547
    %v5965 = vpop.f32.mrf.mxu0
    %v5966 = vadd.f32 %v5877, %v5965
    %v5967 = vpop.f32.mrf.mxu0
    %v5968 = vadd.f32 %v5879, %v5967
    %5969 = vmatmul.bf16.gmra.mxu0 %v3551
    %v5970 = vpop.f32.mrf.mxu0
    %v5971 = vadd.f32 %v5882, %v5970
    %v5972 = vpop.f32.mrf.mxu0
    %v5973 = vadd.f32 %v5884, %v5972
    %5974 = vmatmul.bf16.gmra.mxu0 %v3555
    %v5975 = vpop.f32.mrf.mxu0
    %v5976 = vadd.f32 %v5887, %v5975
    %v5977 = vpop.f32.mrf.mxu0
    %v5978 = vadd.f32 %v5889, %v5977
    %5979 = vmatmul.bf16.gmra.mxu0 %v3559
    %v5980 = vpop.f32.mrf.mxu0
    %v5981 = vadd.f32 %v5892, %v5980
    %v5982 = vpop.f32.mrf.mxu0
    %v5983 = vadd.f32 %v5894, %v5982
    %5984 = vmatmul.bf16.gmra.mxu0 %v3563
    %v5985 = vpop.f32.mrf.mxu0
    %v5986 = vadd.f32 %v5897, %v5985
    %v5987 = vpop.f32.mrf.mxu0
    %v5988 = vadd.f32 %v5899, %v5987
    %5989 = vmatmul.bf16.gmra.mxu0 %v3567
    %v5990 = vpop.f32.mrf.mxu0
    %v5991 = vadd.f32 %v5902, %v5990
    %v5992 = vpop.f32.mrf.mxu0
    %v5993 = vadd.f32 %v5904, %v5992
    %5994 = vmatmul.bf16.gmra.mxu0 %v3571
    %v5995 = vpop.f32.mrf.mxu0
    %v5996 = vadd.f32 %v5907, %v5995
    %v5997 = vpop.f32.mrf.mxu0
    %v5998 = vadd.f32 %v5909, %v5997
    %5999 = vdwg.mxu0
    %6000 = vmatpush.bf16.msra.mxu0 %v4784
    %6001 = vmatpush.bf16.msra.mxu0 %v4776
    %6002 = vmatpush.bf16.msra.mxu0 %v4768
    %6003 = vmatpush.bf16.msra.mxu0 %v4760
    %6004 = vmatpush.bf16.msra.mxu0 %v4752
    %6005 = vmatpush.bf16.msra.mxu0 %v4744
    %6006 = vmatpush.bf16.msra.mxu0 %v4736
    %6007 = vmatpush.bf16.msra.mxu0 %v4728
    %6008 = vmatmul.bf16.gmra.mxu0 %v3512
    %v6009 = vpop.f32.mrf.mxu0
    %v6010 = vadd.f32 %v5921, %v6009
    %v6011 = vpop.f32.mrf.mxu0
    %v6012 = vadd.f32 %v5923, %v6011
    %6013 = vmatmul.bf16.gmra.mxu0 %v3516
    %v6014 = vpop.f32.mrf.mxu0
    %v6015 = vadd.f32 %v5926, %v6014
    %v6016 = vpop.f32.mrf.mxu0
    %v6017 = vadd.f32 %v5928, %v6016
    %6018 = vmatmul.bf16.gmra.mxu0 %v3520
    %v6019 = vpop.f32.mrf.mxu0
    %v6020 = vadd.f32 %v5931, %v6019
    %v6021 = vpop.f32.mrf.mxu0
    %v6022 = vadd.f32 %v5933, %v6021
    %6023 = vmatmul.bf16.gmra.mxu0 %v3524
    %v6024 = vpop.f32.mrf.mxu0
    %v6025 = vadd.f32 %v5936, %v6024
    %v6026 = vpop.f32.mrf.mxu0
    %v6027 = vadd.f32 %v5938, %v6026
    %6028 = vmatmul.bf16.gmra.mxu0 %v3528
    %v6029 = vpop.f32.mrf.mxu0
    %v6030 = vadd.f32 %v5941, %v6029
    %v6031 = vpop.f32.mrf.mxu0
    %v6032 = vadd.f32 %v5943, %v6031
    %6033 = vmatmul.bf16.gmra.mxu0 %v3532
    %v6034 = vpop.f32.mrf.mxu0
    %v6035 = vadd.f32 %v5946, %v6034
    %v6036 = vpop.f32.mrf.mxu0
    %v6037 = vadd.f32 %v5948, %v6036
    %6038 = vmatmul.bf16.gmra.mxu0 %v3536
    %v6039 = vpop.f32.mrf.mxu0
    %v6040 = vadd.f32 %v5951, %v6039
    %v6041 = vpop.f32.mrf.mxu0
    %v6042 = vadd.f32 %v5953, %v6041
    %6043 = vmatmul.bf16.gmra.mxu0 %v3540
    %v6044 = vpop.f32.mrf.mxu0
    %v6045 = vadd.f32 %v5956, %v6044
    %v6046 = vpop.f32.mrf.mxu0
    %v6047 = vadd.f32 %v5958, %v6046
    %6048 = vmatmul.bf16.gmra.mxu0 %v3544
    %v6049 = vpop.f32.mrf.mxu0
    %v6050 = vadd.f32 %v5961, %v6049
    %v6051 = vpop.f32.mrf.mxu0
    %v6052 = vadd.f32 %v5963, %v6051
    %6053 = vmatmul.bf16.gmra.mxu0 %v3548
    %v6054 = vpop.f32.mrf.mxu0
    %v6055 = vadd.f32 %v5966, %v6054
    %v6056 = vpop.f32.mrf.mxu0
    %v6057 = vadd.f32 %v5968, %v6056
    %6058 = vmatmul.bf16.gmra.mxu0 %v3552
    %v6059 = vpop.f32.mrf.mxu0
    %v6060 = vadd.f32 %v5971, %v6059
    %v6061 = vpop.f32.mrf.mxu0
    %v6062 = vadd.f32 %v5973, %v6061
    %6063 = vmatmul.bf16.gmra.mxu0 %v3556
    %v6064 = vpop.f32.mrf.mxu0
    %v6065 = vadd.f32 %v5976, %v6064
    %v6066 = vpop.f32.mrf.mxu0
    %v6067 = vadd.f32 %v5978, %v6066
    %6068 = vmatmul.bf16.gmra.mxu0 %v3560
    %v6069 = vpop.f32.mrf.mxu0
    %v6070 = vadd.f32 %v5981, %v6069
    %v6071 = vpop.f32.mrf.mxu0
    %v6072 = vadd.f32 %v5983, %v6071
    %6073 = vmatmul.bf16.gmra.mxu0 %v3564
    %v6074 = vpop.f32.mrf.mxu0
    %v6075 = vadd.f32 %v5986, %v6074
    %v6076 = vpop.f32.mrf.mxu0
    %v6077 = vadd.f32 %v5988, %v6076
    %6078 = vmatmul.bf16.gmra.mxu0 %v3568
    %v6079 = vpop.f32.mrf.mxu0
    %v6080 = vadd.f32 %v5991, %v6079
    %v6081 = vpop.f32.mrf.mxu0
    %v6082 = vadd.f32 %v5993, %v6081
    %6083 = vmatmul.bf16.gmra.mxu0 %v3572
    %v6084 = vpop.f32.mrf.mxu0
    %v6085 = vadd.f32 %v5996, %v6084
    %v6086 = vpop.f32.mrf.mxu0
    %v6087 = vadd.f32 %v5998, %v6086
    %6088 = vdwg.mxu0
    %6089 = vmatpush.bf16.msra.mxu0 %v4848
    %6090 = vmatpush.bf16.msra.mxu0 %v4840
    %6091 = vmatpush.bf16.msra.mxu0 %v4832
    %6092 = vmatpush.bf16.msra.mxu0 %v4824
    %6093 = vmatpush.bf16.msra.mxu0 %v4816
    %6094 = vmatpush.bf16.msra.mxu0 %v4808
    %6095 = vmatpush.bf16.msra.mxu0 %v4800
    %6096 = vmatpush.bf16.msra.mxu0 %v4792
    %6097 = vmatmul.bf16.gmra.mxu0 %v3513
    %v6098 = vpop.f32.mrf.mxu0
    %v6099 = vadd.f32 %v6010, %v6098
    %v6100 = vpop.f32.mrf.mxu0
    %v6101 = vadd.f32 %v6012, %v6100
    %6102 = vmatmul.bf16.gmra.mxu0 %v3517
    %v6103 = vpop.f32.mrf.mxu0
    %v6104 = vadd.f32 %v6015, %v6103
    %v6105 = vpop.f32.mrf.mxu0
    %v6106 = vadd.f32 %v6017, %v6105
    %6107 = vmatmul.bf16.gmra.mxu0 %v3521
    %v6108 = vpop.f32.mrf.mxu0
    %v6109 = vadd.f32 %v6020, %v6108
    %v6110 = vpop.f32.mrf.mxu0
    %v6111 = vadd.f32 %v6022, %v6110
    %6112 = vmatmul.bf16.gmra.mxu0 %v3525
    %v6113 = vpop.f32.mrf.mxu0
    %v6114 = vadd.f32 %v6025, %v6113
    %v6115 = vpop.f32.mrf.mxu0
    %v6116 = vadd.f32 %v6027, %v6115
    %6117 = vmatmul.bf16.gmra.mxu0 %v3529
    %v6118 = vpop.f32.mrf.mxu0
    %v6119 = vadd.f32 %v6030, %v6118
    %v6120 = vpop.f32.mrf.mxu0
    %v6121 = vadd.f32 %v6032, %v6120
    %6122 = vmatmul.bf16.gmra.mxu0 %v3533
    %v6123 = vpop.f32.mrf.mxu0
    %v6124 = vadd.f32 %v6035, %v6123
    %v6125 = vpop.f32.mrf.mxu0
    %v6126 = vadd.f32 %v6037, %v6125
    %6127 = vmatmul.bf16.gmra.mxu0 %v3537
    %v6128 = vpop.f32.mrf.mxu0
    %v6129 = vadd.f32 %v6040, %v6128
    %v6130 = vpop.f32.mrf.mxu0
    %v6131 = vadd.f32 %v6042, %v6130
    %6132 = vmatmul.bf16.gmra.mxu0 %v3541
    %v6133 = vpop.f32.mrf.mxu0
    %v6134 = vadd.f32 %v6045, %v6133
    %v6135 = vpop.f32.mrf.mxu0
    %v6136 = vadd.f32 %v6047, %v6135
    %6137 = vmatmul.bf16.gmra.mxu0 %v3545
    %v6138 = vpop.f32.mrf.mxu0
    %v6139 = vadd.f32 %v6050, %v6138
    %v6140 = vpop.f32.mrf.mxu0
    %v6141 = vadd.f32 %v6052, %v6140
    %6142 = vmatmul.bf16.gmra.mxu0 %v3549
    %v6143 = vpop.f32.mrf.mxu0
    %v6144 = vadd.f32 %v6055, %v6143
    %v6145 = vpop.f32.mrf.mxu0
    %v6146 = vadd.f32 %v6057, %v6145
    %6147 = vmatmul.bf16.gmra.mxu0 %v3553
    %v6148 = vpop.f32.mrf.mxu0
    %v6149 = vadd.f32 %v6060, %v6148
    %v6150 = vpop.f32.mrf.mxu0
    %v6151 = vadd.f32 %v6062, %v6150
    %6152 = vmatmul.bf16.gmra.mxu0 %v3557
    %v6153 = vpop.f32.mrf.mxu0
    %v6154 = vadd.f32 %v6065, %v6153
    %v6155 = vpop.f32.mrf.mxu0
    %v6156 = vadd.f32 %v6067, %v6155
    %6157 = vmatmul.bf16.gmra.mxu0 %v3561
    %v6158 = vpop.f32.mrf.mxu0
    %v6159 = vadd.f32 %v6070, %v6158
    %v6160 = vpop.f32.mrf.mxu0
    %v6161 = vadd.f32 %v6072, %v6160
    %6162 = vmatmul.bf16.gmra.mxu0 %v3565
    %v6163 = vpop.f32.mrf.mxu0
    %v6164 = vadd.f32 %v6075, %v6163
    %v6165 = vpop.f32.mrf.mxu0
    %v6166 = vadd.f32 %v6077, %v6165
    %6167 = vmatmul.bf16.gmra.mxu0 %v3569
    %v6168 = vpop.f32.mrf.mxu0
    %v6169 = vadd.f32 %v6080, %v6168
    %v6170 = vpop.f32.mrf.mxu0
    %v6171 = vadd.f32 %v6082, %v6170
    %6172 = vmatmul.bf16.gmra.mxu0 %v3573
    %v6173 = vpop.f32.mrf.mxu0
    %v6174 = vadd.f32 %v6085, %v6173
    %v6175 = vpop.f32.mrf.mxu0
    %v6176 = vadd.f32 %v6087, %v6175
    %6177 = vdwg.mxu0
    %6178 = vmatpush.bf16.msra.mxu0 %v4657
    %6179 = vmatpush.bf16.msra.mxu0 %v4649
    %6180 = vmatpush.bf16.msra.mxu0 %v4641
    %6181 = vmatpush.bf16.msra.mxu0 %v4633
    %6182 = vmatpush.bf16.msra.mxu0 %v4625
    %6183 = vmatpush.bf16.msra.mxu0 %v4617
    %6184 = vmatpush.bf16.msra.mxu0 %v4609
    %6185 = vmatpush.bf16.msra.mxu0 %v4601
    %6186 = vmatmul.bf16.gmra.mxu0 %v3510
    %v6187 = vpop.f32.mrf.mxu0
    %v6188 = vadd.f32 0.0, %v6187
    %v6189 = vpop.f32.mrf.mxu0
    %v6190 = vadd.f32 0.0, %v6189
    %6191 = vmatmul.bf16.gmra.mxu0 %v3514
    %v6192 = vpop.f32.mrf.mxu0
    %v6193 = vadd.f32 0.0, %v6192
    %v6194 = vpop.f32.mrf.mxu0
    %v6195 = vadd.f32 0.0, %v6194
    %6196 = vmatmul.bf16.gmra.mxu0 %v3518
    %v6197 = vpop.f32.mrf.mxu0
    %v6198 = vadd.f32 0.0, %v6197
    %v6199 = vpop.f32.mrf.mxu0
    %v6200 = vadd.f32 0.0, %v6199
    %6201 = vmatmul.bf16.gmra.mxu0 %v3522
    %v6202 = vpop.f32.mrf.mxu0
    %v6203 = vadd.f32 0.0, %v6202
    %v6204 = vpop.f32.mrf.mxu0
    %v6205 = vadd.f32 0.0, %v6204
    %6206 = vmatmul.bf16.gmra.mxu0 %v3526
    %v6207 = vpop.f32.mrf.mxu0
    %v6208 = vadd.f32 0.0, %v6207
    %v6209 = vpop.f32.mrf.mxu0
    %v6210 = vadd.f32 0.0, %v6209
    %6211 = vmatmul.bf16.gmra.mxu0 %v3530
    %v6212 = vpop.f32.mrf.mxu0
    %v6213 = vadd.f32 0.0, %v6212
    %v6214 = vpop.f32.mrf.mxu0
    %v6215 = vadd.f32 0.0, %v6214
    %6216 = vmatmul.bf16.gmra.mxu0 %v3534
    %v6217 = vpop.f32.mrf.mxu0
    %v6218 = vadd.f32 0.0, %v6217
    %v6219 = vpop.f32.mrf.mxu0
    %v6220 = vadd.f32 0.0, %v6219
    %6221 = vmatmul.bf16.gmra.mxu0 %v3538
    %v6222 = vpop.f32.mrf.mxu0
    %v6223 = vadd.f32 0.0, %v6222
    %v6224 = vpop.f32.mrf.mxu0
    %v6225 = vadd.f32 0.0, %v6224
    %6226 = vmatmul.bf16.gmra.mxu0 %v3542
    %v6227 = vpop.f32.mrf.mxu0
    %v6228 = vadd.f32 0.0, %v6227
    %v6229 = vpop.f32.mrf.mxu0
    %v6230 = vadd.f32 0.0, %v6229
    %6231 = vmatmul.bf16.gmra.mxu0 %v3546
    %v6232 = vpop.f32.mrf.mxu0
    %v6233 = vadd.f32 0.0, %v6232
    %v6234 = vpop.f32.mrf.mxu0
    %v6235 = vadd.f32 0.0, %v6234
    %6236 = vmatmul.bf16.gmra.mxu0 %v3550
    %v6237 = vpop.f32.mrf.mxu0
    %v6238 = vadd.f32 0.0, %v6237
    %v6239 = vpop.f32.mrf.mxu0
    %v6240 = vadd.f32 0.0, %v6239
    %6241 = vmatmul.bf16.gmra.mxu0 %v3554
    %v6242 = vpop.f32.mrf.mxu0
    %v6243 = vadd.f32 0.0, %v6242
    %v6244 = vpop.f32.mrf.mxu0
    %v6245 = vadd.f32 0.0, %v6244
    %6246 = vmatmul.bf16.gmra.mxu0 %v3558
    %v6247 = vpop.f32.mrf.mxu0
    %v6248 = vadd.f32 0.0, %v6247
    %v6249 = vpop.f32.mrf.mxu0
    %v6250 = vadd.f32 0.0, %v6249
    %6251 = vmatmul.bf16.gmra.mxu0 %v3562
    %v6252 = vpop.f32.mrf.mxu0
    %v6253 = vadd.f32 0.0, %v6252
    %v6254 = vpop.f32.mrf.mxu0
    %v6255 = vadd.f32 0.0, %v6254
    %6256 = vmatmul.bf16.gmra.mxu0 %v3566
    %v6257 = vpop.f32.mrf.mxu0
    %v6258 = vadd.f32 0.0, %v6257
    %v6259 = vpop.f32.mrf.mxu0
    %v6260 = vadd.f32 0.0, %v6259
    %6261 = vmatmul.bf16.gmra.mxu0 %v3570
    %v6262 = vpop.f32.mrf.mxu0
    %v6263 = vadd.f32 0.0, %v6262
    %v6264 = vpop.f32.mrf.mxu0
    %v6265 = vadd.f32 0.0, %v6264
    %6266 = vdwg.mxu0
    %6267 = vmatpush.bf16.msra.mxu0 %v4721
    %6268 = vmatpush.bf16.msra.mxu0 %v4713
    %6269 = vmatpush.bf16.msra.mxu0 %v4705
    %6270 = vmatpush.bf16.msra.mxu0 %v4697
    %6271 = vmatpush.bf16.msra.mxu0 %v4689
    %6272 = vmatpush.bf16.msra.mxu0 %v4681
    %6273 = vmatpush.bf16.msra.mxu0 %v4673
    %6274 = vmatpush.bf16.msra.mxu0 %v4665
    %6275 = vmatmul.bf16.gmra.mxu0 %v3511
    %v6276 = vpop.f32.mrf.mxu0
    %v6277 = vadd.f32 %v6188, %v6276
    %v6278 = vpop.f32.mrf.mxu0
    %v6279 = vadd.f32 %v6190, %v6278
    %6280 = vmatmul.bf16.gmra.mxu0 %v3515
    %v6281 = vpop.f32.mrf.mxu0
    %v6282 = vadd.f32 %v6193, %v6281
    %v6283 = vpop.f32.mrf.mxu0
    %v6284 = vadd.f32 %v6195, %v6283
    %6285 = vmatmul.bf16.gmra.mxu0 %v3519
    %v6286 = vpop.f32.mrf.mxu0
    %v6287 = vadd.f32 %v6198, %v6286
    %v6288 = vpop.f32.mrf.mxu0
    %v6289 = vadd.f32 %v6200, %v6288
    %6290 = vmatmul.bf16.gmra.mxu0 %v3523
    %v6291 = vpop.f32.mrf.mxu0
    %v6292 = vadd.f32 %v6203, %v6291
    %v6293 = vpop.f32.mrf.mxu0
    %v6294 = vadd.f32 %v6205, %v6293
    %6295 = vmatmul.bf16.gmra.mxu0 %v3527
    %v6296 = vpop.f32.mrf.mxu0
    %v6297 = vadd.f32 %v6208, %v6296
    %v6298 = vpop.f32.mrf.mxu0
    %v6299 = vadd.f32 %v6210, %v6298
    %6300 = vmatmul.bf16.gmra.mxu0 %v3531
    %v6301 = vpop.f32.mrf.mxu0
    %v6302 = vadd.f32 %v6213, %v6301
    %v6303 = vpop.f32.mrf.mxu0
    %v6304 = vadd.f32 %v6215, %v6303
    %6305 = vmatmul.bf16.gmra.mxu0 %v3535
    %v6306 = vpop.f32.mrf.mxu0
    %v6307 = vadd.f32 %v6218, %v6306
    %v6308 = vpop.f32.mrf.mxu0
    %v6309 = vadd.f32 %v6220, %v6308
    %6310 = vmatmul.bf16.gmra.mxu0 %v3539
    %v6311 = vpop.f32.mrf.mxu0
    %v6312 = vadd.f32 %v6223, %v6311
    %v6313 = vpop.f32.mrf.mxu0
    %v6314 = vadd.f32 %v6225, %v6313
    %6315 = vmatmul.bf16.gmra.mxu0 %v3543
    %v6316 = vpop.f32.mrf.mxu0
    %v6317 = vadd.f32 %v6228, %v6316
    %v6318 = vpop.f32.mrf.mxu0
    %v6319 = vadd.f32 %v6230, %v6318
    %6320 = vmatmul.bf16.gmra.mxu0 %v3547
    %v6321 = vpop.f32.mrf.mxu0
    %v6322 = vadd.f32 %v6233, %v6321
    %v6323 = vpop.f32.mrf.mxu0
    %v6324 = vadd.f32 %v6235, %v6323
    %6325 = vmatmul.bf16.gmra.mxu0 %v3551
    %v6326 = vpop.f32.mrf.mxu0
    %v6327 = vadd.f32 %v6238, %v6326
    %v6328 = vpop.f32.mrf.mxu0
    %v6329 = vadd.f32 %v6240, %v6328
    %6330 = vmatmul.bf16.gmra.mxu0 %v3555
    %v6331 = vpop.f32.mrf.mxu0
    %v6332 = vadd.f32 %v6243, %v6331
    %v6333 = vpop.f32.mrf.mxu0
    %v6334 = vadd.f32 %v6245, %v6333
    %6335 = vmatmul.bf16.gmra.mxu0 %v3559
    %v6336 = vpop.f32.mrf.mxu0
    %v6337 = vadd.f32 %v6248, %v6336
    %v6338 = vpop.f32.mrf.mxu0
    %v6339 = vadd.f32 %v6250, %v6338
    %6340 = vmatmul.bf16.gmra.mxu0 %v3563
    %v6341 = vpop.f32.mrf.mxu0
    %v6342 = vadd.f32 %v6253, %v6341
    %v6343 = vpop.f32.mrf.mxu0
    %v6344 = vadd.f32 %v6255, %v6343
    %6345 = vmatmul.bf16.gmra.mxu0 %v3567
    %v6346 = vpop.f32.mrf.mxu0
    %v6347 = vadd.f32 %v6258, %v6346
    %v6348 = vpop.f32.mrf.mxu0
    %v6349 = vadd.f32 %v6260, %v6348
    %6350 = vmatmul.bf16.gmra.mxu0 %v3571
    %v6351 = vpop.f32.mrf.mxu0
    %v6352 = vadd.f32 %v6263, %v6351
    %v6353 = vpop.f32.mrf.mxu0
    %v6354 = vadd.f32 %v6265, %v6353
    %6355 = vdwg.mxu0
    %6356 = vmatpush.bf16.msra.mxu0 %v4785
    %6357 = vmatpush.bf16.msra.mxu0 %v4777
    %6358 = vmatpush.bf16.msra.mxu0 %v4769
    %6359 = vmatpush.bf16.msra.mxu0 %v4761
    %6360 = vmatpush.bf16.msra.mxu0 %v4753
    %6361 = vmatpush.bf16.msra.mxu0 %v4745
    %6362 = vmatpush.bf16.msra.mxu0 %v4737
    %6363 = vmatpush.bf16.msra.mxu0 %v4729
    %6364 = vmatmul.bf16.gmra.mxu0 %v3512
    %v6365 = vpop.f32.mrf.mxu0
    %v6366 = vadd.f32 %v6277, %v6365
    %v6367 = vpop.f32.mrf.mxu0
    %v6368 = vadd.f32 %v6279, %v6367
    %6369 = vmatmul.bf16.gmra.mxu0 %v3516
    %v6370 = vpop.f32.mrf.mxu0
    %v6371 = vadd.f32 %v6282, %v6370
    %v6372 = vpop.f32.mrf.mxu0
    %v6373 = vadd.f32 %v6284, %v6372
    %6374 = vmatmul.bf16.gmra.mxu0 %v3520
    %v6375 = vpop.f32.mrf.mxu0
    %v6376 = vadd.f32 %v6287, %v6375
    %v6377 = vpop.f32.mrf.mxu0
    %v6378 = vadd.f32 %v6289, %v6377
    %6379 = vmatmul.bf16.gmra.mxu0 %v3524
    %v6380 = vpop.f32.mrf.mxu0
    %v6381 = vadd.f32 %v6292, %v6380
    %v6382 = vpop.f32.mrf.mxu0
    %v6383 = vadd.f32 %v6294, %v6382
    %6384 = vmatmul.bf16.gmra.mxu0 %v3528
    %v6385 = vpop.f32.mrf.mxu0
    %v6386 = vadd.f32 %v6297, %v6385
    %v6387 = vpop.f32.mrf.mxu0
    %v6388 = vadd.f32 %v6299, %v6387
    %6389 = vmatmul.bf16.gmra.mxu0 %v3532
    %v6390 = vpop.f32.mrf.mxu0
    %v6391 = vadd.f32 %v6302, %v6390
    %v6392 = vpop.f32.mrf.mxu0
    %v6393 = vadd.f32 %v6304, %v6392
    %6394 = vmatmul.bf16.gmra.mxu0 %v3536
    %v6395 = vpop.f32.mrf.mxu0
    %v6396 = vadd.f32 %v6307, %v6395
    %v6397 = vpop.f32.mrf.mxu0
    %v6398 = vadd.f32 %v6309, %v6397
    %6399 = vmatmul.bf16.gmra.mxu0 %v3540
    %v6400 = vpop.f32.mrf.mxu0
    %v6401 = vadd.f32 %v6312, %v6400
    %v6402 = vpop.f32.mrf.mxu0
    %v6403 = vadd.f32 %v6314, %v6402
    %6404 = vmatmul.bf16.gmra.mxu0 %v3544
    %v6405 = vpop.f32.mrf.mxu0
    %v6406 = vadd.f32 %v6317, %v6405
    %v6407 = vpop.f32.mrf.mxu0
    %v6408 = vadd.f32 %v6319, %v6407
    %6409 = vmatmul.bf16.gmra.mxu0 %v3548
    %v6410 = vpop.f32.mrf.mxu0
    %v6411 = vadd.f32 %v6322, %v6410
    %v6412 = vpop.f32.mrf.mxu0
    %v6413 = vadd.f32 %v6324, %v6412
    %6414 = vmatmul.bf16.gmra.mxu0 %v3552
    %v6415 = vpop.f32.mrf.mxu0
    %v6416 = vadd.f32 %v6327, %v6415
    %v6417 = vpop.f32.mrf.mxu0
    %v6418 = vadd.f32 %v6329, %v6417
    %6419 = vmatmul.bf16.gmra.mxu0 %v3556
    %v6420 = vpop.f32.mrf.mxu0
    %v6421 = vadd.f32 %v6332, %v6420
    %v6422 = vpop.f32.mrf.mxu0
    %v6423 = vadd.f32 %v6334, %v6422
    %6424 = vmatmul.bf16.gmra.mxu0 %v3560
    %v6425 = vpop.f32.mrf.mxu0
    %v6426 = vadd.f32 %v6337, %v6425
    %v6427 = vpop.f32.mrf.mxu0
    %v6428 = vadd.f32 %v6339, %v6427
    %6429 = vmatmul.bf16.gmra.mxu0 %v3564
    %v6430 = vpop.f32.mrf.mxu0
    %v6431 = vadd.f32 %v6342, %v6430
    %v6432 = vpop.f32.mrf.mxu0
    %v6433 = vadd.f32 %v6344, %v6432
    %6434 = vmatmul.bf16.gmra.mxu0 %v3568
    %v6435 = vpop.f32.mrf.mxu0
    %v6436 = vadd.f32 %v6347, %v6435
    %v6437 = vpop.f32.mrf.mxu0
    %v6438 = vadd.f32 %v6349, %v6437
    %6439 = vmatmul.bf16.gmra.mxu0 %v3572
    %v6440 = vpop.f32.mrf.mxu0
    %v6441 = vadd.f32 %v6352, %v6440
    %v6442 = vpop.f32.mrf.mxu0
    %v6443 = vadd.f32 %v6354, %v6442
    %6444 = vdwg.mxu0
    %6445 = vmatpush.bf16.msra.mxu0 %v4849
    %6446 = vmatpush.bf16.msra.mxu0 %v4841
    %6447 = vmatpush.bf16.msra.mxu0 %v4833
    %6448 = vmatpush.bf16.msra.mxu0 %v4825
    %6449 = vmatpush.bf16.msra.mxu0 %v4817
    %6450 = vmatpush.bf16.msra.mxu0 %v4809
    %6451 = vmatpush.bf16.msra.mxu0 %v4801
    %6452 = vmatpush.bf16.msra.mxu0 %v4793
    %6453 = vmatmul.bf16.gmra.mxu0 %v3513
    %v6454 = vpop.f32.mrf.mxu0
    %v6455 = vadd.f32 %v6366, %v6454
    %v6456 = vpop.f32.mrf.mxu0
    %v6457 = vadd.f32 %v6368, %v6456
    %6458 = vmatmul.bf16.gmra.mxu0 %v3517
    %v6459 = vpop.f32.mrf.mxu0
    %v6460 = vadd.f32 %v6371, %v6459
    %v6461 = vpop.f32.mrf.mxu0
    %v6462 = vadd.f32 %v6373, %v6461
    %6463 = vmatmul.bf16.gmra.mxu0 %v3521
    %v6464 = vpop.f32.mrf.mxu0
    %v6465 = vadd.f32 %v6376, %v6464
    %v6466 = vpop.f32.mrf.mxu0
    %v6467 = vadd.f32 %v6378, %v6466
    %6468 = vmatmul.bf16.gmra.mxu0 %v3525
    %v6469 = vpop.f32.mrf.mxu0
    %v6470 = vadd.f32 %v6381, %v6469
    %v6471 = vpop.f32.mrf.mxu0
    %v6472 = vadd.f32 %v6383, %v6471
    %6473 = vmatmul.bf16.gmra.mxu0 %v3529
    %v6474 = vpop.f32.mrf.mxu0
    %v6475 = vadd.f32 %v6386, %v6474
    %v6476 = vpop.f32.mrf.mxu0
    %v6477 = vadd.f32 %v6388, %v6476
    %6478 = vmatmul.bf16.gmra.mxu0 %v3533
    %v6479 = vpop.f32.mrf.mxu0
    %v6480 = vadd.f32 %v6391, %v6479
    %v6481 = vpop.f32.mrf.mxu0
    %v6482 = vadd.f32 %v6393, %v6481
    %6483 = vmatmul.bf16.gmra.mxu0 %v3537
    %v6484 = vpop.f32.mrf.mxu0
    %v6485 = vadd.f32 %v6396, %v6484
    %v6486 = vpop.f32.mrf.mxu0
    %v6487 = vadd.f32 %v6398, %v6486
    %6488 = vmatmul.bf16.gmra.mxu0 %v3541
    %v6489 = vpop.f32.mrf.mxu0
    %v6490 = vadd.f32 %v6401, %v6489
    %v6491 = vpop.f32.mrf.mxu0
    %v6492 = vadd.f32 %v6403, %v6491
    %6493 = vmatmul.bf16.gmra.mxu0 %v3545
    %v6494 = vpop.f32.mrf.mxu0
    %v6495 = vadd.f32 %v6406, %v6494
    %v6496 = vpop.f32.mrf.mxu0
    %v6497 = vadd.f32 %v6408, %v6496
    %6498 = vmatmul.bf16.gmra.mxu0 %v3549
    %v6499 = vpop.f32.mrf.mxu0
    %v6500 = vadd.f32 %v6411, %v6499
    %v6501 = vpop.f32.mrf.mxu0
    %v6502 = vadd.f32 %v6413, %v6501
    %6503 = vmatmul.bf16.gmra.mxu0 %v3553
    %v6504 = vpop.f32.mrf.mxu0
    %v6505 = vadd.f32 %v6416, %v6504
    %v6506 = vpop.f32.mrf.mxu0
    %v6507 = vadd.f32 %v6418, %v6506
    %6508 = vmatmul.bf16.gmra.mxu0 %v3557
    %v6509 = vpop.f32.mrf.mxu0
    %v6510 = vadd.f32 %v6421, %v6509
    %v6511 = vpop.f32.mrf.mxu0
    %v6512 = vadd.f32 %v6423, %v6511
    %6513 = vmatmul.bf16.gmra.mxu0 %v3561
    %v6514 = vpop.f32.mrf.mxu0
    %v6515 = vadd.f32 %v6426, %v6514
    %v6516 = vpop.f32.mrf.mxu0
    %v6517 = vadd.f32 %v6428, %v6516
    %6518 = vmatmul.bf16.gmra.mxu0 %v3565
    %v6519 = vpop.f32.mrf.mxu0
    %v6520 = vadd.f32 %v6431, %v6519
    %v6521 = vpop.f32.mrf.mxu0
    %v6522 = vadd.f32 %v6433, %v6521
    %6523 = vmatmul.bf16.gmra.mxu0 %v3569
    %v6524 = vpop.f32.mrf.mxu0
    %v6525 = vadd.f32 %v6436, %v6524
    %v6526 = vpop.f32.mrf.mxu0
    %v6527 = vadd.f32 %v6438, %v6526
    %6528 = vmatmul.bf16.gmra.mxu0 %v3573
    %v6529 = vpop.f32.mrf.mxu0
    %v6530 = vadd.f32 %v6441, %v6529
    %v6531 = vpop.f32.mrf.mxu0
    %v6532 = vadd.f32 %v6443, %v6531
    %6533 = vdwg.mxu0
    %6534 = vmatpush.bf16.msra.mxu0 %v4658
    %6535 = vmatpush.bf16.msra.mxu0 %v4650
    %6536 = vmatpush.bf16.msra.mxu0 %v4642
    %6537 = vmatpush.bf16.msra.mxu0 %v4634
    %6538 = vmatpush.bf16.msra.mxu0 %v4626
    %6539 = vmatpush.bf16.msra.mxu0 %v4618
    %6540 = vmatpush.bf16.msra.mxu0 %v4610
    %6541 = vmatpush.bf16.msra.mxu0 %v4602
    %6542 = vmatmul.bf16.gmra.mxu0 %v3510
    %v6543 = vpop.f32.mrf.mxu0
    %v6544 = vadd.f32 0.0, %v6543
    %v6545 = vpop.f32.mrf.mxu0
    %v6546 = vadd.f32 0.0, %v6545
    %6547 = vmatmul.bf16.gmra.mxu0 %v3514
    %v6548 = vpop.f32.mrf.mxu0
    %v6549 = vadd.f32 0.0, %v6548
    %v6550 = vpop.f32.mrf.mxu0
    %v6551 = vadd.f32 0.0, %v6550
    %6552 = vmatmul.bf16.gmra.mxu0 %v3518
    %v6553 = vpop.f32.mrf.mxu0
    %v6554 = vadd.f32 0.0, %v6553
    %v6555 = vpop.f32.mrf.mxu0
    %v6556 = vadd.f32 0.0, %v6555
    %6557 = vmatmul.bf16.gmra.mxu0 %v3522
    %v6558 = vpop.f32.mrf.mxu0
    %v6559 = vadd.f32 0.0, %v6558
    %v6560 = vpop.f32.mrf.mxu0
    %v6561 = vadd.f32 0.0, %v6560
    %6562 = vmatmul.bf16.gmra.mxu0 %v3526
    %v6563 = vpop.f32.mrf.mxu0
    %v6564 = vadd.f32 0.0, %v6563
    %v6565 = vpop.f32.mrf.mxu0
    %v6566 = vadd.f32 0.0, %v6565
    %6567 = vmatmul.bf16.gmra.mxu0 %v3530
    %v6568 = vpop.f32.mrf.mxu0
    %v6569 = vadd.f32 0.0, %v6568
    %v6570 = vpop.f32.mrf.mxu0
    %v6571 = vadd.f32 0.0, %v6570
    %6572 = vmatmul.bf16.gmra.mxu0 %v3534
    %v6573 = vpop.f32.mrf.mxu0
    %v6574 = vadd.f32 0.0, %v6573
    %v6575 = vpop.f32.mrf.mxu0
    %v6576 = vadd.f32 0.0, %v6575
    %6577 = vmatmul.bf16.gmra.mxu0 %v3538
    %v6578 = vpop.f32.mrf.mxu0
    %v6579 = vadd.f32 0.0, %v6578
    %v6580 = vpop.f32.mrf.mxu0
    %v6581 = vadd.f32 0.0, %v6580
    %6582 = vmatmul.bf16.gmra.mxu0 %v3542
    %v6583 = vpop.f32.mrf.mxu0
    %v6584 = vadd.f32 0.0, %v6583
    %v6585 = vpop.f32.mrf.mxu0
    %v6586 = vadd.f32 0.0, %v6585
    %6587 = vmatmul.bf16.gmra.mxu0 %v3546
    %v6588 = vpop.f32.mrf.mxu0
    %v6589 = vadd.f32 0.0, %v6588
    %v6590 = vpop.f32.mrf.mxu0
    %v6591 = vadd.f32 0.0, %v6590
    %6592 = vmatmul.bf16.gmra.mxu0 %v3550
    %v6593 = vpop.f32.mrf.mxu0
    %v6594 = vadd.f32 0.0, %v6593
    %v6595 = vpop.f32.mrf.mxu0
    %v6596 = vadd.f32 0.0, %v6595
    %6597 = vmatmul.bf16.gmra.mxu0 %v3554
    %v6598 = vpop.f32.mrf.mxu0
    %v6599 = vadd.f32 0.0, %v6598
    %v6600 = vpop.f32.mrf.mxu0
    %v6601 = vadd.f32 0.0, %v6600
    %6602 = vmatmul.bf16.gmra.mxu0 %v3558
    %v6603 = vpop.f32.mrf.mxu0
    %v6604 = vadd.f32 0.0, %v6603
    %v6605 = vpop.f32.mrf.mxu0
    %v6606 = vadd.f32 0.0, %v6605
    %6607 = vmatmul.bf16.gmra.mxu0 %v3562
    %v6608 = vpop.f32.mrf.mxu0
    %v6609 = vadd.f32 0.0, %v6608
    %v6610 = vpop.f32.mrf.mxu0
    %v6611 = vadd.f32 0.0, %v6610
    %6612 = vmatmul.bf16.gmra.mxu0 %v3566
    %v6613 = vpop.f32.mrf.mxu0
    %v6614 = vadd.f32 0.0, %v6613
    %v6615 = vpop.f32.mrf.mxu0
    %v6616 = vadd.f32 0.0, %v6615
    %6617 = vmatmul.bf16.gmra.mxu0 %v3570
    %v6618 = vpop.f32.mrf.mxu0
    %v6619 = vadd.f32 0.0, %v6618
    %v6620 = vpop.f32.mrf.mxu0
    %v6621 = vadd.f32 0.0, %v6620
    %6622 = vdwg.mxu0
    %6623 = vmatpush.bf16.msra.mxu0 %v4722
    %6624 = vmatpush.bf16.msra.mxu0 %v4714
    %6625 = vmatpush.bf16.msra.mxu0 %v4706
    %6626 = vmatpush.bf16.msra.mxu0 %v4698
    %6627 = vmatpush.bf16.msra.mxu0 %v4690
    %6628 = vmatpush.bf16.msra.mxu0 %v4682
    %6629 = vmatpush.bf16.msra.mxu0 %v4674
    %6630 = vmatpush.bf16.msra.mxu0 %v4666
    %6631 = vmatmul.bf16.gmra.mxu0 %v3511
    %v6632 = vpop.f32.mrf.mxu0
    %v6633 = vadd.f32 %v6544, %v6632
    %v6634 = vpop.f32.mrf.mxu0
    %v6635 = vadd.f32 %v6546, %v6634
    %6636 = vmatmul.bf16.gmra.mxu0 %v3515
    %v6637 = vpop.f32.mrf.mxu0
    %v6638 = vadd.f32 %v6549, %v6637
    %v6639 = vpop.f32.mrf.mxu0
    %v6640 = vadd.f32 %v6551, %v6639
    %6641 = vmatmul.bf16.gmra.mxu0 %v3519
    %v6642 = vpop.f32.mrf.mxu0
    %v6643 = vadd.f32 %v6554, %v6642
    %v6644 = vpop.f32.mrf.mxu0
    %v6645 = vadd.f32 %v6556, %v6644
    %6646 = vmatmul.bf16.gmra.mxu0 %v3523
    %v6647 = vpop.f32.mrf.mxu0
    %v6648 = vadd.f32 %v6559, %v6647
    %v6649 = vpop.f32.mrf.mxu0
    %v6650 = vadd.f32 %v6561, %v6649
    %6651 = vmatmul.bf16.gmra.mxu0 %v3527
    %v6652 = vpop.f32.mrf.mxu0
    %v6653 = vadd.f32 %v6564, %v6652
    %v6654 = vpop.f32.mrf.mxu0
    %v6655 = vadd.f32 %v6566, %v6654
    %6656 = vmatmul.bf16.gmra.mxu0 %v3531
    %v6657 = vpop.f32.mrf.mxu0
    %v6658 = vadd.f32 %v6569, %v6657
    %v6659 = vpop.f32.mrf.mxu0
    %v6660 = vadd.f32 %v6571, %v6659
    %6661 = vmatmul.bf16.gmra.mxu0 %v3535
    %v6662 = vpop.f32.mrf.mxu0
    %v6663 = vadd.f32 %v6574, %v6662
    %v6664 = vpop.f32.mrf.mxu0
    %v6665 = vadd.f32 %v6576, %v6664
    %6666 = vmatmul.bf16.gmra.mxu0 %v3539
    %v6667 = vpop.f32.mrf.mxu0
    %v6668 = vadd.f32 %v6579, %v6667
    %v6669 = vpop.f32.mrf.mxu0
    %v6670 = vadd.f32 %v6581, %v6669
    %6671 = vmatmul.bf16.gmra.mxu0 %v3543
    %v6672 = vpop.f32.mrf.mxu0
    %v6673 = vadd.f32 %v6584, %v6672
    %v6674 = vpop.f32.mrf.mxu0
    %v6675 = vadd.f32 %v6586, %v6674
    %6676 = vmatmul.bf16.gmra.mxu0 %v3547
    %v6677 = vpop.f32.mrf.mxu0
    %v6678 = vadd.f32 %v6589, %v6677
    %v6679 = vpop.f32.mrf.mxu0
    %v6680 = vadd.f32 %v6591, %v6679
    %6681 = vmatmul.bf16.gmra.mxu0 %v3551
    %v6682 = vpop.f32.mrf.mxu0
    %v6683 = vadd.f32 %v6594, %v6682
    %v6684 = vpop.f32.mrf.mxu0
    %v6685 = vadd.f32 %v6596, %v6684
    %6686 = vmatmul.bf16.gmra.mxu0 %v3555
    %v6687 = vpop.f32.mrf.mxu0
    %v6688 = vadd.f32 %v6599, %v6687
    %v6689 = vpop.f32.mrf.mxu0
    %v6690 = vadd.f32 %v6601, %v6689
    %6691 = vmatmul.bf16.gmra.mxu0 %v3559
    %v6692 = vpop.f32.mrf.mxu0
    %v6693 = vadd.f32 %v6604, %v6692
    %v6694 = vpop.f32.mrf.mxu0
    %v6695 = vadd.f32 %v6606, %v6694
    %6696 = vmatmul.bf16.gmra.mxu0 %v3563
    %v6697 = vpop.f32.mrf.mxu0
    %v6698 = vadd.f32 %v6609, %v6697
    %v6699 = vpop.f32.mrf.mxu0
    %v6700 = vadd.f32 %v6611, %v6699
    %6701 = vmatmul.bf16.gmra.mxu0 %v3567
    %v6702 = vpop.f32.mrf.mxu0
    %v6703 = vadd.f32 %v6614, %v6702
    %v6704 = vpop.f32.mrf.mxu0
    %v6705 = vadd.f32 %v6616, %v6704
    %6706 = vmatmul.bf16.gmra.mxu0 %v3571
    %v6707 = vpop.f32.mrf.mxu0
    %v6708 = vadd.f32 %v6619, %v6707
    %v6709 = vpop.f32.mrf.mxu0
    %v6710 = vadd.f32 %v6621, %v6709
    %6711 = vdwg.mxu0
    %6712 = vmatpush.bf16.msra.mxu0 %v4786
    %6713 = vmatpush.bf16.msra.mxu0 %v4778
    %6714 = vmatpush.bf16.msra.mxu0 %v4770
    %6715 = vmatpush.bf16.msra.mxu0 %v4762
    %6716 = vmatpush.bf16.msra.mxu0 %v4754
    %6717 = vmatpush.bf16.msra.mxu0 %v4746
    %6718 = vmatpush.bf16.msra.mxu0 %v4738
    %6719 = vmatpush.bf16.msra.mxu0 %v4730
    %6720 = vmatmul.bf16.gmra.mxu0 %v3512
    %v6721 = vpop.f32.mrf.mxu0
    %v6722 = vadd.f32 %v6633, %v6721
    %v6723 = vpop.f32.mrf.mxu0
    %v6724 = vadd.f32 %v6635, %v6723
    %6725 = vmatmul.bf16.gmra.mxu0 %v3516
    %v6726 = vpop.f32.mrf.mxu0
    %v6727 = vadd.f32 %v6638, %v6726
    %v6728 = vpop.f32.mrf.mxu0
    %v6729 = vadd.f32 %v6640, %v6728
    %6730 = vmatmul.bf16.gmra.mxu0 %v3520
    %v6731 = vpop.f32.mrf.mxu0
    %v6732 = vadd.f32 %v6643, %v6731
    %v6733 = vpop.f32.mrf.mxu0
    %v6734 = vadd.f32 %v6645, %v6733
    %6735 = vmatmul.bf16.gmra.mxu0 %v3524
    %v6736 = vpop.f32.mrf.mxu0
    %v6737 = vadd.f32 %v6648, %v6736
    %v6738 = vpop.f32.mrf.mxu0
    %v6739 = vadd.f32 %v6650, %v6738
    %6740 = vmatmul.bf16.gmra.mxu0 %v3528
    %v6741 = vpop.f32.mrf.mxu0
    %v6742 = vadd.f32 %v6653, %v6741
    %v6743 = vpop.f32.mrf.mxu0
    %v6744 = vadd.f32 %v6655, %v6743
    %6745 = vmatmul.bf16.gmra.mxu0 %v3532
    %v6746 = vpop.f32.mrf.mxu0
    %v6747 = vadd.f32 %v6658, %v6746
    %v6748 = vpop.f32.mrf.mxu0
    %v6749 = vadd.f32 %v6660, %v6748
    %6750 = vmatmul.bf16.gmra.mxu0 %v3536
    %v6751 = vpop.f32.mrf.mxu0
    %v6752 = vadd.f32 %v6663, %v6751
    %v6753 = vpop.f32.mrf.mxu0
    %v6754 = vadd.f32 %v6665, %v6753
    %6755 = vmatmul.bf16.gmra.mxu0 %v3540
    %v6756 = vpop.f32.mrf.mxu0
    %v6757 = vadd.f32 %v6668, %v6756
    %v6758 = vpop.f32.mrf.mxu0
    %v6759 = vadd.f32 %v6670, %v6758
    %6760 = vmatmul.bf16.gmra.mxu0 %v3544
    %v6761 = vpop.f32.mrf.mxu0
    %v6762 = vadd.f32 %v6673, %v6761
    %v6763 = vpop.f32.mrf.mxu0
    %v6764 = vadd.f32 %v6675, %v6763
    %6765 = vmatmul.bf16.gmra.mxu0 %v3548
    %v6766 = vpop.f32.mrf.mxu0
    %v6767 = vadd.f32 %v6678, %v6766
    %v6768 = vpop.f32.mrf.mxu0
    %v6769 = vadd.f32 %v6680, %v6768
    %6770 = vmatmul.bf16.gmra.mxu0 %v3552
    %v6771 = vpop.f32.mrf.mxu0
    %v6772 = vadd.f32 %v6683, %v6771
    %v6773 = vpop.f32.mrf.mxu0
    %v6774 = vadd.f32 %v6685, %v6773
    %6775 = vmatmul.bf16.gmra.mxu0 %v3556
    %v6776 = vpop.f32.mrf.mxu0
    %v6777 = vadd.f32 %v6688, %v6776
    %v6778 = vpop.f32.mrf.mxu0
    %v6779 = vadd.f32 %v6690, %v6778
    %6780 = vmatmul.bf16.gmra.mxu0 %v3560
    %v6781 = vpop.f32.mrf.mxu0
    %v6782 = vadd.f32 %v6693, %v6781
    %v6783 = vpop.f32.mrf.mxu0
    %v6784 = vadd.f32 %v6695, %v6783
    %6785 = vmatmul.bf16.gmra.mxu0 %v3564
    %v6786 = vpop.f32.mrf.mxu0
    %v6787 = vadd.f32 %v6698, %v6786
    %v6788 = vpop.f32.mrf.mxu0
    %v6789 = vadd.f32 %v6700, %v6788
    %6790 = vmatmul.bf16.gmra.mxu0 %v3568
    %v6791 = vpop.f32.mrf.mxu0
    %v6792 = vadd.f32 %v6703, %v6791
    %v6793 = vpop.f32.mrf.mxu0
    %v6794 = vadd.f32 %v6705, %v6793
    %6795 = vmatmul.bf16.gmra.mxu0 %v3572
    %v6796 = vpop.f32.mrf.mxu0
    %v6797 = vadd.f32 %v6708, %v6796
    %v6798 = vpop.f32.mrf.mxu0
    %v6799 = vadd.f32 %v6710, %v6798
    %6800 = vdwg.mxu0
    %6801 = vmatpush.bf16.msra.mxu0 %v4850
    %6802 = vmatpush.bf16.msra.mxu0 %v4842
    %6803 = vmatpush.bf16.msra.mxu0 %v4834
    %6804 = vmatpush.bf16.msra.mxu0 %v4826
    %6805 = vmatpush.bf16.msra.mxu0 %v4818
    %6806 = vmatpush.bf16.msra.mxu0 %v4810
    %6807 = vmatpush.bf16.msra.mxu0 %v4802
    %6808 = vmatpush.bf16.msra.mxu0 %v4794
    %6809 = vmatmul.bf16.gmra.mxu0 %v3513
    %v6810 = vpop.f32.mrf.mxu0
    %v6811 = vadd.f32 %v6722, %v6810
    %v6812 = vpop.f32.mrf.mxu0
    %v6813 = vadd.f32 %v6724, %v6812
    %6814 = vmatmul.bf16.gmra.mxu0 %v3517
    %v6815 = vpop.f32.mrf.mxu0
    %v6816 = vadd.f32 %v6727, %v6815
    %v6817 = vpop.f32.mrf.mxu0
    %v6818 = vadd.f32 %v6729, %v6817
    %6819 = vmatmul.bf16.gmra.mxu0 %v3521
    %v6820 = vpop.f32.mrf.mxu0
    %v6821 = vadd.f32 %v6732, %v6820
    %v6822 = vpop.f32.mrf.mxu0
    %v6823 = vadd.f32 %v6734, %v6822
    %6824 = vmatmul.bf16.gmra.mxu0 %v3525
    %v6825 = vpop.f32.mrf.mxu0
    %v6826 = vadd.f32 %v6737, %v6825
    %v6827 = vpop.f32.mrf.mxu0
    %v6828 = vadd.f32 %v6739, %v6827
    %6829 = vmatmul.bf16.gmra.mxu0 %v3529
    %v6830 = vpop.f32.mrf.mxu0
    %v6831 = vadd.f32 %v6742, %v6830
    %v6832 = vpop.f32.mrf.mxu0
    %v6833 = vadd.f32 %v6744, %v6832
    %6834 = vmatmul.bf16.gmra.mxu0 %v3533
    %v6835 = vpop.f32.mrf.mxu0
    %v6836 = vadd.f32 %v6747, %v6835
    %v6837 = vpop.f32.mrf.mxu0
    %v6838 = vadd.f32 %v6749, %v6837
    %6839 = vmatmul.bf16.gmra.mxu0 %v3537
    %v6840 = vpop.f32.mrf.mxu0
    %v6841 = vadd.f32 %v6752, %v6840
    %v6842 = vpop.f32.mrf.mxu0
    %v6843 = vadd.f32 %v6754, %v6842
    %6844 = vmatmul.bf16.gmra.mxu0 %v3541
    %v6845 = vpop.f32.mrf.mxu0
    %v6846 = vadd.f32 %v6757, %v6845
    %v6847 = vpop.f32.mrf.mxu0
    %v6848 = vadd.f32 %v6759, %v6847
    %6849 = vmatmul.bf16.gmra.mxu0 %v3545
    %v6850 = vpop.f32.mrf.mxu0
    %v6851 = vadd.f32 %v6762, %v6850
    %v6852 = vpop.f32.mrf.mxu0
    %v6853 = vadd.f32 %v6764, %v6852
    %6854 = vmatmul.bf16.gmra.mxu0 %v3549
    %v6855 = vpop.f32.mrf.mxu0
    %v6856 = vadd.f32 %v6767, %v6855
    %v6857 = vpop.f32.mrf.mxu0
    %v6858 = vadd.f32 %v6769, %v6857
    %6859 = vmatmul.bf16.gmra.mxu0 %v3553
    %v6860 = vpop.f32.mrf.mxu0
    %v6861 = vadd.f32 %v6772, %v6860
    %v6862 = vpop.f32.mrf.mxu0
    %v6863 = vadd.f32 %v6774, %v6862
    %6864 = vmatmul.bf16.gmra.mxu0 %v3557
    %v6865 = vpop.f32.mrf.mxu0
    %v6866 = vadd.f32 %v6777, %v6865
    %v6867 = vpop.f32.mrf.mxu0
    %v6868 = vadd.f32 %v6779, %v6867
    %6869 = vmatmul.bf16.gmra.mxu0 %v3561
    %v6870 = vpop.f32.mrf.mxu0
    %v6871 = vadd.f32 %v6782, %v6870
    %v6872 = vpop.f32.mrf.mxu0
    %v6873 = vadd.f32 %v6784, %v6872
    %6874 = vmatmul.bf16.gmra.mxu0 %v3565
    %v6875 = vpop.f32.mrf.mxu0
    %v6876 = vadd.f32 %v6787, %v6875
    %v6877 = vpop.f32.mrf.mxu0
    %v6878 = vadd.f32 %v6789, %v6877
    %6879 = vmatmul.bf16.gmra.mxu0 %v3569
    %v6880 = vpop.f32.mrf.mxu0
    %v6881 = vadd.f32 %v6792, %v6880
    %v6882 = vpop.f32.mrf.mxu0
    %v6883 = vadd.f32 %v6794, %v6882
    %6884 = vmatmul.bf16.gmra.mxu0 %v3573
    %v6885 = vpop.f32.mrf.mxu0
    %v6886 = vadd.f32 %v6797, %v6885
    %v6887 = vpop.f32.mrf.mxu0
    %v6888 = vadd.f32 %v6799, %v6887
    %6889 = vdwg.mxu0
    %6890 = vmatpush.bf16.msra.mxu0 %v4659
    %6891 = vmatpush.bf16.msra.mxu0 %v4651
    %6892 = vmatpush.bf16.msra.mxu0 %v4643
    %6893 = vmatpush.bf16.msra.mxu0 %v4635
    %6894 = vmatpush.bf16.msra.mxu0 %v4627
    %6895 = vmatpush.bf16.msra.mxu0 %v4619
    %6896 = vmatpush.bf16.msra.mxu0 %v4611
    %6897 = vmatpush.bf16.msra.mxu0 %v4603
    %6898 = vmatmul.bf16.gmra.mxu0 %v3510
    %v6899 = vpop.f32.mrf.mxu0
    %v6900 = vadd.f32 0.0, %v6899
    %v6901 = vpop.f32.mrf.mxu0
    %v6902 = vadd.f32 0.0, %v6901
    %6903 = vmatmul.bf16.gmra.mxu0 %v3514
    %v6904 = vpop.f32.mrf.mxu0
    %v6905 = vadd.f32 0.0, %v6904
    %v6906 = vpop.f32.mrf.mxu0
    %v6907 = vadd.f32 0.0, %v6906
    %6908 = vmatmul.bf16.gmra.mxu0 %v3518
    %v6909 = vpop.f32.mrf.mxu0
    %v6910 = vadd.f32 0.0, %v6909
    %v6911 = vpop.f32.mrf.mxu0
    %v6912 = vadd.f32 0.0, %v6911
    %6913 = vmatmul.bf16.gmra.mxu0 %v3522
    %v6914 = vpop.f32.mrf.mxu0
    %v6915 = vadd.f32 0.0, %v6914
    %v6916 = vpop.f32.mrf.mxu0
    %v6917 = vadd.f32 0.0, %v6916
    %6918 = vmatmul.bf16.gmra.mxu0 %v3526
    %v6919 = vpop.f32.mrf.mxu0
    %v6920 = vadd.f32 0.0, %v6919
    %v6921 = vpop.f32.mrf.mxu0
    %v6922 = vadd.f32 0.0, %v6921
    %6923 = vmatmul.bf16.gmra.mxu0 %v3530
    %v6924 = vpop.f32.mrf.mxu0
    %v6925 = vadd.f32 0.0, %v6924
    %v6926 = vpop.f32.mrf.mxu0
    %v6927 = vadd.f32 0.0, %v6926
    %6928 = vmatmul.bf16.gmra.mxu0 %v3534
    %v6929 = vpop.f32.mrf.mxu0
    %v6930 = vadd.f32 0.0, %v6929
    %v6931 = vpop.f32.mrf.mxu0
    %v6932 = vadd.f32 0.0, %v6931
    %6933 = vmatmul.bf16.gmra.mxu0 %v3538
    %v6934 = vpop.f32.mrf.mxu0
    %v6935 = vadd.f32 0.0, %v6934
    %v6936 = vpop.f32.mrf.mxu0
    %v6937 = vadd.f32 0.0, %v6936
    %6938 = vmatmul.bf16.gmra.mxu0 %v3542
    %v6939 = vpop.f32.mrf.mxu0
    %v6940 = vadd.f32 0.0, %v6939
    %v6941 = vpop.f32.mrf.mxu0
    %v6942 = vadd.f32 0.0, %v6941
    %6943 = vmatmul.bf16.gmra.mxu0 %v3546
    %v6944 = vpop.f32.mrf.mxu0
    %v6945 = vadd.f32 0.0, %v6944
    %v6946 = vpop.f32.mrf.mxu0
    %v6947 = vadd.f32 0.0, %v6946
    %6948 = vmatmul.bf16.gmra.mxu0 %v3550
    %v6949 = vpop.f32.mrf.mxu0
    %v6950 = vadd.f32 0.0, %v6949
    %v6951 = vpop.f32.mrf.mxu0
    %v6952 = vadd.f32 0.0, %v6951
    %6953 = vmatmul.bf16.gmra.mxu0 %v3554
    %v6954 = vpop.f32.mrf.mxu0
    %v6955 = vadd.f32 0.0, %v6954
    %v6956 = vpop.f32.mrf.mxu0
    %v6957 = vadd.f32 0.0, %v6956
    %6958 = vmatmul.bf16.gmra.mxu0 %v3558
    %v6959 = vpop.f32.mrf.mxu0
    %v6960 = vadd.f32 0.0, %v6959
    %v6961 = vpop.f32.mrf.mxu0
    %v6962 = vadd.f32 0.0, %v6961
    %6963 = vmatmul.bf16.gmra.mxu0 %v3562
    %v6964 = vpop.f32.mrf.mxu0
    %v6965 = vadd.f32 0.0, %v6964
    %v6966 = vpop.f32.mrf.mxu0
    %v6967 = vadd.f32 0.0, %v6966
    %6968 = vmatmul.bf16.gmra.mxu0 %v3566
    %v6969 = vpop.f32.mrf.mxu0
    %v6970 = vadd.f32 0.0, %v6969
    %v6971 = vpop.f32.mrf.mxu0
    %v6972 = vadd.f32 0.0, %v6971
    %6973 = vmatmul.bf16.gmra.mxu0 %v3570
    %v6974 = vpop.f32.mrf.mxu0
    %v6975 = vadd.f32 0.0, %v6974
    %v6976 = vpop.f32.mrf.mxu0
    %v6977 = vadd.f32 0.0, %v6976
    %6978 = vdwg.mxu0
    %6979 = vmatpush.bf16.msra.mxu0 %v4723
    %6980 = vmatpush.bf16.msra.mxu0 %v4715
    %6981 = vmatpush.bf16.msra.mxu0 %v4707
    %6982 = vmatpush.bf16.msra.mxu0 %v4699
    %6983 = vmatpush.bf16.msra.mxu0 %v4691
    %6984 = vmatpush.bf16.msra.mxu0 %v4683
    %6985 = vmatpush.bf16.msra.mxu0 %v4675
    %6986 = vmatpush.bf16.msra.mxu0 %v4667
    %6987 = vmatmul.bf16.gmra.mxu0 %v3511
    %v6988 = vpop.f32.mrf.mxu0
    %v6989 = vadd.f32 %v6900, %v6988
    %v6990 = vpop.f32.mrf.mxu0
    %v6991 = vadd.f32 %v6902, %v6990
    %6992 = vmatmul.bf16.gmra.mxu0 %v3515
    %v6993 = vpop.f32.mrf.mxu0
    %v6994 = vadd.f32 %v6905, %v6993
    %v6995 = vpop.f32.mrf.mxu0
    %v6996 = vadd.f32 %v6907, %v6995
    %6997 = vmatmul.bf16.gmra.mxu0 %v3519
    %v6998 = vpop.f32.mrf.mxu0
    %v6999 = vadd.f32 %v6910, %v6998
    %v7000 = vpop.f32.mrf.mxu0
    %v7001 = vadd.f32 %v6912, %v7000
    %7002 = vmatmul.bf16.gmra.mxu0 %v3523
    %v7003 = vpop.f32.mrf.mxu0
    %v7004 = vadd.f32 %v6915, %v7003
    %v7005 = vpop.f32.mrf.mxu0
    %v7006 = vadd.f32 %v6917, %v7005
    %7007 = vmatmul.bf16.gmra.mxu0 %v3527
    %v7008 = vpop.f32.mrf.mxu0
    %v7009 = vadd.f32 %v6920, %v7008
    %v7010 = vpop.f32.mrf.mxu0
    %v7011 = vadd.f32 %v6922, %v7010
    %7012 = vmatmul.bf16.gmra.mxu0 %v3531
    %v7013 = vpop.f32.mrf.mxu0
    %v7014 = vadd.f32 %v6925, %v7013
    %v7015 = vpop.f32.mrf.mxu0
    %v7016 = vadd.f32 %v6927, %v7015
    %7017 = vmatmul.bf16.gmra.mxu0 %v3535
    %v7018 = vpop.f32.mrf.mxu0
    %v7019 = vadd.f32 %v6930, %v7018
    %v7020 = vpop.f32.mrf.mxu0
    %v7021 = vadd.f32 %v6932, %v7020
    %7022 = vmatmul.bf16.gmra.mxu0 %v3539
    %v7023 = vpop.f32.mrf.mxu0
    %v7024 = vadd.f32 %v6935, %v7023
    %v7025 = vpop.f32.mrf.mxu0
    %v7026 = vadd.f32 %v6937, %v7025
    %7027 = vmatmul.bf16.gmra.mxu0 %v3543
    %v7028 = vpop.f32.mrf.mxu0
    %v7029 = vadd.f32 %v6940, %v7028
    %v7030 = vpop.f32.mrf.mxu0
    %v7031 = vadd.f32 %v6942, %v7030
    %7032 = vmatmul.bf16.gmra.mxu0 %v3547
    %v7033 = vpop.f32.mrf.mxu0
    %v7034 = vadd.f32 %v6945, %v7033
    %v7035 = vpop.f32.mrf.mxu0
    %v7036 = vadd.f32 %v6947, %v7035
    %7037 = vmatmul.bf16.gmra.mxu0 %v3551
    %v7038 = vpop.f32.mrf.mxu0
    %v7039 = vadd.f32 %v6950, %v7038
    %v7040 = vpop.f32.mrf.mxu0
    %v7041 = vadd.f32 %v6952, %v7040
    %7042 = vmatmul.bf16.gmra.mxu0 %v3555
    %v7043 = vpop.f32.mrf.mxu0
    %v7044 = vadd.f32 %v6955, %v7043
    %v7045 = vpop.f32.mrf.mxu0
    %v7046 = vadd.f32 %v6957, %v7045
    %7047 = vmatmul.bf16.gmra.mxu0 %v3559
    %v7048 = vpop.f32.mrf.mxu0
    %v7049 = vadd.f32 %v6960, %v7048
    %v7050 = vpop.f32.mrf.mxu0
    %v7051 = vadd.f32 %v6962, %v7050
    %7052 = vmatmul.bf16.gmra.mxu0 %v3563
    %v7053 = vpop.f32.mrf.mxu0
    %v7054 = vadd.f32 %v6965, %v7053
    %v7055 = vpop.f32.mrf.mxu0
    %v7056 = vadd.f32 %v6967, %v7055
    %7057 = vmatmul.bf16.gmra.mxu0 %v3567
    %v7058 = vpop.f32.mrf.mxu0
    %v7059 = vadd.f32 %v6970, %v7058
    %v7060 = vpop.f32.mrf.mxu0
    %v7061 = vadd.f32 %v6972, %v7060
    %7062 = vmatmul.bf16.gmra.mxu0 %v3571
    %v7063 = vpop.f32.mrf.mxu0
    %v7064 = vadd.f32 %v6975, %v7063
    %v7065 = vpop.f32.mrf.mxu0
    %v7066 = vadd.f32 %v6977, %v7065
    %7067 = vdwg.mxu0
    %7068 = vmatpush.bf16.msra.mxu0 %v4787
    %7069 = vmatpush.bf16.msra.mxu0 %v4779
    %7070 = vmatpush.bf16.msra.mxu0 %v4771
    %7071 = vmatpush.bf16.msra.mxu0 %v4763
    %7072 = vmatpush.bf16.msra.mxu0 %v4755
    %7073 = vmatpush.bf16.msra.mxu0 %v4747
    %7074 = vmatpush.bf16.msra.mxu0 %v4739
    %7075 = vmatpush.bf16.msra.mxu0 %v4731
    %7076 = vmatmul.bf16.gmra.mxu0 %v3512
    %v7077 = vpop.f32.mrf.mxu0
    %v7078 = vadd.f32 %v6989, %v7077
    %v7079 = vpop.f32.mrf.mxu0
    %v7080 = vadd.f32 %v6991, %v7079
    %7081 = vmatmul.bf16.gmra.mxu0 %v3516
    %v7082 = vpop.f32.mrf.mxu0
    %v7083 = vadd.f32 %v6994, %v7082
    %v7084 = vpop.f32.mrf.mxu0
    %v7085 = vadd.f32 %v6996, %v7084
    %7086 = vmatmul.bf16.gmra.mxu0 %v3520
    %v7087 = vpop.f32.mrf.mxu0
    %v7088 = vadd.f32 %v6999, %v7087
    %v7089 = vpop.f32.mrf.mxu0
    %v7090 = vadd.f32 %v7001, %v7089
    %7091 = vmatmul.bf16.gmra.mxu0 %v3524
    %v7092 = vpop.f32.mrf.mxu0
    %v7093 = vadd.f32 %v7004, %v7092
    %v7094 = vpop.f32.mrf.mxu0
    %v7095 = vadd.f32 %v7006, %v7094
    %7096 = vmatmul.bf16.gmra.mxu0 %v3528
    %v7097 = vpop.f32.mrf.mxu0
    %v7098 = vadd.f32 %v7009, %v7097
    %v7099 = vpop.f32.mrf.mxu0
    %v7100 = vadd.f32 %v7011, %v7099
    %7101 = vmatmul.bf16.gmra.mxu0 %v3532
    %v7102 = vpop.f32.mrf.mxu0
    %v7103 = vadd.f32 %v7014, %v7102
    %v7104 = vpop.f32.mrf.mxu0
    %v7105 = vadd.f32 %v7016, %v7104
    %7106 = vmatmul.bf16.gmra.mxu0 %v3536
    %v7107 = vpop.f32.mrf.mxu0
    %v7108 = vadd.f32 %v7019, %v7107
    %v7109 = vpop.f32.mrf.mxu0
    %v7110 = vadd.f32 %v7021, %v7109
    %7111 = vmatmul.bf16.gmra.mxu0 %v3540
    %v7112 = vpop.f32.mrf.mxu0
    %v7113 = vadd.f32 %v7024, %v7112
    %v7114 = vpop.f32.mrf.mxu0
    %v7115 = vadd.f32 %v7026, %v7114
    %7116 = vmatmul.bf16.gmra.mxu0 %v3544
    %v7117 = vpop.f32.mrf.mxu0
    %v7118 = vadd.f32 %v7029, %v7117
    %v7119 = vpop.f32.mrf.mxu0
    %v7120 = vadd.f32 %v7031, %v7119
    %7121 = vmatmul.bf16.gmra.mxu0 %v3548
    %v7122 = vpop.f32.mrf.mxu0
    %v7123 = vadd.f32 %v7034, %v7122
    %v7124 = vpop.f32.mrf.mxu0
    %v7125 = vadd.f32 %v7036, %v7124
    %7126 = vmatmul.bf16.gmra.mxu0 %v3552
    %v7127 = vpop.f32.mrf.mxu0
    %v7128 = vadd.f32 %v7039, %v7127
    %v7129 = vpop.f32.mrf.mxu0
    %v7130 = vadd.f32 %v7041, %v7129
    %7131 = vmatmul.bf16.gmra.mxu0 %v3556
    %v7132 = vpop.f32.mrf.mxu0
    %v7133 = vadd.f32 %v7044, %v7132
    %v7134 = vpop.f32.mrf.mxu0
    %v7135 = vadd.f32 %v7046, %v7134
    %7136 = vmatmul.bf16.gmra.mxu0 %v3560
    %v7137 = vpop.f32.mrf.mxu0
    %v7138 = vadd.f32 %v7049, %v7137
    %v7139 = vpop.f32.mrf.mxu0
    %v7140 = vadd.f32 %v7051, %v7139
    %7141 = vmatmul.bf16.gmra.mxu0 %v3564
    %v7142 = vpop.f32.mrf.mxu0
    %v7143 = vadd.f32 %v7054, %v7142
    %v7144 = vpop.f32.mrf.mxu0
    %v7145 = vadd.f32 %v7056, %v7144
    %7146 = vmatmul.bf16.gmra.mxu0 %v3568
    %v7147 = vpop.f32.mrf.mxu0
    %v7148 = vadd.f32 %v7059, %v7147
    %v7149 = vpop.f32.mrf.mxu0
    %v7150 = vadd.f32 %v7061, %v7149
    %7151 = vmatmul.bf16.gmra.mxu0 %v3572
    %v7152 = vpop.f32.mrf.mxu0
    %v7153 = vadd.f32 %v7064, %v7152
    %v7154 = vpop.f32.mrf.mxu0
    %v7155 = vadd.f32 %v7066, %v7154
    %7156 = vdwg.mxu0
    %7157 = vmatpush.bf16.msra.mxu0 %v4851
    %7158 = vmatpush.bf16.msra.mxu0 %v4843
    %7159 = vmatpush.bf16.msra.mxu0 %v4835
    %7160 = vmatpush.bf16.msra.mxu0 %v4827
    %7161 = vmatpush.bf16.msra.mxu0 %v4819
    %7162 = vmatpush.bf16.msra.mxu0 %v4811
    %7163 = vmatpush.bf16.msra.mxu0 %v4803
    %7164 = vmatpush.bf16.msra.mxu0 %v4795
    %7165 = vmatmul.bf16.gmra.mxu0 %v3513
    %v7166 = vpop.f32.mrf.mxu0
    %v7167 = vadd.f32 %v7078, %v7166
    %v7168 = vpop.f32.mrf.mxu0
    %v7169 = vadd.f32 %v7080, %v7168
    %7170 = vmatmul.bf16.gmra.mxu0 %v3517
    %v7171 = vpop.f32.mrf.mxu0
    %v7172 = vadd.f32 %v7083, %v7171
    %v7173 = vpop.f32.mrf.mxu0
    %v7174 = vadd.f32 %v7085, %v7173
    %7175 = vmatmul.bf16.gmra.mxu0 %v3521
    %v7176 = vpop.f32.mrf.mxu0
    %v7177 = vadd.f32 %v7088, %v7176
    %v7178 = vpop.f32.mrf.mxu0
    %v7179 = vadd.f32 %v7090, %v7178
    %7180 = vmatmul.bf16.gmra.mxu0 %v3525
    %v7181 = vpop.f32.mrf.mxu0
    %v7182 = vadd.f32 %v7093, %v7181
    %v7183 = vpop.f32.mrf.mxu0
    %v7184 = vadd.f32 %v7095, %v7183
    %7185 = vmatmul.bf16.gmra.mxu0 %v3529
    %v7186 = vpop.f32.mrf.mxu0
    %v7187 = vadd.f32 %v7098, %v7186
    %v7188 = vpop.f32.mrf.mxu0
    %v7189 = vadd.f32 %v7100, %v7188
    %7190 = vmatmul.bf16.gmra.mxu0 %v3533
    %v7191 = vpop.f32.mrf.mxu0
    %v7192 = vadd.f32 %v7103, %v7191
    %v7193 = vpop.f32.mrf.mxu0
    %v7194 = vadd.f32 %v7105, %v7193
    %7195 = vmatmul.bf16.gmra.mxu0 %v3537
    %v7196 = vpop.f32.mrf.mxu0
    %v7197 = vadd.f32 %v7108, %v7196
    %v7198 = vpop.f32.mrf.mxu0
    %v7199 = vadd.f32 %v7110, %v7198
    %7200 = vmatmul.bf16.gmra.mxu0 %v3541
    %v7201 = vpop.f32.mrf.mxu0
    %v7202 = vadd.f32 %v7113, %v7201
    %v7203 = vpop.f32.mrf.mxu0
    %v7204 = vadd.f32 %v7115, %v7203
    %7205 = vmatmul.bf16.gmra.mxu0 %v3545
    %v7206 = vpop.f32.mrf.mxu0
    %v7207 = vadd.f32 %v7118, %v7206
    %v7208 = vpop.f32.mrf.mxu0
    %v7209 = vadd.f32 %v7120, %v7208
    %7210 = vmatmul.bf16.gmra.mxu0 %v3549
    %v7211 = vpop.f32.mrf.mxu0
    %v7212 = vadd.f32 %v7123, %v7211
    %v7213 = vpop.f32.mrf.mxu0
    %v7214 = vadd.f32 %v7125, %v7213
    %7215 = vmatmul.bf16.gmra.mxu0 %v3553
    %v7216 = vpop.f32.mrf.mxu0
    %v7217 = vadd.f32 %v7128, %v7216
    %v7218 = vpop.f32.mrf.mxu0
    %v7219 = vadd.f32 %v7130, %v7218
    %7220 = vmatmul.bf16.gmra.mxu0 %v3557
    %v7221 = vpop.f32.mrf.mxu0
    %v7222 = vadd.f32 %v7133, %v7221
    %v7223 = vpop.f32.mrf.mxu0
    %v7224 = vadd.f32 %v7135, %v7223
    %7225 = vmatmul.bf16.gmra.mxu0 %v3561
    %v7226 = vpop.f32.mrf.mxu0
    %v7227 = vadd.f32 %v7138, %v7226
    %v7228 = vpop.f32.mrf.mxu0
    %v7229 = vadd.f32 %v7140, %v7228
    %7230 = vmatmul.bf16.gmra.mxu0 %v3565
    %v7231 = vpop.f32.mrf.mxu0
    %v7232 = vadd.f32 %v7143, %v7231
    %v7233 = vpop.f32.mrf.mxu0
    %v7234 = vadd.f32 %v7145, %v7233
    %7235 = vmatmul.bf16.gmra.mxu0 %v3569
    %v7236 = vpop.f32.mrf.mxu0
    %v7237 = vadd.f32 %v7148, %v7236
    %v7238 = vpop.f32.mrf.mxu0
    %v7239 = vadd.f32 %v7150, %v7238
    %7240 = vmatmul.bf16.gmra.mxu0 %v3573
    %v7241 = vpop.f32.mrf.mxu0
    %v7242 = vadd.f32 %v7153, %v7241
    %v7243 = vpop.f32.mrf.mxu0
    %v7244 = vadd.f32 %v7155, %v7243
    %7245 = vdwg.mxu0
    %7246 = vmatpush.bf16.msra.mxu0 %v4660
    %7247 = vmatpush.bf16.msra.mxu0 %v4652
    %7248 = vmatpush.bf16.msra.mxu0 %v4644
    %7249 = vmatpush.bf16.msra.mxu0 %v4636
    %7250 = vmatpush.bf16.msra.mxu0 %v4628
    %7251 = vmatpush.bf16.msra.mxu0 %v4620
    %7252 = vmatpush.bf16.msra.mxu0 %v4612
    %7253 = vmatpush.bf16.msra.mxu0 %v4604
    %7254 = vmatmul.bf16.gmra.mxu0 %v3510
    %v7255 = vpop.f32.mrf.mxu0
    %v7256 = vadd.f32 0.0, %v7255
    %v7257 = vpop.f32.mrf.mxu0
    %v7258 = vadd.f32 0.0, %v7257
    %7259 = vmatmul.bf16.gmra.mxu0 %v3514
    %v7260 = vpop.f32.mrf.mxu0
    %v7261 = vadd.f32 0.0, %v7260
    %v7262 = vpop.f32.mrf.mxu0
    %v7263 = vadd.f32 0.0, %v7262
    %7264 = vmatmul.bf16.gmra.mxu0 %v3518
    %v7265 = vpop.f32.mrf.mxu0
    %v7266 = vadd.f32 0.0, %v7265
    %v7267 = vpop.f32.mrf.mxu0
    %v7268 = vadd.f32 0.0, %v7267
    %7269 = vmatmul.bf16.gmra.mxu0 %v3522
    %v7270 = vpop.f32.mrf.mxu0
    %v7271 = vadd.f32 0.0, %v7270
    %v7272 = vpop.f32.mrf.mxu0
    %v7273 = vadd.f32 0.0, %v7272
    %7274 = vmatmul.bf16.gmra.mxu0 %v3526
    %v7275 = vpop.f32.mrf.mxu0
    %v7276 = vadd.f32 0.0, %v7275
    %v7277 = vpop.f32.mrf.mxu0
    %v7278 = vadd.f32 0.0, %v7277
    %7279 = vmatmul.bf16.gmra.mxu0 %v3530
    %v7280 = vpop.f32.mrf.mxu0
    %v7281 = vadd.f32 0.0, %v7280
    %v7282 = vpop.f32.mrf.mxu0
    %v7283 = vadd.f32 0.0, %v7282
    %7284 = vmatmul.bf16.gmra.mxu0 %v3534
    %v7285 = vpop.f32.mrf.mxu0
    %v7286 = vadd.f32 0.0, %v7285
    %v7287 = vpop.f32.mrf.mxu0
    %v7288 = vadd.f32 0.0, %v7287
    %7289 = vmatmul.bf16.gmra.mxu0 %v3538
    %v7290 = vpop.f32.mrf.mxu0
    %v7291 = vadd.f32 0.0, %v7290
    %v7292 = vpop.f32.mrf.mxu0
    %v7293 = vadd.f32 0.0, %v7292
    %7294 = vmatmul.bf16.gmra.mxu0 %v3542
    %v7295 = vpop.f32.mrf.mxu0
    %v7296 = vadd.f32 0.0, %v7295
    %v7297 = vpop.f32.mrf.mxu0
    %v7298 = vadd.f32 0.0, %v7297
    %7299 = vmatmul.bf16.gmra.mxu0 %v3546
    %v7300 = vpop.f32.mrf.mxu0
    %v7301 = vadd.f32 0.0, %v7300
    %v7302 = vpop.f32.mrf.mxu0
    %v7303 = vadd.f32 0.0, %v7302
    %7304 = vmatmul.bf16.gmra.mxu0 %v3550
    %v7305 = vpop.f32.mrf.mxu0
    %v7306 = vadd.f32 0.0, %v7305
    %v7307 = vpop.f32.mrf.mxu0
    %v7308 = vadd.f32 0.0, %v7307
    %7309 = vmatmul.bf16.gmra.mxu0 %v3554
    %v7310 = vpop.f32.mrf.mxu0
    %v7311 = vadd.f32 0.0, %v7310
    %v7312 = vpop.f32.mrf.mxu0
    %v7313 = vadd.f32 0.0, %v7312
    %7314 = vmatmul.bf16.gmra.mxu0 %v3558
    %v7315 = vpop.f32.mrf.mxu0
    %v7316 = vadd.f32 0.0, %v7315
    %v7317 = vpop.f32.mrf.mxu0
    %v7318 = vadd.f32 0.0, %v7317
    %7319 = vmatmul.bf16.gmra.mxu0 %v3562
    %v7320 = vpop.f32.mrf.mxu0
    %v7321 = vadd.f32 0.0, %v7320
    %v7322 = vpop.f32.mrf.mxu0
    %v7323 = vadd.f32 0.0, %v7322
    %7324 = vmatmul.bf16.gmra.mxu0 %v3566
    %v7325 = vpop.f32.mrf.mxu0
    %v7326 = vadd.f32 0.0, %v7325
    %v7327 = vpop.f32.mrf.mxu0
    %v7328 = vadd.f32 0.0, %v7327
    %7329 = vmatmul.bf16.gmra.mxu0 %v3570
    %v7330 = vpop.f32.mrf.mxu0
    %v7331 = vadd.f32 0.0, %v7330
    %v7332 = vpop.f32.mrf.mxu0
    %v7333 = vadd.f32 0.0, %v7332
    %7334 = vdwg.mxu0
    %7335 = vmatpush.bf16.msra.mxu0 %v4724
    %7336 = vmatpush.bf16.msra.mxu0 %v4716
    %7337 = vmatpush.bf16.msra.mxu0 %v4708
    %7338 = vmatpush.bf16.msra.mxu0 %v4700
    %7339 = vmatpush.bf16.msra.mxu0 %v4692
    %7340 = vmatpush.bf16.msra.mxu0 %v4684
    %7341 = vmatpush.bf16.msra.mxu0 %v4676
    %7342 = vmatpush.bf16.msra.mxu0 %v4668
    %7343 = vmatmul.bf16.gmra.mxu0 %v3511
    %v7344 = vpop.f32.mrf.mxu0
    %v7345 = vadd.f32 %v7256, %v7344
    %v7346 = vpop.f32.mrf.mxu0
    %v7347 = vadd.f32 %v7258, %v7346
    %7348 = vmatmul.bf16.gmra.mxu0 %v3515
    %v7349 = vpop.f32.mrf.mxu0
    %v7350 = vadd.f32 %v7261, %v7349
    %v7351 = vpop.f32.mrf.mxu0
    %v7352 = vadd.f32 %v7263, %v7351
    %7353 = vmatmul.bf16.gmra.mxu0 %v3519
    %v7354 = vpop.f32.mrf.mxu0
    %v7355 = vadd.f32 %v7266, %v7354
    %v7356 = vpop.f32.mrf.mxu0
    %v7357 = vadd.f32 %v7268, %v7356
    %7358 = vmatmul.bf16.gmra.mxu0 %v3523
    %v7359 = vpop.f32.mrf.mxu0
    %v7360 = vadd.f32 %v7271, %v7359
    %v7361 = vpop.f32.mrf.mxu0
    %v7362 = vadd.f32 %v7273, %v7361
    %7363 = vmatmul.bf16.gmra.mxu0 %v3527
    %v7364 = vpop.f32.mrf.mxu0
    %v7365 = vadd.f32 %v7276, %v7364
    %v7366 = vpop.f32.mrf.mxu0
    %v7367 = vadd.f32 %v7278, %v7366
    %7368 = vmatmul.bf16.gmra.mxu0 %v3531
    %v7369 = vpop.f32.mrf.mxu0
    %v7370 = vadd.f32 %v7281, %v7369
    %v7371 = vpop.f32.mrf.mxu0
    %v7372 = vadd.f32 %v7283, %v7371
    %7373 = vmatmul.bf16.gmra.mxu0 %v3535
    %v7374 = vpop.f32.mrf.mxu0
    %v7375 = vadd.f32 %v7286, %v7374
    %v7376 = vpop.f32.mrf.mxu0
    %v7377 = vadd.f32 %v7288, %v7376
    %7378 = vmatmul.bf16.gmra.mxu0 %v3539
    %v7379 = vpop.f32.mrf.mxu0
    %v7380 = vadd.f32 %v7291, %v7379
    %v7381 = vpop.f32.mrf.mxu0
    %v7382 = vadd.f32 %v7293, %v7381
    %7383 = vmatmul.bf16.gmra.mxu0 %v3543
    %v7384 = vpop.f32.mrf.mxu0
    %v7385 = vadd.f32 %v7296, %v7384
    %v7386 = vpop.f32.mrf.mxu0
    %v7387 = vadd.f32 %v7298, %v7386
    %7388 = vmatmul.bf16.gmra.mxu0 %v3547
    %v7389 = vpop.f32.mrf.mxu0
    %v7390 = vadd.f32 %v7301, %v7389
    %v7391 = vpop.f32.mrf.mxu0
    %v7392 = vadd.f32 %v7303, %v7391
    %7393 = vmatmul.bf16.gmra.mxu0 %v3551
    %v7394 = vpop.f32.mrf.mxu0
    %v7395 = vadd.f32 %v7306, %v7394
    %v7396 = vpop.f32.mrf.mxu0
    %v7397 = vadd.f32 %v7308, %v7396
    %7398 = vmatmul.bf16.gmra.mxu0 %v3555
    %v7399 = vpop.f32.mrf.mxu0
    %v7400 = vadd.f32 %v7311, %v7399
    %v7401 = vpop.f32.mrf.mxu0
    %v7402 = vadd.f32 %v7313, %v7401
    %7403 = vmatmul.bf16.gmra.mxu0 %v3559
    %v7404 = vpop.f32.mrf.mxu0
    %v7405 = vadd.f32 %v7316, %v7404
    %v7406 = vpop.f32.mrf.mxu0
    %v7407 = vadd.f32 %v7318, %v7406
    %7408 = vmatmul.bf16.gmra.mxu0 %v3563
    %v7409 = vpop.f32.mrf.mxu0
    %v7410 = vadd.f32 %v7321, %v7409
    %v7411 = vpop.f32.mrf.mxu0
    %v7412 = vadd.f32 %v7323, %v7411
    %7413 = vmatmul.bf16.gmra.mxu0 %v3567
    %v7414 = vpop.f32.mrf.mxu0
    %v7415 = vadd.f32 %v7326, %v7414
    %v7416 = vpop.f32.mrf.mxu0
    %v7417 = vadd.f32 %v7328, %v7416
    %7418 = vmatmul.bf16.gmra.mxu0 %v3571
    %v7419 = vpop.f32.mrf.mxu0
    %v7420 = vadd.f32 %v7331, %v7419
    %v7421 = vpop.f32.mrf.mxu0
    %v7422 = vadd.f32 %v7333, %v7421
    %7423 = vdwg.mxu0
    %7424 = vmatpush.bf16.msra.mxu0 %v4788
    %7425 = vmatpush.bf16.msra.mxu0 %v4780
    %7426 = vmatpush.bf16.msra.mxu0 %v4772
    %7427 = vmatpush.bf16.msra.mxu0 %v4764
    %7428 = vmatpush.bf16.msra.mxu0 %v4756
    %7429 = vmatpush.bf16.msra.mxu0 %v4748
    %7430 = vmatpush.bf16.msra.mxu0 %v4740
    %7431 = vmatpush.bf16.msra.mxu0 %v4732
    %7432 = vmatmul.bf16.gmra.mxu0 %v3512
    %v7433 = vpop.f32.mrf.mxu0
    %v7434 = vadd.f32 %v7345, %v7433
    %v7435 = vpop.f32.mrf.mxu0
    %v7436 = vadd.f32 %v7347, %v7435
    %7437 = vmatmul.bf16.gmra.mxu0 %v3516
    %v7438 = vpop.f32.mrf.mxu0
    %v7439 = vadd.f32 %v7350, %v7438
    %v7440 = vpop.f32.mrf.mxu0
    %v7441 = vadd.f32 %v7352, %v7440
    %7442 = vmatmul.bf16.gmra.mxu0 %v3520
    %v7443 = vpop.f32.mrf.mxu0
    %v7444 = vadd.f32 %v7355, %v7443
    %v7445 = vpop.f32.mrf.mxu0
    %v7446 = vadd.f32 %v7357, %v7445
    %7447 = vmatmul.bf16.gmra.mxu0 %v3524
    %v7448 = vpop.f32.mrf.mxu0
    %v7449 = vadd.f32 %v7360, %v7448
    %v7450 = vpop.f32.mrf.mxu0
    %v7451 = vadd.f32 %v7362, %v7450
    %7452 = vmatmul.bf16.gmra.mxu0 %v3528
    %v7453 = vpop.f32.mrf.mxu0
    %v7454 = vadd.f32 %v7365, %v7453
    %v7455 = vpop.f32.mrf.mxu0
    %v7456 = vadd.f32 %v7367, %v7455
    %7457 = vmatmul.bf16.gmra.mxu0 %v3532
    %v7458 = vpop.f32.mrf.mxu0
    %v7459 = vadd.f32 %v7370, %v7458
    %v7460 = vpop.f32.mrf.mxu0
    %v7461 = vadd.f32 %v7372, %v7460
    %7462 = vmatmul.bf16.gmra.mxu0 %v3536
    %v7463 = vpop.f32.mrf.mxu0
    %v7464 = vadd.f32 %v7375, %v7463
    %v7465 = vpop.f32.mrf.mxu0
    %v7466 = vadd.f32 %v7377, %v7465
    %7467 = vmatmul.bf16.gmra.mxu0 %v3540
    %v7468 = vpop.f32.mrf.mxu0
    %v7469 = vadd.f32 %v7380, %v7468
    %v7470 = vpop.f32.mrf.mxu0
    %v7471 = vadd.f32 %v7382, %v7470
    %7472 = vmatmul.bf16.gmra.mxu0 %v3544
    %v7473 = vpop.f32.mrf.mxu0
    %v7474 = vadd.f32 %v7385, %v7473
    %v7475 = vpop.f32.mrf.mxu0
    %v7476 = vadd.f32 %v7387, %v7475
    %7477 = vmatmul.bf16.gmra.mxu0 %v3548
    %v7478 = vpop.f32.mrf.mxu0
    %v7479 = vadd.f32 %v7390, %v7478
    %v7480 = vpop.f32.mrf.mxu0
    %v7481 = vadd.f32 %v7392, %v7480
    %7482 = vmatmul.bf16.gmra.mxu0 %v3552
    %v7483 = vpop.f32.mrf.mxu0
    %v7484 = vadd.f32 %v7395, %v7483
    %v7485 = vpop.f32.mrf.mxu0
    %v7486 = vadd.f32 %v7397, %v7485
    %7487 = vmatmul.bf16.gmra.mxu0 %v3556
    %v7488 = vpop.f32.mrf.mxu0
    %v7489 = vadd.f32 %v7400, %v7488
    %v7490 = vpop.f32.mrf.mxu0
    %v7491 = vadd.f32 %v7402, %v7490
    %7492 = vmatmul.bf16.gmra.mxu0 %v3560
    %v7493 = vpop.f32.mrf.mxu0
    %v7494 = vadd.f32 %v7405, %v7493
    %v7495 = vpop.f32.mrf.mxu0
    %v7496 = vadd.f32 %v7407, %v7495
    %7497 = vmatmul.bf16.gmra.mxu0 %v3564
    %v7498 = vpop.f32.mrf.mxu0
    %v7499 = vadd.f32 %v7410, %v7498
    %v7500 = vpop.f32.mrf.mxu0
    %v7501 = vadd.f32 %v7412, %v7500
    %7502 = vmatmul.bf16.gmra.mxu0 %v3568
    %v7503 = vpop.f32.mrf.mxu0
    %v7504 = vadd.f32 %v7415, %v7503
    %v7505 = vpop.f32.mrf.mxu0
    %v7506 = vadd.f32 %v7417, %v7505
    %7507 = vmatmul.bf16.gmra.mxu0 %v3572
    %v7508 = vpop.f32.mrf.mxu0
    %v7509 = vadd.f32 %v7420, %v7508
    %v7510 = vpop.f32.mrf.mxu0
    %v7511 = vadd.f32 %v7422, %v7510
    %7512 = vdwg.mxu0
    %7513 = vmatpush.bf16.msra.mxu0 %v4852
    %7514 = vmatpush.bf16.msra.mxu0 %v4844
    %7515 = vmatpush.bf16.msra.mxu0 %v4836
    %7516 = vmatpush.bf16.msra.mxu0 %v4828
    %7517 = vmatpush.bf16.msra.mxu0 %v4820
    %7518 = vmatpush.bf16.msra.mxu0 %v4812
    %7519 = vmatpush.bf16.msra.mxu0 %v4804
    %7520 = vmatpush.bf16.msra.mxu0 %v4796
    %7521 = vmatmul.bf16.gmra.mxu0 %v3513
    %v7522 = vpop.f32.mrf.mxu0
    %v7523 = vadd.f32 %v7434, %v7522
    %v7524 = vpop.f32.mrf.mxu0
    %v7525 = vadd.f32 %v7436, %v7524
    %7526 = vmatmul.bf16.gmra.mxu0 %v3517
    %v7527 = vpop.f32.mrf.mxu0
    %v7528 = vadd.f32 %v7439, %v7527
    %v7529 = vpop.f32.mrf.mxu0
    %v7530 = vadd.f32 %v7441, %v7529
    %7531 = vmatmul.bf16.gmra.mxu0 %v3521
    %v7532 = vpop.f32.mrf.mxu0
    %v7533 = vadd.f32 %v7444, %v7532
    %v7534 = vpop.f32.mrf.mxu0
    %v7535 = vadd.f32 %v7446, %v7534
    %7536 = vmatmul.bf16.gmra.mxu0 %v3525
    %v7537 = vpop.f32.mrf.mxu0
    %v7538 = vadd.f32 %v7449, %v7537
    %v7539 = vpop.f32.mrf.mxu0
    %v7540 = vadd.f32 %v7451, %v7539
    %7541 = vmatmul.bf16.gmra.mxu0 %v3529
    %v7542 = vpop.f32.mrf.mxu0
    %v7543 = vadd.f32 %v7454, %v7542
    %v7544 = vpop.f32.mrf.mxu0
    %v7545 = vadd.f32 %v7456, %v7544
    %7546 = vmatmul.bf16.gmra.mxu0 %v3533
    %v7547 = vpop.f32.mrf.mxu0
    %v7548 = vadd.f32 %v7459, %v7547
    %v7549 = vpop.f32.mrf.mxu0
    %v7550 = vadd.f32 %v7461, %v7549
    %7551 = vmatmul.bf16.gmra.mxu0 %v3537
    %v7552 = vpop.f32.mrf.mxu0
    %v7553 = vadd.f32 %v7464, %v7552
    %v7554 = vpop.f32.mrf.mxu0
    %v7555 = vadd.f32 %v7466, %v7554
    %7556 = vmatmul.bf16.gmra.mxu0 %v3541
    %v7557 = vpop.f32.mrf.mxu0
    %v7558 = vadd.f32 %v7469, %v7557
    %v7559 = vpop.f32.mrf.mxu0
    %v7560 = vadd.f32 %v7471, %v7559
    %7561 = vmatmul.bf16.gmra.mxu0 %v3545
    %v7562 = vpop.f32.mrf.mxu0
    %v7563 = vadd.f32 %v7474, %v7562
    %v7564 = vpop.f32.mrf.mxu0
    %v7565 = vadd.f32 %v7476, %v7564
    %7566 = vmatmul.bf16.gmra.mxu0 %v3549
    %v7567 = vpop.f32.mrf.mxu0
    %v7568 = vadd.f32 %v7479, %v7567
    %v7569 = vpop.f32.mrf.mxu0
    %v7570 = vadd.f32 %v7481, %v7569
    %7571 = vmatmul.bf16.gmra.mxu0 %v3553
    %v7572 = vpop.f32.mrf.mxu0
    %v7573 = vadd.f32 %v7484, %v7572
    %v7574 = vpop.f32.mrf.mxu0
    %v7575 = vadd.f32 %v7486, %v7574
    %7576 = vmatmul.bf16.gmra.mxu0 %v3557
    %v7577 = vpop.f32.mrf.mxu0
    %v7578 = vadd.f32 %v7489, %v7577
    %v7579 = vpop.f32.mrf.mxu0
    %v7580 = vadd.f32 %v7491, %v7579
    %7581 = vmatmul.bf16.gmra.mxu0 %v3561
    %v7582 = vpop.f32.mrf.mxu0
    %v7583 = vadd.f32 %v7494, %v7582
    %v7584 = vpop.f32.mrf.mxu0
    %v7585 = vadd.f32 %v7496, %v7584
    %7586 = vmatmul.bf16.gmra.mxu0 %v3565
    %v7587 = vpop.f32.mrf.mxu0
    %v7588 = vadd.f32 %v7499, %v7587
    %v7589 = vpop.f32.mrf.mxu0
    %v7590 = vadd.f32 %v7501, %v7589
    %7591 = vmatmul.bf16.gmra.mxu0 %v3569
    %v7592 = vpop.f32.mrf.mxu0
    %v7593 = vadd.f32 %v7504, %v7592
    %v7594 = vpop.f32.mrf.mxu0
    %v7595 = vadd.f32 %v7506, %v7594
    %7596 = vmatmul.bf16.gmra.mxu0 %v3573
    %v7597 = vpop.f32.mrf.mxu0
    %v7598 = vadd.f32 %v7509, %v7597
    %v7599 = vpop.f32.mrf.mxu0
    %v7600 = vadd.f32 %v7511, %v7599
    %7601 = vdwg.mxu0
    %7602 = vmatpush.bf16.msra.mxu0 %v4661
    %7603 = vmatpush.bf16.msra.mxu0 %v4653
    %7604 = vmatpush.bf16.msra.mxu0 %v4645
    %7605 = vmatpush.bf16.msra.mxu0 %v4637
    %7606 = vmatpush.bf16.msra.mxu0 %v4629
    %7607 = vmatpush.bf16.msra.mxu0 %v4621
    %7608 = vmatpush.bf16.msra.mxu0 %v4613
    %7609 = vmatpush.bf16.msra.mxu0 %v4605
    %7610 = vmatmul.bf16.gmra.mxu0 %v3510
    %v7611 = vpop.f32.mrf.mxu0
    %v7612 = vadd.f32 0.0, %v7611
    %v7613 = vpop.f32.mrf.mxu0
    %v7614 = vadd.f32 0.0, %v7613
    %7615 = vmatmul.bf16.gmra.mxu0 %v3514
    %v7616 = vpop.f32.mrf.mxu0
    %v7617 = vadd.f32 0.0, %v7616
    %v7618 = vpop.f32.mrf.mxu0
    %v7619 = vadd.f32 0.0, %v7618
    %7620 = vmatmul.bf16.gmra.mxu0 %v3518
    %v7621 = vpop.f32.mrf.mxu0
    %v7622 = vadd.f32 0.0, %v7621
    %v7623 = vpop.f32.mrf.mxu0
    %v7624 = vadd.f32 0.0, %v7623
    %7625 = vmatmul.bf16.gmra.mxu0 %v3522
    %v7626 = vpop.f32.mrf.mxu0
    %v7627 = vadd.f32 0.0, %v7626
    %v7628 = vpop.f32.mrf.mxu0
    %v7629 = vadd.f32 0.0, %v7628
    %7630 = vmatmul.bf16.gmra.mxu0 %v3526
    %v7631 = vpop.f32.mrf.mxu0
    %v7632 = vadd.f32 0.0, %v7631
    %v7633 = vpop.f32.mrf.mxu0
    %v7634 = vadd.f32 0.0, %v7633
    %7635 = vmatmul.bf16.gmra.mxu0 %v3530
    %v7636 = vpop.f32.mrf.mxu0
    %v7637 = vadd.f32 0.0, %v7636
    %v7638 = vpop.f32.mrf.mxu0
    %v7639 = vadd.f32 0.0, %v7638
    %7640 = vmatmul.bf16.gmra.mxu0 %v3534
    %v7641 = vpop.f32.mrf.mxu0
    %v7642 = vadd.f32 0.0, %v7641
    %v7643 = vpop.f32.mrf.mxu0
    %v7644 = vadd.f32 0.0, %v7643
    %7645 = vmatmul.bf16.gmra.mxu0 %v3538
    %v7646 = vpop.f32.mrf.mxu0
    %v7647 = vadd.f32 0.0, %v7646
    %v7648 = vpop.f32.mrf.mxu0
    %v7649 = vadd.f32 0.0, %v7648
    %7650 = vmatmul.bf16.gmra.mxu0 %v3542
    %v7651 = vpop.f32.mrf.mxu0
    %v7652 = vadd.f32 0.0, %v7651
    %v7653 = vpop.f32.mrf.mxu0
    %v7654 = vadd.f32 0.0, %v7653
    %7655 = vmatmul.bf16.gmra.mxu0 %v3546
    %v7656 = vpop.f32.mrf.mxu0
    %v7657 = vadd.f32 0.0, %v7656
    %v7658 = vpop.f32.mrf.mxu0
    %v7659 = vadd.f32 0.0, %v7658
    %7660 = vmatmul.bf16.gmra.mxu0 %v3550
    %v7661 = vpop.f32.mrf.mxu0
    %v7662 = vadd.f32 0.0, %v7661
    %v7663 = vpop.f32.mrf.mxu0
    %v7664 = vadd.f32 0.0, %v7663
    %7665 = vmatmul.bf16.gmra.mxu0 %v3554
    %v7666 = vpop.f32.mrf.mxu0
    %v7667 = vadd.f32 0.0, %v7666
    %v7668 = vpop.f32.mrf.mxu0
    %v7669 = vadd.f32 0.0, %v7668
    %7670 = vmatmul.bf16.gmra.mxu0 %v3558
    %v7671 = vpop.f32.mrf.mxu0
    %v7672 = vadd.f32 0.0, %v7671
    %v7673 = vpop.f32.mrf.mxu0
    %v7674 = vadd.f32 0.0, %v7673
    %7675 = vmatmul.bf16.gmra.mxu0 %v3562
    %v7676 = vpop.f32.mrf.mxu0
    %v7677 = vadd.f32 0.0, %v7676
    %v7678 = vpop.f32.mrf.mxu0
    %v7679 = vadd.f32 0.0, %v7678
    %7680 = vmatmul.bf16.gmra.mxu0 %v3566
    %v7681 = vpop.f32.mrf.mxu0
    %v7682 = vadd.f32 0.0, %v7681
    %v7683 = vpop.f32.mrf.mxu0
    %v7684 = vadd.f32 0.0, %v7683
    %7685 = vmatmul.bf16.gmra.mxu0 %v3570
    %v7686 = vpop.f32.mrf.mxu0
    %v7687 = vadd.f32 0.0, %v7686
    %v7688 = vpop.f32.mrf.mxu0
    %v7689 = vadd.f32 0.0, %v7688
    %7690 = vdwg.mxu0
    %7691 = vmatpush.bf16.msra.mxu0 %v4725
    %7692 = vmatpush.bf16.msra.mxu0 %v4717
    %7693 = vmatpush.bf16.msra.mxu0 %v4709
    %7694 = vmatpush.bf16.msra.mxu0 %v4701
    %7695 = vmatpush.bf16.msra.mxu0 %v4693
    %7696 = vmatpush.bf16.msra.mxu0 %v4685
    %7697 = vmatpush.bf16.msra.mxu0 %v4677
    %7698 = vmatpush.bf16.msra.mxu0 %v4669
    %7699 = vmatmul.bf16.gmra.mxu0 %v3511
    %v7700 = vpop.f32.mrf.mxu0
    %v7701 = vadd.f32 %v7612, %v7700
    %v7702 = vpop.f32.mrf.mxu0
    %v7703 = vadd.f32 %v7614, %v7702
    %7704 = vmatmul.bf16.gmra.mxu0 %v3515
    %v7705 = vpop.f32.mrf.mxu0
    %v7706 = vadd.f32 %v7617, %v7705
    %v7707 = vpop.f32.mrf.mxu0
    %v7708 = vadd.f32 %v7619, %v7707
    %7709 = vmatmul.bf16.gmra.mxu0 %v3519
    %v7710 = vpop.f32.mrf.mxu0
    %v7711 = vadd.f32 %v7622, %v7710
    %v7712 = vpop.f32.mrf.mxu0
    %v7713 = vadd.f32 %v7624, %v7712
    %7714 = vmatmul.bf16.gmra.mxu0 %v3523
    %v7715 = vpop.f32.mrf.mxu0
    %v7716 = vadd.f32 %v7627, %v7715
    %v7717 = vpop.f32.mrf.mxu0
    %v7718 = vadd.f32 %v7629, %v7717
    %7719 = vmatmul.bf16.gmra.mxu0 %v3527
    %v7720 = vpop.f32.mrf.mxu0
    %v7721 = vadd.f32 %v7632, %v7720
    %v7722 = vpop.f32.mrf.mxu0
    %v7723 = vadd.f32 %v7634, %v7722
    %7724 = vmatmul.bf16.gmra.mxu0 %v3531
    %v7725 = vpop.f32.mrf.mxu0
    %v7726 = vadd.f32 %v7637, %v7725
    %v7727 = vpop.f32.mrf.mxu0
    %v7728 = vadd.f32 %v7639, %v7727
    %7729 = vmatmul.bf16.gmra.mxu0 %v3535
    %v7730 = vpop.f32.mrf.mxu0
    %v7731 = vadd.f32 %v7642, %v7730
    %v7732 = vpop.f32.mrf.mxu0
    %v7733 = vadd.f32 %v7644, %v7732
    %7734 = vmatmul.bf16.gmra.mxu0 %v3539
    %v7735 = vpop.f32.mrf.mxu0
    %v7736 = vadd.f32 %v7647, %v7735
    %v7737 = vpop.f32.mrf.mxu0
    %v7738 = vadd.f32 %v7649, %v7737
    %7739 = vmatmul.bf16.gmra.mxu0 %v3543
    %v7740 = vpop.f32.mrf.mxu0
    %v7741 = vadd.f32 %v7652, %v7740
    %v7742 = vpop.f32.mrf.mxu0
    %v7743 = vadd.f32 %v7654, %v7742
    %7744 = vmatmul.bf16.gmra.mxu0 %v3547
    %v7745 = vpop.f32.mrf.mxu0
    %v7746 = vadd.f32 %v7657, %v7745
    %v7747 = vpop.f32.mrf.mxu0
    %v7748 = vadd.f32 %v7659, %v7747
    %7749 = vmatmul.bf16.gmra.mxu0 %v3551
    %v7750 = vpop.f32.mrf.mxu0
    %v7751 = vadd.f32 %v7662, %v7750
    %v7752 = vpop.f32.mrf.mxu0
    %v7753 = vadd.f32 %v7664, %v7752
    %7754 = vmatmul.bf16.gmra.mxu0 %v3555
    %v7755 = vpop.f32.mrf.mxu0
    %v7756 = vadd.f32 %v7667, %v7755
    %v7757 = vpop.f32.mrf.mxu0
    %v7758 = vadd.f32 %v7669, %v7757
    %7759 = vmatmul.bf16.gmra.mxu0 %v3559
    %v7760 = vpop.f32.mrf.mxu0
    %v7761 = vadd.f32 %v7672, %v7760
    %v7762 = vpop.f32.mrf.mxu0
    %v7763 = vadd.f32 %v7674, %v7762
    %7764 = vmatmul.bf16.gmra.mxu0 %v3563
    %v7765 = vpop.f32.mrf.mxu0
    %v7766 = vadd.f32 %v7677, %v7765
    %v7767 = vpop.f32.mrf.mxu0
    %v7768 = vadd.f32 %v7679, %v7767
    %7769 = vmatmul.bf16.gmra.mxu0 %v3567
    %v7770 = vpop.f32.mrf.mxu0
    %v7771 = vadd.f32 %v7682, %v7770
    %v7772 = vpop.f32.mrf.mxu0
    %v7773 = vadd.f32 %v7684, %v7772
    %7774 = vmatmul.bf16.gmra.mxu0 %v3571
    %v7775 = vpop.f32.mrf.mxu0
    %v7776 = vadd.f32 %v7687, %v7775
    %v7777 = vpop.f32.mrf.mxu0
    %v7778 = vadd.f32 %v7689, %v7777
    %7779 = vdwg.mxu0
    %7780 = vmatpush.bf16.msra.mxu0 %v4789
    %7781 = vmatpush.bf16.msra.mxu0 %v4781
    %7782 = vmatpush.bf16.msra.mxu0 %v4773
    %7783 = vmatpush.bf16.msra.mxu0 %v4765
    %7784 = vmatpush.bf16.msra.mxu0 %v4757
    %7785 = vmatpush.bf16.msra.mxu0 %v4749
    %7786 = vmatpush.bf16.msra.mxu0 %v4741
    %7787 = vmatpush.bf16.msra.mxu0 %v4733
    %7788 = vmatmul.bf16.gmra.mxu0 %v3512
    %v7789 = vpop.f32.mrf.mxu0
    %v7790 = vadd.f32 %v7701, %v7789
    %v7791 = vpop.f32.mrf.mxu0
    %v7792 = vadd.f32 %v7703, %v7791
    %7793 = vmatmul.bf16.gmra.mxu0 %v3516
    %v7794 = vpop.f32.mrf.mxu0
    %v7795 = vadd.f32 %v7706, %v7794
    %v7796 = vpop.f32.mrf.mxu0
    %v7797 = vadd.f32 %v7708, %v7796
    %7798 = vmatmul.bf16.gmra.mxu0 %v3520
    %v7799 = vpop.f32.mrf.mxu0
    %v7800 = vadd.f32 %v7711, %v7799
    %v7801 = vpop.f32.mrf.mxu0
    %v7802 = vadd.f32 %v7713, %v7801
    %7803 = vmatmul.bf16.gmra.mxu0 %v3524
    %v7804 = vpop.f32.mrf.mxu0
    %v7805 = vadd.f32 %v7716, %v7804
    %v7806 = vpop.f32.mrf.mxu0
    %v7807 = vadd.f32 %v7718, %v7806
    %7808 = vmatmul.bf16.gmra.mxu0 %v3528
    %v7809 = vpop.f32.mrf.mxu0
    %v7810 = vadd.f32 %v7721, %v7809
    %v7811 = vpop.f32.mrf.mxu0
    %v7812 = vadd.f32 %v7723, %v7811
    %7813 = vmatmul.bf16.gmra.mxu0 %v3532
    %v7814 = vpop.f32.mrf.mxu0
    %v7815 = vadd.f32 %v7726, %v7814
    %v7816 = vpop.f32.mrf.mxu0
    %v7817 = vadd.f32 %v7728, %v7816
    %7818 = vmatmul.bf16.gmra.mxu0 %v3536
    %v7819 = vpop.f32.mrf.mxu0
    %v7820 = vadd.f32 %v7731, %v7819
    %v7821 = vpop.f32.mrf.mxu0
    %v7822 = vadd.f32 %v7733, %v7821
    %7823 = vmatmul.bf16.gmra.mxu0 %v3540
    %v7824 = vpop.f32.mrf.mxu0
    %v7825 = vadd.f32 %v7736, %v7824
    %v7826 = vpop.f32.mrf.mxu0
    %v7827 = vadd.f32 %v7738, %v7826
    %7828 = vmatmul.bf16.gmra.mxu0 %v3544
    %v7829 = vpop.f32.mrf.mxu0
    %v7830 = vadd.f32 %v7741, %v7829
    %v7831 = vpop.f32.mrf.mxu0
    %v7832 = vadd.f32 %v7743, %v7831
    %7833 = vmatmul.bf16.gmra.mxu0 %v3548
    %v7834 = vpop.f32.mrf.mxu0
    %v7835 = vadd.f32 %v7746, %v7834
    %v7836 = vpop.f32.mrf.mxu0
    %v7837 = vadd.f32 %v7748, %v7836
    %7838 = vmatmul.bf16.gmra.mxu0 %v3552
    %v7839 = vpop.f32.mrf.mxu0
    %v7840 = vadd.f32 %v7751, %v7839
    %v7841 = vpop.f32.mrf.mxu0
    %v7842 = vadd.f32 %v7753, %v7841
    %7843 = vmatmul.bf16.gmra.mxu0 %v3556
    %v7844 = vpop.f32.mrf.mxu0
    %v7845 = vadd.f32 %v7756, %v7844
    %v7846 = vpop.f32.mrf.mxu0
    %v7847 = vadd.f32 %v7758, %v7846
    %7848 = vmatmul.bf16.gmra.mxu0 %v3560
    %v7849 = vpop.f32.mrf.mxu0
    %v7850 = vadd.f32 %v7761, %v7849
    %v7851 = vpop.f32.mrf.mxu0
    %v7852 = vadd.f32 %v7763, %v7851
    %7853 = vmatmul.bf16.gmra.mxu0 %v3564
    %v7854 = vpop.f32.mrf.mxu0
    %v7855 = vadd.f32 %v7766, %v7854
    %v7856 = vpop.f32.mrf.mxu0
    %v7857 = vadd.f32 %v7768, %v7856
    %7858 = vmatmul.bf16.gmra.mxu0 %v3568
    %v7859 = vpop.f32.mrf.mxu0
    %v7860 = vadd.f32 %v7771, %v7859
    %v7861 = vpop.f32.mrf.mxu0
    %v7862 = vadd.f32 %v7773, %v7861
    %7863 = vmatmul.bf16.gmra.mxu0 %v3572
    %v7864 = vpop.f32.mrf.mxu0
    %v7865 = vadd.f32 %v7776, %v7864
    %v7866 = vpop.f32.mrf.mxu0
    %v7867 = vadd.f32 %v7778, %v7866
    %7868 = vdwg.mxu0
    %7869 = vmatpush.bf16.msra.mxu0 %v4853
    %7870 = vmatpush.bf16.msra.mxu0 %v4845
    %7871 = vmatpush.bf16.msra.mxu0 %v4837
    %7872 = vmatpush.bf16.msra.mxu0 %v4829
    %7873 = vmatpush.bf16.msra.mxu0 %v4821
    %7874 = vmatpush.bf16.msra.mxu0 %v4813
    %7875 = vmatpush.bf16.msra.mxu0 %v4805
    %7876 = vmatpush.bf16.msra.mxu0 %v4797
    %7877 = vmatmul.bf16.gmra.mxu0 %v3513
    %v7878 = vpop.f32.mrf.mxu0
    %v7879 = vadd.f32 %v7790, %v7878
    %v7880 = vpop.f32.mrf.mxu0
    %v7881 = vadd.f32 %v7792, %v7880
    %7882 = vmatmul.bf16.gmra.mxu0 %v3517
    %v7883 = vpop.f32.mrf.mxu0
    %v7884 = vadd.f32 %v7795, %v7883
    %v7885 = vpop.f32.mrf.mxu0
    %v7886 = vadd.f32 %v7797, %v7885
    %7887 = vmatmul.bf16.gmra.mxu0 %v3521
    %v7888 = vpop.f32.mrf.mxu0
    %v7889 = vadd.f32 %v7800, %v7888
    %v7890 = vpop.f32.mrf.mxu0
    %v7891 = vadd.f32 %v7802, %v7890
    %7892 = vmatmul.bf16.gmra.mxu0 %v3525
    %v7893 = vpop.f32.mrf.mxu0
    %v7894 = vadd.f32 %v7805, %v7893
    %v7895 = vpop.f32.mrf.mxu0
    %v7896 = vadd.f32 %v7807, %v7895
    %7897 = vmatmul.bf16.gmra.mxu0 %v3529
    %v7898 = vpop.f32.mrf.mxu0
    %v7899 = vadd.f32 %v7810, %v7898
    %v7900 = vpop.f32.mrf.mxu0
    %v7901 = vadd.f32 %v7812, %v7900
    %7902 = vmatmul.bf16.gmra.mxu0 %v3533
    %v7903 = vpop.f32.mrf.mxu0
    %v7904 = vadd.f32 %v7815, %v7903
    %v7905 = vpop.f32.mrf.mxu0
    %v7906 = vadd.f32 %v7817, %v7905
    %7907 = vmatmul.bf16.gmra.mxu0 %v3537
    %v7908 = vpop.f32.mrf.mxu0
    %v7909 = vadd.f32 %v7820, %v7908
    %v7910 = vpop.f32.mrf.mxu0
    %v7911 = vadd.f32 %v7822, %v7910
    %7912 = vmatmul.bf16.gmra.mxu0 %v3541
    %v7913 = vpop.f32.mrf.mxu0
    %v7914 = vadd.f32 %v7825, %v7913
    %v7915 = vpop.f32.mrf.mxu0
    %v7916 = vadd.f32 %v7827, %v7915
    %7917 = vmatmul.bf16.gmra.mxu0 %v3545
    %v7918 = vpop.f32.mrf.mxu0
    %v7919 = vadd.f32 %v7830, %v7918
    %v7920 = vpop.f32.mrf.mxu0
    %v7921 = vadd.f32 %v7832, %v7920
    %7922 = vmatmul.bf16.gmra.mxu0 %v3549
    %v7923 = vpop.f32.mrf.mxu0
    %v7924 = vadd.f32 %v7835, %v7923
    %v7925 = vpop.f32.mrf.mxu0
    %v7926 = vadd.f32 %v7837, %v7925
    %7927 = vmatmul.bf16.gmra.mxu0 %v3553
    %v7928 = vpop.f32.mrf.mxu0
    %v7929 = vadd.f32 %v7840, %v7928
    %v7930 = vpop.f32.mrf.mxu0
    %v7931 = vadd.f32 %v7842, %v7930
    %7932 = vmatmul.bf16.gmra.mxu0 %v3557
    %v7933 = vpop.f32.mrf.mxu0
    %v7934 = vadd.f32 %v7845, %v7933
    %v7935 = vpop.f32.mrf.mxu0
    %v7936 = vadd.f32 %v7847, %v7935
    %7937 = vmatmul.bf16.gmra.mxu0 %v3561
    %v7938 = vpop.f32.mrf.mxu0
    %v7939 = vadd.f32 %v7850, %v7938
    %v7940 = vpop.f32.mrf.mxu0
    %v7941 = vadd.f32 %v7852, %v7940
    %7942 = vmatmul.bf16.gmra.mxu0 %v3565
    %v7943 = vpop.f32.mrf.mxu0
    %v7944 = vadd.f32 %v7855, %v7943
    %v7945 = vpop.f32.mrf.mxu0
    %v7946 = vadd.f32 %v7857, %v7945
    %7947 = vmatmul.bf16.gmra.mxu0 %v3569
    %v7948 = vpop.f32.mrf.mxu0
    %v7949 = vadd.f32 %v7860, %v7948
    %v7950 = vpop.f32.mrf.mxu0
    %v7951 = vadd.f32 %v7862, %v7950
    %7952 = vmatmul.bf16.gmra.mxu0 %v3573
    %v7953 = vpop.f32.mrf.mxu0
    %v7954 = vadd.f32 %v7865, %v7953
    %v7955 = vpop.f32.mrf.mxu0
    %v7956 = vadd.f32 %v7867, %v7955
    %7957 = vdwg.mxu0
    %v7958 = vadd.f32 %v5387, %v5389
    %v7959 = vadd.f32 %v7958, %v5392
    %v7960 = vadd.f32 %v7959, %v5394
    %v7961 = vadd.f32 %v7960, %v5397
    %v7962 = vadd.f32 %v7961, %v5399
    %v7963 = vadd.f32 %v7962, %v5402
    %v7964 = vadd.f32 %v7963, %v5404
    %v7965 = vadd.f32 %v7964, %v5407
    %v7966 = vadd.f32 %v7965, %v5409
    %v7967 = vadd.f32 %v7966, %v5412
    %v7968 = vadd.f32 %v7967, %v5414
    %v7969 = vadd.f32 %v7968, %v5417
    %v7970 = vadd.f32 %v7969, %v5419
    %v7971 = vadd.f32 %v7970, %v5422
    %v7972 = vadd.f32 %v7971, %v5424
    %v7973 = vadd.f32 %v7972, %v5427
    %v7974 = vadd.f32 %v7973, %v5429
    %v7975 = vadd.f32 %v7974, %v5432
    %v7976 = vadd.f32 %v7975, %v5434
    %v7977 = vadd.f32 %v7976, %v5437
    %v7978 = vadd.f32 %v7977, %v5439
    %v7979 = vadd.f32 %v7978, %v5442
    %v7980 = vadd.f32 %v7979, %v5444
    %v7981 = vadd.f32 %v7980, %v5447
    %v7982 = vadd.f32 %v7981, %v5449
    %v7983 = vadd.f32 %v7982, %v5452
    %v7984 = vadd.f32 %v7983, %v5454
    %v7985 = vadd.f32 %v7984, %v5457
    %v7986 = vadd.f32 %v7985, %v5459
    %v7987 = vadd.f32 %v7986, %v5462
    %v7988 = vadd.f32 %v7987, %v5464
    %v7989 = vrot.slane %v7988, 4
    %v7990 = vadd.f32 %v7988, %v7989
    %v7991 = vrot.slane %v7990, 2
    %v7992 = vadd.f32 %v7990, %v7991
    %v7993 = vrot.slane %v7992, 1
    %v7994 = vadd.f32 %v7992, %v7993
    %v7995 = vadd.f32 %v5743, %v5745
    %v7996 = vadd.f32 %v7995, %v5748
    %v7997 = vadd.f32 %v7996, %v5750
    %v7998 = vadd.f32 %v7997, %v5753
    %v7999 = vadd.f32 %v7998, %v5755
    %v8000 = vadd.f32 %v7999, %v5758
    %v8001 = vadd.f32 %v8000, %v5760
    %v8002 = vadd.f32 %v8001, %v5763
    %v8003 = vadd.f32 %v8002, %v5765
    %v8004 = vadd.f32 %v8003, %v5768
    %v8005 = vadd.f32 %v8004, %v5770
    %v8006 = vadd.f32 %v8005, %v5773
    %v8007 = vadd.f32 %v8006, %v5775
    %v8008 = vadd.f32 %v8007, %v5778
    %v8009 = vadd.f32 %v8008, %v5780
    %v8010 = vadd.f32 %v8009, %v5783
    %v8011 = vadd.f32 %v8010, %v5785
    %v8012 = vadd.f32 %v8011, %v5788
    %v8013 = vadd.f32 %v8012, %v5790
    %v8014 = vadd.f32 %v8013, %v5793
    %v8015 = vadd.f32 %v8014, %v5795
    %v8016 = vadd.f32 %v8015, %v5798
    %v8017 = vadd.f32 %v8016, %v5800
    %v8018 = vadd.f32 %v8017, %v5803
    %v8019 = vadd.f32 %v8018, %v5805
    %v8020 = vadd.f32 %v8019, %v5808
    %v8021 = vadd.f32 %v8020, %v5810
    %v8022 = vadd.f32 %v8021, %v5813
    %v8023 = vadd.f32 %v8022, %v5815
    %v8024 = vadd.f32 %v8023, %v5818
    %v8025 = vadd.f32 %v8024, %v5820
    %v8026 = vrot.slane %v8025, 4
    %v8027 = vadd.f32 %v8025, %v8026
    %v8028 = vrot.slane %v8027, 2
    %v8029 = vadd.f32 %v8027, %v8028
    %v8030 = vrot.slane %v8029, 1
    %v8031 = vadd.f32 %v8029, %v8030
    %v8032 = vadd.f32 %v6099, %v6101
    %v8033 = vadd.f32 %v8032, %v6104
    %v8034 = vadd.f32 %v8033, %v6106
    %v8035 = vadd.f32 %v8034, %v6109
    %v8036 = vadd.f32 %v8035, %v6111
    %v8037 = vadd.f32 %v8036, %v6114
    %v8038 = vadd.f32 %v8037, %v6116
    %v8039 = vadd.f32 %v8038, %v6119
    %v8040 = vadd.f32 %v8039, %v6121
    %v8041 = vadd.f32 %v8040, %v6124
    %v8042 = vadd.f32 %v8041, %v6126
    %v8043 = vadd.f32 %v8042, %v6129
    %v8044 = vadd.f32 %v8043, %v6131
    %v8045 = vadd.f32 %v8044, %v6134
    %v8046 = vadd.f32 %v8045, %v6136
    %v8047 = vadd.f32 %v8046, %v6139
    %v8048 = vadd.f32 %v8047, %v6141
    %v8049 = vadd.f32 %v8048, %v6144
    %v8050 = vadd.f32 %v8049, %v6146
    %v8051 = vadd.f32 %v8050, %v6149
    %v8052 = vadd.f32 %v8051, %v6151
    %v8053 = vadd.f32 %v8052, %v6154
    %v8054 = vadd.f32 %v8053, %v6156
    %v8055 = vadd.f32 %v8054, %v6159
    %v8056 = vadd.f32 %v8055, %v6161
    %v8057 = vadd.f32 %v8056, %v6164
    %v8058 = vadd.f32 %v8057, %v6166
    %v8059 = vadd.f32 %v8058, %v6169
    %v8060 = vadd.f32 %v8059, %v6171
    %v8061 = vadd.f32 %v8060, %v6174
    %v8062 = vadd.f32 %v8061, %v6176
    %v8063 = vrot.slane %v8062, 4
    %v8064 = vadd.f32 %v8062, %v8063
    %v8065 = vrot.slane %v8064, 2
    %v8066 = vadd.f32 %v8064, %v8065
    %v8067 = vrot.slane %v8066, 1
    %v8068 = vadd.f32 %v8066, %v8067
    %v8069 = vadd.f32 %v6455, %v6457
    %v8070 = vadd.f32 %v8069, %v6460
    %v8071 = vadd.f32 %v8070, %v6462
    %v8072 = vadd.f32 %v8071, %v6465
    %v8073 = vadd.f32 %v8072, %v6467
    %v8074 = vadd.f32 %v8073, %v6470
    %v8075 = vadd.f32 %v8074, %v6472
    %v8076 = vadd.f32 %v8075, %v6475
    %v8077 = vadd.f32 %v8076, %v6477
    %v8078 = vadd.f32 %v8077, %v6480
    %v8079 = vadd.f32 %v8078, %v6482
    %v8080 = vadd.f32 %v8079, %v6485
    %v8081 = vadd.f32 %v8080, %v6487
    %v8082 = vadd.f32 %v8081, %v6490
    %v8083 = vadd.f32 %v8082, %v6492
    %v8084 = vadd.f32 %v8083, %v6495
    %v8085 = vadd.f32 %v8084, %v6497
    %v8086 = vadd.f32 %v8085, %v6500
    %v8087 = vadd.f32 %v8086, %v6502
    %v8088 = vadd.f32 %v8087, %v6505
    %v8089 = vadd.f32 %v8088, %v6507
    %v8090 = vadd.f32 %v8089, %v6510
    %v8091 = vadd.f32 %v8090, %v6512
    %v8092 = vadd.f32 %v8091, %v6515
    %v8093 = vadd.f32 %v8092, %v6517
    %v8094 = vadd.f32 %v8093, %v6520
    %v8095 = vadd.f32 %v8094, %v6522
    %v8096 = vadd.f32 %v8095, %v6525
    %v8097 = vadd.f32 %v8096, %v6527
    %v8098 = vadd.f32 %v8097, %v6530
    %v8099 = vadd.f32 %v8098, %v6532
    %v8100 = vrot.slane %v8099, 4
    %v8101 = vadd.f32 %v8099, %v8100
    %v8102 = vrot.slane %v8101, 2
    %v8103 = vadd.f32 %v8101, %v8102
    %v8104 = vrot.slane %v8103, 1
    %v8105 = vadd.f32 %v8103, %v8104
    %v8106 = vadd.f32 %v6811, %v6813
    %v8107 = vadd.f32 %v8106, %v6816
    %v8108 = vadd.f32 %v8107, %v6818
    %v8109 = vadd.f32 %v8108, %v6821
    %v8110 = vadd.f32 %v8109, %v6823
    %v8111 = vadd.f32 %v8110, %v6826
    %v8112 = vadd.f32 %v8111, %v6828
    %v8113 = vadd.f32 %v8112, %v6831
    %v8114 = vadd.f32 %v8113, %v6833
    %v8115 = vadd.f32 %v8114, %v6836
    %v8116 = vadd.f32 %v8115, %v6838
    %v8117 = vadd.f32 %v8116, %v6841
    %v8118 = vadd.f32 %v8117, %v6843
    %v8119 = vadd.f32 %v8118, %v6846
    %v8120 = vadd.f32 %v8119, %v6848
    %v8121 = vadd.f32 %v8120, %v6851
    %v8122 = vadd.f32 %v8121, %v6853
    %v8123 = vadd.f32 %v8122, %v6856
    %v8124 = vadd.f32 %v8123, %v6858
    %v8125 = vadd.f32 %v8124, %v6861
    %v8126 = vadd.f32 %v8125, %v6863
    %v8127 = vadd.f32 %v8126, %v6866
    %v8128 = vadd.f32 %v8127, %v6868
    %v8129 = vadd.f32 %v8128, %v6871
    %v8130 = vadd.f32 %v8129, %v6873
    %v8131 = vadd.f32 %v8130, %v6876
    %v8132 = vadd.f32 %v8131, %v6878
    %v8133 = vadd.f32 %v8132, %v6881
    %v8134 = vadd.f32 %v8133, %v6883
    %v8135 = vadd.f32 %v8134, %v6886
    %v8136 = vadd.f32 %v8135, %v6888
    %v8137 = vrot.slane %v8136, 4
    %v8138 = vadd.f32 %v8136, %v8137
    %v8139 = vrot.slane %v8138, 2
    %v8140 = vadd.f32 %v8138, %v8139
    %v8141 = vrot.slane %v8140, 1
    %v8142 = vadd.f32 %v8140, %v8141
    %v8143 = vadd.f32 %v7167, %v7169
    %v8144 = vadd.f32 %v8143, %v7172
    %v8145 = vadd.f32 %v8144, %v7174
    %v8146 = vadd.f32 %v8145, %v7177
    %v8147 = vadd.f32 %v8146, %v7179
    %v8148 = vadd.f32 %v8147, %v7182
    %v8149 = vadd.f32 %v8148, %v7184
    %v8150 = vadd.f32 %v8149, %v7187
    %v8151 = vadd.f32 %v8150, %v7189
    %v8152 = vadd.f32 %v8151, %v7192
    %v8153 = vadd.f32 %v8152, %v7194
    %v8154 = vadd.f32 %v8153, %v7197
    %v8155 = vadd.f32 %v8154, %v7199
    %v8156 = vadd.f32 %v8155, %v7202
    %v8157 = vadd.f32 %v8156, %v7204
    %v8158 = vadd.f32 %v8157, %v7207
    %v8159 = vadd.f32 %v8158, %v7209
    %v8160 = vadd.f32 %v8159, %v7212
    %v8161 = vadd.f32 %v8160, %v7214
    %v8162 = vadd.f32 %v8161, %v7217
    %v8163 = vadd.f32 %v8162, %v7219
    %v8164 = vadd.f32 %v8163, %v7222
    %v8165 = vadd.f32 %v8164, %v7224
    %v8166 = vadd.f32 %v8165, %v7227
    %v8167 = vadd.f32 %v8166, %v7229
    %v8168 = vadd.f32 %v8167, %v7232
    %v8169 = vadd.f32 %v8168, %v7234
    %v8170 = vadd.f32 %v8169, %v7237
    %v8171 = vadd.f32 %v8170, %v7239
    %v8172 = vadd.f32 %v8171, %v7242
    %v8173 = vadd.f32 %v8172, %v7244
    %v8174 = vrot.slane %v8173, 4
    %v8175 = vadd.f32 %v8173, %v8174
    %v8176 = vrot.slane %v8175, 2
    %v8177 = vadd.f32 %v8175, %v8176
    %v8178 = vrot.slane %v8177, 1
    %v8179 = vadd.f32 %v8177, %v8178
    %v8180 = vadd.f32 %v7523, %v7525
    %v8181 = vadd.f32 %v8180, %v7528
    %v8182 = vadd.f32 %v8181, %v7530
    %v8183 = vadd.f32 %v8182, %v7533
    %v8184 = vadd.f32 %v8183, %v7535
    %v8185 = vadd.f32 %v8184, %v7538
    %v8186 = vadd.f32 %v8185, %v7540
    %v8187 = vadd.f32 %v8186, %v7543
    %v8188 = vadd.f32 %v8187, %v7545
    %v8189 = vadd.f32 %v8188, %v7548
    %v8190 = vadd.f32 %v8189, %v7550
    %v8191 = vadd.f32 %v8190, %v7553
    %v8192 = vadd.f32 %v8191, %v7555
    %v8193 = vadd.f32 %v8192, %v7558
    %v8194 = vadd.f32 %v8193, %v7560
    %v8195 = vadd.f32 %v8194, %v7563
    %v8196 = vadd.f32 %v8195, %v7565
    %v8197 = vadd.f32 %v8196, %v7568
    %v8198 = vadd.f32 %v8197, %v7570
    %v8199 = vadd.f32 %v8198, %v7573
    %v8200 = vadd.f32 %v8199, %v7575
    %v8201 = vadd.f32 %v8200, %v7578
    %v8202 = vadd.f32 %v8201, %v7580
    %v8203 = vadd.f32 %v8202, %v7583
    %v8204 = vadd.f32 %v8203, %v7585
    %v8205 = vadd.f32 %v8204, %v7588
    %v8206 = vadd.f32 %v8205, %v7590
    %v8207 = vadd.f32 %v8206, %v7593
    %v8208 = vadd.f32 %v8207, %v7595
    %v8209 = vadd.f32 %v8208, %v7598
    %v8210 = vadd.f32 %v8209, %v7600
    %v8211 = vrot.slane %v8210, 4
    %v8212 = vadd.f32 %v8210, %v8211
    %v8213 = vrot.slane %v8212, 2
    %v8214 = vadd.f32 %v8212, %v8213
    %v8215 = vrot.slane %v8214, 1
    %v8216 = vadd.f32 %v8214, %v8215
    %v8217 = vadd.f32 %v7879, %v7881
    %v8218 = vadd.f32 %v8217, %v7884
    %v8219 = vadd.f32 %v8218, %v7886
    %v8220 = vadd.f32 %v8219, %v7889
    %v8221 = vadd.f32 %v8220, %v7891
    %v8222 = vadd.f32 %v8221, %v7894
    %v8223 = vadd.f32 %v8222, %v7896
    %v8224 = vadd.f32 %v8223, %v7899
    %v8225 = vadd.f32 %v8224, %v7901
    %v8226 = vadd.f32 %v8225, %v7904
    %v8227 = vadd.f32 %v8226, %v7906
    %v8228 = vadd.f32 %v8227, %v7909
    %v8229 = vadd.f32 %v8228, %v7911
    %v8230 = vadd.f32 %v8229, %v7914
    %v8231 = vadd.f32 %v8230, %v7916
    %v8232 = vadd.f32 %v8231, %v7919
    %v8233 = vadd.f32 %v8232, %v7921
    %v8234 = vadd.f32 %v8233, %v7924
    %v8235 = vadd.f32 %v8234, %v7926
    %v8236 = vadd.f32 %v8235, %v7929
    %v8237 = vadd.f32 %v8236, %v7931
    %v8238 = vadd.f32 %v8237, %v7934
    %v8239 = vadd.f32 %v8238, %v7936
    %v8240 = vadd.f32 %v8239, %v7939
    %v8241 = vadd.f32 %v8240, %v7941
    %v8242 = vadd.f32 %v8241, %v7944
    %v8243 = vadd.f32 %v8242, %v7946
    %v8244 = vadd.f32 %v8243, %v7949
    %v8245 = vadd.f32 %v8244, %v7951
    %v8246 = vadd.f32 %v8245, %v7954
    %v8247 = vadd.f32 %v8246, %v7956
    %v8248 = vrot.slane %v8247, 4
    %v8249 = vadd.f32 %v8247, %v8248
    %v8250 = vrot.slane %v8249, 2
    %v8251 = vadd.f32 %v8249, %v8250
    %v8252 = vrot.slane %v8251, 1
    %v8253 = vadd.f32 %v8251, %v8252
    %v8254 = vmul.f32 %v7994, 0.00390625
    %v8255 = vmul.f32 %v8031, 0.00390625
    %v8256 = vmul.f32 %v8068, 0.00390625
    %v8257 = vmul.f32 %v8105, 0.00390625
    %v8258 = vmul.f32 %v8142, 0.00390625
    %v8259 = vmul.f32 %v8179, 0.00390625
    %v8260 = vmul.f32 %v8216, 0.00390625
    %v8261 = vmul.f32 %v8253, 0.00390625
    %v8262 = vsub.f32 %v5387, %v8254
    %v8263 = vsub.f32 %v5743, %v8255
    %v8264 = vsub.f32 %v6099, %v8256
    %v8265 = vsub.f32 %v6455, %v8257
    %v8266 = vsub.f32 %v6811, %v8258
    %v8267 = vsub.f32 %v7167, %v8259
    %v8268 = vsub.f32 %v7523, %v8260
    %v8269 = vsub.f32 %v7879, %v8261
    %v8270 = vsub.f32 %v5389, %v8254
    %v8271 = vsub.f32 %v5745, %v8255
    %v8272 = vsub.f32 %v6101, %v8256
    %v8273 = vsub.f32 %v6457, %v8257
    %v8274 = vsub.f32 %v6813, %v8258
    %v8275 = vsub.f32 %v7169, %v8259
    %v8276 = vsub.f32 %v7525, %v8260
    %v8277 = vsub.f32 %v7881, %v8261
    %v8278 = vsub.f32 %v5392, %v8254
    %v8279 = vsub.f32 %v5748, %v8255
    %v8280 = vsub.f32 %v6104, %v8256
    %v8281 = vsub.f32 %v6460, %v8257
    %v8282 = vsub.f32 %v6816, %v8258
    %v8283 = vsub.f32 %v7172, %v8259
    %v8284 = vsub.f32 %v7528, %v8260
    %v8285 = vsub.f32 %v7884, %v8261
    %v8286 = vsub.f32 %v5394, %v8254
    %v8287 = vsub.f32 %v5750, %v8255
    %v8288 = vsub.f32 %v6106, %v8256
    %v8289 = vsub.f32 %v6462, %v8257
    %v8290 = vsub.f32 %v6818, %v8258
    %v8291 = vsub.f32 %v7174, %v8259
    %v8292 = vsub.f32 %v7530, %v8260
    %v8293 = vsub.f32 %v7886, %v8261
    %v8294 = vsub.f32 %v5397, %v8254
    %v8295 = vsub.f32 %v5753, %v8255
    %v8296 = vsub.f32 %v6109, %v8256
    %v8297 = vsub.f32 %v6465, %v8257
    %v8298 = vsub.f32 %v6821, %v8258
    %v8299 = vsub.f32 %v7177, %v8259
    %v8300 = vsub.f32 %v7533, %v8260
    %v8301 = vsub.f32 %v7889, %v8261
    %v8302 = vsub.f32 %v5399, %v8254
    %v8303 = vsub.f32 %v5755, %v8255
    %v8304 = vsub.f32 %v6111, %v8256
    %v8305 = vsub.f32 %v6467, %v8257
    %v8306 = vsub.f32 %v6823, %v8258
    %v8307 = vsub.f32 %v7179, %v8259
    %v8308 = vsub.f32 %v7535, %v8260
    %v8309 = vsub.f32 %v7891, %v8261
    %v8310 = vsub.f32 %v5402, %v8254
    %v8311 = vsub.f32 %v5758, %v8255
    %v8312 = vsub.f32 %v6114, %v8256
    %v8313 = vsub.f32 %v6470, %v8257
    %v8314 = vsub.f32 %v6826, %v8258
    %v8315 = vsub.f32 %v7182, %v8259
    %v8316 = vsub.f32 %v7538, %v8260
    %v8317 = vsub.f32 %v7894, %v8261
    %v8318 = vsub.f32 %v5404, %v8254
    %v8319 = vsub.f32 %v5760, %v8255
    %v8320 = vsub.f32 %v6116, %v8256
    %v8321 = vsub.f32 %v6472, %v8257
    %v8322 = vsub.f32 %v6828, %v8258
    %v8323 = vsub.f32 %v7184, %v8259
    %v8324 = vsub.f32 %v7540, %v8260
    %v8325 = vsub.f32 %v7896, %v8261
    %v8326 = vsub.f32 %v5407, %v8254
    %v8327 = vsub.f32 %v5763, %v8255
    %v8328 = vsub.f32 %v6119, %v8256
    %v8329 = vsub.f32 %v6475, %v8257
    %v8330 = vsub.f32 %v6831, %v8258
    %v8331 = vsub.f32 %v7187, %v8259
    %v8332 = vsub.f32 %v7543, %v8260
    %v8333 = vsub.f32 %v7899, %v8261
    %v8334 = vsub.f32 %v5409, %v8254
    %v8335 = vsub.f32 %v5765, %v8255
    %v8336 = vsub.f32 %v6121, %v8256
    %v8337 = vsub.f32 %v6477, %v8257
    %v8338 = vsub.f32 %v6833, %v8258
    %v8339 = vsub.f32 %v7189, %v8259
    %v8340 = vsub.f32 %v7545, %v8260
    %v8341 = vsub.f32 %v7901, %v8261
    %v8342 = vsub.f32 %v5412, %v8254
    %v8343 = vsub.f32 %v5768, %v8255
    %v8344 = vsub.f32 %v6124, %v8256
    %v8345 = vsub.f32 %v6480, %v8257
    %v8346 = vsub.f32 %v6836, %v8258
    %v8347 = vsub.f32 %v7192, %v8259
    %v8348 = vsub.f32 %v7548, %v8260
    %v8349 = vsub.f32 %v7904, %v8261
    %v8350 = vsub.f32 %v5414, %v8254
    %v8351 = vsub.f32 %v5770, %v8255
    %v8352 = vsub.f32 %v6126, %v8256
    %v8353 = vsub.f32 %v6482, %v8257
    %v8354 = vsub.f32 %v6838, %v8258
    %v8355 = vsub.f32 %v7194, %v8259
    %v8356 = vsub.f32 %v7550, %v8260
    %v8357 = vsub.f32 %v7906, %v8261
    %v8358 = vsub.f32 %v5417, %v8254
    %v8359 = vsub.f32 %v5773, %v8255
    %v8360 = vsub.f32 %v6129, %v8256
    %v8361 = vsub.f32 %v6485, %v8257
    %v8362 = vsub.f32 %v6841, %v8258
    %v8363 = vsub.f32 %v7197, %v8259
    %v8364 = vsub.f32 %v7553, %v8260
    %v8365 = vsub.f32 %v7909, %v8261
    %v8366 = vsub.f32 %v5419, %v8254
    %v8367 = vsub.f32 %v5775, %v8255
    %v8368 = vsub.f32 %v6131, %v8256
    %v8369 = vsub.f32 %v6487, %v8257
    %v8370 = vsub.f32 %v6843, %v8258
    %v8371 = vsub.f32 %v7199, %v8259
    %v8372 = vsub.f32 %v7555, %v8260
    %v8373 = vsub.f32 %v7911, %v8261
    %v8374 = vsub.f32 %v5422, %v8254
    %v8375 = vsub.f32 %v5778, %v8255
    %v8376 = vsub.f32 %v6134, %v8256
    %v8377 = vsub.f32 %v6490, %v8257
    %v8378 = vsub.f32 %v6846, %v8258
    %v8379 = vsub.f32 %v7202, %v8259
    %v8380 = vsub.f32 %v7558, %v8260
    %v8381 = vsub.f32 %v7914, %v8261
    %v8382 = vsub.f32 %v5424, %v8254
    %v8383 = vsub.f32 %v5780, %v8255
    %v8384 = vsub.f32 %v6136, %v8256
    %v8385 = vsub.f32 %v6492, %v8257
    %v8386 = vsub.f32 %v6848, %v8258
    %v8387 = vsub.f32 %v7204, %v8259
    %v8388 = vsub.f32 %v7560, %v8260
    %v8389 = vsub.f32 %v7916, %v8261
    %v8390 = vsub.f32 %v5427, %v8254
    %v8391 = vsub.f32 %v5783, %v8255
    %v8392 = vsub.f32 %v6139, %v8256
    %v8393 = vsub.f32 %v6495, %v8257
    %v8394 = vsub.f32 %v6851, %v8258
    %v8395 = vsub.f32 %v7207, %v8259
    %v8396 = vsub.f32 %v7563, %v8260
    %v8397 = vsub.f32 %v7919, %v8261
    %v8398 = vsub.f32 %v5429, %v8254
    %v8399 = vsub.f32 %v5785, %v8255
    %v8400 = vsub.f32 %v6141, %v8256
    %v8401 = vsub.f32 %v6497, %v8257
    %v8402 = vsub.f32 %v6853, %v8258
    %v8403 = vsub.f32 %v7209, %v8259
    %v8404 = vsub.f32 %v7565, %v8260
    %v8405 = vsub.f32 %v7921, %v8261
    %v8406 = vsub.f32 %v5432, %v8254
    %v8407 = vsub.f32 %v5788, %v8255
    %v8408 = vsub.f32 %v6144, %v8256
    %v8409 = vsub.f32 %v6500, %v8257
    %v8410 = vsub.f32 %v6856, %v8258
    %v8411 = vsub.f32 %v7212, %v8259
    %v8412 = vsub.f32 %v7568, %v8260
    %v8413 = vsub.f32 %v7924, %v8261
    %v8414 = vsub.f32 %v5434, %v8254
    %v8415 = vsub.f32 %v5790, %v8255
    %v8416 = vsub.f32 %v6146, %v8256
    %v8417 = vsub.f32 %v6502, %v8257
    %v8418 = vsub.f32 %v6858, %v8258
    %v8419 = vsub.f32 %v7214, %v8259
    %v8420 = vsub.f32 %v7570, %v8260
    %v8421 = vsub.f32 %v7926, %v8261
    %v8422 = vsub.f32 %v5437, %v8254
    %v8423 = vsub.f32 %v5793, %v8255
    %v8424 = vsub.f32 %v6149, %v8256
    %v8425 = vsub.f32 %v6505, %v8257
    %v8426 = vsub.f32 %v6861, %v8258
    %v8427 = vsub.f32 %v7217, %v8259
    %v8428 = vsub.f32 %v7573, %v8260
    %v8429 = vsub.f32 %v7929, %v8261
    %v8430 = vsub.f32 %v5439, %v8254
    %v8431 = vsub.f32 %v5795, %v8255
    %v8432 = vsub.f32 %v6151, %v8256
    %v8433 = vsub.f32 %v6507, %v8257
    %v8434 = vsub.f32 %v6863, %v8258
    %v8435 = vsub.f32 %v7219, %v8259
    %v8436 = vsub.f32 %v7575, %v8260
    %v8437 = vsub.f32 %v7931, %v8261
    %v8438 = vsub.f32 %v5442, %v8254
    %v8439 = vsub.f32 %v5798, %v8255
    %v8440 = vsub.f32 %v6154, %v8256
    %v8441 = vsub.f32 %v6510, %v8257
    %v8442 = vsub.f32 %v6866, %v8258
    %v8443 = vsub.f32 %v7222, %v8259
    %v8444 = vsub.f32 %v7578, %v8260
    %v8445 = vsub.f32 %v7934, %v8261
    %v8446 = vsub.f32 %v5444, %v8254
    %v8447 = vsub.f32 %v5800, %v8255
    %v8448 = vsub.f32 %v6156, %v8256
    %v8449 = vsub.f32 %v6512, %v8257
    %v8450 = vsub.f32 %v6868, %v8258
    %v8451 = vsub.f32 %v7224, %v8259
    %v8452 = vsub.f32 %v7580, %v8260
    %v8453 = vsub.f32 %v7936, %v8261
    %v8454 = vsub.f32 %v5447, %v8254
    %v8455 = vsub.f32 %v5803, %v8255
    %v8456 = vsub.f32 %v6159, %v8256
    %v8457 = vsub.f32 %v6515, %v8257
    %v8458 = vsub.f32 %v6871, %v8258
    %v8459 = vsub.f32 %v7227, %v8259
    %v8460 = vsub.f32 %v7583, %v8260
    %v8461 = vsub.f32 %v7939, %v8261
    %v8462 = vsub.f32 %v5449, %v8254
    %v8463 = vsub.f32 %v5805, %v8255
    %v8464 = vsub.f32 %v6161, %v8256
    %v8465 = vsub.f32 %v6517, %v8257
    %v8466 = vsub.f32 %v6873, %v8258
    %v8467 = vsub.f32 %v7229, %v8259
    %v8468 = vsub.f32 %v7585, %v8260
    %v8469 = vsub.f32 %v7941, %v8261
    %v8470 = vsub.f32 %v5452, %v8254
    %v8471 = vsub.f32 %v5808, %v8255
    %v8472 = vsub.f32 %v6164, %v8256
    %v8473 = vsub.f32 %v6520, %v8257
    %v8474 = vsub.f32 %v6876, %v8258
    %v8475 = vsub.f32 %v7232, %v8259
    %v8476 = vsub.f32 %v7588, %v8260
    %v8477 = vsub.f32 %v7944, %v8261
    %v8478 = vsub.f32 %v5454, %v8254
    %v8479 = vsub.f32 %v5810, %v8255
    %v8480 = vsub.f32 %v6166, %v8256
    %v8481 = vsub.f32 %v6522, %v8257
    %v8482 = vsub.f32 %v6878, %v8258
    %v8483 = vsub.f32 %v7234, %v8259
    %v8484 = vsub.f32 %v7590, %v8260
    %v8485 = vsub.f32 %v7946, %v8261
    %v8486 = vsub.f32 %v5457, %v8254
    %v8487 = vsub.f32 %v5813, %v8255
    %v8488 = vsub.f32 %v6169, %v8256
    %v8489 = vsub.f32 %v6525, %v8257
    %v8490 = vsub.f32 %v6881, %v8258
    %v8491 = vsub.f32 %v7237, %v8259
    %v8492 = vsub.f32 %v7593, %v8260
    %v8493 = vsub.f32 %v7949, %v8261
    %v8494 = vsub.f32 %v5459, %v8254
    %v8495 = vsub.f32 %v5815, %v8255
    %v8496 = vsub.f32 %v6171, %v8256
    %v8497 = vsub.f32 %v6527, %v8257
    %v8498 = vsub.f32 %v6883, %v8258
    %v8499 = vsub.f32 %v7239, %v8259
    %v8500 = vsub.f32 %v7595, %v8260
    %v8501 = vsub.f32 %v7951, %v8261
    %v8502 = vsub.f32 %v5462, %v8254
    %v8503 = vsub.f32 %v5818, %v8255
    %v8504 = vsub.f32 %v6174, %v8256
    %v8505 = vsub.f32 %v6530, %v8257
    %v8506 = vsub.f32 %v6886, %v8258
    %v8507 = vsub.f32 %v7242, %v8259
    %v8508 = vsub.f32 %v7598, %v8260
    %v8509 = vsub.f32 %v7954, %v8261
    %v8510 = vsub.f32 %v5464, %v8254
    %v8511 = vsub.f32 %v5820, %v8255
    %v8512 = vsub.f32 %v6176, %v8256
    %v8513 = vsub.f32 %v6532, %v8257
    %v8514 = vsub.f32 %v6888, %v8258
    %v8515 = vsub.f32 %v7244, %v8259
    %v8516 = vsub.f32 %v7600, %v8260
    %v8517 = vsub.f32 %v7956, %v8261
    %v8518 = vmul.f32 %v8262, %v8262
    %v8519 = vmul.f32 %v8263, %v8263
    %v8520 = vmul.f32 %v8264, %v8264
    %v8521 = vmul.f32 %v8265, %v8265
    %v8522 = vmul.f32 %v8266, %v8266
    %v8523 = vmul.f32 %v8267, %v8267
    %v8524 = vmul.f32 %v8268, %v8268
    %v8525 = vmul.f32 %v8269, %v8269
    %v8526 = vmul.f32 %v8270, %v8270
    %v8527 = vmul.f32 %v8271, %v8271
    %v8528 = vmul.f32 %v8272, %v8272
    %v8529 = vmul.f32 %v8273, %v8273
    %v8530 = vmul.f32 %v8274, %v8274
    %v8531 = vmul.f32 %v8275, %v8275
    %v8532 = vmul.f32 %v8276, %v8276
    %v8533 = vmul.f32 %v8277, %v8277
    %v8534 = vmul.f32 %v8278, %v8278
    %v8535 = vmul.f32 %v8279, %v8279
    %v8536 = vmul.f32 %v8280, %v8280
    %v8537 = vmul.f32 %v8281, %v8281
    %v8538 = vmul.f32 %v8282, %v8282
    %v8539 = vmul.f32 %v8283, %v8283
    %v8540 = vmul.f32 %v8284, %v8284
    %v8541 = vmul.f32 %v8285, %v8285
    %v8542 = vmul.f32 %v8286, %v8286
    %v8543 = vmul.f32 %v8287, %v8287
    %v8544 = vmul.f32 %v8288, %v8288
    %v8545 = vmul.f32 %v8289, %v8289
    %v8546 = vmul.f32 %v8290, %v8290
    %v8547 = vmul.f32 %v8291, %v8291
    %v8548 = vmul.f32 %v8292, %v8292
    %v8549 = vmul.f32 %v8293, %v8293
    %v8550 = vmul.f32 %v8294, %v8294
    %v8551 = vmul.f32 %v8295, %v8295
    %v8552 = vmul.f32 %v8296, %v8296
    %v8553 = vmul.f32 %v8297, %v8297
    %v8554 = vmul.f32 %v8298, %v8298
    %v8555 = vmul.f32 %v8299, %v8299
    %v8556 = vmul.f32 %v8300, %v8300
    %v8557 = vmul.f32 %v8301, %v8301
    %v8558 = vmul.f32 %v8302, %v8302
    %v8559 = vmul.f32 %v8303, %v8303
    %v8560 = vmul.f32 %v8304, %v8304
    %v8561 = vmul.f32 %v8305, %v8305
    %v8562 = vmul.f32 %v8306, %v8306
    %v8563 = vmul.f32 %v8307, %v8307
    %v8564 = vmul.f32 %v8308, %v8308
    %v8565 = vmul.f32 %v8309, %v8309
    %v8566 = vmul.f32 %v8310, %v8310
    %v8567 = vmul.f32 %v8311, %v8311
    %v8568 = vmul.f32 %v8312, %v8312
    %v8569 = vmul.f32 %v8313, %v8313
    %v8570 = vmul.f32 %v8314, %v8314
    %v8571 = vmul.f32 %v8315, %v8315
    %v8572 = vmul.f32 %v8316, %v8316
    %v8573 = vmul.f32 %v8317, %v8317
    %v8574 = vmul.f32 %v8318, %v8318
    %v8575 = vmul.f32 %v8319, %v8319
    %v8576 = vmul.f32 %v8320, %v8320
    %v8577 = vmul.f32 %v8321, %v8321
    %v8578 = vmul.f32 %v8322, %v8322
    %v8579 = vmul.f32 %v8323, %v8323
    %v8580 = vmul.f32 %v8324, %v8324
    %v8581 = vmul.f32 %v8325, %v8325
    %v8582 = vmul.f32 %v8326, %v8326
    %v8583 = vmul.f32 %v8327, %v8327
    %v8584 = vmul.f32 %v8328, %v8328
    %v8585 = vmul.f32 %v8329, %v8329
    %v8586 = vmul.f32 %v8330, %v8330
    %v8587 = vmul.f32 %v8331, %v8331
    %v8588 = vmul.f32 %v8332, %v8332
    %v8589 = vmul.f32 %v8333, %v8333
    %v8590 = vmul.f32 %v8334, %v8334
    %v8591 = vmul.f32 %v8335, %v8335
    %v8592 = vmul.f32 %v8336, %v8336
    %v8593 = vmul.f32 %v8337, %v8337
    %v8594 = vmul.f32 %v8338, %v8338
    %v8595 = vmul.f32 %v8339, %v8339
    %v8596 = vmul.f32 %v8340, %v8340
    %v8597 = vmul.f32 %v8341, %v8341
    %v8598 = vmul.f32 %v8342, %v8342
    %v8599 = vmul.f32 %v8343, %v8343
    %v8600 = vmul.f32 %v8344, %v8344
    %v8601 = vmul.f32 %v8345, %v8345
    %v8602 = vmul.f32 %v8346, %v8346
    %v8603 = vmul.f32 %v8347, %v8347
    %v8604 = vmul.f32 %v8348, %v8348
    %v8605 = vmul.f32 %v8349, %v8349
    %v8606 = vmul.f32 %v8350, %v8350
    %v8607 = vmul.f32 %v8351, %v8351
    %v8608 = vmul.f32 %v8352, %v8352
    %v8609 = vmul.f32 %v8353, %v8353
    %v8610 = vmul.f32 %v8354, %v8354
    %v8611 = vmul.f32 %v8355, %v8355
    %v8612 = vmul.f32 %v8356, %v8356
    %v8613 = vmul.f32 %v8357, %v8357
    %v8614 = vmul.f32 %v8358, %v8358
    %v8615 = vmul.f32 %v8359, %v8359
    %v8616 = vmul.f32 %v8360, %v8360
    %v8617 = vmul.f32 %v8361, %v8361
    %v8618 = vmul.f32 %v8362, %v8362
    %v8619 = vmul.f32 %v8363, %v8363
    %v8620 = vmul.f32 %v8364, %v8364
    %v8621 = vmul.f32 %v8365, %v8365
    %v8622 = vmul.f32 %v8366, %v8366
    %v8623 = vmul.f32 %v8367, %v8367
    %v8624 = vmul.f32 %v8368, %v8368
    %v8625 = vmul.f32 %v8369, %v8369
    %v8626 = vmul.f32 %v8370, %v8370
    %v8627 = vmul.f32 %v8371, %v8371
    %v8628 = vmul.f32 %v8372, %v8372
    %v8629 = vmul.f32 %v8373, %v8373
    %v8630 = vmul.f32 %v8374, %v8374
    %v8631 = vmul.f32 %v8375, %v8375
    %v8632 = vmul.f32 %v8376, %v8376
    %v8633 = vmul.f32 %v8377, %v8377
    %v8634 = vmul.f32 %v8378, %v8378
    %v8635 = vmul.f32 %v8379, %v8379
    %v8636 = vmul.f32 %v8380, %v8380
    %v8637 = vmul.f32 %v8381, %v8381
    %v8638 = vmul.f32 %v8382, %v8382
    %v8639 = vmul.f32 %v8383, %v8383
    %v8640 = vmul.f32 %v8384, %v8384
    %v8641 = vmul.f32 %v8385, %v8385
    %v8642 = vmul.f32 %v8386, %v8386
    %v8643 = vmul.f32 %v8387, %v8387
    %v8644 = vmul.f32 %v8388, %v8388
    %v8645 = vmul.f32 %v8389, %v8389
    %v8646 = vmul.f32 %v8390, %v8390
    %v8647 = vmul.f32 %v8391, %v8391
    %v8648 = vmul.f32 %v8392, %v8392
    %v8649 = vmul.f32 %v8393, %v8393
    %v8650 = vmul.f32 %v8394, %v8394
    %v8651 = vmul.f32 %v8395, %v8395
    %v8652 = vmul.f32 %v8396, %v8396
    %v8653 = vmul.f32 %v8397, %v8397
    %v8654 = vmul.f32 %v8398, %v8398
    %v8655 = vmul.f32 %v8399, %v8399
    %v8656 = vmul.f32 %v8400, %v8400
    %v8657 = vmul.f32 %v8401, %v8401
    %v8658 = vmul.f32 %v8402, %v8402
    %v8659 = vmul.f32 %v8403, %v8403
    %v8660 = vmul.f32 %v8404, %v8404
    %v8661 = vmul.f32 %v8405, %v8405
    %v8662 = vmul.f32 %v8406, %v8406
    %v8663 = vmul.f32 %v8407, %v8407
    %v8664 = vmul.f32 %v8408, %v8408
    %v8665 = vmul.f32 %v8409, %v8409
    %v8666 = vmul.f32 %v8410, %v8410
    %v8667 = vmul.f32 %v8411, %v8411
    %v8668 = vmul.f32 %v8412, %v8412
    %v8669 = vmul.f32 %v8413, %v8413
    %v8670 = vmul.f32 %v8414, %v8414
    %v8671 = vmul.f32 %v8415, %v8415
    %v8672 = vmul.f32 %v8416, %v8416
    %v8673 = vmul.f32 %v8417, %v8417
    %v8674 = vmul.f32 %v8418, %v8418
    %v8675 = vmul.f32 %v8419, %v8419
    %v8676 = vmul.f32 %v8420, %v8420
    %v8677 = vmul.f32 %v8421, %v8421
    %v8678 = vmul.f32 %v8422, %v8422
    %v8679 = vmul.f32 %v8423, %v8423
    %v8680 = vmul.f32 %v8424, %v8424
    %v8681 = vmul.f32 %v8425, %v8425
    %v8682 = vmul.f32 %v8426, %v8426
    %v8683 = vmul.f32 %v8427, %v8427
    %v8684 = vmul.f32 %v8428, %v8428
    %v8685 = vmul.f32 %v8429, %v8429
    %v8686 = vmul.f32 %v8430, %v8430
    %v8687 = vmul.f32 %v8431, %v8431
    %v8688 = vmul.f32 %v8432, %v8432
    %v8689 = vmul.f32 %v8433, %v8433
    %v8690 = vmul.f32 %v8434, %v8434
    %v8691 = vmul.f32 %v8435, %v8435
    %v8692 = vmul.f32 %v8436, %v8436
    %v8693 = vmul.f32 %v8437, %v8437
    %v8694 = vmul.f32 %v8438, %v8438
    %v8695 = vmul.f32 %v8439, %v8439
    %v8696 = vmul.f32 %v8440, %v8440
    %v8697 = vmul.f32 %v8441, %v8441
    %v8698 = vmul.f32 %v8442, %v8442
    %v8699 = vmul.f32 %v8443, %v8443
    %v8700 = vmul.f32 %v8444, %v8444
    %v8701 = vmul.f32 %v8445, %v8445
    %v8702 = vmul.f32 %v8446, %v8446
    %v8703 = vmul.f32 %v8447, %v8447
    %v8704 = vmul.f32 %v8448, %v8448
    %v8705 = vmul.f32 %v8449, %v8449
    %v8706 = vmul.f32 %v8450, %v8450
    %v8707 = vmul.f32 %v8451, %v8451
    %v8708 = vmul.f32 %v8452, %v8452
    %v8709 = vmul.f32 %v8453, %v8453
    %v8710 = vmul.f32 %v8454, %v8454
    %v8711 = vmul.f32 %v8455, %v8455
    %v8712 = vmul.f32 %v8456, %v8456
    %v8713 = vmul.f32 %v8457, %v8457
    %v8714 = vmul.f32 %v8458, %v8458
    %v8715 = vmul.f32 %v8459, %v8459
    %v8716 = vmul.f32 %v8460, %v8460
    %v8717 = vmul.f32 %v8461, %v8461
    %v8718 = vmul.f32 %v8462, %v8462
    %v8719 = vmul.f32 %v8463, %v8463
    %v8720 = vmul.f32 %v8464, %v8464
    %v8721 = vmul.f32 %v8465, %v8465
    %v8722 = vmul.f32 %v8466, %v8466
    %v8723 = vmul.f32 %v8467, %v8467
    %v8724 = vmul.f32 %v8468, %v8468
    %v8725 = vmul.f32 %v8469, %v8469
    %v8726 = vmul.f32 %v8470, %v8470
    %v8727 = vmul.f32 %v8471, %v8471
    %v8728 = vmul.f32 %v8472, %v8472
    %v8729 = vmul.f32 %v8473, %v8473
    %v8730 = vmul.f32 %v8474, %v8474
    %v8731 = vmul.f32 %v8475, %v8475
    %v8732 = vmul.f32 %v8476, %v8476
    %v8733 = vmul.f32 %v8477, %v8477
    %v8734 = vmul.f32 %v8478, %v8478
    %v8735 = vmul.f32 %v8479, %v8479
    %v8736 = vmul.f32 %v8480, %v8480
    %v8737 = vmul.f32 %v8481, %v8481
    %v8738 = vmul.f32 %v8482, %v8482
    %v8739 = vmul.f32 %v8483, %v8483
    %v8740 = vmul.f32 %v8484, %v8484
    %v8741 = vmul.f32 %v8485, %v8485
    %v8742 = vmul.f32 %v8486, %v8486
    %v8743 = vmul.f32 %v8487, %v8487
    %v8744 = vmul.f32 %v8488, %v8488
    %v8745 = vmul.f32 %v8489, %v8489
    %v8746 = vmul.f32 %v8490, %v8490
    %v8747 = vmul.f32 %v8491, %v8491
    %v8748 = vmul.f32 %v8492, %v8492
    %v8749 = vmul.f32 %v8493, %v8493
    %v8750 = vmul.f32 %v8494, %v8494
    %v8751 = vmul.f32 %v8495, %v8495
    %v8752 = vmul.f32 %v8496, %v8496
    %v8753 = vmul.f32 %v8497, %v8497
    %v8754 = vmul.f32 %v8498, %v8498
    %v8755 = vmul.f32 %v8499, %v8499
    %v8756 = vmul.f32 %v8500, %v8500
    %v8757 = vmul.f32 %v8501, %v8501
    %v8758 = vmul.f32 %v8502, %v8502
    %v8759 = vmul.f32 %v8503, %v8503
    %v8760 = vmul.f32 %v8504, %v8504
    %v8761 = vmul.f32 %v8505, %v8505
    %v8762 = vmul.f32 %v8506, %v8506
    %v8763 = vmul.f32 %v8507, %v8507
    %v8764 = vmul.f32 %v8508, %v8508
    %v8765 = vmul.f32 %v8509, %v8509
    %v8766 = vmul.f32 %v8510, %v8510
    %v8767 = vmul.f32 %v8511, %v8511
    %v8768 = vmul.f32 %v8512, %v8512
    %v8769 = vmul.f32 %v8513, %v8513
    %v8770 = vmul.f32 %v8514, %v8514
    %v8771 = vmul.f32 %v8515, %v8515
    %v8772 = vmul.f32 %v8516, %v8516
    %v8773 = vmul.f32 %v8517, %v8517
    %v8774 = vadd.f32 %v8518, %v8526
    %v8775 = vadd.f32 %v8774, %v8534
    %v8776 = vadd.f32 %v8775, %v8542
    %v8777 = vadd.f32 %v8776, %v8550
    %v8778 = vadd.f32 %v8777, %v8558
    %v8779 = vadd.f32 %v8778, %v8566
    %v8780 = vadd.f32 %v8779, %v8574
    %v8781 = vadd.f32 %v8780, %v8582
    %v8782 = vadd.f32 %v8781, %v8590
    %v8783 = vadd.f32 %v8782, %v8598
    %v8784 = vadd.f32 %v8783, %v8606
    %v8785 = vadd.f32 %v8784, %v8614
    %v8786 = vadd.f32 %v8785, %v8622
    %v8787 = vadd.f32 %v8786, %v8630
    %v8788 = vadd.f32 %v8787, %v8638
    %v8789 = vadd.f32 %v8788, %v8646
    %v8790 = vadd.f32 %v8789, %v8654
    %v8791 = vadd.f32 %v8790, %v8662
    %v8792 = vadd.f32 %v8791, %v8670
    %v8793 = vadd.f32 %v8792, %v8678
    %v8794 = vadd.f32 %v8793, %v8686
    %v8795 = vadd.f32 %v8794, %v8694
    %v8796 = vadd.f32 %v8795, %v8702
    %v8797 = vadd.f32 %v8796, %v8710
    %v8798 = vadd.f32 %v8797, %v8718
    %v8799 = vadd.f32 %v8798, %v8726
    %v8800 = vadd.f32 %v8799, %v8734
    %v8801 = vadd.f32 %v8800, %v8742
    %v8802 = vadd.f32 %v8801, %v8750
    %v8803 = vadd.f32 %v8802, %v8758
    %v8804 = vadd.f32 %v8803, %v8766
    %v8805 = vrot.slane %v8804, 4
    %v8806 = vadd.f32 %v8804, %v8805
    %v8807 = vrot.slane %v8806, 2
    %v8808 = vadd.f32 %v8806, %v8807
    %v8809 = vrot.slane %v8808, 1
    %v8810 = vadd.f32 %v8808, %v8809
    %v8811 = vadd.f32 %v8519, %v8527
    %v8812 = vadd.f32 %v8811, %v8535
    %v8813 = vadd.f32 %v8812, %v8543
    %v8814 = vadd.f32 %v8813, %v8551
    %v8815 = vadd.f32 %v8814, %v8559
    %v8816 = vadd.f32 %v8815, %v8567
    %v8817 = vadd.f32 %v8816, %v8575
    %v8818 = vadd.f32 %v8817, %v8583
    %v8819 = vadd.f32 %v8818, %v8591
    %v8820 = vadd.f32 %v8819, %v8599
    %v8821 = vadd.f32 %v8820, %v8607
    %v8822 = vadd.f32 %v8821, %v8615
    %v8823 = vadd.f32 %v8822, %v8623
    %v8824 = vadd.f32 %v8823, %v8631
    %v8825 = vadd.f32 %v8824, %v8639
    %v8826 = vadd.f32 %v8825, %v8647
    %v8827 = vadd.f32 %v8826, %v8655
    %v8828 = vadd.f32 %v8827, %v8663
    %v8829 = vadd.f32 %v8828, %v8671
    %v8830 = vadd.f32 %v8829, %v8679
    %v8831 = vadd.f32 %v8830, %v8687
    %v8832 = vadd.f32 %v8831, %v8695
    %v8833 = vadd.f32 %v8832, %v8703
    %v8834 = vadd.f32 %v8833, %v8711
    %v8835 = vadd.f32 %v8834, %v8719
    %v8836 = vadd.f32 %v8835, %v8727
    %v8837 = vadd.f32 %v8836, %v8735
    %v8838 = vadd.f32 %v8837, %v8743
    %v8839 = vadd.f32 %v8838, %v8751
    %v8840 = vadd.f32 %v8839, %v8759
    %v8841 = vadd.f32 %v8840, %v8767
    %v8842 = vrot.slane %v8841, 4
    %v8843 = vadd.f32 %v8841, %v8842
    %v8844 = vrot.slane %v8843, 2
    %v8845 = vadd.f32 %v8843, %v8844
    %v8846 = vrot.slane %v8845, 1
    %v8847 = vadd.f32 %v8845, %v8846
    %v8848 = vadd.f32 %v8520, %v8528
    %v8849 = vadd.f32 %v8848, %v8536
    %v8850 = vadd.f32 %v8849, %v8544
    %v8851 = vadd.f32 %v8850, %v8552
    %v8852 = vadd.f32 %v8851, %v8560
    %v8853 = vadd.f32 %v8852, %v8568
    %v8854 = vadd.f32 %v8853, %v8576
    %v8855 = vadd.f32 %v8854, %v8584
    %v8856 = vadd.f32 %v8855, %v8592
    %v8857 = vadd.f32 %v8856, %v8600
    %v8858 = vadd.f32 %v8857, %v8608
    %v8859 = vadd.f32 %v8858, %v8616
    %v8860 = vadd.f32 %v8859, %v8624
    %v8861 = vadd.f32 %v8860, %v8632
    %v8862 = vadd.f32 %v8861, %v8640
    %v8863 = vadd.f32 %v8862, %v8648
    %v8864 = vadd.f32 %v8863, %v8656
    %v8865 = vadd.f32 %v8864, %v8664
    %v8866 = vadd.f32 %v8865, %v8672
    %v8867 = vadd.f32 %v8866, %v8680
    %v8868 = vadd.f32 %v8867, %v8688
    %v8869 = vadd.f32 %v8868, %v8696
    %v8870 = vadd.f32 %v8869, %v8704
    %v8871 = vadd.f32 %v8870, %v8712
    %v8872 = vadd.f32 %v8871, %v8720
    %v8873 = vadd.f32 %v8872, %v8728
    %v8874 = vadd.f32 %v8873, %v8736
    %v8875 = vadd.f32 %v8874, %v8744
    %v8876 = vadd.f32 %v8875, %v8752
    %v8877 = vadd.f32 %v8876, %v8760
    %v8878 = vadd.f32 %v8877, %v8768
    %v8879 = vrot.slane %v8878, 4
    %v8880 = vadd.f32 %v8878, %v8879
    %v8881 = vrot.slane %v8880, 2
    %v8882 = vadd.f32 %v8880, %v8881
    %v8883 = vrot.slane %v8882, 1
    %v8884 = vadd.f32 %v8882, %v8883
    %v8885 = vadd.f32 %v8521, %v8529
    %v8886 = vadd.f32 %v8885, %v8537
    %v8887 = vadd.f32 %v8886, %v8545
    %v8888 = vadd.f32 %v8887, %v8553
    %v8889 = vadd.f32 %v8888, %v8561
    %v8890 = vadd.f32 %v8889, %v8569
    %v8891 = vadd.f32 %v8890, %v8577
    %v8892 = vadd.f32 %v8891, %v8585
    %v8893 = vadd.f32 %v8892, %v8593
    %v8894 = vadd.f32 %v8893, %v8601
    %v8895 = vadd.f32 %v8894, %v8609
    %v8896 = vadd.f32 %v8895, %v8617
    %v8897 = vadd.f32 %v8896, %v8625
    %v8898 = vadd.f32 %v8897, %v8633
    %v8899 = vadd.f32 %v8898, %v8641
    %v8900 = vadd.f32 %v8899, %v8649
    %v8901 = vadd.f32 %v8900, %v8657
    %v8902 = vadd.f32 %v8901, %v8665
    %v8903 = vadd.f32 %v8902, %v8673
    %v8904 = vadd.f32 %v8903, %v8681
    %v8905 = vadd.f32 %v8904, %v8689
    %v8906 = vadd.f32 %v8905, %v8697
    %v8907 = vadd.f32 %v8906, %v8705
    %v8908 = vadd.f32 %v8907, %v8713
    %v8909 = vadd.f32 %v8908, %v8721
    %v8910 = vadd.f32 %v8909, %v8729
    %v8911 = vadd.f32 %v8910, %v8737
    %v8912 = vadd.f32 %v8911, %v8745
    %v8913 = vadd.f32 %v8912, %v8753
    %v8914 = vadd.f32 %v8913, %v8761
    %v8915 = vadd.f32 %v8914, %v8769
    %v8916 = vrot.slane %v8915, 4
    %v8917 = vadd.f32 %v8915, %v8916
    %v8918 = vrot.slane %v8917, 2
    %v8919 = vadd.f32 %v8917, %v8918
    %v8920 = vrot.slane %v8919, 1
    %v8921 = vadd.f32 %v8919, %v8920
    %v8922 = vadd.f32 %v8522, %v8530
    %v8923 = vadd.f32 %v8922, %v8538
    %v8924 = vadd.f32 %v8923, %v8546
    %v8925 = vadd.f32 %v8924, %v8554
    %v8926 = vadd.f32 %v8925, %v8562
    %v8927 = vadd.f32 %v8926, %v8570
    %v8928 = vadd.f32 %v8927, %v8578
    %v8929 = vadd.f32 %v8928, %v8586
    %v8930 = vadd.f32 %v8929, %v8594
    %v8931 = vadd.f32 %v8930, %v8602
    %v8932 = vadd.f32 %v8931, %v8610
    %v8933 = vadd.f32 %v8932, %v8618
    %v8934 = vadd.f32 %v8933, %v8626
    %v8935 = vadd.f32 %v8934, %v8634
    %v8936 = vadd.f32 %v8935, %v8642
    %v8937 = vadd.f32 %v8936, %v8650
    %v8938 = vadd.f32 %v8937, %v8658
    %v8939 = vadd.f32 %v8938, %v8666
    %v8940 = vadd.f32 %v8939, %v8674
    %v8941 = vadd.f32 %v8940, %v8682
    %v8942 = vadd.f32 %v8941, %v8690
    %v8943 = vadd.f32 %v8942, %v8698
    %v8944 = vadd.f32 %v8943, %v8706
    %v8945 = vadd.f32 %v8944, %v8714
    %v8946 = vadd.f32 %v8945, %v8722
    %v8947 = vadd.f32 %v8946, %v8730
    %v8948 = vadd.f32 %v8947, %v8738
    %v8949 = vadd.f32 %v8948, %v8746
    %v8950 = vadd.f32 %v8949, %v8754
    %v8951 = vadd.f32 %v8950, %v8762
    %v8952 = vadd.f32 %v8951, %v8770
    %v8953 = vrot.slane %v8952, 4
    %v8954 = vadd.f32 %v8952, %v8953
    %v8955 = vrot.slane %v8954, 2
    %v8956 = vadd.f32 %v8954, %v8955
    %v8957 = vrot.slane %v8956, 1
    %v8958 = vadd.f32 %v8956, %v8957
    %v8959 = vadd.f32 %v8523, %v8531
    %v8960 = vadd.f32 %v8959, %v8539
    %v8961 = vadd.f32 %v8960, %v8547
    %v8962 = vadd.f32 %v8961, %v8555
    %v8963 = vadd.f32 %v8962, %v8563
    %v8964 = vadd.f32 %v8963, %v8571
    %v8965 = vadd.f32 %v8964, %v8579
    %v8966 = vadd.f32 %v8965, %v8587
    %v8967 = vadd.f32 %v8966, %v8595
    %v8968 = vadd.f32 %v8967, %v8603
    %v8969 = vadd.f32 %v8968, %v8611
    %v8970 = vadd.f32 %v8969, %v8619
    %v8971 = vadd.f32 %v8970, %v8627
    %v8972 = vadd.f32 %v8971, %v8635
    %v8973 = vadd.f32 %v8972, %v8643
    %v8974 = vadd.f32 %v8973, %v8651
    %v8975 = vadd.f32 %v8974, %v8659
    %v8976 = vadd.f32 %v8975, %v8667
    %v8977 = vadd.f32 %v8976, %v8675
    %v8978 = vadd.f32 %v8977, %v8683
    %v8979 = vadd.f32 %v8978, %v8691
    %v8980 = vadd.f32 %v8979, %v8699
    %v8981 = vadd.f32 %v8980, %v8707
    %v8982 = vadd.f32 %v8981, %v8715
    %v8983 = vadd.f32 %v8982, %v8723
    %v8984 = vadd.f32 %v8983, %v8731
    %v8985 = vadd.f32 %v8984, %v8739
    %v8986 = vadd.f32 %v8985, %v8747
    %v8987 = vadd.f32 %v8986, %v8755
    %v8988 = vadd.f32 %v8987, %v8763
    %v8989 = vadd.f32 %v8988, %v8771
    %v8990 = vrot.slane %v8989, 4
    %v8991 = vadd.f32 %v8989, %v8990
    %v8992 = vrot.slane %v8991, 2
    %v8993 = vadd.f32 %v8991, %v8992
    %v8994 = vrot.slane %v8993, 1
    %v8995 = vadd.f32 %v8993, %v8994
    %v8996 = vadd.f32 %v8524, %v8532
    %v8997 = vadd.f32 %v8996, %v8540
    %v8998 = vadd.f32 %v8997, %v8548
    %v8999 = vadd.f32 %v8998, %v8556
    %v9000 = vadd.f32 %v8999, %v8564
    %v9001 = vadd.f32 %v9000, %v8572
    %v9002 = vadd.f32 %v9001, %v8580
    %v9003 = vadd.f32 %v9002, %v8588
    %v9004 = vadd.f32 %v9003, %v8596
    %v9005 = vadd.f32 %v9004, %v8604
    %v9006 = vadd.f32 %v9005, %v8612
    %v9007 = vadd.f32 %v9006, %v8620
    %v9008 = vadd.f32 %v9007, %v8628
    %v9009 = vadd.f32 %v9008, %v8636
    %v9010 = vadd.f32 %v9009, %v8644
    %v9011 = vadd.f32 %v9010, %v8652
    %v9012 = vadd.f32 %v9011, %v8660
    %v9013 = vadd.f32 %v9012, %v8668
    %v9014 = vadd.f32 %v9013, %v8676
    %v9015 = vadd.f32 %v9014, %v8684
    %v9016 = vadd.f32 %v9015, %v8692
    %v9017 = vadd.f32 %v9016, %v8700
    %v9018 = vadd.f32 %v9017, %v8708
    %v9019 = vadd.f32 %v9018, %v8716
    %v9020 = vadd.f32 %v9019, %v8724
    %v9021 = vadd.f32 %v9020, %v8732
    %v9022 = vadd.f32 %v9021, %v8740
    %v9023 = vadd.f32 %v9022, %v8748
    %v9024 = vadd.f32 %v9023, %v8756
    %v9025 = vadd.f32 %v9024, %v8764
    %v9026 = vadd.f32 %v9025, %v8772
    %v9027 = vrot.slane %v9026, 4
    %v9028 = vadd.f32 %v9026, %v9027
    %v9029 = vrot.slane %v9028, 2
    %v9030 = vadd.f32 %v9028, %v9029
    %v9031 = vrot.slane %v9030, 1
    %v9032 = vadd.f32 %v9030, %v9031
    %v9033 = vadd.f32 %v8525, %v8533
    %v9034 = vadd.f32 %v9033, %v8541
    %v9035 = vadd.f32 %v9034, %v8549
    %v9036 = vadd.f32 %v9035, %v8557
    %v9037 = vadd.f32 %v9036, %v8565
    %v9038 = vadd.f32 %v9037, %v8573
    %v9039 = vadd.f32 %v9038, %v8581
    %v9040 = vadd.f32 %v9039, %v8589
    %v9041 = vadd.f32 %v9040, %v8597
    %v9042 = vadd.f32 %v9041, %v8605
    %v9043 = vadd.f32 %v9042, %v8613
    %v9044 = vadd.f32 %v9043, %v8621
    %v9045 = vadd.f32 %v9044, %v8629
    %v9046 = vadd.f32 %v9045, %v8637
    %v9047 = vadd.f32 %v9046, %v8645
    %v9048 = vadd.f32 %v9047, %v8653
    %v9049 = vadd.f32 %v9048, %v8661
    %v9050 = vadd.f32 %v9049, %v8669
    %v9051 = vadd.f32 %v9050, %v8677
    %v9052 = vadd.f32 %v9051, %v8685
    %v9053 = vadd.f32 %v9052, %v8693
    %v9054 = vadd.f32 %v9053, %v8701
    %v9055 = vadd.f32 %v9054, %v8709
    %v9056 = vadd.f32 %v9055, %v8717
    %v9057 = vadd.f32 %v9056, %v8725
    %v9058 = vadd.f32 %v9057, %v8733
    %v9059 = vadd.f32 %v9058, %v8741
    %v9060 = vadd.f32 %v9059, %v8749
    %v9061 = vadd.f32 %v9060, %v8757
    %v9062 = vadd.f32 %v9061, %v8765
    %v9063 = vadd.f32 %v9062, %v8773
    %v9064 = vrot.slane %v9063, 4
    %v9065 = vadd.f32 %v9063, %v9064
    %v9066 = vrot.slane %v9065, 2
    %v9067 = vadd.f32 %v9065, %v9066
    %v9068 = vrot.slane %v9067, 1
    %v9069 = vadd.f32 %v9067, %v9068
    %v9070 = vmul.f32 %v8810, 0.00390625
    %v9071 = vmul.f32 %v8847, 0.00390625
    %v9072 = vmul.f32 %v8884, 0.00390625
    %v9073 = vmul.f32 %v8921, 0.00390625
    %v9074 = vmul.f32 %v8958, 0.00390625
    %v9075 = vmul.f32 %v8995, 0.00390625
    %v9076 = vmul.f32 %v9032, 0.00390625
    %v9077 = vmul.f32 %v9069, 0.00390625
    %v9078 = vld [vmem:[%s10] sm:$0xff]
    %v9079 = vadd.f32 %v9070, 0.8
    %v9080 = vadd.f32 %v9071, 0.8
    %v9081 = vadd.f32 %v9072, 0.8
    %v9082 = vadd.f32 %v9073, 0.8
    %v9083 = vadd.f32 %v9074, 0.8
    %v9084 = vadd.f32 %v9075, 0.8
    %v9085 = vadd.f32 %v9076, 0.8
    %v9086 = vadd.f32 %v9077, 0.8
    %v9087 = vrsqrt.pop %v9079
    %v9088 = vmul.f32 %v9087, %v9079
    %v9089 = vmul.f32 %v9088, %v9087
    %v9090 = vmul.f32 0.5, %v9089
    %v9091 = vsub.f32 1.5, %v9090
    %v9092 = vmul.f32 %v9087, %v9091
    %vm9093 = vweird.f32 %v9079
    %vm9094 = vweird.f32 %v9087
    %vm9095 = vmor %vm9093, %vm9094
    %v9096 = vsel %vm9095, %v9087, %v9092
    %v9097 = vrsqrt.pop %v9080
    %v9098 = vmul.f32 %v9097, %v9080
    %v9099 = vmul.f32 %v9098, %v9097
    %v9100 = vmul.f32 0.5, %v9099
    %v9101 = vsub.f32 1.5, %v9100
    %v9102 = vmul.f32 %v9097, %v9101
    %vm9103 = vweird.f32 %v9080
    %vm9104 = vweird.f32 %v9097
    %vm9105 = vmor %vm9103, %vm9104
    %v9106 = vsel %vm9105, %v9097, %v9102
    %v9107 = vrsqrt.pop %v9081
    %v9108 = vmul.f32 %v9107, %v9081
    %v9109 = vmul.f32 %v9108, %v9107
    %v9110 = vmul.f32 0.5, %v9109
    %v9111 = vsub.f32 1.5, %v9110
    %v9112 = vmul.f32 %v9107, %v9111
    %vm9113 = vweird.f32 %v9081
    %vm9114 = vweird.f32 %v9107
    %vm9115 = vmor %vm9113, %vm9114
    %v9116 = vsel %vm9115, %v9107, %v9112
    %v9117 = vrsqrt.pop %v9082
    %v9118 = vmul.f32 %v9117, %v9082
    %v9119 = vmul.f32 %v9118, %v9117
    %v9120 = vmul.f32 0.5, %v9119
    %v9121 = vsub.f32 1.5, %v9120
    %v9122 = vmul.f32 %v9117, %v9121
    %vm9123 = vweird.f32 %v9082
    %vm9124 = vweird.f32 %v9117
    %vm9125 = vmor %vm9123, %vm9124
    %v9126 = vsel %vm9125, %v9117, %v9122
    %v9127 = vrsqrt.pop %v9083
    %v9128 = vmul.f32 %v9127, %v9083
    %v9129 = vmul.f32 %v9128, %v9127
    %v9130 = vmul.f32 0.5, %v9129
    %v9131 = vsub.f32 1.5, %v9130
    %v9132 = vmul.f32 %v9127, %v9131
    %vm9133 = vweird.f32 %v9083
    %vm9134 = vweird.f32 %v9127
    %vm9135 = vmor %vm9133, %vm9134
    %v9136 = vsel %vm9135, %v9127, %v9132
    %v9137 = vrsqrt.pop %v9084
    %v9138 = vmul.f32 %v9137, %v9084
    %v9139 = vmul.f32 %v9138, %v9137
    %v9140 = vmul.f32 0.5, %v9139
    %v9141 = vsub.f32 1.5, %v9140
    %v9142 = vmul.f32 %v9137, %v9141
    %vm9143 = vweird.f32 %v9084
    %vm9144 = vweird.f32 %v9137
    %vm9145 = vmor %vm9143, %vm9144
    %v9146 = vsel %vm9145, %v9137, %v9142
    %v9147 = vrsqrt.pop %v9085
    %v9148 = vmul.f32 %v9147, %v9085
    %v9149 = vmul.f32 %v9148, %v9147
    %v9150 = vmul.f32 0.5, %v9149
    %v9151 = vsub.f32 1.5, %v9150
    %v9152 = vmul.f32 %v9147, %v9151
    %vm9153 = vweird.f32 %v9085
    %vm9154 = vweird.f32 %v9147
    %vm9155 = vmor %vm9153, %vm9154
    %v9156 = vsel %vm9155, %v9147, %v9152
    %v9157 = vrsqrt.pop %v9086
    %v9158 = vmul.f32 %v9157, %v9086
    %v9159 = vmul.f32 %v9158, %v9157
    %v9160 = vmul.f32 0.5, %v9159
    %v9161 = vsub.f32 1.5, %v9160
    %v9162 = vmul.f32 %v9157, %v9161
    %vm9163 = vweird.f32 %v9086
    %vm9164 = vweird.f32 %v9157
    %vm9165 = vmor %vm9163, %vm9164
    %v9166 = vsel %vm9165, %v9157, %v9162
    %v9175 = vrot.slane %v9106, 7
    %v9176 = vrot.slane %v9116, 6
    %v9177 = vrot.slane %v9126, 5
    %v9178 = vrot.slane %v9136, 4
    %v9179 = vrot.slane %v9146, 3
    %v9180 = vrot.slane %v9156, 2
    %v9181 = vrot.slane %v9166, 1
    %v9182 = vsel %vm961, %v9096, %v9175
    %v9183 = vsel %vm2973, %v9176, %v9177
    %v9184 = vsel %vm2975, %v9182, %v9183
    %vm9185 = vcmask 1044484
    %v9186 = vsel %vm9185, %v9178, %v9179
    %vm9187 = vcmask 1046534
    %v9188 = vsel %vm9187, %v9180, %v9181
    %vm9189 = vcmask 1045508
    %v9190 = vsel %vm9189, %v9186, %v9188
    %vm9191 = vcmask 1043456
    %v9192 = vsel %vm9191, %v9184, %v9190
    %v9194 = vmul.f32 %v9078, %v9192
    %v9196 = vperm.slane %v9194, 0
    %v9197 = vperm.slane %v9194, 1
    %v9198 = vperm.slane %v9194, 2
    %v9199 = vperm.slane %v9194, 3
    %v9200 = vperm.slane %v9194, 4
    %v9201 = vperm.slane %v9194, 5
    %v9202 = vperm.slane %v9194, 6
    %v9203 = vperm.slane %v9194, 7
    %v9212 = vmul.f32 %v8262, %v9196
    %v9213 = vmul.f32 %v8263, %v9197
    %v9214 = vmul.f32 %v8264, %v9198
    %v9215 = vmul.f32 %v8265, %v9199
    %v9216 = vmul.f32 %v8266, %v9200
    %v9217 = vmul.f32 %v8267, %v9201
    %v9218 = vmul.f32 %v8268, %v9202
    %v9219 = vmul.f32 %v8269, %v9203
    %v9220 = vmul.f32 %v8270, %v9196
    %v9221 = vmul.f32 %v8271, %v9197
    %v9222 = vmul.f32 %v8272, %v9198
    %v9223 = vmul.f32 %v8273, %v9199
    %v9224 = vmul.f32 %v8274, %v9200
    %v9225 = vmul.f32 %v8275, %v9201
    %v9226 = vmul.f32 %v8276, %v9202
    %v9227 = vmul.f32 %v8277, %v9203
    %v9228 = vmul.f32 %v8278, %v9196
    %v9229 = vmul.f32 %v8279, %v9197
    %v9230 = vmul.f32 %v8280, %v9198
    %v9231 = vmul.f32 %v8281, %v9199
    %v9232 = vmul.f32 %v8282, %v9200
    %v9233 = vmul.f32 %v8283, %v9201
    %v9234 = vmul.f32 %v8284, %v9202
    %v9235 = vmul.f32 %v8285, %v9203
    %v9236 = vmul.f32 %v8286, %v9196
    %v9237 = vmul.f32 %v8287, %v9197
    %v9238 = vmul.f32 %v8288, %v9198
    %v9239 = vmul.f32 %v8289, %v9199
    %v9240 = vmul.f32 %v8290, %v9200
    %v9241 = vmul.f32 %v8291, %v9201
    %v9242 = vmul.f32 %v8292, %v9202
    %v9243 = vmul.f32 %v8293, %v9203
    %v9244 = vmul.f32 %v8294, %v9196
    %v9245 = vmul.f32 %v8295, %v9197
    %v9246 = vmul.f32 %v8296, %v9198
    %v9247 = vmul.f32 %v8297, %v9199
    %v9248 = vmul.f32 %v8298, %v9200
    %v9249 = vmul.f32 %v8299, %v9201
    %v9250 = vmul.f32 %v8300, %v9202
    %v9251 = vmul.f32 %v8301, %v9203
    %v9252 = vmul.f32 %v8302, %v9196
    %v9253 = vmul.f32 %v8303, %v9197
    %v9254 = vmul.f32 %v8304, %v9198
    %v9255 = vmul.f32 %v8305, %v9199
    %v9256 = vmul.f32 %v8306, %v9200
    %v9257 = vmul.f32 %v8307, %v9201
    %v9258 = vmul.f32 %v8308, %v9202
    %v9259 = vmul.f32 %v8309, %v9203
    %v9260 = vmul.f32 %v8310, %v9196
    %v9261 = vmul.f32 %v8311, %v9197
    %v9262 = vmul.f32 %v8312, %v9198
    %v9263 = vmul.f32 %v8313, %v9199
    %v9264 = vmul.f32 %v8314, %v9200
    %v9265 = vmul.f32 %v8315, %v9201
    %v9266 = vmul.f32 %v8316, %v9202
    %v9267 = vmul.f32 %v8317, %v9203
    %v9268 = vmul.f32 %v8318, %v9196
    %v9269 = vmul.f32 %v8319, %v9197
    %v9270 = vmul.f32 %v8320, %v9198
    %v9271 = vmul.f32 %v8321, %v9199
    %v9272 = vmul.f32 %v8322, %v9200
    %v9273 = vmul.f32 %v8323, %v9201
    %v9274 = vmul.f32 %v8324, %v9202
    %v9275 = vmul.f32 %v8325, %v9203
    %v9276 = vmul.f32 %v8326, %v9196
    %v9277 = vmul.f32 %v8327, %v9197
    %v9278 = vmul.f32 %v8328, %v9198
    %v9279 = vmul.f32 %v8329, %v9199
    %v9280 = vmul.f32 %v8330, %v9200
    %v9281 = vmul.f32 %v8331, %v9201
    %v9282 = vmul.f32 %v8332, %v9202
    %v9283 = vmul.f32 %v8333, %v9203
    %v9284 = vmul.f32 %v8334, %v9196
    %v9285 = vmul.f32 %v8335, %v9197
    %v9286 = vmul.f32 %v8336, %v9198
    %v9287 = vmul.f32 %v8337, %v9199
    %v9288 = vmul.f32 %v8338, %v9200
    %v9289 = vmul.f32 %v8339, %v9201
    %v9290 = vmul.f32 %v8340, %v9202
    %v9291 = vmul.f32 %v8341, %v9203
    %v9292 = vmul.f32 %v8342, %v9196
    %v9293 = vmul.f32 %v8343, %v9197
    %v9294 = vmul.f32 %v8344, %v9198
    %v9295 = vmul.f32 %v8345, %v9199
    %v9296 = vmul.f32 %v8346, %v9200
    %v9297 = vmul.f32 %v8347, %v9201
    %v9298 = vmul.f32 %v8348, %v9202
    %v9299 = vmul.f32 %v8349, %v9203
    %v9300 = vmul.f32 %v8350, %v9196
    %v9301 = vmul.f32 %v8351, %v9197
    %v9302 = vmul.f32 %v8352, %v9198
    %v9303 = vmul.f32 %v8353, %v9199
    %v9304 = vmul.f32 %v8354, %v9200
    %v9305 = vmul.f32 %v8355, %v9201
    %v9306 = vmul.f32 %v8356, %v9202
    %v9307 = vmul.f32 %v8357, %v9203
    %v9308 = vmul.f32 %v8358, %v9196
    %v9309 = vmul.f32 %v8359, %v9197
    %v9310 = vmul.f32 %v8360, %v9198
    %v9311 = vmul.f32 %v8361, %v9199
    %v9312 = vmul.f32 %v8362, %v9200
    %v9313 = vmul.f32 %v8363, %v9201
    %v9314 = vmul.f32 %v8364, %v9202
    %v9315 = vmul.f32 %v8365, %v9203
    %v9316 = vmul.f32 %v8366, %v9196
    %v9317 = vmul.f32 %v8367, %v9197
    %v9318 = vmul.f32 %v8368, %v9198
    %v9319 = vmul.f32 %v8369, %v9199
    %v9320 = vmul.f32 %v8370, %v9200
    %v9321 = vmul.f32 %v8371, %v9201
    %v9322 = vmul.f32 %v8372, %v9202
    %v9323 = vmul.f32 %v8373, %v9203
    %v9324 = vmul.f32 %v8374, %v9196
    %v9325 = vmul.f32 %v8375, %v9197
    %v9326 = vmul.f32 %v8376, %v9198
    %v9327 = vmul.f32 %v8377, %v9199
    %v9328 = vmul.f32 %v8378, %v9200
    %v9329 = vmul.f32 %v8379, %v9201
    %v9330 = vmul.f32 %v8380, %v9202
    %v9331 = vmul.f32 %v8381, %v9203
    %v9332 = vmul.f32 %v8382, %v9196
    %v9333 = vmul.f32 %v8383, %v9197
    %v9334 = vmul.f32 %v8384, %v9198
    %v9335 = vmul.f32 %v8385, %v9199
    %v9336 = vmul.f32 %v8386, %v9200
    %v9337 = vmul.f32 %v8387, %v9201
    %v9338 = vmul.f32 %v8388, %v9202
    %v9339 = vmul.f32 %v8389, %v9203
    %v9340 = vmul.f32 %v8390, %v9196
    %v9341 = vmul.f32 %v8391, %v9197
    %v9342 = vmul.f32 %v8392, %v9198
    %v9343 = vmul.f32 %v8393, %v9199
    %v9344 = vmul.f32 %v8394, %v9200
    %v9345 = vmul.f32 %v8395, %v9201
    %v9346 = vmul.f32 %v8396, %v9202
    %v9347 = vmul.f32 %v8397, %v9203
    %v9348 = vmul.f32 %v8398, %v9196
    %v9349 = vmul.f32 %v8399, %v9197
    %v9350 = vmul.f32 %v8400, %v9198
    %v9351 = vmul.f32 %v8401, %v9199
    %v9352 = vmul.f32 %v8402, %v9200
    %v9353 = vmul.f32 %v8403, %v9201
    %v9354 = vmul.f32 %v8404, %v9202
    %v9355 = vmul.f32 %v8405, %v9203
    %v9356 = vmul.f32 %v8406, %v9196
    %v9357 = vmul.f32 %v8407, %v9197
    %v9358 = vmul.f32 %v8408, %v9198
    %v9359 = vmul.f32 %v8409, %v9199
    %v9360 = vmul.f32 %v8410, %v9200
    %v9361 = vmul.f32 %v8411, %v9201
    %v9362 = vmul.f32 %v8412, %v9202
    %v9363 = vmul.f32 %v8413, %v9203
    %v9364 = vmul.f32 %v8414, %v9196
    %v9365 = vmul.f32 %v8415, %v9197
    %v9366 = vmul.f32 %v8416, %v9198
    %v9367 = vmul.f32 %v8417, %v9199
    %v9368 = vmul.f32 %v8418, %v9200
    %v9369 = vmul.f32 %v8419, %v9201
    %v9370 = vmul.f32 %v8420, %v9202
    %v9371 = vmul.f32 %v8421, %v9203
    %v9372 = vmul.f32 %v8422, %v9196
    %v9373 = vmul.f32 %v8423, %v9197
    %v9374 = vmul.f32 %v8424, %v9198
    %v9375 = vmul.f32 %v8425, %v9199
    %v9376 = vmul.f32 %v8426, %v9200
    %v9377 = vmul.f32 %v8427, %v9201
    %v9378 = vmul.f32 %v8428, %v9202
    %v9379 = vmul.f32 %v8429, %v9203
    %v9380 = vmul.f32 %v8430, %v9196
    %v9381 = vmul.f32 %v8431, %v9197
    %v9382 = vmul.f32 %v8432, %v9198
    %v9383 = vmul.f32 %v8433, %v9199
    %v9384 = vmul.f32 %v8434, %v9200
    %v9385 = vmul.f32 %v8435, %v9201
    %v9386 = vmul.f32 %v8436, %v9202
    %v9387 = vmul.f32 %v8437, %v9203
    %v9388 = vmul.f32 %v8438, %v9196
    %v9389 = vmul.f32 %v8439, %v9197
    %v9390 = vmul.f32 %v8440, %v9198
    %v9391 = vmul.f32 %v8441, %v9199
    %v9392 = vmul.f32 %v8442, %v9200
    %v9393 = vmul.f32 %v8443, %v9201
    %v9394 = vmul.f32 %v8444, %v9202
    %v9395 = vmul.f32 %v8445, %v9203
    %v9396 = vmul.f32 %v8446, %v9196
    %v9397 = vmul.f32 %v8447, %v9197
    %v9398 = vmul.f32 %v8448, %v9198
    %v9399 = vmul.f32 %v8449, %v9199
    %v9400 = vmul.f32 %v8450, %v9200
    %v9401 = vmul.f32 %v8451, %v9201
    %v9402 = vmul.f32 %v8452, %v9202
    %v9403 = vmul.f32 %v8453, %v9203
    %v9404 = vmul.f32 %v8454, %v9196
    %v9405 = vmul.f32 %v8455, %v9197
    %v9406 = vmul.f32 %v8456, %v9198
    %v9407 = vmul.f32 %v8457, %v9199
    %v9408 = vmul.f32 %v8458, %v9200
    %v9409 = vmul.f32 %v8459, %v9201
    %v9410 = vmul.f32 %v8460, %v9202
    %v9411 = vmul.f32 %v8461, %v9203
    %v9412 = vmul.f32 %v8462, %v9196
    %v9413 = vmul.f32 %v8463, %v9197
    %v9414 = vmul.f32 %v8464, %v9198
    %v9415 = vmul.f32 %v8465, %v9199
    %v9416 = vmul.f32 %v8466, %v9200
    %v9417 = vmul.f32 %v8467, %v9201
    %v9418 = vmul.f32 %v8468, %v9202
    %v9419 = vmul.f32 %v8469, %v9203
    %v9420 = vmul.f32 %v8470, %v9196
    %v9421 = vmul.f32 %v8471, %v9197
    %v9422 = vmul.f32 %v8472, %v9198
    %v9423 = vmul.f32 %v8473, %v9199
    %v9424 = vmul.f32 %v8474, %v9200
    %v9425 = vmul.f32 %v8475, %v9201
    %v9426 = vmul.f32 %v8476, %v9202
    %v9427 = vmul.f32 %v8477, %v9203
    %v9428 = vmul.f32 %v8478, %v9196
    %v9429 = vmul.f32 %v8479, %v9197
    %v9430 = vmul.f32 %v8480, %v9198
    %v9431 = vmul.f32 %v8481, %v9199
    %v9432 = vmul.f32 %v8482, %v9200
    %v9433 = vmul.f32 %v8483, %v9201
    %v9434 = vmul.f32 %v8484, %v9202
    %v9435 = vmul.f32 %v8485, %v9203
    %v9436 = vmul.f32 %v8486, %v9196
    %v9437 = vmul.f32 %v8487, %v9197
    %v9438 = vmul.f32 %v8488, %v9198
    %v9439 = vmul.f32 %v8489, %v9199
    %v9440 = vmul.f32 %v8490, %v9200
    %v9441 = vmul.f32 %v8491, %v9201
    %v9442 = vmul.f32 %v8492, %v9202
    %v9443 = vmul.f32 %v8493, %v9203
    %v9444 = vmul.f32 %v8494, %v9196
    %v9445 = vmul.f32 %v8495, %v9197
    %v9446 = vmul.f32 %v8496, %v9198
    %v9447 = vmul.f32 %v8497, %v9199
    %v9448 = vmul.f32 %v8498, %v9200
    %v9449 = vmul.f32 %v8499, %v9201
    %v9450 = vmul.f32 %v8500, %v9202
    %v9451 = vmul.f32 %v8501, %v9203
    %v9452 = vmul.f32 %v8502, %v9196
    %v9453 = vmul.f32 %v8503, %v9197
    %v9454 = vmul.f32 %v8504, %v9198
    %v9455 = vmul.f32 %v8505, %v9199
    %v9456 = vmul.f32 %v8506, %v9200
    %v9457 = vmul.f32 %v8507, %v9201
    %v9458 = vmul.f32 %v8508, %v9202
    %v9459 = vmul.f32 %v8509, %v9203
    %v9460 = vmul.f32 %v8510, %v9196
    %v9461 = vmul.f32 %v8511, %v9197
    %v9462 = vmul.f32 %v8512, %v9198
    %v9463 = vmul.f32 %v8513, %v9199
    %v9464 = vmul.f32 %v8514, %v9200
    %v9465 = vmul.f32 %v8515, %v9201
    %v9466 = vmul.f32 %v8516, %v9202
    %v9467 = vmul.f32 %v8517, %v9203
    %v9468 = vld [vmem:[%s11] sm:$0xff]
    %v9470 = vperm.slane %v9468, 0
    %v9471 = vperm.slane %v9468, 1
    %v9472 = vperm.slane %v9468, 2
    %v9473 = vperm.slane %v9468, 3
    %v9474 = vperm.slane %v9468, 4
    %v9475 = vperm.slane %v9468, 5
    %v9476 = vperm.slane %v9468, 6
    %v9477 = vperm.slane %v9468, 7
    %v9486 = vadd.f32 %v9212, %v9470
    %v9487 = vadd.f32 %v9213, %v9471
    %v9488 = vadd.f32 %v9214, %v9472
    %v9489 = vadd.f32 %v9215, %v9473
    %v9490 = vadd.f32 %v9216, %v9474
    %v9491 = vadd.f32 %v9217, %v9475
    %v9492 = vadd.f32 %v9218, %v9476
    %v9493 = vadd.f32 %v9219, %v9477
    %v9494 = vadd.f32 %v9220, %v9470
    %v9495 = vadd.f32 %v9221, %v9471
    %v9496 = vadd.f32 %v9222, %v9472
    %v9497 = vadd.f32 %v9223, %v9473
    %v9498 = vadd.f32 %v9224, %v9474
    %v9499 = vadd.f32 %v9225, %v9475
    %v9500 = vadd.f32 %v9226, %v9476
    %v9501 = vadd.f32 %v9227, %v9477
    %v9502 = vadd.f32 %v9228, %v9470
    %v9503 = vadd.f32 %v9229, %v9471
    %v9504 = vadd.f32 %v9230, %v9472
    %v9505 = vadd.f32 %v9231, %v9473
    %v9506 = vadd.f32 %v9232, %v9474
    %v9507 = vadd.f32 %v9233, %v9475
    %v9508 = vadd.f32 %v9234, %v9476
    %v9509 = vadd.f32 %v9235, %v9477
    %v9510 = vadd.f32 %v9236, %v9470
    %v9511 = vadd.f32 %v9237, %v9471
    %v9512 = vadd.f32 %v9238, %v9472
    %v9513 = vadd.f32 %v9239, %v9473
    %v9514 = vadd.f32 %v9240, %v9474
    %v9515 = vadd.f32 %v9241, %v9475
    %v9516 = vadd.f32 %v9242, %v9476
    %v9517 = vadd.f32 %v9243, %v9477
    %v9518 = vadd.f32 %v9244, %v9470
    %v9519 = vadd.f32 %v9245, %v9471
    %v9520 = vadd.f32 %v9246, %v9472
    %v9521 = vadd.f32 %v9247, %v9473
    %v9522 = vadd.f32 %v9248, %v9474
    %v9523 = vadd.f32 %v9249, %v9475
    %v9524 = vadd.f32 %v9250, %v9476
    %v9525 = vadd.f32 %v9251, %v9477
    %v9526 = vadd.f32 %v9252, %v9470
    %v9527 = vadd.f32 %v9253, %v9471
    %v9528 = vadd.f32 %v9254, %v9472
    %v9529 = vadd.f32 %v9255, %v9473
    %v9530 = vadd.f32 %v9256, %v9474
    %v9531 = vadd.f32 %v9257, %v9475
    %v9532 = vadd.f32 %v9258, %v9476
    %v9533 = vadd.f32 %v9259, %v9477
    %v9534 = vadd.f32 %v9260, %v9470
    %v9535 = vadd.f32 %v9261, %v9471
    %v9536 = vadd.f32 %v9262, %v9472
    %v9537 = vadd.f32 %v9263, %v9473
    %v9538 = vadd.f32 %v9264, %v9474
    %v9539 = vadd.f32 %v9265, %v9475
    %v9540 = vadd.f32 %v9266, %v9476
    %v9541 = vadd.f32 %v9267, %v9477
    %v9542 = vadd.f32 %v9268, %v9470
    %v9543 = vadd.f32 %v9269, %v9471
    %v9544 = vadd.f32 %v9270, %v9472
    %v9545 = vadd.f32 %v9271, %v9473
    %v9546 = vadd.f32 %v9272, %v9474
    %v9547 = vadd.f32 %v9273, %v9475
    %v9548 = vadd.f32 %v9274, %v9476
    %v9549 = vadd.f32 %v9275, %v9477
    %v9550 = vadd.f32 %v9276, %v9470
    %v9551 = vadd.f32 %v9277, %v9471
    %v9552 = vadd.f32 %v9278, %v9472
    %v9553 = vadd.f32 %v9279, %v9473
    %v9554 = vadd.f32 %v9280, %v9474
    %v9555 = vadd.f32 %v9281, %v9475
    %v9556 = vadd.f32 %v9282, %v9476
    %v9557 = vadd.f32 %v9283, %v9477
    %v9558 = vadd.f32 %v9284, %v9470
    %v9559 = vadd.f32 %v9285, %v9471
    %v9560 = vadd.f32 %v9286, %v9472
    %v9561 = vadd.f32 %v9287, %v9473
    %v9562 = vadd.f32 %v9288, %v9474
    %v9563 = vadd.f32 %v9289, %v9475
    %v9564 = vadd.f32 %v9290, %v9476
    %v9565 = vadd.f32 %v9291, %v9477
    %v9566 = vadd.f32 %v9292, %v9470
    %v9567 = vadd.f32 %v9293, %v9471
    %v9568 = vadd.f32 %v9294, %v9472
    %v9569 = vadd.f32 %v9295, %v9473
    %v9570 = vadd.f32 %v9296, %v9474
    %v9571 = vadd.f32 %v9297, %v9475
    %v9572 = vadd.f32 %v9298, %v9476
    %v9573 = vadd.f32 %v9299, %v9477
    %v9574 = vadd.f32 %v9300, %v9470
    %v9575 = vadd.f32 %v9301, %v9471
    %v9576 = vadd.f32 %v9302, %v9472
    %v9577 = vadd.f32 %v9303, %v9473
    %v9578 = vadd.f32 %v9304, %v9474
    %v9579 = vadd.f32 %v9305, %v9475
    %v9580 = vadd.f32 %v9306, %v9476
    %v9581 = vadd.f32 %v9307, %v9477
    %v9582 = vadd.f32 %v9308, %v9470
    %v9583 = vadd.f32 %v9309, %v9471
    %v9584 = vadd.f32 %v9310, %v9472
    %v9585 = vadd.f32 %v9311, %v9473
    %v9586 = vadd.f32 %v9312, %v9474
    %v9587 = vadd.f32 %v9313, %v9475
    %v9588 = vadd.f32 %v9314, %v9476
    %v9589 = vadd.f32 %v9315, %v9477
    %v9590 = vadd.f32 %v9316, %v9470
    %v9591 = vadd.f32 %v9317, %v9471
    %v9592 = vadd.f32 %v9318, %v9472
    %v9593 = vadd.f32 %v9319, %v9473
    %v9594 = vadd.f32 %v9320, %v9474
    %v9595 = vadd.f32 %v9321, %v9475
    %v9596 = vadd.f32 %v9322, %v9476
    %v9597 = vadd.f32 %v9323, %v9477
    %v9598 = vadd.f32 %v9324, %v9470
    %v9599 = vadd.f32 %v9325, %v9471
    %v9600 = vadd.f32 %v9326, %v9472
    %v9601 = vadd.f32 %v9327, %v9473
    %v9602 = vadd.f32 %v9328, %v9474
    %v9603 = vadd.f32 %v9329, %v9475
    %v9604 = vadd.f32 %v9330, %v9476
    %v9605 = vadd.f32 %v9331, %v9477
    %v9606 = vadd.f32 %v9332, %v9470
    %v9607 = vadd.f32 %v9333, %v9471
    %v9608 = vadd.f32 %v9334, %v9472
    %v9609 = vadd.f32 %v9335, %v9473
    %v9610 = vadd.f32 %v9336, %v9474
    %v9611 = vadd.f32 %v9337, %v9475
    %v9612 = vadd.f32 %v9338, %v9476
    %v9613 = vadd.f32 %v9339, %v9477
    %v9614 = vadd.f32 %v9340, %v9470
    %v9615 = vadd.f32 %v9341, %v9471
    %v9616 = vadd.f32 %v9342, %v9472
    %v9617 = vadd.f32 %v9343, %v9473
    %v9618 = vadd.f32 %v9344, %v9474
    %v9619 = vadd.f32 %v9345, %v9475
    %v9620 = vadd.f32 %v9346, %v9476
    %v9621 = vadd.f32 %v9347, %v9477
    %v9622 = vadd.f32 %v9348, %v9470
    %v9623 = vadd.f32 %v9349, %v9471
    %v9624 = vadd.f32 %v9350, %v9472
    %v9625 = vadd.f32 %v9351, %v9473
    %v9626 = vadd.f32 %v9352, %v9474
    %v9627 = vadd.f32 %v9353, %v9475
    %v9628 = vadd.f32 %v9354, %v9476
    %v9629 = vadd.f32 %v9355, %v9477
    %v9630 = vadd.f32 %v9356, %v9470
    %v9631 = vadd.f32 %v9357, %v9471
    %v9632 = vadd.f32 %v9358, %v9472
    %v9633 = vadd.f32 %v9359, %v9473
    %v9634 = vadd.f32 %v9360, %v9474
    %v9635 = vadd.f32 %v9361, %v9475
    %v9636 = vadd.f32 %v9362, %v9476
    %v9637 = vadd.f32 %v9363, %v9477
    %v9638 = vadd.f32 %v9364, %v9470
    %v9639 = vadd.f32 %v9365, %v9471
    %v9640 = vadd.f32 %v9366, %v9472
    %v9641 = vadd.f32 %v9367, %v9473
    %v9642 = vadd.f32 %v9368, %v9474
    %v9643 = vadd.f32 %v9369, %v9475
    %v9644 = vadd.f32 %v9370, %v9476
    %v9645 = vadd.f32 %v9371, %v9477
    %v9646 = vadd.f32 %v9372, %v9470
    %v9647 = vadd.f32 %v9373, %v9471
    %v9648 = vadd.f32 %v9374, %v9472
    %v9649 = vadd.f32 %v9375, %v9473
    %v9650 = vadd.f32 %v9376, %v9474
    %v9651 = vadd.f32 %v9377, %v9475
    %v9652 = vadd.f32 %v9378, %v9476
    %v9653 = vadd.f32 %v9379, %v9477
    %v9654 = vadd.f32 %v9380, %v9470
    %v9655 = vadd.f32 %v9381, %v9471
    %v9656 = vadd.f32 %v9382, %v9472
    %v9657 = vadd.f32 %v9383, %v9473
    %v9658 = vadd.f32 %v9384, %v9474
    %v9659 = vadd.f32 %v9385, %v9475
    %v9660 = vadd.f32 %v9386, %v9476
    %v9661 = vadd.f32 %v9387, %v9477
    %v9662 = vadd.f32 %v9388, %v9470
    %v9663 = vadd.f32 %v9389, %v9471
    %v9664 = vadd.f32 %v9390, %v9472
    %v9665 = vadd.f32 %v9391, %v9473
    %v9666 = vadd.f32 %v9392, %v9474
    %v9667 = vadd.f32 %v9393, %v9475
    %v9668 = vadd.f32 %v9394, %v9476
    %v9669 = vadd.f32 %v9395, %v9477
    %v9670 = vadd.f32 %v9396, %v9470
    %v9671 = vadd.f32 %v9397, %v9471
    %v9672 = vadd.f32 %v9398, %v9472
    %v9673 = vadd.f32 %v9399, %v9473
    %v9674 = vadd.f32 %v9400, %v9474
    %v9675 = vadd.f32 %v9401, %v9475
    %v9676 = vadd.f32 %v9402, %v9476
    %v9677 = vadd.f32 %v9403, %v9477
    %v9678 = vadd.f32 %v9404, %v9470
    %v9679 = vadd.f32 %v9405, %v9471
    %v9680 = vadd.f32 %v9406, %v9472
    %v9681 = vadd.f32 %v9407, %v9473
    %v9682 = vadd.f32 %v9408, %v9474
    %v9683 = vadd.f32 %v9409, %v9475
    %v9684 = vadd.f32 %v9410, %v9476
    %v9685 = vadd.f32 %v9411, %v9477
    %v9686 = vadd.f32 %v9412, %v9470
    %v9687 = vadd.f32 %v9413, %v9471
    %v9688 = vadd.f32 %v9414, %v9472
    %v9689 = vadd.f32 %v9415, %v9473
    %v9690 = vadd.f32 %v9416, %v9474
    %v9691 = vadd.f32 %v9417, %v9475
    %v9692 = vadd.f32 %v9418, %v9476
    %v9693 = vadd.f32 %v9419, %v9477
    %v9694 = vadd.f32 %v9420, %v9470
    %v9695 = vadd.f32 %v9421, %v9471
    %v9696 = vadd.f32 %v9422, %v9472
    %v9697 = vadd.f32 %v9423, %v9473
    %v9698 = vadd.f32 %v9424, %v9474
    %v9699 = vadd.f32 %v9425, %v9475
    %v9700 = vadd.f32 %v9426, %v9476
    %v9701 = vadd.f32 %v9427, %v9477
    %v9702 = vadd.f32 %v9428, %v9470
    %v9703 = vadd.f32 %v9429, %v9471
    %v9704 = vadd.f32 %v9430, %v9472
    %v9705 = vadd.f32 %v9431, %v9473
    %v9706 = vadd.f32 %v9432, %v9474
    %v9707 = vadd.f32 %v9433, %v9475
    %v9708 = vadd.f32 %v9434, %v9476
    %v9709 = vadd.f32 %v9435, %v9477
    %v9710 = vadd.f32 %v9436, %v9470
    %v9711 = vadd.f32 %v9437, %v9471
    %v9712 = vadd.f32 %v9438, %v9472
    %v9713 = vadd.f32 %v9439, %v9473
    %v9714 = vadd.f32 %v9440, %v9474
    %v9715 = vadd.f32 %v9441, %v9475
    %v9716 = vadd.f32 %v9442, %v9476
    %v9717 = vadd.f32 %v9443, %v9477
    %v9718 = vadd.f32 %v9444, %v9470
    %v9719 = vadd.f32 %v9445, %v9471
    %v9720 = vadd.f32 %v9446, %v9472
    %v9721 = vadd.f32 %v9447, %v9473
    %v9722 = vadd.f32 %v9448, %v9474
    %v9723 = vadd.f32 %v9449, %v9475
    %v9724 = vadd.f32 %v9450, %v9476
    %v9725 = vadd.f32 %v9451, %v9477
    %v9726 = vadd.f32 %v9452, %v9470
    %v9727 = vadd.f32 %v9453, %v9471
    %v9728 = vadd.f32 %v9454, %v9472
    %v9729 = vadd.f32 %v9455, %v9473
    %v9730 = vadd.f32 %v9456, %v9474
    %v9731 = vadd.f32 %v9457, %v9475
    %v9732 = vadd.f32 %v9458, %v9476
    %v9733 = vadd.f32 %v9459, %v9477
    %v9734 = vadd.f32 %v9460, %v9470
    %v9735 = vadd.f32 %v9461, %v9471
    %v9736 = vadd.f32 %v9462, %v9472
    %v9737 = vadd.f32 %v9463, %v9473
    %v9738 = vadd.f32 %v9464, %v9474
    %v9739 = vadd.f32 %v9465, %v9475
    %v9740 = vadd.f32 %v9466, %v9476
    %v9741 = vadd.f32 %v9467, %v9477
    %v9742 = vmul.f32 %v9486, 0.2
    %v9743 = vmul.f32 %v9487, 0.2
    %v9744 = vmul.f32 %v9488, 0.2
    %v9745 = vmul.f32 %v9489, 0.2
    %v9746 = vmul.f32 %v9490, 0.2
    %v9747 = vmul.f32 %v9491, 0.2
    %v9748 = vmul.f32 %v9492, 0.2
    %v9749 = vmul.f32 %v9493, 0.2
    %v9750 = vmul.f32 %v9494, 0.2
    %v9751 = vmul.f32 %v9495, 0.2
    %v9752 = vmul.f32 %v9496, 0.2
    %v9753 = vmul.f32 %v9497, 0.2
    %v9754 = vmul.f32 %v9498, 0.2
    %v9755 = vmul.f32 %v9499, 0.2
    %v9756 = vmul.f32 %v9500, 0.2
    %v9757 = vmul.f32 %v9501, 0.2
    %v9758 = vmul.f32 %v9502, 0.2
    %v9759 = vmul.f32 %v9503, 0.2
    %v9760 = vmul.f32 %v9504, 0.2
    %v9761 = vmul.f32 %v9505, 0.2
    %v9762 = vmul.f32 %v9506, 0.2
    %v9763 = vmul.f32 %v9507, 0.2
    %v9764 = vmul.f32 %v9508, 0.2
    %v9765 = vmul.f32 %v9509, 0.2
    %v9766 = vmul.f32 %v9510, 0.2
    %v9767 = vmul.f32 %v9511, 0.2
    %v9768 = vmul.f32 %v9512, 0.2
    %v9769 = vmul.f32 %v9513, 0.2
    %v9770 = vmul.f32 %v9514, 0.2
    %v9771 = vmul.f32 %v9515, 0.2
    %v9772 = vmul.f32 %v9516, 0.2
    %v9773 = vmul.f32 %v9517, 0.2
    %v9774 = vmul.f32 %v9518, 0.2
    %v9775 = vmul.f32 %v9519, 0.2
    %v9776 = vmul.f32 %v9520, 0.2
    %v9777 = vmul.f32 %v9521, 0.2
    %v9778 = vmul.f32 %v9522, 0.2
    %v9779 = vmul.f32 %v9523, 0.2
    %v9780 = vmul.f32 %v9524, 0.2
    %v9781 = vmul.f32 %v9525, 0.2
    %v9782 = vmul.f32 %v9526, 0.2
    %v9783 = vmul.f32 %v9527, 0.2
    %v9784 = vmul.f32 %v9528, 0.2
    %v9785 = vmul.f32 %v9529, 0.2
    %v9786 = vmul.f32 %v9530, 0.2
    %v9787 = vmul.f32 %v9531, 0.2
    %v9788 = vmul.f32 %v9532, 0.2
    %v9789 = vmul.f32 %v9533, 0.2
    %v9790 = vmul.f32 %v9534, 0.2
    %v9791 = vmul.f32 %v9535, 0.2
    %v9792 = vmul.f32 %v9536, 0.2
    %v9793 = vmul.f32 %v9537, 0.2
    %v9794 = vmul.f32 %v9538, 0.2
    %v9795 = vmul.f32 %v9539, 0.2
    %v9796 = vmul.f32 %v9540, 0.2
    %v9797 = vmul.f32 %v9541, 0.2
    %v9798 = vmul.f32 %v9542, 0.2
    %v9799 = vmul.f32 %v9543, 0.2
    %v9800 = vmul.f32 %v9544, 0.2
    %v9801 = vmul.f32 %v9545, 0.2
    %v9802 = vmul.f32 %v9546, 0.2
    %v9803 = vmul.f32 %v9547, 0.2
    %v9804 = vmul.f32 %v9548, 0.2
    %v9805 = vmul.f32 %v9549, 0.2
    %v9806 = vmul.f32 %v9550, 0.2
    %v9807 = vmul.f32 %v9551, 0.2
    %v9808 = vmul.f32 %v9552, 0.2
    %v9809 = vmul.f32 %v9553, 0.2
    %v9810 = vmul.f32 %v9554, 0.2
    %v9811 = vmul.f32 %v9555, 0.2
    %v9812 = vmul.f32 %v9556, 0.2
    %v9813 = vmul.f32 %v9557, 0.2
    %v9814 = vmul.f32 %v9558, 0.2
    %v9815 = vmul.f32 %v9559, 0.2
    %v9816 = vmul.f32 %v9560, 0.2
    %v9817 = vmul.f32 %v9561, 0.2
    %v9818 = vmul.f32 %v9562, 0.2
    %v9819 = vmul.f32 %v9563, 0.2
    %v9820 = vmul.f32 %v9564, 0.2
    %v9821 = vmul.f32 %v9565, 0.2
    %v9822 = vmul.f32 %v9566, 0.2
    %v9823 = vmul.f32 %v9567, 0.2
    %v9824 = vmul.f32 %v9568, 0.2
    %v9825 = vmul.f32 %v9569, 0.2
    %v9826 = vmul.f32 %v9570, 0.2
    %v9827 = vmul.f32 %v9571, 0.2
    %v9828 = vmul.f32 %v9572, 0.2
    %v9829 = vmul.f32 %v9573, 0.2
    %v9830 = vmul.f32 %v9574, 0.2
    %v9831 = vmul.f32 %v9575, 0.2
    %v9832 = vmul.f32 %v9576, 0.2
    %v9833 = vmul.f32 %v9577, 0.2
    %v9834 = vmul.f32 %v9578, 0.2
    %v9835 = vmul.f32 %v9579, 0.2
    %v9836 = vmul.f32 %v9580, 0.2
    %v9837 = vmul.f32 %v9581, 0.2
    %v9838 = vmul.f32 %v9582, 0.2
    %v9839 = vmul.f32 %v9583, 0.2
    %v9840 = vmul.f32 %v9584, 0.2
    %v9841 = vmul.f32 %v9585, 0.2
    %v9842 = vmul.f32 %v9586, 0.2
    %v9843 = vmul.f32 %v9587, 0.2
    %v9844 = vmul.f32 %v9588, 0.2
    %v9845 = vmul.f32 %v9589, 0.2
    %v9846 = vmul.f32 %v9590, 0.2
    %v9847 = vmul.f32 %v9591, 0.2
    %v9848 = vmul.f32 %v9592, 0.2
    %v9849 = vmul.f32 %v9593, 0.2
    %v9850 = vmul.f32 %v9594, 0.2
    %v9851 = vmul.f32 %v9595, 0.2
    %v9852 = vmul.f32 %v9596, 0.2
    %v9853 = vmul.f32 %v9597, 0.2
    %v9854 = vmul.f32 %v9598, 0.2
    %v9855 = vmul.f32 %v9599, 0.2
    %v9856 = vmul.f32 %v9600, 0.2
    %v9857 = vmul.f32 %v9601, 0.2
    %v9858 = vmul.f32 %v9602, 0.2
    %v9859 = vmul.f32 %v9603, 0.2
    %v9860 = vmul.f32 %v9604, 0.2
    %v9861 = vmul.f32 %v9605, 0.2
    %v9862 = vmul.f32 %v9606, 0.2
    %v9863 = vmul.f32 %v9607, 0.2
    %v9864 = vmul.f32 %v9608, 0.2
    %v9865 = vmul.f32 %v9609, 0.2
    %v9866 = vmul.f32 %v9610, 0.2
    %v9867 = vmul.f32 %v9611, 0.2
    %v9868 = vmul.f32 %v9612, 0.2
    %v9869 = vmul.f32 %v9613, 0.2
    %v9870 = vmul.f32 %v9614, 0.2
    %v9871 = vmul.f32 %v9615, 0.2
    %v9872 = vmul.f32 %v9616, 0.2
    %v9873 = vmul.f32 %v9617, 0.2
    %v9874 = vmul.f32 %v9618, 0.2
    %v9875 = vmul.f32 %v9619, 0.2
    %v9876 = vmul.f32 %v9620, 0.2
    %v9877 = vmul.f32 %v9621, 0.2
    %v9878 = vmul.f32 %v9622, 0.2
    %v9879 = vmul.f32 %v9623, 0.2
    %v9880 = vmul.f32 %v9624, 0.2
    %v9881 = vmul.f32 %v9625, 0.2
    %v9882 = vmul.f32 %v9626, 0.2
    %v9883 = vmul.f32 %v9627, 0.2
    %v9884 = vmul.f32 %v9628, 0.2
    %v9885 = vmul.f32 %v9629, 0.2
    %v9886 = vmul.f32 %v9630, 0.2
    %v9887 = vmul.f32 %v9631, 0.2
    %v9888 = vmul.f32 %v9632, 0.2
    %v9889 = vmul.f32 %v9633, 0.2
    %v9890 = vmul.f32 %v9634, 0.2
    %v9891 = vmul.f32 %v9635, 0.2
    %v9892 = vmul.f32 %v9636, 0.2
    %v9893 = vmul.f32 %v9637, 0.2
    %v9894 = vmul.f32 %v9638, 0.2
    %v9895 = vmul.f32 %v9639, 0.2
    %v9896 = vmul.f32 %v9640, 0.2
    %v9897 = vmul.f32 %v9641, 0.2
    %v9898 = vmul.f32 %v9642, 0.2
    %v9899 = vmul.f32 %v9643, 0.2
    %v9900 = vmul.f32 %v9644, 0.2
    %v9901 = vmul.f32 %v9645, 0.2
    %v9902 = vmul.f32 %v9646, 0.2
    %v9903 = vmul.f32 %v9647, 0.2
    %v9904 = vmul.f32 %v9648, 0.2
    %v9905 = vmul.f32 %v9649, 0.2
    %v9906 = vmul.f32 %v9650, 0.2
    %v9907 = vmul.f32 %v9651, 0.2
    %v9908 = vmul.f32 %v9652, 0.2
    %v9909 = vmul.f32 %v9653, 0.2
    %v9910 = vmul.f32 %v9654, 0.2
    %v9911 = vmul.f32 %v9655, 0.2
    %v9912 = vmul.f32 %v9656, 0.2
    %v9913 = vmul.f32 %v9657, 0.2
    %v9914 = vmul.f32 %v9658, 0.2
    %v9915 = vmul.f32 %v9659, 0.2
    %v9916 = vmul.f32 %v9660, 0.2
    %v9917 = vmul.f32 %v9661, 0.2
    %v9918 = vmul.f32 %v9662, 0.2
    %v9919 = vmul.f32 %v9663, 0.2
    %v9920 = vmul.f32 %v9664, 0.2
    %v9921 = vmul.f32 %v9665, 0.2
    %v9922 = vmul.f32 %v9666, 0.2
    %v9923 = vmul.f32 %v9667, 0.2
    %v9924 = vmul.f32 %v9668, 0.2
    %v9925 = vmul.f32 %v9669, 0.2
    %v9926 = vmul.f32 %v9670, 0.2
    %v9927 = vmul.f32 %v9671, 0.2
    %v9928 = vmul.f32 %v9672, 0.2
    %v9929 = vmul.f32 %v9673, 0.2
    %v9930 = vmul.f32 %v9674, 0.2
    %v9931 = vmul.f32 %v9675, 0.2
    %v9932 = vmul.f32 %v9676, 0.2
    %v9933 = vmul.f32 %v9677, 0.2
    %v9934 = vmul.f32 %v9678, 0.2
    %v9935 = vmul.f32 %v9679, 0.2
    %v9936 = vmul.f32 %v9680, 0.2
    %v9937 = vmul.f32 %v9681, 0.2
    %v9938 = vmul.f32 %v9682, 0.2
    %v9939 = vmul.f32 %v9683, 0.2
    %v9940 = vmul.f32 %v9684, 0.2
    %v9941 = vmul.f32 %v9685, 0.2
    %v9942 = vmul.f32 %v9686, 0.2
    %v9943 = vmul.f32 %v9687, 0.2
    %v9944 = vmul.f32 %v9688, 0.2
    %v9945 = vmul.f32 %v9689, 0.2
    %v9946 = vmul.f32 %v9690, 0.2
    %v9947 = vmul.f32 %v9691, 0.2
    %v9948 = vmul.f32 %v9692, 0.2
    %v9949 = vmul.f32 %v9693, 0.2
    %v9950 = vmul.f32 %v9694, 0.2
    %v9951 = vmul.f32 %v9695, 0.2
    %v9952 = vmul.f32 %v9696, 0.2
    %v9953 = vmul.f32 %v9697, 0.2
    %v9954 = vmul.f32 %v9698, 0.2
    %v9955 = vmul.f32 %v9699, 0.2
    %v9956 = vmul.f32 %v9700, 0.2
    %v9957 = vmul.f32 %v9701, 0.2
    %v9958 = vmul.f32 %v9702, 0.2
    %v9959 = vmul.f32 %v9703, 0.2
    %v9960 = vmul.f32 %v9704, 0.2
    %v9961 = vmul.f32 %v9705, 0.2
    %v9962 = vmul.f32 %v9706, 0.2
    %v9963 = vmul.f32 %v9707, 0.2
    %v9964 = vmul.f32 %v9708, 0.2
    %v9965 = vmul.f32 %v9709, 0.2
    %v9966 = vmul.f32 %v9710, 0.2
    %v9967 = vmul.f32 %v9711, 0.2
    %v9968 = vmul.f32 %v9712, 0.2
    %v9969 = vmul.f32 %v9713, 0.2
    %v9970 = vmul.f32 %v9714, 0.2
    %v9971 = vmul.f32 %v9715, 0.2
    %v9972 = vmul.f32 %v9716, 0.2
    %v9973 = vmul.f32 %v9717, 0.2
    %v9974 = vmul.f32 %v9718, 0.2
    %v9975 = vmul.f32 %v9719, 0.2
    %v9976 = vmul.f32 %v9720, 0.2
    %v9977 = vmul.f32 %v9721, 0.2
    %v9978 = vmul.f32 %v9722, 0.2
    %v9979 = vmul.f32 %v9723, 0.2
    %v9980 = vmul.f32 %v9724, 0.2
    %v9981 = vmul.f32 %v9725, 0.2
    %v9982 = vmul.f32 %v9726, 0.2
    %v9983 = vmul.f32 %v9727, 0.2
    %v9984 = vmul.f32 %v9728, 0.2
    %v9985 = vmul.f32 %v9729, 0.2
    %v9986 = vmul.f32 %v9730, 0.2
    %v9987 = vmul.f32 %v9731, 0.2
    %v9988 = vmul.f32 %v9732, 0.2
    %v9989 = vmul.f32 %v9733, 0.2
    %v9990 = vmul.f32 %v9734, 0.2
    %v9991 = vmul.f32 %v9735, 0.2
    %v9992 = vmul.f32 %v9736, 0.2
    %v9993 = vmul.f32 %v9737, 0.2
    %v9994 = vmul.f32 %v9738, 0.2
    %v9995 = vmul.f32 %v9739, 0.2
    %v9996 = vmul.f32 %v9740, 0.2
    %v9997 = vmul.f32 %v9741, 0.2
    %v9998 = vmax.f32 %v9486, %v9742
    %v9999 = vmax.f32 %v9487, %v9743
    %v10000 = vmax.f32 %v9488, %v9744
    %v10001 = vmax.f32 %v9489, %v9745
    %v10002 = vmax.f32 %v9490, %v9746
    %v10003 = vmax.f32 %v9491, %v9747
    %v10004 = vmax.f32 %v9492, %v9748
    %v10005 = vmax.f32 %v9493, %v9749
    %v10006 = vmax.f32 %v9494, %v9750
    %v10007 = vmax.f32 %v9495, %v9751
    %v10008 = vmax.f32 %v9496, %v9752
    %v10009 = vmax.f32 %v9497, %v9753
    %v10010 = vmax.f32 %v9498, %v9754
    %v10011 = vmax.f32 %v9499, %v9755
    %v10012 = vmax.f32 %v9500, %v9756
    %v10013 = vmax.f32 %v9501, %v9757
    %v10014 = vmax.f32 %v9502, %v9758
    %v10015 = vmax.f32 %v9503, %v9759
    %v10016 = vmax.f32 %v9504, %v9760
    %v10017 = vmax.f32 %v9505, %v9761
    %v10018 = vmax.f32 %v9506, %v9762
    %v10019 = vmax.f32 %v9507, %v9763
    %v10020 = vmax.f32 %v9508, %v9764
    %v10021 = vmax.f32 %v9509, %v9765
    %v10022 = vmax.f32 %v9510, %v9766
    %v10023 = vmax.f32 %v9511, %v9767
    %v10024 = vmax.f32 %v9512, %v9768
    %v10025 = vmax.f32 %v9513, %v9769
    %v10026 = vmax.f32 %v9514, %v9770
    %v10027 = vmax.f32 %v9515, %v9771
    %v10028 = vmax.f32 %v9516, %v9772
    %v10029 = vmax.f32 %v9517, %v9773
    %v10030 = vmax.f32 %v9518, %v9774
    %v10031 = vmax.f32 %v9519, %v9775
    %v10032 = vmax.f32 %v9520, %v9776
    %v10033 = vmax.f32 %v9521, %v9777
    %v10034 = vmax.f32 %v9522, %v9778
    %v10035 = vmax.f32 %v9523, %v9779
    %v10036 = vmax.f32 %v9524, %v9780
    %v10037 = vmax.f32 %v9525, %v9781
    %v10038 = vmax.f32 %v9526, %v9782
    %v10039 = vmax.f32 %v9527, %v9783
    %v10040 = vmax.f32 %v9528, %v9784
    %v10041 = vmax.f32 %v9529, %v9785
    %v10042 = vmax.f32 %v9530, %v9786
    %v10043 = vmax.f32 %v9531, %v9787
    %v10044 = vmax.f32 %v9532, %v9788
    %v10045 = vmax.f32 %v9533, %v9789
    %v10046 = vmax.f32 %v9534, %v9790
    %v10047 = vmax.f32 %v9535, %v9791
    %v10048 = vmax.f32 %v9536, %v9792
    %v10049 = vmax.f32 %v9537, %v9793
    %v10050 = vmax.f32 %v9538, %v9794
    %v10051 = vmax.f32 %v9539, %v9795
    %v10052 = vmax.f32 %v9540, %v9796
    %v10053 = vmax.f32 %v9541, %v9797
    %v10054 = vmax.f32 %v9542, %v9798
    %v10055 = vmax.f32 %v9543, %v9799
    %v10056 = vmax.f32 %v9544, %v9800
    %v10057 = vmax.f32 %v9545, %v9801
    %v10058 = vmax.f32 %v9546, %v9802
    %v10059 = vmax.f32 %v9547, %v9803
    %v10060 = vmax.f32 %v9548, %v9804
    %v10061 = vmax.f32 %v9549, %v9805
    %v10062 = vmax.f32 %v9550, %v9806
    %v10063 = vmax.f32 %v9551, %v9807
    %v10064 = vmax.f32 %v9552, %v9808
    %v10065 = vmax.f32 %v9553, %v9809
    %v10066 = vmax.f32 %v9554, %v9810
    %v10067 = vmax.f32 %v9555, %v9811
    %v10068 = vmax.f32 %v9556, %v9812
    %v10069 = vmax.f32 %v9557, %v9813
    %v10070 = vmax.f32 %v9558, %v9814
    %v10071 = vmax.f32 %v9559, %v9815
    %v10072 = vmax.f32 %v9560, %v9816
    %v10073 = vmax.f32 %v9561, %v9817
    %v10074 = vmax.f32 %v9562, %v9818
    %v10075 = vmax.f32 %v9563, %v9819
    %v10076 = vmax.f32 %v9564, %v9820
    %v10077 = vmax.f32 %v9565, %v9821
    %v10078 = vmax.f32 %v9566, %v9822
    %v10079 = vmax.f32 %v9567, %v9823
    %v10080 = vmax.f32 %v9568, %v9824
    %v10081 = vmax.f32 %v9569, %v9825
    %v10082 = vmax.f32 %v9570, %v9826
    %v10083 = vmax.f32 %v9571, %v9827
    %v10084 = vmax.f32 %v9572, %v9828
    %v10085 = vmax.f32 %v9573, %v9829
    %v10086 = vmax.f32 %v9574, %v9830
    %v10087 = vmax.f32 %v9575, %v9831
    %v10088 = vmax.f32 %v9576, %v9832
    %v10089 = vmax.f32 %v9577, %v9833
    %v10090 = vmax.f32 %v9578, %v9834
    %v10091 = vmax.f32 %v9579, %v9835
    %v10092 = vmax.f32 %v9580, %v9836
    %v10093 = vmax.f32 %v9581, %v9837
    %v10094 = vmax.f32 %v9582, %v9838
    %v10095 = vmax.f32 %v9583, %v9839
    %v10096 = vmax.f32 %v9584, %v9840
    %v10097 = vmax.f32 %v9585, %v9841
    %v10098 = vmax.f32 %v9586, %v9842
    %v10099 = vmax.f32 %v9587, %v9843
    %v10100 = vmax.f32 %v9588, %v9844
    %v10101 = vmax.f32 %v9589, %v9845
    %v10102 = vmax.f32 %v9590, %v9846
    %v10103 = vmax.f32 %v9591, %v9847
    %v10104 = vmax.f32 %v9592, %v9848
    %v10105 = vmax.f32 %v9593, %v9849
    %v10106 = vmax.f32 %v9594, %v9850
    %v10107 = vmax.f32 %v9595, %v9851
    %v10108 = vmax.f32 %v9596, %v9852
    %v10109 = vmax.f32 %v9597, %v9853
    %v10110 = vmax.f32 %v9598, %v9854
    %v10111 = vmax.f32 %v9599, %v9855
    %v10112 = vmax.f32 %v9600, %v9856
    %v10113 = vmax.f32 %v9601, %v9857
    %v10114 = vmax.f32 %v9602, %v9858
    %v10115 = vmax.f32 %v9603, %v9859
    %v10116 = vmax.f32 %v9604, %v9860
    %v10117 = vmax.f32 %v9605, %v9861
    %v10118 = vmax.f32 %v9606, %v9862
    %v10119 = vmax.f32 %v9607, %v9863
    %v10120 = vmax.f32 %v9608, %v9864
    %v10121 = vmax.f32 %v9609, %v9865
    %v10122 = vmax.f32 %v9610, %v9866
    %v10123 = vmax.f32 %v9611, %v9867
    %v10124 = vmax.f32 %v9612, %v9868
    %v10125 = vmax.f32 %v9613, %v9869
    %v10126 = vmax.f32 %v9614, %v9870
    %v10127 = vmax.f32 %v9615, %v9871
    %v10128 = vmax.f32 %v9616, %v9872
    %v10129 = vmax.f32 %v9617, %v9873
    %v10130 = vmax.f32 %v9618, %v9874
    %v10131 = vmax.f32 %v9619, %v9875
    %v10132 = vmax.f32 %v9620, %v9876
    %v10133 = vmax.f32 %v9621, %v9877
    %v10134 = vmax.f32 %v9622, %v9878
    %v10135 = vmax.f32 %v9623, %v9879
    %v10136 = vmax.f32 %v9624, %v9880
    %v10137 = vmax.f32 %v9625, %v9881
    %v10138 = vmax.f32 %v9626, %v9882
    %v10139 = vmax.f32 %v9627, %v9883
    %v10140 = vmax.f32 %v9628, %v9884
    %v10141 = vmax.f32 %v9629, %v9885
    %v10142 = vmax.f32 %v9630, %v9886
    %v10143 = vmax.f32 %v9631, %v9887
    %v10144 = vmax.f32 %v9632, %v9888
    %v10145 = vmax.f32 %v9633, %v9889
    %v10146 = vmax.f32 %v9634, %v9890
    %v10147 = vmax.f32 %v9635, %v9891
    %v10148 = vmax.f32 %v9636, %v9892
    %v10149 = vmax.f32 %v9637, %v9893
    %v10150 = vmax.f32 %v9638, %v9894
    %v10151 = vmax.f32 %v9639, %v9895
    %v10152 = vmax.f32 %v9640, %v9896
    %v10153 = vmax.f32 %v9641, %v9897
    %v10154 = vmax.f32 %v9642, %v9898
    %v10155 = vmax.f32 %v9643, %v9899
    %v10156 = vmax.f32 %v9644, %v9900
    %v10157 = vmax.f32 %v9645, %v9901
    %v10158 = vmax.f32 %v9646, %v9902
    %v10159 = vmax.f32 %v9647, %v9903
    %v10160 = vmax.f32 %v9648, %v9904
    %v10161 = vmax.f32 %v9649, %v9905
    %v10162 = vmax.f32 %v9650, %v9906
    %v10163 = vmax.f32 %v9651, %v9907
    %v10164 = vmax.f32 %v9652, %v9908
    %v10165 = vmax.f32 %v9653, %v9909
    %v10166 = vmax.f32 %v9654, %v9910
    %v10167 = vmax.f32 %v9655, %v9911
    %v10168 = vmax.f32 %v9656, %v9912
    %v10169 = vmax.f32 %v9657, %v9913
    %v10170 = vmax.f32 %v9658, %v9914
    %v10171 = vmax.f32 %v9659, %v9915
    %v10172 = vmax.f32 %v9660, %v9916
    %v10173 = vmax.f32 %v9661, %v9917
    %v10174 = vmax.f32 %v9662, %v9918
    %v10175 = vmax.f32 %v9663, %v9919
    %v10176 = vmax.f32 %v9664, %v9920
    %v10177 = vmax.f32 %v9665, %v9921
    %v10178 = vmax.f32 %v9666, %v9922
    %v10179 = vmax.f32 %v9667, %v9923
    %v10180 = vmax.f32 %v9668, %v9924
    %v10181 = vmax.f32 %v9669, %v9925
    %v10182 = vmax.f32 %v9670, %v9926
    %v10183 = vmax.f32 %v9671, %v9927
    %v10184 = vmax.f32 %v9672, %v9928
    %v10185 = vmax.f32 %v9673, %v9929
    %v10186 = vmax.f32 %v9674, %v9930
    %v10187 = vmax.f32 %v9675, %v9931
    %v10188 = vmax.f32 %v9676, %v9932
    %v10189 = vmax.f32 %v9677, %v9933
    %v10190 = vmax.f32 %v9678, %v9934
    %v10191 = vmax.f32 %v9679, %v9935
    %v10192 = vmax.f32 %v9680, %v9936
    %v10193 = vmax.f32 %v9681, %v9937
    %v10194 = vmax.f32 %v9682, %v9938
    %v10195 = vmax.f32 %v9683, %v9939
    %v10196 = vmax.f32 %v9684, %v9940
    %v10197 = vmax.f32 %v9685, %v9941
    %v10198 = vmax.f32 %v9686, %v9942
    %v10199 = vmax.f32 %v9687, %v9943
    %v10200 = vmax.f32 %v9688, %v9944
    %v10201 = vmax.f32 %v9689, %v9945
    %v10202 = vmax.f32 %v9690, %v9946
    %v10203 = vmax.f32 %v9691, %v9947
    %v10204 = vmax.f32 %v9692, %v9948
    %v10205 = vmax.f32 %v9693, %v9949
    %v10206 = vmax.f32 %v9694, %v9950
    %v10207 = vmax.f32 %v9695, %v9951
    %v10208 = vmax.f32 %v9696, %v9952
    %v10209 = vmax.f32 %v9697, %v9953
    %v10210 = vmax.f32 %v9698, %v9954
    %v10211 = vmax.f32 %v9699, %v9955
    %v10212 = vmax.f32 %v9700, %v9956
    %v10213 = vmax.f32 %v9701, %v9957
    %v10214 = vmax.f32 %v9702, %v9958
    %v10215 = vmax.f32 %v9703, %v9959
    %v10216 = vmax.f32 %v9704, %v9960
    %v10217 = vmax.f32 %v9705, %v9961
    %v10218 = vmax.f32 %v9706, %v9962
    %v10219 = vmax.f32 %v9707, %v9963
    %v10220 = vmax.f32 %v9708, %v9964
    %v10221 = vmax.f32 %v9709, %v9965
    %v10222 = vmax.f32 %v9710, %v9966
    %v10223 = vmax.f32 %v9711, %v9967
    %v10224 = vmax.f32 %v9712, %v9968
    %v10225 = vmax.f32 %v9713, %v9969
    %v10226 = vmax.f32 %v9714, %v9970
    %v10227 = vmax.f32 %v9715, %v9971
    %v10228 = vmax.f32 %v9716, %v9972
    %v10229 = vmax.f32 %v9717, %v9973
    %v10230 = vmax.f32 %v9718, %v9974
    %v10231 = vmax.f32 %v9719, %v9975
    %v10232 = vmax.f32 %v9720, %v9976
    %v10233 = vmax.f32 %v9721, %v9977
    %v10234 = vmax.f32 %v9722, %v9978
    %v10235 = vmax.f32 %v9723, %v9979
    %v10236 = vmax.f32 %v9724, %v9980
    %v10237 = vmax.f32 %v9725, %v9981
    %v10238 = vmax.f32 %v9726, %v9982
    %v10239 = vmax.f32 %v9727, %v9983
    %v10240 = vmax.f32 %v9728, %v9984
    %v10241 = vmax.f32 %v9729, %v9985
    %v10242 = vmax.f32 %v9730, %v9986
    %v10243 = vmax.f32 %v9731, %v9987
    %v10244 = vmax.f32 %v9732, %v9988
    %v10245 = vmax.f32 %v9733, %v9989
    %v10246 = vmax.f32 %v9734, %v9990
    %v10247 = vmax.f32 %v9735, %v9991
    %v10248 = vmax.f32 %v9736, %v9992
    %v10249 = vmax.f32 %v9737, %v9993
    %v10250 = vmax.f32 %v9738, %v9994
    %v10251 = vmax.f32 %v9739, %v9995
    %v10252 = vmax.f32 %v9740, %v9996
    %v10253 = vmax.f32 %v9741, %v9997
    %v10254 = vpack.c.bf16 %v10006, %v9998
    %v10255 = vpack.c.bf16 %v10007, %v9999
    %v10256 = vpack.c.bf16 %v10008, %v10000
    %v10257 = vpack.c.bf16 %v10009, %v10001
    %v10258 = vpack.c.bf16 %v10010, %v10002
    %v10259 = vpack.c.bf16 %v10011, %v10003
    %v10260 = vpack.c.bf16 %v10012, %v10004
    %v10261 = vpack.c.bf16 %v10013, %v10005
    %v10262 = vpack.c.bf16 %v10022, %v10014
    %v10263 = vpack.c.bf16 %v10023, %v10015
    %v10264 = vpack.c.bf16 %v10024, %v10016
    %v10265 = vpack.c.bf16 %v10025, %v10017
    %v10266 = vpack.c.bf16 %v10026, %v10018
    %v10267 = vpack.c.bf16 %v10027, %v10019
    %v10268 = vpack.c.bf16 %v10028, %v10020
    %v10269 = vpack.c.bf16 %v10029, %v10021
    %v10270 = vpack.c.bf16 %v10038, %v10030
    %v10271 = vpack.c.bf16 %v10039, %v10031
    %v10272 = vpack.c.bf16 %v10040, %v10032
    %v10273 = vpack.c.bf16 %v10041, %v10033
    %v10274 = vpack.c.bf16 %v10042, %v10034
    %v10275 = vpack.c.bf16 %v10043, %v10035
    %v10276 = vpack.c.bf16 %v10044, %v10036
    %v10277 = vpack.c.bf16 %v10045, %v10037
    %v10278 = vpack.c.bf16 %v10054, %v10046
    %v10279 = vpack.c.bf16 %v10055, %v10047
    %v10280 = vpack.c.bf16 %v10056, %v10048
    %v10281 = vpack.c.bf16 %v10057, %v10049
    %v10282 = vpack.c.bf16 %v10058, %v10050
    %v10283 = vpack.c.bf16 %v10059, %v10051
    %v10284 = vpack.c.bf16 %v10060, %v10052
    %v10285 = vpack.c.bf16 %v10061, %v10053
    %v10286 = vpack.c.bf16 %v10070, %v10062
    %v10287 = vpack.c.bf16 %v10071, %v10063
    %v10288 = vpack.c.bf16 %v10072, %v10064
    %v10289 = vpack.c.bf16 %v10073, %v10065
    %v10290 = vpack.c.bf16 %v10074, %v10066
    %v10291 = vpack.c.bf16 %v10075, %v10067
    %v10292 = vpack.c.bf16 %v10076, %v10068
    %v10293 = vpack.c.bf16 %v10077, %v10069
    %v10294 = vpack.c.bf16 %v10086, %v10078
    %v10295 = vpack.c.bf16 %v10087, %v10079
    %v10296 = vpack.c.bf16 %v10088, %v10080
    %v10297 = vpack.c.bf16 %v10089, %v10081
    %v10298 = vpack.c.bf16 %v10090, %v10082
    %v10299 = vpack.c.bf16 %v10091, %v10083
    %v10300 = vpack.c.bf16 %v10092, %v10084
    %v10301 = vpack.c.bf16 %v10093, %v10085
    %v10302 = vpack.c.bf16 %v10102, %v10094
    %v10303 = vpack.c.bf16 %v10103, %v10095
    %v10304 = vpack.c.bf16 %v10104, %v10096
    %v10305 = vpack.c.bf16 %v10105, %v10097
    %v10306 = vpack.c.bf16 %v10106, %v10098
    %v10307 = vpack.c.bf16 %v10107, %v10099
    %v10308 = vpack.c.bf16 %v10108, %v10100
    %v10309 = vpack.c.bf16 %v10109, %v10101
    %v10310 = vpack.c.bf16 %v10118, %v10110
    %v10311 = vpack.c.bf16 %v10119, %v10111
    %v10312 = vpack.c.bf16 %v10120, %v10112
    %v10313 = vpack.c.bf16 %v10121, %v10113
    %v10314 = vpack.c.bf16 %v10122, %v10114
    %v10315 = vpack.c.bf16 %v10123, %v10115
    %v10316 = vpack.c.bf16 %v10124, %v10116
    %v10317 = vpack.c.bf16 %v10125, %v10117
    %v10318 = vpack.c.bf16 %v10134, %v10126
    %v10319 = vpack.c.bf16 %v10135, %v10127
    %v10320 = vpack.c.bf16 %v10136, %v10128
    %v10321 = vpack.c.bf16 %v10137, %v10129
    %v10322 = vpack.c.bf16 %v10138, %v10130
    %v10323 = vpack.c.bf16 %v10139, %v10131
    %v10324 = vpack.c.bf16 %v10140, %v10132
    %v10325 = vpack.c.bf16 %v10141, %v10133
    %v10326 = vpack.c.bf16 %v10150, %v10142
    %v10327 = vpack.c.bf16 %v10151, %v10143
    %v10328 = vpack.c.bf16 %v10152, %v10144
    %v10329 = vpack.c.bf16 %v10153, %v10145
    %v10330 = vpack.c.bf16 %v10154, %v10146
    %v10331 = vpack.c.bf16 %v10155, %v10147
    %v10332 = vpack.c.bf16 %v10156, %v10148
    %v10333 = vpack.c.bf16 %v10157, %v10149
    %v10334 = vpack.c.bf16 %v10166, %v10158
    %v10335 = vpack.c.bf16 %v10167, %v10159
    %v10336 = vpack.c.bf16 %v10168, %v10160
    %v10337 = vpack.c.bf16 %v10169, %v10161
    %v10338 = vpack.c.bf16 %v10170, %v10162
    %v10339 = vpack.c.bf16 %v10171, %v10163
    %v10340 = vpack.c.bf16 %v10172, %v10164
    %v10341 = vpack.c.bf16 %v10173, %v10165
    %v10342 = vpack.c.bf16 %v10182, %v10174
    %v10343 = vpack.c.bf16 %v10183, %v10175
    %v10344 = vpack.c.bf16 %v10184, %v10176
    %v10345 = vpack.c.bf16 %v10185, %v10177
    %v10346 = vpack.c.bf16 %v10186, %v10178
    %v10347 = vpack.c.bf16 %v10187, %v10179
    %v10348 = vpack.c.bf16 %v10188, %v10180
    %v10349 = vpack.c.bf16 %v10189, %v10181
    %v10350 = vpack.c.bf16 %v10198, %v10190
    %v10351 = vpack.c.bf16 %v10199, %v10191
    %v10352 = vpack.c.bf16 %v10200, %v10192
    %v10353 = vpack.c.bf16 %v10201, %v10193
    %v10354 = vpack.c.bf16 %v10202, %v10194
    %v10355 = vpack.c.bf16 %v10203, %v10195
    %v10356 = vpack.c.bf16 %v10204, %v10196
    %v10357 = vpack.c.bf16 %v10205, %v10197
    %v10358 = vpack.c.bf16 %v10214, %v10206
    %v10359 = vpack.c.bf16 %v10215, %v10207
    %v10360 = vpack.c.bf16 %v10216, %v10208
    %v10361 = vpack.c.bf16 %v10217, %v10209
    %v10362 = vpack.c.bf16 %v10218, %v10210
    %v10363 = vpack.c.bf16 %v10219, %v10211
    %v10364 = vpack.c.bf16 %v10220, %v10212
    %v10365 = vpack.c.bf16 %v10221, %v10213
    %v10366 = vpack.c.bf16 %v10230, %v10222
    %v10367 = vpack.c.bf16 %v10231, %v10223
    %v10368 = vpack.c.bf16 %v10232, %v10224
    %v10369 = vpack.c.bf16 %v10233, %v10225
    %v10370 = vpack.c.bf16 %v10234, %v10226
    %v10371 = vpack.c.bf16 %v10235, %v10227
    %v10372 = vpack.c.bf16 %v10236, %v10228
    %v10373 = vpack.c.bf16 %v10237, %v10229
    %v10374 = vpack.c.bf16 %v10246, %v10238
    %v10375 = vpack.c.bf16 %v10247, %v10239
    %v10376 = vpack.c.bf16 %v10248, %v10240
    %v10377 = vpack.c.bf16 %v10249, %v10241
    %v10378 = vpack.c.bf16 %v10250, %v10242
    %v10379 = vpack.c.bf16 %v10251, %v10243
    %v10380 = vpack.c.bf16 %v10252, %v10244
    %v10381 = vpack.c.bf16 %v10253, %v10245
    %v10382 = vld [vmem:[#allocation6] sm:$0xf]
    %v10383 = vld [vmem:[#allocation6 + $0x4] sm:$0xf]
    %v10384 = vld [vmem:[#allocation6 + $0x8] sm:$0xf]
    %v10385 = vld [vmem:[#allocation6 + $0xc] sm:$0xf]
    %v10386 = vld [vmem:[#allocation6 + $0x10] sm:$0xf]
    %v10387 = vld [vmem:[#allocation6 + $0x14] sm:$0xf]
    %v10388 = vld [vmem:[#allocation6 + $0x18] sm:$0xf]
    %v10389 = vld [vmem:[#allocation6 + $0x1c] sm:$0xf]
    %v10390 = vld [vmem:[#allocation6 + $0x20] sm:$0xf]
    %v10391 = vld [vmem:[#allocation6 + $0x24] sm:$0xf]
    %v10392 = vld [vmem:[#allocation6 + $0x28] sm:$0xf]
    %v10393 = vld [vmem:[#allocation6 + $0x2c] sm:$0xf]
    %v10394 = vld [vmem:[#allocation6 + $0x30] sm:$0xf]
    %v10395 = vld [vmem:[#allocation6 + $0x34] sm:$0xf]
    %v10396 = vld [vmem:[#allocation6 + $0x38] sm:$0xf]
    %v10397 = vld [vmem:[#allocation6 + $0x3c] sm:$0xf]
    %v10398 = vld [vmem:[#allocation6 + $0x40] sm:$0xf]
    %v10399 = vld [vmem:[#allocation6 + $0x44] sm:$0xf]
    %v10400 = vld [vmem:[#allocation6 + $0x48] sm:$0xf]
    %v10401 = vld [vmem:[#allocation6 + $0x4c] sm:$0xf]
    %v10402 = vld [vmem:[#allocation6 + $0x50] sm:$0xf]
    %v10403 = vld [vmem:[#allocation6 + $0x54] sm:$0xf]
    %v10404 = vld [vmem:[#allocation6 + $0x58] sm:$0xf]
    %v10405 = vld [vmem:[#allocation6 + $0x5c] sm:$0xf]
    %v10406 = vld [vmem:[#allocation6 + $0x60] sm:$0xf]
    %v10407 = vld [vmem:[#allocation6 + $0x64] sm:$0xf]
    %v10408 = vld [vmem:[#allocation6 + $0x68] sm:$0xf]
    %v10409 = vld [vmem:[#allocation6 + $0x6c] sm:$0xf]
    %v10410 = vld [vmem:[#allocation6 + $0x70] sm:$0xf]
    %v10411 = vld [vmem:[#allocation6 + $0x74] sm:$0xf]
    %v10412 = vld [vmem:[#allocation6 + $0x78] sm:$0xf]
    %v10413 = vld [vmem:[#allocation6 + $0x7c] sm:$0xf]
    %v10414 = vld [vmem:[#allocation6 + $0x80] sm:$0xf]
    %v10415 = vld [vmem:[#allocation6 + $0x84] sm:$0xf]
    %v10416 = vld [vmem:[#allocation6 + $0x88] sm:$0xf]
    %v10417 = vld [vmem:[#allocation6 + $0x8c] sm:$0xf]
    %v10418 = vld [vmem:[#allocation6 + $0x90] sm:$0xf]
    %v10419 = vld [vmem:[#allocation6 + $0x94] sm:$0xf]
    %v10420 = vld [vmem:[#allocation6 + $0x98] sm:$0xf]
    %v10421 = vld [vmem:[#allocation6 + $0x9c] sm:$0xf]
    %v10422 = vld [vmem:[#allocation6 + $0xa0] sm:$0xf]
    %v10423 = vld [vmem:[#allocation6 + $0xa4] sm:$0xf]
    %v10424 = vld [vmem:[#allocation6 + $0xa8] sm:$0xf]
    %v10425 = vld [vmem:[#allocation6 + $0xac] sm:$0xf]
    %v10426 = vld [vmem:[#allocation6 + $0xb0] sm:$0xf]
    %v10427 = vld [vmem:[#allocation6 + $0xb4] sm:$0xf]
    %v10428 = vld [vmem:[#allocation6 + $0xb8] sm:$0xf]
    %v10429 = vld [vmem:[#allocation6 + $0xbc] sm:$0xf]
    %v10430 = vld [vmem:[#allocation6 + $0xc0] sm:$0xf]
    %v10431 = vld [vmem:[#allocation6 + $0xc4] sm:$0xf]
    %v10432 = vld [vmem:[#allocation6 + $0xc8] sm:$0xf]
    %v10433 = vld [vmem:[#allocation6 + $0xcc] sm:$0xf]
    %v10434 = vld [vmem:[#allocation6 + $0xd0] sm:$0xf]
    %v10435 = vld [vmem:[#allocation6 + $0xd4] sm:$0xf]
    %v10436 = vld [vmem:[#allocation6 + $0xd8] sm:$0xf]
    %v10437 = vld [vmem:[#allocation6 + $0xdc] sm:$0xf]
    %v10438 = vld [vmem:[#allocation6 + $0xe0] sm:$0xf]
    %v10439 = vld [vmem:[#allocation6 + $0xe4] sm:$0xf]
    %v10440 = vld [vmem:[#allocation6 + $0xe8] sm:$0xf]
    %v10441 = vld [vmem:[#allocation6 + $0xec] sm:$0xf]
    %v10442 = vld [vmem:[#allocation6 + $0xf0] sm:$0xf]
    %v10443 = vld [vmem:[#allocation6 + $0xf4] sm:$0xf]
    %v10444 = vld [vmem:[#allocation6 + $0xf8] sm:$0xf]
    %v10445 = vld [vmem:[#allocation6 + $0xfc] sm:$0xf]
    %v10446 = vld [vmem:[#allocation6 + $0x100] sm:$0xf]
    %v10447 = vld [vmem:[#allocation6 + $0x104] sm:$0xf]
    %v10448 = vld [vmem:[#allocation6 + $0x108] sm:$0xf]
    %v10449 = vld [vmem:[#allocation6 + $0x10c] sm:$0xf]
    %v10450 = vld [vmem:[#allocation6 + $0x110] sm:$0xf]
    %v10451 = vld [vmem:[#allocation6 + $0x114] sm:$0xf]
    %v10452 = vld [vmem:[#allocation6 + $0x118] sm:$0xf]
    %v10453 = vld [vmem:[#allocation6 + $0x11c] sm:$0xf]
    %v10454 = vld [vmem:[#allocation6 + $0x120] sm:$0xf]
    %v10455 = vld [vmem:[#allocation6 + $0x124] sm:$0xf]
    %v10456 = vld [vmem:[#allocation6 + $0x128] sm:$0xf]
    %v10457 = vld [vmem:[#allocation6 + $0x12c] sm:$0xf]
    %v10458 = vld [vmem:[#allocation6 + $0x130] sm:$0xf]
    %v10459 = vld [vmem:[#allocation6 + $0x134] sm:$0xf]
    %v10460 = vld [vmem:[#allocation6 + $0x138] sm:$0xf]
    %v10461 = vld [vmem:[#allocation6 + $0x13c] sm:$0xf]
    %v10462 = vld [vmem:[#allocation6 + $0x140] sm:$0xf]
    %v10463 = vld [vmem:[#allocation6 + $0x144] sm:$0xf]
    %v10464 = vld [vmem:[#allocation6 + $0x148] sm:$0xf]
    %v10465 = vld [vmem:[#allocation6 + $0x14c] sm:$0xf]
    %v10466 = vld [vmem:[#allocation6 + $0x150] sm:$0xf]
    %v10467 = vld [vmem:[#allocation6 + $0x154] sm:$0xf]
    %v10468 = vld [vmem:[#allocation6 + $0x158] sm:$0xf]
    %v10469 = vld [vmem:[#allocation6 + $0x15c] sm:$0xf]
    %v10470 = vld [vmem:[#allocation6 + $0x160] sm:$0xf]
    %v10471 = vld [vmem:[#allocation6 + $0x164] sm:$0xf]
    %v10472 = vld [vmem:[#allocation6 + $0x168] sm:$0xf]
    %v10473 = vld [vmem:[#allocation6 + $0x16c] sm:$0xf]
    %v10474 = vld [vmem:[#allocation6 + $0x170] sm:$0xf]
    %v10475 = vld [vmem:[#allocation6 + $0x174] sm:$0xf]
    %v10476 = vld [vmem:[#allocation6 + $0x178] sm:$0xf]
    %v10477 = vld [vmem:[#allocation6 + $0x17c] sm:$0xf]
    %v10478 = vld [vmem:[#allocation6 + $0x180] sm:$0xf]
    %v10479 = vld [vmem:[#allocation6 + $0x184] sm:$0xf]
    %v10480 = vld [vmem:[#allocation6 + $0x188] sm:$0xf]
    %v10481 = vld [vmem:[#allocation6 + $0x18c] sm:$0xf]
    %v10482 = vld [vmem:[#allocation6 + $0x190] sm:$0xf]
    %v10483 = vld [vmem:[#allocation6 + $0x194] sm:$0xf]
    %v10484 = vld [vmem:[#allocation6 + $0x198] sm:$0xf]
    %v10485 = vld [vmem:[#allocation6 + $0x19c] sm:$0xf]
    %v10486 = vld [vmem:[#allocation6 + $0x1a0] sm:$0xf]
    %v10487 = vld [vmem:[#allocation6 + $0x1a4] sm:$0xf]
    %v10488 = vld [vmem:[#allocation6 + $0x1a8] sm:$0xf]
    %v10489 = vld [vmem:[#allocation6 + $0x1ac] sm:$0xf]
    %v10490 = vld [vmem:[#allocation6 + $0x1b0] sm:$0xf]
    %v10491 = vld [vmem:[#allocation6 + $0x1b4] sm:$0xf]
    %v10492 = vld [vmem:[#allocation6 + $0x1b8] sm:$0xf]
    %v10493 = vld [vmem:[#allocation6 + $0x1bc] sm:$0xf]
    %v10494 = vld [vmem:[#allocation6 + $0x1c0] sm:$0xf]
    %v10495 = vld [vmem:[#allocation6 + $0x1c4] sm:$0xf]
    %v10496 = vld [vmem:[#allocation6 + $0x1c8] sm:$0xf]
    %v10497 = vld [vmem:[#allocation6 + $0x1cc] sm:$0xf]
    %v10498 = vld [vmem:[#allocation6 + $0x1d0] sm:$0xf]
    %v10499 = vld [vmem:[#allocation6 + $0x1d4] sm:$0xf]
    %v10500 = vld [vmem:[#allocation6 + $0x1d8] sm:$0xf]
    %v10501 = vld [vmem:[#allocation6 + $0x1dc] sm:$0xf]
    %v10502 = vld [vmem:[#allocation6 + $0x1e0] sm:$0xf]
    %v10503 = vld [vmem:[#allocation6 + $0x1e4] sm:$0xf]
    %v10504 = vld [vmem:[#allocation6 + $0x1e8] sm:$0xf]
    %v10505 = vld [vmem:[#allocation6 + $0x1ec] sm:$0xf]
    %v10506 = vld [vmem:[#allocation6 + $0x1f0] sm:$0xf]
    %v10507 = vld [vmem:[#allocation6 + $0x1f4] sm:$0xf]
    %v10508 = vld [vmem:[#allocation6 + $0x1f8] sm:$0xf]
    %v10509 = vld [vmem:[#allocation6 + $0x1fc] sm:$0xf]
    %v10510 = vld [vmem:[%s13] sm:$0x1]
    %v10512 = vperm.slane %v10510, 0
    %v10642 = vunpack.c.l.b16 %v10382
    %v10643 = vunpack.c.l.b16 %v10383
    %v10644 = vunpack.c.l.b16 %v10384
    %v10645 = vunpack.c.l.b16 %v10385
    %v10646 = vunpack.c.l.b16 %v10386
    %v10647 = vunpack.c.l.b16 %v10387
    %v10648 = vunpack.c.l.b16 %v10388
    %v10649 = vunpack.c.l.b16 %v10389
    %v10650 = vunpack.c.l.b16 %v10390
    %v10651 = vunpack.c.l.b16 %v10391
    %v10652 = vunpack.c.l.b16 %v10392
    %v10653 = vunpack.c.l.b16 %v10393
    %v10654 = vunpack.c.l.b16 %v10394
    %v10655 = vunpack.c.l.b16 %v10395
    %v10656 = vunpack.c.l.b16 %v10396
    %v10657 = vunpack.c.l.b16 %v10397
    %v10658 = vunpack.c.l.b16 %v10398
    %v10659 = vunpack.c.l.b16 %v10399
    %v10660 = vunpack.c.l.b16 %v10400
    %v10661 = vunpack.c.l.b16 %v10401
    %v10662 = vunpack.c.l.b16 %v10402
    %v10663 = vunpack.c.l.b16 %v10403
    %v10664 = vunpack.c.l.b16 %v10404
    %v10665 = vunpack.c.l.b16 %v10405
    %v10666 = vunpack.c.l.b16 %v10406
    %v10667 = vunpack.c.l.b16 %v10407
    %v10668 = vunpack.c.l.b16 %v10408
    %v10669 = vunpack.c.l.b16 %v10409
    %v10670 = vunpack.c.l.b16 %v10410
    %v10671 = vunpack.c.l.b16 %v10411
    %v10672 = vunpack.c.l.b16 %v10412
    %v10673 = vunpack.c.l.b16 %v10413
    %v10674 = vunpack.c.l.b16 %v10414
    %v10675 = vunpack.c.l.b16 %v10415
    %v10676 = vunpack.c.l.b16 %v10416
    %v10677 = vunpack.c.l.b16 %v10417
    %v10678 = vunpack.c.l.b16 %v10418
    %v10679 = vunpack.c.l.b16 %v10419
    %v10680 = vunpack.c.l.b16 %v10420
    %v10681 = vunpack.c.l.b16 %v10421
    %v10682 = vunpack.c.l.b16 %v10422
    %v10683 = vunpack.c.l.b16 %v10423
    %v10684 = vunpack.c.l.b16 %v10424
    %v10685 = vunpack.c.l.b16 %v10425
    %v10686 = vunpack.c.l.b16 %v10426
    %v10687 = vunpack.c.l.b16 %v10427
    %v10688 = vunpack.c.l.b16 %v10428
    %v10689 = vunpack.c.l.b16 %v10429
    %v10690 = vunpack.c.l.b16 %v10430
    %v10691 = vunpack.c.l.b16 %v10431
    %v10692 = vunpack.c.l.b16 %v10432
    %v10693 = vunpack.c.l.b16 %v10433
    %v10694 = vunpack.c.l.b16 %v10434
    %v10695 = vunpack.c.l.b16 %v10435
    %v10696 = vunpack.c.l.b16 %v10436
    %v10697 = vunpack.c.l.b16 %v10437
    %v10698 = vunpack.c.l.b16 %v10438
    %v10699 = vunpack.c.l.b16 %v10439
    %v10700 = vunpack.c.l.b16 %v10440
    %v10701 = vunpack.c.l.b16 %v10441
    %v10702 = vunpack.c.l.b16 %v10442
    %v10703 = vunpack.c.l.b16 %v10443
    %v10704 = vunpack.c.l.b16 %v10444
    %v10705 = vunpack.c.l.b16 %v10445
    %v10706 = vunpack.c.l.b16 %v10446
    %v10707 = vunpack.c.l.b16 %v10447
    %v10708 = vunpack.c.l.b16 %v10448
    %v10709 = vunpack.c.l.b16 %v10449
    %v10710 = vunpack.c.l.b16 %v10450
    %v10711 = vunpack.c.l.b16 %v10451
    %v10712 = vunpack.c.l.b16 %v10452
    %v10713 = vunpack.c.l.b16 %v10453
    %v10714 = vunpack.c.l.b16 %v10454
    %v10715 = vunpack.c.l.b16 %v10455
    %v10716 = vunpack.c.l.b16 %v10456
    %v10717 = vunpack.c.l.b16 %v10457
    %v10718 = vunpack.c.l.b16 %v10458
    %v10719 = vunpack.c.l.b16 %v10459
    %v10720 = vunpack.c.l.b16 %v10460
    %v10721 = vunpack.c.l.b16 %v10461
    %v10722 = vunpack.c.l.b16 %v10462
    %v10723 = vunpack.c.l.b16 %v10463
    %v10724 = vunpack.c.l.b16 %v10464
    %v10725 = vunpack.c.l.b16 %v10465
    %v10726 = vunpack.c.l.b16 %v10466
    %v10727 = vunpack.c.l.b16 %v10467
    %v10728 = vunpack.c.l.b16 %v10468
    %v10729 = vunpack.c.l.b16 %v10469
    %v10730 = vunpack.c.l.b16 %v10470
    %v10731 = vunpack.c.l.b16 %v10471
    %v10732 = vunpack.c.l.b16 %v10472
    %v10733 = vunpack.c.l.b16 %v10473
    %v10734 = vunpack.c.l.b16 %v10474
    %v10735 = vunpack.c.l.b16 %v10475
    %v10736 = vunpack.c.l.b16 %v10476
    %v10737 = vunpack.c.l.b16 %v10477
    %v10738 = vunpack.c.l.b16 %v10478
    %v10739 = vunpack.c.l.b16 %v10479
    %v10740 = vunpack.c.l.b16 %v10480
    %v10741 = vunpack.c.l.b16 %v10481
    %v10742 = vunpack.c.l.b16 %v10482
    %v10743 = vunpack.c.l.b16 %v10483
    %v10744 = vunpack.c.l.b16 %v10484
    %v10745 = vunpack.c.l.b16 %v10485
    %v10746 = vunpack.c.l.b16 %v10486
    %v10747 = vunpack.c.l.b16 %v10487
    %v10748 = vunpack.c.l.b16 %v10488
    %v10749 = vunpack.c.l.b16 %v10489
    %v10750 = vunpack.c.l.b16 %v10490
    %v10751 = vunpack.c.l.b16 %v10491
    %v10752 = vunpack.c.l.b16 %v10492
    %v10753 = vunpack.c.l.b16 %v10493
    %v10754 = vunpack.c.l.b16 %v10494
    %v10755 = vunpack.c.l.b16 %v10495
    %v10756 = vunpack.c.l.b16 %v10496
    %v10757 = vunpack.c.l.b16 %v10497
    %v10758 = vunpack.c.l.b16 %v10498
    %v10759 = vunpack.c.l.b16 %v10499
    %v10760 = vunpack.c.l.b16 %v10500
    %v10761 = vunpack.c.l.b16 %v10501
    %v10762 = vunpack.c.l.b16 %v10502
    %v10763 = vunpack.c.l.b16 %v10503
    %v10764 = vunpack.c.l.b16 %v10504
    %v10765 = vunpack.c.l.b16 %v10505
    %v10766 = vunpack.c.l.b16 %v10506
    %v10767 = vunpack.c.l.b16 %v10507
    %v10768 = vunpack.c.l.b16 %v10508
    %v10769 = vunpack.c.l.b16 %v10509
    %v10770 = vpack.c.b16 %v10643, %v10642
    %v10771 = vpack.c.b16 %v10645, %v10644
    %v10772 = vpack.c.b16 %v10647, %v10646
    %v10773 = vpack.c.b16 %v10649, %v10648
    %v10774 = vpack.c.b16 %v10651, %v10650
    %v10775 = vpack.c.b16 %v10653, %v10652
    %v10776 = vpack.c.b16 %v10655, %v10654
    %v10777 = vpack.c.b16 %v10657, %v10656
    %v10778 = vpack.c.b16 %v10659, %v10658
    %v10779 = vpack.c.b16 %v10661, %v10660
    %v10780 = vpack.c.b16 %v10663, %v10662
    %v10781 = vpack.c.b16 %v10665, %v10664
    %v10782 = vpack.c.b16 %v10667, %v10666
    %v10783 = vpack.c.b16 %v10669, %v10668
    %v10784 = vpack.c.b16 %v10671, %v10670
    %v10785 = vpack.c.b16 %v10673, %v10672
    %v10786 = vpack.c.b16 %v10675, %v10674
    %v10787 = vpack.c.b16 %v10677, %v10676
    %v10788 = vpack.c.b16 %v10679, %v10678
    %v10789 = vpack.c.b16 %v10681, %v10680
    %v10790 = vpack.c.b16 %v10683, %v10682
    %v10791 = vpack.c.b16 %v10685, %v10684
    %v10792 = vpack.c.b16 %v10687, %v10686
    %v10793 = vpack.c.b16 %v10689, %v10688
    %v10794 = vpack.c.b16 %v10691, %v10690
    %v10795 = vpack.c.b16 %v10693, %v10692
    %v10796 = vpack.c.b16 %v10695, %v10694
    %v10797 = vpack.c.b16 %v10697, %v10696
    %v10798 = vpack.c.b16 %v10699, %v10698
    %v10799 = vpack.c.b16 %v10701, %v10700
    %v10800 = vpack.c.b16 %v10703, %v10702
    %v10801 = vpack.c.b16 %v10705, %v10704
    %v10802 = vpack.c.b16 %v10707, %v10706
    %v10803 = vpack.c.b16 %v10709, %v10708
    %v10804 = vpack.c.b16 %v10711, %v10710
    %v10805 = vpack.c.b16 %v10713, %v10712
    %v10806 = vpack.c.b16 %v10715, %v10714
    %v10807 = vpack.c.b16 %v10717, %v10716
    %v10808 = vpack.c.b16 %v10719, %v10718
    %v10809 = vpack.c.b16 %v10721, %v10720
    %v10810 = vpack.c.b16 %v10723, %v10722
    %v10811 = vpack.c.b16 %v10725, %v10724
    %v10812 = vpack.c.b16 %v10727, %v10726
    %v10813 = vpack.c.b16 %v10729, %v10728
    %v10814 = vpack.c.b16 %v10731, %v10730
    %v10815 = vpack.c.b16 %v10733, %v10732
    %v10816 = vpack.c.b16 %v10735, %v10734
    %v10817 = vpack.c.b16 %v10737, %v10736
    %v10818 = vpack.c.b16 %v10739, %v10738
    %v10819 = vpack.c.b16 %v10741, %v10740
    %v10820 = vpack.c.b16 %v10743, %v10742
    %v10821 = vpack.c.b16 %v10745, %v10744
    %v10822 = vpack.c.b16 %v10747, %v10746
    %v10823 = vpack.c.b16 %v10749, %v10748
    %v10824 = vpack.c.b16 %v10751, %v10750
    %v10825 = vpack.c.b16 %v10753, %v10752
    %v10826 = vpack.c.b16 %v10755, %v10754
    %v10827 = vpack.c.b16 %v10757, %v10756
    %v10828 = vpack.c.b16 %v10759, %v10758
    %v10829 = vpack.c.b16 %v10761, %v10760
    %v10830 = vpack.c.b16 %v10763, %v10762
    %v10831 = vpack.c.b16 %v10765, %v10764
    %v10832 = vpack.c.b16 %v10767, %v10766
    %v10833 = vpack.c.b16 %v10769, %v10768
    %10898 = vmatpush.bf16.msra.mxu0 %v10777
    %10899 = vmatpush.bf16.msra.mxu0 %v10776
    %10900 = vmatpush.bf16.msra.mxu0 %v10775
    %10901 = vmatpush.bf16.msra.mxu0 %v10774
    %10902 = vmatpush.bf16.msra.mxu0 %v10773
    %10903 = vmatpush.bf16.msra.mxu0 %v10772
    %10904 = vmatpush.bf16.msra.mxu0 %v10771
    %10905 = vmatpush.bf16.msra.mxu0 %v10770
    %10906 = vmatmul.bf16.gmra.mxu0 %v10254
    %v10907 = vpop.f32.mrf.mxu0
    %v10908 = vadd.f32 %v10512, %v10907
    %v10909 = vpop.f32.mrf.mxu0
    %v10910 = vadd.f32 %v10512, %v10909
    %10911 = vmatmul.bf16.gmra.mxu0 %v10262
    %v10912 = vpop.f32.mrf.mxu0
    %v10913 = vadd.f32 %v10512, %v10912
    %v10914 = vpop.f32.mrf.mxu0
    %v10915 = vadd.f32 %v10512, %v10914
    %10916 = vmatmul.bf16.gmra.mxu0 %v10270
    %v10917 = vpop.f32.mrf.mxu0
    %v10918 = vadd.f32 %v10512, %v10917
    %v10919 = vpop.f32.mrf.mxu0
    %v10920 = vadd.f32 %v10512, %v10919
    %10921 = vmatmul.bf16.gmra.mxu0 %v10278
    %v10922 = vpop.f32.mrf.mxu0
    %v10923 = vadd.f32 %v10512, %v10922
    %v10924 = vpop.f32.mrf.mxu0
    %v10925 = vadd.f32 %v10512, %v10924
    %10926 = vmatmul.bf16.gmra.mxu0 %v10286
    %v10927 = vpop.f32.mrf.mxu0
    %v10928 = vadd.f32 %v10512, %v10927
    %v10929 = vpop.f32.mrf.mxu0
    %v10930 = vadd.f32 %v10512, %v10929
    %10931 = vmatmul.bf16.gmra.mxu0 %v10294
    %v10932 = vpop.f32.mrf.mxu0
    %v10933 = vadd.f32 %v10512, %v10932
    %v10934 = vpop.f32.mrf.mxu0
    %v10935 = vadd.f32 %v10512, %v10934
    %10936 = vmatmul.bf16.gmra.mxu0 %v10302
    %v10937 = vpop.f32.mrf.mxu0
    %v10938 = vadd.f32 %v10512, %v10937
    %v10939 = vpop.f32.mrf.mxu0
    %v10940 = vadd.f32 %v10512, %v10939
    %10941 = vmatmul.bf16.gmra.mxu0 %v10310
    %v10942 = vpop.f32.mrf.mxu0
    %v10943 = vadd.f32 %v10512, %v10942
    %v10944 = vpop.f32.mrf.mxu0
    %v10945 = vadd.f32 %v10512, %v10944
    %10946 = vmatmul.bf16.gmra.mxu0 %v10318
    %v10947 = vpop.f32.mrf.mxu0
    %v10948 = vadd.f32 %v10512, %v10947
    %v10949 = vpop.f32.mrf.mxu0
    %v10950 = vadd.f32 %v10512, %v10949
    %10951 = vmatmul.bf16.gmra.mxu0 %v10326
    %v10952 = vpop.f32.mrf.mxu0
    %v10953 = vadd.f32 %v10512, %v10952
    %v10954 = vpop.f32.mrf.mxu0
    %v10955 = vadd.f32 %v10512, %v10954
    %10956 = vmatmul.bf16.gmra.mxu0 %v10334
    %v10957 = vpop.f32.mrf.mxu0
    %v10958 = vadd.f32 %v10512, %v10957
    %v10959 = vpop.f32.mrf.mxu0
    %v10960 = vadd.f32 %v10512, %v10959
    %10961 = vmatmul.bf16.gmra.mxu0 %v10342
    %v10962 = vpop.f32.mrf.mxu0
    %v10963 = vadd.f32 %v10512, %v10962
    %v10964 = vpop.f32.mrf.mxu0
    %v10965 = vadd.f32 %v10512, %v10964
    %10966 = vmatmul.bf16.gmra.mxu0 %v10350
    %v10967 = vpop.f32.mrf.mxu0
    %v10968 = vadd.f32 %v10512, %v10967
    %v10969 = vpop.f32.mrf.mxu0
    %v10970 = vadd.f32 %v10512, %v10969
    %10971 = vmatmul.bf16.gmra.mxu0 %v10358
    %v10972 = vpop.f32.mrf.mxu0
    %v10973 = vadd.f32 %v10512, %v10972
    %v10974 = vpop.f32.mrf.mxu0
    %v10975 = vadd.f32 %v10512, %v10974
    %10976 = vmatmul.bf16.gmra.mxu0 %v10366
    %v10977 = vpop.f32.mrf.mxu0
    %v10978 = vadd.f32 %v10512, %v10977
    %v10979 = vpop.f32.mrf.mxu0
    %v10980 = vadd.f32 %v10512, %v10979
    %10981 = vmatmul.bf16.gmra.mxu0 %v10374
    %v10982 = vpop.f32.mrf.mxu0
    %v10983 = vadd.f32 %v10512, %v10982
    %v10984 = vpop.f32.mrf.mxu0
    %v10985 = vadd.f32 %v10512, %v10984
    %10986 = vdwg.mxu0
    %10987 = vmatpush.bf16.msra.mxu0 %v10785
    %10988 = vmatpush.bf16.msra.mxu0 %v10784
    %10989 = vmatpush.bf16.msra.mxu0 %v10783
    %10990 = vmatpush.bf16.msra.mxu0 %v10782
    %10991 = vmatpush.bf16.msra.mxu0 %v10781
    %10992 = vmatpush.bf16.msra.mxu0 %v10780
    %10993 = vmatpush.bf16.msra.mxu0 %v10779
    %10994 = vmatpush.bf16.msra.mxu0 %v10778
    %10995 = vmatmul.bf16.gmra.mxu0 %v10255
    %v10996 = vpop.f32.mrf.mxu0
    %v10997 = vadd.f32 %v10908, %v10996
    %v10998 = vpop.f32.mrf.mxu0
    %v10999 = vadd.f32 %v10910, %v10998
    %11000 = vmatmul.bf16.gmra.mxu0 %v10263
    %v11001 = vpop.f32.mrf.mxu0
    %v11002 = vadd.f32 %v10913, %v11001
    %v11003 = vpop.f32.mrf.mxu0
    %v11004 = vadd.f32 %v10915, %v11003
    %11005 = vmatmul.bf16.gmra.mxu0 %v10271
    %v11006 = vpop.f32.mrf.mxu0
    %v11007 = vadd.f32 %v10918, %v11006
    %v11008 = vpop.f32.mrf.mxu0
    %v11009 = vadd.f32 %v10920, %v11008
    %11010 = vmatmul.bf16.gmra.mxu0 %v10279
    %v11011 = vpop.f32.mrf.mxu0
    %v11012 = vadd.f32 %v10923, %v11011
    %v11013 = vpop.f32.mrf.mxu0
    %v11014 = vadd.f32 %v10925, %v11013
    %11015 = vmatmul.bf16.gmra.mxu0 %v10287
    %v11016 = vpop.f32.mrf.mxu0
    %v11017 = vadd.f32 %v10928, %v11016
    %v11018 = vpop.f32.mrf.mxu0
    %v11019 = vadd.f32 %v10930, %v11018
    %11020 = vmatmul.bf16.gmra.mxu0 %v10295
    %v11021 = vpop.f32.mrf.mxu0
    %v11022 = vadd.f32 %v10933, %v11021
    %v11023 = vpop.f32.mrf.mxu0
    %v11024 = vadd.f32 %v10935, %v11023
    %11025 = vmatmul.bf16.gmra.mxu0 %v10303
    %v11026 = vpop.f32.mrf.mxu0
    %v11027 = vadd.f32 %v10938, %v11026
    %v11028 = vpop.f32.mrf.mxu0
    %v11029 = vadd.f32 %v10940, %v11028
    %11030 = vmatmul.bf16.gmra.mxu0 %v10311
    %v11031 = vpop.f32.mrf.mxu0
    %v11032 = vadd.f32 %v10943, %v11031
    %v11033 = vpop.f32.mrf.mxu0
    %v11034 = vadd.f32 %v10945, %v11033
    %11035 = vmatmul.bf16.gmra.mxu0 %v10319
    %v11036 = vpop.f32.mrf.mxu0
    %v11037 = vadd.f32 %v10948, %v11036
    %v11038 = vpop.f32.mrf.mxu0
    %v11039 = vadd.f32 %v10950, %v11038
    %11040 = vmatmul.bf16.gmra.mxu0 %v10327
    %v11041 = vpop.f32.mrf.mxu0
    %v11042 = vadd.f32 %v10953, %v11041
    %v11043 = vpop.f32.mrf.mxu0
    %v11044 = vadd.f32 %v10955, %v11043
    %11045 = vmatmul.bf16.gmra.mxu0 %v10335
    %v11046 = vpop.f32.mrf.mxu0
    %v11047 = vadd.f32 %v10958, %v11046
    %v11048 = vpop.f32.mrf.mxu0
    %v11049 = vadd.f32 %v10960, %v11048
    %11050 = vmatmul.bf16.gmra.mxu0 %v10343
    %v11051 = vpop.f32.mrf.mxu0
    %v11052 = vadd.f32 %v10963, %v11051
    %v11053 = vpop.f32.mrf.mxu0
    %v11054 = vadd.f32 %v10965, %v11053
    %11055 = vmatmul.bf16.gmra.mxu0 %v10351
    %v11056 = vpop.f32.mrf.mxu0
    %v11057 = vadd.f32 %v10968, %v11056
    %v11058 = vpop.f32.mrf.mxu0
    %v11059 = vadd.f32 %v10970, %v11058
    %11060 = vmatmul.bf16.gmra.mxu0 %v10359
    %v11061 = vpop.f32.mrf.mxu0
    %v11062 = vadd.f32 %v10973, %v11061
    %v11063 = vpop.f32.mrf.mxu0
    %v11064 = vadd.f32 %v10975, %v11063
    %11065 = vmatmul.bf16.gmra.mxu0 %v10367
    %v11066 = vpop.f32.mrf.mxu0
    %v11067 = vadd.f32 %v10978, %v11066
    %v11068 = vpop.f32.mrf.mxu0
    %v11069 = vadd.f32 %v10980, %v11068
    %11070 = vmatmul.bf16.gmra.mxu0 %v10375
    %v11071 = vpop.f32.mrf.mxu0
    %v11072 = vadd.f32 %v10983, %v11071
    %v11073 = vpop.f32.mrf.mxu0
    %v11074 = vadd.f32 %v10985, %v11073
    %11075 = vdwg.mxu0
    %11076 = vmatpush.bf16.msra.mxu0 %v10793
    %11077 = vmatpush.bf16.msra.mxu0 %v10792
    %11078 = vmatpush.bf16.msra.mxu0 %v10791
    %11079 = vmatpush.bf16.msra.mxu0 %v10790
    %11080 = vmatpush.bf16.msra.mxu0 %v10789
    %11081 = vmatpush.bf16.msra.mxu0 %v10788
    %11082 = vmatpush.bf16.msra.mxu0 %v10787
    %11083 = vmatpush.bf16.msra.mxu0 %v10786
    %11084 = vmatmul.bf16.gmra.mxu0 %v10256
    %v11085 = vpop.f32.mrf.mxu0
    %v11086 = vadd.f32 %v10997, %v11085
    %v11087 = vpop.f32.mrf.mxu0
    %v11088 = vadd.f32 %v10999, %v11087
    %11089 = vmatmul.bf16.gmra.mxu0 %v10264
    %v11090 = vpop.f32.mrf.mxu0
    %v11091 = vadd.f32 %v11002, %v11090
    %v11092 = vpop.f32.mrf.mxu0
    %v11093 = vadd.f32 %v11004, %v11092
    %11094 = vmatmul.bf16.gmra.mxu0 %v10272
    %v11095 = vpop.f32.mrf.mxu0
    %v11096 = vadd.f32 %v11007, %v11095
    %v11097 = vpop.f32.mrf.mxu0
    %v11098 = vadd.f32 %v11009, %v11097
    %11099 = vmatmul.bf16.gmra.mxu0 %v10280
    %v11100 = vpop.f32.mrf.mxu0
    %v11101 = vadd.f32 %v11012, %v11100
    %v11102 = vpop.f32.mrf.mxu0
    %v11103 = vadd.f32 %v11014, %v11102
    %11104 = vmatmul.bf16.gmra.mxu0 %v10288
    %v11105 = vpop.f32.mrf.mxu0
    %v11106 = vadd.f32 %v11017, %v11105
    %v11107 = vpop.f32.mrf.mxu0
    %v11108 = vadd.f32 %v11019, %v11107
    %11109 = vmatmul.bf16.gmra.mxu0 %v10296
    %v11110 = vpop.f32.mrf.mxu0
    %v11111 = vadd.f32 %v11022, %v11110
    %v11112 = vpop.f32.mrf.mxu0
    %v11113 = vadd.f32 %v11024, %v11112
    %11114 = vmatmul.bf16.gmra.mxu0 %v10304
    %v11115 = vpop.f32.mrf.mxu0
    %v11116 = vadd.f32 %v11027, %v11115
    %v11117 = vpop.f32.mrf.mxu0
    %v11118 = vadd.f32 %v11029, %v11117
    %11119 = vmatmul.bf16.gmra.mxu0 %v10312
    %v11120 = vpop.f32.mrf.mxu0
    %v11121 = vadd.f32 %v11032, %v11120
    %v11122 = vpop.f32.mrf.mxu0
    %v11123 = vadd.f32 %v11034, %v11122
    %11124 = vmatmul.bf16.gmra.mxu0 %v10320
    %v11125 = vpop.f32.mrf.mxu0
    %v11126 = vadd.f32 %v11037, %v11125
    %v11127 = vpop.f32.mrf.mxu0
    %v11128 = vadd.f32 %v11039, %v11127
    %11129 = vmatmul.bf16.gmra.mxu0 %v10328
    %v11130 = vpop.f32.mrf.mxu0
    %v11131 = vadd.f32 %v11042, %v11130
    %v11132 = vpop.f32.mrf.mxu0
    %v11133 = vadd.f32 %v11044, %v11132
    %11134 = vmatmul.bf16.gmra.mxu0 %v10336
    %v11135 = vpop.f32.mrf.mxu0
    %v11136 = vadd.f32 %v11047, %v11135
    %v11137 = vpop.f32.mrf.mxu0
    %v11138 = vadd.f32 %v11049, %v11137
    %11139 = vmatmul.bf16.gmra.mxu0 %v10344
    %v11140 = vpop.f32.mrf.mxu0
    %v11141 = vadd.f32 %v11052, %v11140
    %v11142 = vpop.f32.mrf.mxu0
    %v11143 = vadd.f32 %v11054, %v11142
    %11144 = vmatmul.bf16.gmra.mxu0 %v10352
    %v11145 = vpop.f32.mrf.mxu0
    %v11146 = vadd.f32 %v11057, %v11145
    %v11147 = vpop.f32.mrf.mxu0
    %v11148 = vadd.f32 %v11059, %v11147
    %11149 = vmatmul.bf16.gmra.mxu0 %v10360
    %v11150 = vpop.f32.mrf.mxu0
    %v11151 = vadd.f32 %v11062, %v11150
    %v11152 = vpop.f32.mrf.mxu0
    %v11153 = vadd.f32 %v11064, %v11152
    %11154 = vmatmul.bf16.gmra.mxu0 %v10368
    %v11155 = vpop.f32.mrf.mxu0
    %v11156 = vadd.f32 %v11067, %v11155
    %v11157 = vpop.f32.mrf.mxu0
    %v11158 = vadd.f32 %v11069, %v11157
    %11159 = vmatmul.bf16.gmra.mxu0 %v10376
    %v11160 = vpop.f32.mrf.mxu0
    %v11161 = vadd.f32 %v11072, %v11160
    %v11162 = vpop.f32.mrf.mxu0
    %v11163 = vadd.f32 %v11074, %v11162
    %11164 = vdwg.mxu0
    %11165 = vmatpush.bf16.msra.mxu0 %v10801
    %11166 = vmatpush.bf16.msra.mxu0 %v10800
    %11167 = vmatpush.bf16.msra.mxu0 %v10799
    %11168 = vmatpush.bf16.msra.mxu0 %v10798
    %11169 = vmatpush.bf16.msra.mxu0 %v10797
    %11170 = vmatpush.bf16.msra.mxu0 %v10796
    %11171 = vmatpush.bf16.msra.mxu0 %v10795
    %11172 = vmatpush.bf16.msra.mxu0 %v10794
    %11173 = vmatmul.bf16.gmra.mxu0 %v10257
    %v11174 = vpop.f32.mrf.mxu0
    %v11175 = vadd.f32 %v11086, %v11174
    %v11176 = vpop.f32.mrf.mxu0
    %v11177 = vadd.f32 %v11088, %v11176
    %11178 = vmatmul.bf16.gmra.mxu0 %v10265
    %v11179 = vpop.f32.mrf.mxu0
    %v11180 = vadd.f32 %v11091, %v11179
    %v11181 = vpop.f32.mrf.mxu0
    %v11182 = vadd.f32 %v11093, %v11181
    %11183 = vmatmul.bf16.gmra.mxu0 %v10273
    %v11184 = vpop.f32.mrf.mxu0
    %v11185 = vadd.f32 %v11096, %v11184
    %v11186 = vpop.f32.mrf.mxu0
    %v11187 = vadd.f32 %v11098, %v11186
    %11188 = vmatmul.bf16.gmra.mxu0 %v10281
    %v11189 = vpop.f32.mrf.mxu0
    %v11190 = vadd.f32 %v11101, %v11189
    %v11191 = vpop.f32.mrf.mxu0
    %v11192 = vadd.f32 %v11103, %v11191
    %11193 = vmatmul.bf16.gmra.mxu0 %v10289
    %v11194 = vpop.f32.mrf.mxu0
    %v11195 = vadd.f32 %v11106, %v11194
    %v11196 = vpop.f32.mrf.mxu0
    %v11197 = vadd.f32 %v11108, %v11196
    %11198 = vmatmul.bf16.gmra.mxu0 %v10297
    %v11199 = vpop.f32.mrf.mxu0
    %v11200 = vadd.f32 %v11111, %v11199
    %v11201 = vpop.f32.mrf.mxu0
    %v11202 = vadd.f32 %v11113, %v11201
    %11203 = vmatmul.bf16.gmra.mxu0 %v10305
    %v11204 = vpop.f32.mrf.mxu0
    %v11205 = vadd.f32 %v11116, %v11204
    %v11206 = vpop.f32.mrf.mxu0
    %v11207 = vadd.f32 %v11118, %v11206
    %11208 = vmatmul.bf16.gmra.mxu0 %v10313
    %v11209 = vpop.f32.mrf.mxu0
    %v11210 = vadd.f32 %v11121, %v11209
    %v11211 = vpop.f32.mrf.mxu0
    %v11212 = vadd.f32 %v11123, %v11211
    %11213 = vmatmul.bf16.gmra.mxu0 %v10321
    %v11214 = vpop.f32.mrf.mxu0
    %v11215 = vadd.f32 %v11126, %v11214
    %v11216 = vpop.f32.mrf.mxu0
    %v11217 = vadd.f32 %v11128, %v11216
    %11218 = vmatmul.bf16.gmra.mxu0 %v10329
    %v11219 = vpop.f32.mrf.mxu0
    %v11220 = vadd.f32 %v11131, %v11219
    %v11221 = vpop.f32.mrf.mxu0
    %v11222 = vadd.f32 %v11133, %v11221
    %11223 = vmatmul.bf16.gmra.mxu0 %v10337
    %v11224 = vpop.f32.mrf.mxu0
    %v11225 = vadd.f32 %v11136, %v11224
    %v11226 = vpop.f32.mrf.mxu0
    %v11227 = vadd.f32 %v11138, %v11226
    %11228 = vmatmul.bf16.gmra.mxu0 %v10345
    %v11229 = vpop.f32.mrf.mxu0
    %v11230 = vadd.f32 %v11141, %v11229
    %v11231 = vpop.f32.mrf.mxu0
    %v11232 = vadd.f32 %v11143, %v11231
    %11233 = vmatmul.bf16.gmra.mxu0 %v10353
    %v11234 = vpop.f32.mrf.mxu0
    %v11235 = vadd.f32 %v11146, %v11234
    %v11236 = vpop.f32.mrf.mxu0
    %v11237 = vadd.f32 %v11148, %v11236
    %11238 = vmatmul.bf16.gmra.mxu0 %v10361
    %v11239 = vpop.f32.mrf.mxu0
    %v11240 = vadd.f32 %v11151, %v11239
    %v11241 = vpop.f32.mrf.mxu0
    %v11242 = vadd.f32 %v11153, %v11241
    %11243 = vmatmul.bf16.gmra.mxu0 %v10369
    %v11244 = vpop.f32.mrf.mxu0
    %v11245 = vadd.f32 %v11156, %v11244
    %v11246 = vpop.f32.mrf.mxu0
    %v11247 = vadd.f32 %v11158, %v11246
    %11248 = vmatmul.bf16.gmra.mxu0 %v10377
    %v11249 = vpop.f32.mrf.mxu0
    %v11250 = vadd.f32 %v11161, %v11249
    %v11251 = vpop.f32.mrf.mxu0
    %v11252 = vadd.f32 %v11163, %v11251
    %11253 = vdwg.mxu0
    %11254 = vmatpush.bf16.msra.mxu0 %v10809
    %11255 = vmatpush.bf16.msra.mxu0 %v10808
    %11256 = vmatpush.bf16.msra.mxu0 %v10807
    %11257 = vmatpush.bf16.msra.mxu0 %v10806
    %11258 = vmatpush.bf16.msra.mxu0 %v10805
    %11259 = vmatpush.bf16.msra.mxu0 %v10804
    %11260 = vmatpush.bf16.msra.mxu0 %v10803
    %11261 = vmatpush.bf16.msra.mxu0 %v10802
    %11262 = vmatmul.bf16.gmra.mxu0 %v10258
    %v11263 = vpop.f32.mrf.mxu0
    %v11264 = vadd.f32 %v11175, %v11263
    %v11265 = vpop.f32.mrf.mxu0
    %v11266 = vadd.f32 %v11177, %v11265
    %11267 = vmatmul.bf16.gmra.mxu0 %v10266
    %v11268 = vpop.f32.mrf.mxu0
    %v11269 = vadd.f32 %v11180, %v11268
    %v11270 = vpop.f32.mrf.mxu0
    %v11271 = vadd.f32 %v11182, %v11270
    %11272 = vmatmul.bf16.gmra.mxu0 %v10274
    %v11273 = vpop.f32.mrf.mxu0
    %v11274 = vadd.f32 %v11185, %v11273
    %v11275 = vpop.f32.mrf.mxu0
    %v11276 = vadd.f32 %v11187, %v11275
    %11277 = vmatmul.bf16.gmra.mxu0 %v10282
    %v11278 = vpop.f32.mrf.mxu0
    %v11279 = vadd.f32 %v11190, %v11278
    %v11280 = vpop.f32.mrf.mxu0
    %v11281 = vadd.f32 %v11192, %v11280
    %11282 = vmatmul.bf16.gmra.mxu0 %v10290
    %v11283 = vpop.f32.mrf.mxu0
    %v11284 = vadd.f32 %v11195, %v11283
    %v11285 = vpop.f32.mrf.mxu0
    %v11286 = vadd.f32 %v11197, %v11285
    %11287 = vmatmul.bf16.gmra.mxu0 %v10298
    %v11288 = vpop.f32.mrf.mxu0
    %v11289 = vadd.f32 %v11200, %v11288
    %v11290 = vpop.f32.mrf.mxu0
    %v11291 = vadd.f32 %v11202, %v11290
    %11292 = vmatmul.bf16.gmra.mxu0 %v10306
    %v11293 = vpop.f32.mrf.mxu0
    %v11294 = vadd.f32 %v11205, %v11293
    %v11295 = vpop.f32.mrf.mxu0
    %v11296 = vadd.f32 %v11207, %v11295
    %11297 = vmatmul.bf16.gmra.mxu0 %v10314
    %v11298 = vpop.f32.mrf.mxu0
    %v11299 = vadd.f32 %v11210, %v11298
    %v11300 = vpop.f32.mrf.mxu0
    %v11301 = vadd.f32 %v11212, %v11300
    %11302 = vmatmul.bf16.gmra.mxu0 %v10322
    %v11303 = vpop.f32.mrf.mxu0
    %v11304 = vadd.f32 %v11215, %v11303
    %v11305 = vpop.f32.mrf.mxu0
    %v11306 = vadd.f32 %v11217, %v11305
    %11307 = vmatmul.bf16.gmra.mxu0 %v10330
    %v11308 = vpop.f32.mrf.mxu0
    %v11309 = vadd.f32 %v11220, %v11308
    %v11310 = vpop.f32.mrf.mxu0
    %v11311 = vadd.f32 %v11222, %v11310
    %11312 = vmatmul.bf16.gmra.mxu0 %v10338
    %v11313 = vpop.f32.mrf.mxu0
    %v11314 = vadd.f32 %v11225, %v11313
    %v11315 = vpop.f32.mrf.mxu0
    %v11316 = vadd.f32 %v11227, %v11315
    %11317 = vmatmul.bf16.gmra.mxu0 %v10346
    %v11318 = vpop.f32.mrf.mxu0
    %v11319 = vadd.f32 %v11230, %v11318
    %v11320 = vpop.f32.mrf.mxu0
    %v11321 = vadd.f32 %v11232, %v11320
    %11322 = vmatmul.bf16.gmra.mxu0 %v10354
    %v11323 = vpop.f32.mrf.mxu0
    %v11324 = vadd.f32 %v11235, %v11323
    %v11325 = vpop.f32.mrf.mxu0
    %v11326 = vadd.f32 %v11237, %v11325
    %11327 = vmatmul.bf16.gmra.mxu0 %v10362
    %v11328 = vpop.f32.mrf.mxu0
    %v11329 = vadd.f32 %v11240, %v11328
    %v11330 = vpop.f32.mrf.mxu0
    %v11331 = vadd.f32 %v11242, %v11330
    %11332 = vmatmul.bf16.gmra.mxu0 %v10370
    %v11333 = vpop.f32.mrf.mxu0
    %v11334 = vadd.f32 %v11245, %v11333
    %v11335 = vpop.f32.mrf.mxu0
    %v11336 = vadd.f32 %v11247, %v11335
    %11337 = vmatmul.bf16.gmra.mxu0 %v10378
    %v11338 = vpop.f32.mrf.mxu0
    %v11339 = vadd.f32 %v11250, %v11338
    %v11340 = vpop.f32.mrf.mxu0
    %v11341 = vadd.f32 %v11252, %v11340
    %11342 = vdwg.mxu0
    %11343 = vmatpush.bf16.msra.mxu0 %v10817
    %11344 = vmatpush.bf16.msra.mxu0 %v10816
    %11345 = vmatpush.bf16.msra.mxu0 %v10815
    %11346 = vmatpush.bf16.msra.mxu0 %v10814
    %11347 = vmatpush.bf16.msra.mxu0 %v10813
    %11348 = vmatpush.bf16.msra.mxu0 %v10812
    %11349 = vmatpush.bf16.msra.mxu0 %v10811
    %11350 = vmatpush.bf16.msra.mxu0 %v10810
    %11351 = vmatmul.bf16.gmra.mxu0 %v10259
    %v11352 = vpop.f32.mrf.mxu0
    %v11353 = vadd.f32 %v11264, %v11352
    %v11354 = vpop.f32.mrf.mxu0
    %v11355 = vadd.f32 %v11266, %v11354
    %11356 = vmatmul.bf16.gmra.mxu0 %v10267
    %v11357 = vpop.f32.mrf.mxu0
    %v11358 = vadd.f32 %v11269, %v11357
    %v11359 = vpop.f32.mrf.mxu0
    %v11360 = vadd.f32 %v11271, %v11359
    %11361 = vmatmul.bf16.gmra.mxu0 %v10275
    %v11362 = vpop.f32.mrf.mxu0
    %v11363 = vadd.f32 %v11274, %v11362
    %v11364 = vpop.f32.mrf.mxu0
    %v11365 = vadd.f32 %v11276, %v11364
    %11366 = vmatmul.bf16.gmra.mxu0 %v10283
    %v11367 = vpop.f32.mrf.mxu0
    %v11368 = vadd.f32 %v11279, %v11367
    %v11369 = vpop.f32.mrf.mxu0
    %v11370 = vadd.f32 %v11281, %v11369
    %11371 = vmatmul.bf16.gmra.mxu0 %v10291
    %v11372 = vpop.f32.mrf.mxu0
    %v11373 = vadd.f32 %v11284, %v11372
    %v11374 = vpop.f32.mrf.mxu0
    %v11375 = vadd.f32 %v11286, %v11374
    %11376 = vmatmul.bf16.gmra.mxu0 %v10299
    %v11377 = vpop.f32.mrf.mxu0
    %v11378 = vadd.f32 %v11289, %v11377
    %v11379 = vpop.f32.mrf.mxu0
    %v11380 = vadd.f32 %v11291, %v11379
    %11381 = vmatmul.bf16.gmra.mxu0 %v10307
    %v11382 = vpop.f32.mrf.mxu0
    %v11383 = vadd.f32 %v11294, %v11382
    %v11384 = vpop.f32.mrf.mxu0
    %v11385 = vadd.f32 %v11296, %v11384
    %11386 = vmatmul.bf16.gmra.mxu0 %v10315
    %v11387 = vpop.f32.mrf.mxu0
    %v11388 = vadd.f32 %v11299, %v11387
    %v11389 = vpop.f32.mrf.mxu0
    %v11390 = vadd.f32 %v11301, %v11389
    %11391 = vmatmul.bf16.gmra.mxu0 %v10323
    %v11392 = vpop.f32.mrf.mxu0
    %v11393 = vadd.f32 %v11304, %v11392
    %v11394 = vpop.f32.mrf.mxu0
    %v11395 = vadd.f32 %v11306, %v11394
    %11396 = vmatmul.bf16.gmra.mxu0 %v10331
    %v11397 = vpop.f32.mrf.mxu0
    %v11398 = vadd.f32 %v11309, %v11397
    %v11399 = vpop.f32.mrf.mxu0
    %v11400 = vadd.f32 %v11311, %v11399
    %11401 = vmatmul.bf16.gmra.mxu0 %v10339
    %v11402 = vpop.f32.mrf.mxu0
    %v11403 = vadd.f32 %v11314, %v11402
    %v11404 = vpop.f32.mrf.mxu0
    %v11405 = vadd.f32 %v11316, %v11404
    %11406 = vmatmul.bf16.gmra.mxu0 %v10347
    %v11407 = vpop.f32.mrf.mxu0
    %v11408 = vadd.f32 %v11319, %v11407
    %v11409 = vpop.f32.mrf.mxu0
    %v11410 = vadd.f32 %v11321, %v11409
    %11411 = vmatmul.bf16.gmra.mxu0 %v10355
    %v11412 = vpop.f32.mrf.mxu0
    %v11413 = vadd.f32 %v11324, %v11412
    %v11414 = vpop.f32.mrf.mxu0
    %v11415 = vadd.f32 %v11326, %v11414
    %11416 = vmatmul.bf16.gmra.mxu0 %v10363
    %v11417 = vpop.f32.mrf.mxu0
    %v11418 = vadd.f32 %v11329, %v11417
    %v11419 = vpop.f32.mrf.mxu0
    %v11420 = vadd.f32 %v11331, %v11419
    %11421 = vmatmul.bf16.gmra.mxu0 %v10371
    %v11422 = vpop.f32.mrf.mxu0
    %v11423 = vadd.f32 %v11334, %v11422
    %v11424 = vpop.f32.mrf.mxu0
    %v11425 = vadd.f32 %v11336, %v11424
    %11426 = vmatmul.bf16.gmra.mxu0 %v10379
    %v11427 = vpop.f32.mrf.mxu0
    %v11428 = vadd.f32 %v11339, %v11427
    %v11429 = vpop.f32.mrf.mxu0
    %v11430 = vadd.f32 %v11341, %v11429
    %11431 = vdwg.mxu0
    %11432 = vmatpush.bf16.msra.mxu0 %v10825
    %11433 = vmatpush.bf16.msra.mxu0 %v10824
    %11434 = vmatpush.bf16.msra.mxu0 %v10823
    %11435 = vmatpush.bf16.msra.mxu0 %v10822
    %11436 = vmatpush.bf16.msra.mxu0 %v10821
    %11437 = vmatpush.bf16.msra.mxu0 %v10820
    %11438 = vmatpush.bf16.msra.mxu0 %v10819
    %11439 = vmatpush.bf16.msra.mxu0 %v10818
    %11440 = vmatmul.bf16.gmra.mxu0 %v10260
    %v11441 = vpop.f32.mrf.mxu0
    %v11442 = vadd.f32 %v11353, %v11441
    %v11443 = vpop.f32.mrf.mxu0
    %v11444 = vadd.f32 %v11355, %v11443
    %11445 = vmatmul.bf16.gmra.mxu0 %v10268
    %v11446 = vpop.f32.mrf.mxu0
    %v11447 = vadd.f32 %v11358, %v11446
    %v11448 = vpop.f32.mrf.mxu0
    %v11449 = vadd.f32 %v11360, %v11448
    %11450 = vmatmul.bf16.gmra.mxu0 %v10276
    %v11451 = vpop.f32.mrf.mxu0
    %v11452 = vadd.f32 %v11363, %v11451
    %v11453 = vpop.f32.mrf.mxu0
    %v11454 = vadd.f32 %v11365, %v11453
    %11455 = vmatmul.bf16.gmra.mxu0 %v10284
    %v11456 = vpop.f32.mrf.mxu0
    %v11457 = vadd.f32 %v11368, %v11456
    %v11458 = vpop.f32.mrf.mxu0
    %v11459 = vadd.f32 %v11370, %v11458
    %11460 = vmatmul.bf16.gmra.mxu0 %v10292
    %v11461 = vpop.f32.mrf.mxu0
    %v11462 = vadd.f32 %v11373, %v11461
    %v11463 = vpop.f32.mrf.mxu0
    %v11464 = vadd.f32 %v11375, %v11463
    %11465 = vmatmul.bf16.gmra.mxu0 %v10300
    %v11466 = vpop.f32.mrf.mxu0
    %v11467 = vadd.f32 %v11378, %v11466
    %v11468 = vpop.f32.mrf.mxu0
    %v11469 = vadd.f32 %v11380, %v11468
    %11470 = vmatmul.bf16.gmra.mxu0 %v10308
    %v11471 = vpop.f32.mrf.mxu0
    %v11472 = vadd.f32 %v11383, %v11471
    %v11473 = vpop.f32.mrf.mxu0
    %v11474 = vadd.f32 %v11385, %v11473
    %11475 = vmatmul.bf16.gmra.mxu0 %v10316
    %v11476 = vpop.f32.mrf.mxu0
    %v11477 = vadd.f32 %v11388, %v11476
    %v11478 = vpop.f32.mrf.mxu0
    %v11479 = vadd.f32 %v11390, %v11478
    %11480 = vmatmul.bf16.gmra.mxu0 %v10324
    %v11481 = vpop.f32.mrf.mxu0
    %v11482 = vadd.f32 %v11393, %v11481
    %v11483 = vpop.f32.mrf.mxu0
    %v11484 = vadd.f32 %v11395, %v11483
    %11485 = vmatmul.bf16.gmra.mxu0 %v10332
    %v11486 = vpop.f32.mrf.mxu0
    %v11487 = vadd.f32 %v11398, %v11486
    %v11488 = vpop.f32.mrf.mxu0
    %v11489 = vadd.f32 %v11400, %v11488
    %11490 = vmatmul.bf16.gmra.mxu0 %v10340
    %v11491 = vpop.f32.mrf.mxu0
    %v11492 = vadd.f32 %v11403, %v11491
    %v11493 = vpop.f32.mrf.mxu0
    %v11494 = vadd.f32 %v11405, %v11493
    %11495 = vmatmul.bf16.gmra.mxu0 %v10348
    %v11496 = vpop.f32.mrf.mxu0
    %v11497 = vadd.f32 %v11408, %v11496
    %v11498 = vpop.f32.mrf.mxu0
    %v11499 = vadd.f32 %v11410, %v11498
    %11500 = vmatmul.bf16.gmra.mxu0 %v10356
    %v11501 = vpop.f32.mrf.mxu0
    %v11502 = vadd.f32 %v11413, %v11501
    %v11503 = vpop.f32.mrf.mxu0
    %v11504 = vadd.f32 %v11415, %v11503
    %11505 = vmatmul.bf16.gmra.mxu0 %v10364
    %v11506 = vpop.f32.mrf.mxu0
    %v11507 = vadd.f32 %v11418, %v11506
    %v11508 = vpop.f32.mrf.mxu0
    %v11509 = vadd.f32 %v11420, %v11508
    %11510 = vmatmul.bf16.gmra.mxu0 %v10372
    %v11511 = vpop.f32.mrf.mxu0
    %v11512 = vadd.f32 %v11423, %v11511
    %v11513 = vpop.f32.mrf.mxu0
    %v11514 = vadd.f32 %v11425, %v11513
    %11515 = vmatmul.bf16.gmra.mxu0 %v10380
    %v11516 = vpop.f32.mrf.mxu0
    %v11517 = vadd.f32 %v11428, %v11516
    %v11518 = vpop.f32.mrf.mxu0
    %v11519 = vadd.f32 %v11430, %v11518
    %11520 = vdwg.mxu0
    %11521 = vmatpush.bf16.msra.mxu0 %v10833
    %11522 = vmatpush.bf16.msra.mxu0 %v10832
    %11523 = vmatpush.bf16.msra.mxu0 %v10831
    %11524 = vmatpush.bf16.msra.mxu0 %v10830
    %11525 = vmatpush.bf16.msra.mxu0 %v10829
    %11526 = vmatpush.bf16.msra.mxu0 %v10828
    %11527 = vmatpush.bf16.msra.mxu0 %v10827
    %11528 = vmatpush.bf16.msra.mxu0 %v10826
    %11529 = vmatmul.bf16.gmra.mxu0 %v10261
    %v11530 = vpop.f32.mrf.mxu0
    %v11531 = vadd.f32 %v11442, %v11530
    %v11532 = vpop.f32.mrf.mxu0
    %v11533 = vadd.f32 %v11444, %v11532
    %11534 = vmatmul.bf16.gmra.mxu0 %v10269
    %v11535 = vpop.f32.mrf.mxu0
    %v11536 = vadd.f32 %v11447, %v11535
    %v11537 = vpop.f32.mrf.mxu0
    %v11538 = vadd.f32 %v11449, %v11537
    %11539 = vmatmul.bf16.gmra.mxu0 %v10277
    %v11540 = vpop.f32.mrf.mxu0
    %v11541 = vadd.f32 %v11452, %v11540
    %v11542 = vpop.f32.mrf.mxu0
    %v11543 = vadd.f32 %v11454, %v11542
    %11544 = vmatmul.bf16.gmra.mxu0 %v10285
    %v11545 = vpop.f32.mrf.mxu0
    %v11546 = vadd.f32 %v11457, %v11545
    %v11547 = vpop.f32.mrf.mxu0
    %v11548 = vadd.f32 %v11459, %v11547
    %11549 = vmatmul.bf16.gmra.mxu0 %v10293
    %v11550 = vpop.f32.mrf.mxu0
    %v11551 = vadd.f32 %v11462, %v11550
    %v11552 = vpop.f32.mrf.mxu0
    %v11553 = vadd.f32 %v11464, %v11552
    %11554 = vmatmul.bf16.gmra.mxu0 %v10301
    %v11555 = vpop.f32.mrf.mxu0
    %v11556 = vadd.f32 %v11467, %v11555
    %v11557 = vpop.f32.mrf.mxu0
    %v11558 = vadd.f32 %v11469, %v11557
    %11559 = vmatmul.bf16.gmra.mxu0 %v10309
    %v11560 = vpop.f32.mrf.mxu0
    %v11561 = vadd.f32 %v11472, %v11560
    %v11562 = vpop.f32.mrf.mxu0
    %v11563 = vadd.f32 %v11474, %v11562
    %11564 = vmatmul.bf16.gmra.mxu0 %v10317
    %v11565 = vpop.f32.mrf.mxu0
    %v11566 = vadd.f32 %v11477, %v11565
    %v11567 = vpop.f32.mrf.mxu0
    %v11568 = vadd.f32 %v11479, %v11567
    %11569 = vmatmul.bf16.gmra.mxu0 %v10325
    %v11570 = vpop.f32.mrf.mxu0
    %v11571 = vadd.f32 %v11482, %v11570
    %v11572 = vpop.f32.mrf.mxu0
    %v11573 = vadd.f32 %v11484, %v11572
    %11574 = vmatmul.bf16.gmra.mxu0 %v10333
    %v11575 = vpop.f32.mrf.mxu0
    %v11576 = vadd.f32 %v11487, %v11575
    %v11577 = vpop.f32.mrf.mxu0
    %v11578 = vadd.f32 %v11489, %v11577
    %11579 = vmatmul.bf16.gmra.mxu0 %v10341
    %v11580 = vpop.f32.mrf.mxu0
    %v11581 = vadd.f32 %v11492, %v11580
    %v11582 = vpop.f32.mrf.mxu0
    %v11583 = vadd.f32 %v11494, %v11582
    %11584 = vmatmul.bf16.gmra.mxu0 %v10349
    %v11585 = vpop.f32.mrf.mxu0
    %v11586 = vadd.f32 %v11497, %v11585
    %v11587 = vpop.f32.mrf.mxu0
    %v11588 = vadd.f32 %v11499, %v11587
    %11589 = vmatmul.bf16.gmra.mxu0 %v10357
    %v11590 = vpop.f32.mrf.mxu0
    %v11591 = vadd.f32 %v11502, %v11590
    %v11592 = vpop.f32.mrf.mxu0
    %v11593 = vadd.f32 %v11504, %v11592
    %11594 = vmatmul.bf16.gmra.mxu0 %v10365
    %v11595 = vpop.f32.mrf.mxu0
    %v11596 = vadd.f32 %v11507, %v11595
    %v11597 = vpop.f32.mrf.mxu0
    %v11598 = vadd.f32 %v11509, %v11597
    %11599 = vmatmul.bf16.gmra.mxu0 %v10373
    %v11600 = vpop.f32.mrf.mxu0
    %v11601 = vadd.f32 %v11512, %v11600
    %v11602 = vpop.f32.mrf.mxu0
    %v11603 = vadd.f32 %v11514, %v11602
    %11604 = vmatmul.bf16.gmra.mxu0 %v10381
    %v11605 = vpop.f32.mrf.mxu0
    %v11606 = vadd.f32 %v11517, %v11605
    %v11607 = vpop.f32.mrf.mxu0
    %v11608 = vadd.f32 %v11519, %v11607
    %11609 = vdwg.mxu0
    %11610 = vst [vmem:[%s14] sm:$0xff] %v11531
    %11611 = vst [vmem:[%s14 + $0x8] sm:$0xff] %v11533
    %11612 = vst [vmem:[%s14 + $0x10] sm:$0xff] %v11536
    %11613 = vst [vmem:[%s14 + $0x18] sm:$0xff] %v11538
    %11614 = vst [vmem:[%s14 + $0x20] sm:$0xff] %v11541
    %11615 = vst [vmem:[%s14 + $0x28] sm:$0xff] %v11543
    %11616 = vst [vmem:[%s14 + $0x30] sm:$0xff] %v11546
    %11617 = vst [vmem:[%s14 + $0x38] sm:$0xff] %v11548
    %11618 = vst [vmem:[%s14 + $0x40] sm:$0xff] %v11551
    %11619 = vst [vmem:[%s14 + $0x48] sm:$0xff] %v11553
    %11620 = vst [vmem:[%s14 + $0x50] sm:$0xff] %v11556
    %11621 = vst [vmem:[%s14 + $0x58] sm:$0xff] %v11558
    %11622 = vst [vmem:[%s14 + $0x60] sm:$0xff] %v11561
    %11623 = vst [vmem:[%s14 + $0x68] sm:$0xff] %v11563
    %11624 = vst [vmem:[%s14 + $0x70] sm:$0xff] %v11566
    %11625 = vst [vmem:[%s14 + $0x78] sm:$0xff] %v11568
    %11626 = vst [vmem:[%s14 + $0x80] sm:$0xff] %v11571
    %11627 = vst [vmem:[%s14 + $0x88] sm:$0xff] %v11573
    %11628 = vst [vmem:[%s14 + $0x90] sm:$0xff] %v11576
    %11629 = vst [vmem:[%s14 + $0x98] sm:$0xff] %v11578
    %11630 = vst [vmem:[%s14 + $0xa0] sm:$0xff] %v11581
    %11631 = vst [vmem:[%s14 + $0xa8] sm:$0xff] %v11583
    %11632 = vst [vmem:[%s14 + $0xb0] sm:$0xff] %v11586
    %11633 = vst [vmem:[%s14 + $0xb8] sm:$0xff] %v11588
    %11634 = vst [vmem:[%s14 + $0xc0] sm:$0xff] %v11591
    %11635 = vst [vmem:[%s14 + $0xc8] sm:$0xff] %v11593
    %11636 = vst [vmem:[%s14 + $0xd0] sm:$0xff] %v11596
    %11637 = vst [vmem:[%s14 + $0xd8] sm:$0xff] %v11598
    %11638 = vst [vmem:[%s14 + $0xe0] sm:$0xff] %v11601
    %11639 = vst [vmem:[%s14 + $0xe8] sm:$0xff] %v11603
    %11640 = vst [vmem:[%s14 + $0xf0] sm:$0xff] %v11606
    %11641 = vst [vmem:[%s14 + $0xf8] sm:$0xff] %v11608
    // Predicated region
    $region70: #{generator_forward.1} parent=1 // pred_check
      _
    $region71: #{generator_forward.1} parent=1 // pred_check_branch
      %11643 = sbr.rel (0) target = $region73
    $region72: #{generator_forward.1} parent=1 // pred_region
      _
    $region73: #{generator_forward.1} parent=1 // pred_fallthru
      _
    // Predicated region
    $region74: #{generator_forward.1} parent=1 // pred_check
      _
    $region75: #{generator_forward.1} parent=1 // pred_check_branch
      %11645 = sbr.rel (0) target = $region77
    $region76: #{generator_forward.1} parent=1 // pred_region
      _
    $region77: #{generator_forward.1} parent=1 // pred_fallthru
      _
    %11646 = vsyncpa [#allocation3], 1
    %11647 = vsyncpa [#allocation5], 1

</llo_original>
